<compile_context>
chip_gen: v5e
topology: v5e:2x2
jax: 0.10.0
libtpu: 0.0.40
codegen_flags: <defaults>
</compile_context>

<pallas_src>
import functools

import jax
import jax.numpy as jnp
from jax.experimental import pallas as pl
from jax.experimental.pallas import tpu as pltpu

NUM_FILTERS = 100   # num_filters in JeffBERT.__init__
NUM_LABELS = 2      # self.num_labels
EMB_SIZE = 768      # self.embedding_size
_PAD = 8            # zero guard rows around the batched slab (8-sublane tile)


def _round_up(x, m):
    return (x + m - 1) // m * m


# ------------------------------- kernel ------------------------------------
def dpcnn_kernel(x_ref, wr_ref, br_ref, wc_ref, bc_ref, wf_ref, bf_ref,
                 out_ref, slab_ref):
    """One grid step == one tile of Bt examples; the whole DPCNN runs in VMEM.

    Slab layout (persistent f32 scratch, FP=128 lanes):
      rows [0, _PAD)            : zero guard (top padding1 row for example 0)
      rows [_PAD, _PAD + n)     : current core, batch-major, per-example
                                  stride s (live h rows, dead rows masked to 0)
      rows [_PAD + n0, N0)      : zero guard (kept finite for tail-window reads)
    """
    f32 = jnp.float32
    bf16 = jnp.bfloat16
    bt, seq_l, emb_e = x_ref.shape
    fp = slab_ref.shape[1]
    n0 = bt * seq_l
    N0 = n0 + 2 * _PAD

    # Zero the guard rows (top feeds live rows, bottom keeps tail reads finite).
    zg = jnp.zeros((_PAD, fp), f32)
    slab_ref[0:_PAD, :] = zg
    slab_ref[_PAD + n0:N0, :] = zg

    def row_mask(n, stride, h):
        # 1.0 on rows holding live data ((row % stride) < h), 0.0 elsewhere
        r = jax.lax.broadcasted_iota(jnp.int32, (n, 1), 0)
        return ((r % stride) < h).astype(f32)

    def same_conv(n):
        # nn.ZeroPad2d((0,0,1,1)) -> ReLU -> nn.Conv2d(F, F, (3,1)) as three
        # accumulated bf16 matmuls over shifted slab windows (f32 MXU acc).
        a = jax.nn.relu(slab_ref[0:n + 2 * _PAD, :])          # (n+16, FP) f32
        acc = bc_ref[...]                                     # (1, FP)
        for k in range(3):
            lhs = a[_PAD - 1 + k:_PAD - 1 + k + n, :].astype(bf16)
            acc = acc + jnp.dot(lhs, wc_ref[k], preferred_element_type=f32)
        return acc

    # ---- conv_region : nn.Conv2d(1, F, (3, E)), valid conv over L ----------
    x2d = x_ref[...].reshape(n0, emb_e)                       # bf16 (Bt*L, E)
    xz = jnp.concatenate([x2d, jnp.zeros((_PAD, emb_e), bf16)], axis=0)
    acc = br_ref[...]
    for k in range(3):
        acc = acc + jnp.dot(xz[k:k + n0, :], wr_ref[k],
                            preferred_element_type=f32)

    h, s, n = seq_l - 2, seq_l, n0
    m = row_mask(n, s, h)
    slab_ref[_PAD:_PAD + n, :] = acc * m                      # masked core

    # ---- padding1 -> relu -> conv, twice ------------------------------------
    slab_ref[_PAD:_PAD + n, :] = same_conv(n) * m
    slab_ref[_PAD:_PAD + n, :] = same_conv(n) * m

    # ---- while x.size()[2] >= 2: x = self._block(x)  (static trip count) ----
    while h >= 2:
        h2, s2, n2 = h // 2, s // 2, n // 2
        m2 = row_mask(n2, s2, h2)
        # padding2 + MaxPool2d((3,1), stride=2): three stride-2 sublane loads
        v0 = slab_ref[pl.ds(_PAD + 0, n2, stride=2), :]
        v1 = slab_ref[pl.ds(_PAD + 1, n2, stride=2), :]
        v2 = slab_ref[pl.ds(_PAD + 2, n2, stride=2), :]
        px = jnp.maximum(jnp.maximum(v0, v1), v2) * m2        # pooled + masked
        slab_ref[_PAD:_PAD + n2, :] = px
        # two (padding1, relu, conv) then the residual add
        slab_ref[_PAD:_PAD + n2, :] = same_conv(n2) * m2
        c = same_conv(n2) * m2
        slab_ref[_PAD:_PAD + n2, :] = c + px
        h, s, n = h2, s2, n2

    # ---- x.squeeze(); self.fc(x): strided gather of each example's row ------
    feat = slab_ref[pl.ds(_PAD, bt, stride=s), :]             # (Bt, FP) f32
    out_ref[...] = jnp.dot(feat, wf_ref[...],
                           preferred_element_type=f32) + bf_ref[...]


# ------------------------------ wrapper ------------------------------------
def jeffbert_forward(emb0, target, wr, br, wc, bc, wf, bf, *, block_batch=16):
    """Pallas implementation of JeffBERT.forward (post-MLM part).

    emb0 : (B, L, S, E) f32 -- stacked MLM token embeddings (new_emb0)
    wr   : (3, E, F)  <- conv_region.weight (F,1,3,E)     br : (F,)
    wc   : (3, F, F)  <- conv.weight        (F,F,3,1)     bc : (F,)
    wf   : (F, 2)     <- fc.weight.T                      bf : (2,)
    Returns [logits (B, 2), target] like the torch module returns [x, labels].
    """
    B, L, S, E = emb0.shape
    F = wr.shape[-1]
    FP = _round_up(F, 128)

    # The fixed-stride slab schedule needs an even per-example stride at every
    # pooling step of the DPCNN (supported maxlen: L = 2^k or 3*2^k, L >= 3).
    assert L >= 3
    h, s = L - 2, L
    while h >= 2:
        assert s % 2 == 0, f"maxlen={L} not supported by the slab schedule"
        h, s = h // 2, s // 2

    # torch.mean(new_emb0, -2) hoisted out of the kernel: one fused XLA pass
    # over HBM, kernel input shrinks S-fold.  bf16 shipping is lossless here
    # because the first conv rounds its LHS to bf16 anyway.
    xmean = jnp.mean(emb0, axis=2).astype(jnp.bfloat16)       # (B, L, E)

    Bt = max(8, min(_round_up(block_batch, 8), _round_up(B, 8)))
    Bp = _round_up(B, Bt)
    if Bp != B:
        xmean = jnp.pad(xmean, ((0, Bp - B), (0, 0), (0, 0)))

    # --- weight preprocessing (once, outside the kernel) --------------------
    #  * pad the filter axis 100 -> 128 (padded lanes stay exactly zero
    #    through relu / pool / residual, so results are unchanged)
    #  * keep the 3 kernel taps separate; each conv is 3 accumulated matmuls
    #  * bf16 matmul operands; accumulation stays f32 in the MXU
    wr_t = (jnp.zeros((3, E, FP), jnp.float32).at[:, :, :F].set(wr)
            .astype(jnp.bfloat16))
    wc_t = (jnp.zeros((3, FP, FP), jnp.float32).at[:, :F, :F].set(wc)
            .astype(jnp.bfloat16))
    br_p = jnp.zeros((1, FP), jnp.float32).at[0, :F].set(br)
    bc_p = jnp.zeros((1, FP), jnp.float32).at[0, :F].set(bc)
    wf_p = jnp.zeros((FP, FP), jnp.float32).at[:F, :NUM_LABELS].set(wf)
    bf_p = jnp.zeros((1, FP), jnp.float32).at[0, :NUM_LABELS].set(bf)

    out = pl.pallas_call(
        dpcnn_kernel,
        out_shape=jax.ShapeDtypeStruct((Bp, FP), jnp.float32),
        grid_spec=pltpu.PrefetchScalarGridSpec(
            num_scalar_prefetch=0,
            grid=(Bp // Bt,),
            in_specs=[
                pl.BlockSpec((Bt, L, E), lambda t: (t, 0, 0)),     # mean(emb0)
                pl.BlockSpec((3, E, FP), lambda t: (0, 0, 0)),     # conv_region w
                pl.BlockSpec((1, FP), lambda t: (0, 0)),           # conv_region b
                pl.BlockSpec((3, FP, FP), lambda t: (0, 0, 0)),    # conv w
                pl.BlockSpec((1, FP), lambda t: (0, 0)),           # conv b
                pl.BlockSpec((FP, FP), lambda t: (0, 0)),          # fc w (padded)
                pl.BlockSpec((1, FP), lambda t: (0, 0)),           # fc b (padded)
            ],
            out_specs=pl.BlockSpec((Bt, FP), lambda t: (t, 0)),    # lane-dense
            scratch_shapes=[pltpu.VMEM((Bt * L + 2 * _PAD, FP), jnp.float32)],
        ),
        compiler_params=pltpu.CompilerParams(
            dimension_semantics=("parallel",),    # batch tiles are independent
            vmem_limit_bytes=32 * 1024 * 1024,    # fits v5e/v6e/v7x budgets
        ),
    )(xmean, wr_t, br_p, wc_t, bc_p, wf_p, bf_p)

    return [out[:B, :NUM_LABELS], target]


# ------------------------- plain-JAX reference -----------------------------
def jeffbert_reference(emb0, wr, br, wc, bc, wf, bf):
    """Reference mirroring the kernel's bf16-operand / f32-accum matmuls."""
    bf16 = jnp.bfloat16
    f32 = jnp.float32
    x = jnp.mean(emb0, axis=2)                                 # (B, L, E) f32

    def conv3(x, w, b):
        hout = x.shape[1] - 2
        out = jnp.zeros((x.shape[0], hout, w.shape[2]), f32) + b.reshape(1, 1, -1)
        for kh in range(3):
            out = out + jnp.einsum(
                "bhc,cf->bhf",
                x[:, kh:kh + hout, :].astype(bf16).astype(f32),
                w[kh].astype(bf16).astype(f32),
                precision=jax.lax.Precision.HIGHEST)
        return out

    def pad_h(x, t, btm):
        return jnp.pad(x, ((0, 0), (t, btm), (0, 0)))

    def maxpool(x):                      # padding2 + MaxPool2d((3,1), stride 2)
        xp = pad_h(x, 0, 1)
        hp = (xp.shape[1] - 3) // 2 + 1
        return jnp.stack([jnp.max(xp[:, 2 * i:2 * i + 3, :], axis=1)
                          for i in range(hp)], axis=1)

    x = conv3(x, wr, br)
    x = conv3(jax.nn.relu(pad_h(x, 1, 1)), wc, bc)
    x = conv3(jax.nn.relu(pad_h(x, 1, 1)), wc, bc)
    while x.shape[1] >= 2:
        px = maxpool(x)
        y = conv3(jax.nn.relu(pad_h(px, 1, 1)), wc, bc)
        y = conv3(jax.nn.relu(pad_h(y, 1, 1)), wc, bc)
        x = y + px
    feat = x[:, 0, :]
    return feat @ wf + bf.reshape(1, -1)


# ------------------------------- main ---------------------------------------
if __name__ == "__main__":
    B, L, S, E, F = 64, 16, 8, EMB_SIZE, NUM_FILTERS

    key = jax.random.PRNGKey(0)
    k = jax.random.split(key, 8)

    # Deterministic synthetic parameters (torch layouts pre-transposed):
    #   conv_region.weight (F,1,3,E) -> wr (3,E,F); conv.weight (F,F,3,1) -> wc (3,Fin,Fout)
    #   fc.weight (2,F) -> wf (F,2)
    wr = (jax.random.normal(k[0], (3, E, F)) * 0.02).astype(jnp.float32)
    br = (jax.random.normal(k[1], (F,)) * 0.02).astype(jnp.float32)
    wc = (jax.random.normal(k[2], (3, F, F)) * 0.05).astype(jnp.float32)
    bc = (jax.random.normal(k[3], (F,)) * 0.05).astype(jnp.float32)
    wf = (jax.random.normal(k[4], (F, NUM_LABELS)) * 0.1).astype(jnp.float32)
    bf = (jax.random.normal(k[5], (NUM_LABELS,)) * 0.1).astype(jnp.float32)

    # Synthetic stand-in for the frozen MLM token embeddings new_emb0.
    emb0 = jax.random.normal(k[6], (B, L, S, E), dtype=jnp.float32)
    target = (jnp.arange(B, dtype=jnp.int32) % NUM_LABELS)

    # B=64, Bt=16 -> grid=4 (even, >=4): both v7x TensorCores get >=2 steps.
    fwd = jax.jit(functools.partial(jeffbert_forward, block_batch=16))
    logits, labels = fwd(emb0, target, wr, br, wc, bc, wf, bf)
    logits = jax.block_until_ready(logits)

    ref = jeffbert_reference(emb0, wr, br, wc, bc, wf, bf)
    assert logits.shape == (B, NUM_LABELS)
    assert jnp.allclose(logits, ref, rtol=2e-2, atol=2e-2), (logits, ref)

    print("KERNEL_OK")
</pallas_src>

<mosaic_0001>
module attributes {stable_mosaic.version = 11 : i64} {
  func.func @dpcnn_kernel(%arg0: i32, %arg1: memref<16x16x768xbf16, #tpu.memory_space<vmem>>, %arg2: memref<3x768x128xbf16, #tpu.memory_space<vmem>>, %arg3: memref<1x128xf32, #tpu.memory_space<vmem>>, %arg4: memref<3x128x128xbf16, #tpu.memory_space<vmem>>, %arg5: memref<1x128xf32, #tpu.memory_space<vmem>>, %arg6: memref<128x128xf32, #tpu.memory_space<vmem>>, %arg7: memref<1x128xf32, #tpu.memory_space<vmem>>, %arg8: memref<16x128xf32, #tpu.memory_space<vmem>>, %arg9: memref<272x128xf32, #tpu.memory_space<vmem>>) attributes {dimension_semantics = [#tpu.dimension_semantics<parallel>], iteration_bounds = array<i64: 4>, scalar_prefetch = 0 : i64, scratch_operands = 1 : i64, tpu.core_type = #tpu.core_type<tc>, window_params = [{transform_indices = @transform_0, window_bounds = array<i64: 16, 16, 768>}, {pipeline_mode = #tpu.pipeline_mode<synchronous>, transform_indices = @transform_1, window_bounds = array<i64: 3, 768, 128>}, {pipeline_mode = #tpu.pipeline_mode<synchronous>, transform_indices = @transform_2, window_bounds = array<i64: 1, 128>}, {pipeline_mode = #tpu.pipeline_mode<synchronous>, transform_indices = @transform_3, window_bounds = array<i64: 3, 128, 128>}, {pipeline_mode = #tpu.pipeline_mode<synchronous>, transform_indices = @transform_4, window_bounds = array<i64: 1, 128>}, {pipeline_mode = #tpu.pipeline_mode<synchronous>, transform_indices = @transform_5, window_bounds = array<i64: 128, 128>}, {pipeline_mode = #tpu.pipeline_mode<synchronous>, transform_indices = @transform_6, window_bounds = array<i64: 1, 128>}, {transform_indices = @transform_7, window_bounds = array<i64: 16, 128>}]} {
    %cst = arith.constant 0.000000e+00 : f32
    %0 = vector.broadcast %cst : f32 to vector<8x128xf32>
    %c0 = arith.constant 0 : index
    %c0_0 = arith.constant 0 : index
    %1 = vector.load %arg9[%c0, %c0_0] : memref<272x128xf32, #tpu.memory_space<vmem>>, vector<8x128xf32>
    tpu.vector_store %arg9[%c0, %c0_0], %0 {strides = array<i32>} : memref<272x128xf32, #tpu.memory_space<vmem>>, vector<8x128xf32>,
    %c264 = arith.constant 264 : index
    %c0_1 = arith.constant 0 : index
    %2 = vector.load %arg9[%c264, %c0_1] : memref<272x128xf32, #tpu.memory_space<vmem>>, vector<8x128xf32>
    tpu.vector_store %arg9[%c264, %c0_1], %0 {strides = array<i32>} : memref<272x128xf32, #tpu.memory_space<vmem>>, vector<8x128xf32>,
    %c0_2 = arith.constant 0 : index
    %c0_3 = arith.constant 0 : index
    %c0_4 = arith.constant 0 : index
    %3 = vector.load %arg1[%c0_2, %c0_3, %c0_4] : memref<16x16x768xbf16, #tpu.memory_space<vmem>>, vector<16x16x768xbf16>
    %4 = vector.shape_cast %3 : vector<16x16x768xbf16> to vector<256x768xbf16>
    %cst_5 = arith.constant 0.000000e+00 : bf16
    %5 = vector.broadcast %cst_5 : bf16 to vector<8x768xbf16>
    %6 = tpu.concatenate %4, %5 in 0 : vector<256x768xbf16>, vector<8x768xbf16> -> vector<264x768xbf16>
    %c0_6 = arith.constant 0 : index
    %c0_7 = arith.constant 0 : index
    %7 = vector.load %arg3[%c0_6, %c0_7] : memref<1x128xf32, #tpu.memory_space<vmem>>, vector<1x128xf32>
    %8 = vector.extract_strided_slice %6 {offsets = [0, 0], sizes = [256, 768], strides = [1, 1]} : vector<264x768xbf16> to vector<256x768xbf16>
    %c0_8 = arith.constant 0 : index
    %c0_9 = arith.constant 0 : index
    %c0_10 = arith.constant 0 : index
    %9 = vector.load %arg2[%c0_8, %c0_9, %c0_10] : memref<3x768x128xbf16, #tpu.memory_space<vmem>>, vector<1x768x128xbf16>
    %10 = vector.shape_cast %9 : vector<1x768x128xbf16> to vector<768x128xbf16>
    %cst_11 = arith.constant dense<0.000000e+00> : vector<256x128xf32>
    %11 = tpu.matmul %8, %10, %cst_11 {dimension_numbers = #tpu.dot_dimension_numbers<[1], [0], [0], [1], [0, 0, 1, 1], [], []>} : vector<256x768xbf16>, vector<768x128xbf16>, vector<256x128xf32> -> vector<256x128xf32>
    %12 = vector.broadcast %7 : vector<1x128xf32> to vector<256x128xf32>
    %13 = arith.addf %12, %11 : vector<256x128xf32>
    %14 = vector.extract_strided_slice %6 {offsets = [1, 0], sizes = [256, 768], strides = [1, 1]} : vector<264x768xbf16> to vector<256x768xbf16>
    %c1 = arith.constant 1 : index
    %c0_12 = arith.constant 0 : index
    %c0_13 = arith.constant 0 : index
    %15 = vector.load %arg2[%c1, %c0_12, %c0_13] : memref<3x768x128xbf16, #tpu.memory_space<vmem>>, vector<1x768x128xbf16>
    %16 = vector.shape_cast %15 : vector<1x768x128xbf16> to vector<768x128xbf16>
    %cst_14 = arith.constant dense<0.000000e+00> : vector<256x128xf32>
    %17 = tpu.matmul %14, %16, %cst_14 {dimension_numbers = #tpu.dot_dimension_numbers<[1], [0], [0], [1], [0, 0, 1, 1], [], []>} : vector<256x768xbf16>, vector<768x128xbf16>, vector<256x128xf32> -> vector<256x128xf32>
    %18 = arith.addf %13, %17 : vector<256x128xf32>
    %19 = vector.extract_strided_slice %6 {offsets = [2, 0], sizes = [256, 768], strides = [1, 1]} : vector<264x768xbf16> to vector<256x768xbf16>
    %c2 = arith.constant 2 : index
    %c0_15 = arith.constant 0 : index
    %c0_16 = arith.constant 0 : index
    %20 = vector.load %arg2[%c2, %c0_15, %c0_16] : memref<3x768x128xbf16, #tpu.memory_space<vmem>>, vector<1x768x128xbf16>
    %21 = vector.shape_cast %20 : vector<1x768x128xbf16> to vector<768x128xbf16>
    %cst_17 = arith.constant dense<0.000000e+00> : vector<256x128xf32>
    %22 = tpu.matmul %19, %21, %cst_17 {dimension_numbers = #tpu.dot_dimension_numbers<[1], [0], [0], [1], [0, 0, 1, 1], [], []>} : vector<256x768xbf16>, vector<768x128xbf16>, vector<256x128xf32> -> vector<256x128xf32>
    %23 = arith.addf %18, %22 : vector<256x128xf32>
    %24 = tpu.iota {dimensions = array<i32: 0>} : vector<256x1xi32>
    %c16_i32 = arith.constant 16 : i32
    %c0_i32 = arith.constant 0 : i32
    %25 = arith.cmpi eq, %c16_i32, %c0_i32 : i32
    %c1_i32 = arith.constant 1 : i32
    %26 = arith.select %25, %c1_i32, %c16_i32 : i32
    %27 = vector.broadcast %26 : i32 to vector<256x1xi32>
    %28 = arith.remsi %24, %27 : vector<256x1xi32>
    %c0_i32_18 = arith.constant 0 : i32
    %29 = vector.broadcast %c0_i32_18 : i32 to vector<256x1xi32>
    %30 = arith.cmpi ne, %28, %29 : vector<256x1xi32>
    %c0_i32_19 = arith.constant 0 : i32
    %31 = vector.broadcast %c0_i32_19 : i32 to vector<256x1xi32>
    %32 = arith.cmpi slt, %28, %31 : vector<256x1xi32>
    %c0_i32_20 = arith.constant 0 : i32
    %33 = arith.cmpi slt, %26, %c0_i32_20 : i32
    %34 = vector.broadcast %33 : i1 to vector<256x1xi1>
    %35 = vector.broadcast %34 : vector<256x1xi1> to vector<256x1xi1>
    %36 = arith.xori %32, %35 : vector<256x1xi1>
    %37 = arith.andi %36, %30 : vector<256x1xi1>
    %38 = vector.broadcast %26 : i32 to vector<256x1xi32>
    %39 = arith.addi %28, %38 : vector<256x1xi32>
    %40 = arith.select %37, %39, %28 : vector<256x1xi1>, vector<256x1xi32>
    %c14_i32 = arith.constant 14 : i32
    %41 = vector.broadcast %c14_i32 : i32 to vector<256x1xi32>
    %42 = arith.cmpi slt, %40, %41 : vector<256x1xi32>
    %43 = arith.extui %42 : vector<256x1xi1> to vector<256x1xi32>
    %44 = arith.sitofp %43 : vector<256x1xi32> to vector<256x1xf32>
    %45 = vector.broadcast %44 : vector<256x1xf32> to vector<256x128xf32>
    %46 = arith.mulf %23, %45 : vector<256x128xf32>
    %c8 = arith.constant 8 : index
    %c0_21 = arith.constant 0 : index
    %47 = vector.load %arg9[%c8, %c0_21] : memref<272x128xf32, #tpu.memory_space<vmem>>, vector<256x128xf32>
    tpu.vector_store %arg9[%c8, %c0_21], %46 {strides = array<i32>} : memref<272x128xf32, #tpu.memory_space<vmem>>, vector<256x128xf32>,
    %c0_22 = arith.constant 0 : index
    %c0_23 = arith.constant 0 : index
    %48 = vector.load %arg9[%c0_22, %c0_23] : memref<272x128xf32, #tpu.memory_space<vmem>>, vector<272x128xf32>
    %cst_24 = arith.constant 0.000000e+00 : f32
    %49 = vector.broadcast %cst_24 : f32 to vector<272x128xf32>
    %50 = arith.maximumf %48, %49 : vector<272x128xf32>
    %c0_25 = arith.constant 0 : index
    %c0_26 = arith.constant 0 : index
    %51 = vector.load %arg5[%c0_25, %c0_26] : memref<1x128xf32, #tpu.memory_space<vmem>>, vector<1x128xf32>
    %52 = vector.extract_strided_slice %50 {offsets = [7, 0], sizes = [256, 128], strides = [1, 1]} : vector<272x128xf32> to vector<256x128xf32>
    %53 = arith.truncf %52 : vector<256x128xf32> to vector<256x128xbf16>
    %c0_27 = arith.constant 0 : index
    %c0_28 = arith.constant 0 : index
    %c0_29 = arith.constant 0 : index
    %54 = vector.load %arg4[%c0_27, %c0_28, %c0_29] : memref<3x128x128xbf16, #tpu.memory_space<vmem>>, vector<1x128x128xbf16>
    %55 = vector.shape_cast %54 : vector<1x128x128xbf16> to vector<128x128xbf16>
    %cst_30 = arith.constant dense<0.000000e+00> : vector<256x128xf32>
    %56 = tpu.matmul %53, %55, %cst_30 {dimension_numbers = #tpu.dot_dimension_numbers<[1], [0], [0], [1], [0, 0, 1, 1], [], []>} : vector<256x128xbf16>, vector<128x128xbf16>, vector<256x128xf32> -> vector<256x128xf32>
    %57 = vector.broadcast %51 : vector<1x128xf32> to vector<256x128xf32>
    %58 = arith.addf %57, %56 : vector<256x128xf32>
    %59 = vector.extract_strided_slice %50 {offsets = [8, 0], sizes = [256, 128], strides = [1, 1]} : vector<272x128xf32> to vector<256x128xf32>
    %60 = arith.truncf %59 : vector<256x128xf32> to vector<256x128xbf16>
    %c1_31 = arith.constant 1 : index
    %c0_32 = arith.constant 0 : index
    %c0_33 = arith.constant 0 : index
    %61 = vector.load %arg4[%c1_31, %c0_32, %c0_33] : memref<3x128x128xbf16, #tpu.memory_space<vmem>>, vector<1x128x128xbf16>
    %62 = vector.shape_cast %61 : vector<1x128x128xbf16> to vector<128x128xbf16>
    %cst_34 = arith.constant dense<0.000000e+00> : vector<256x128xf32>
    %63 = tpu.matmul %60, %62, %cst_34 {dimension_numbers = #tpu.dot_dimension_numbers<[1], [0], [0], [1], [0, 0, 1, 1], [], []>} : vector<256x128xbf16>, vector<128x128xbf16>, vector<256x128xf32> -> vector<256x128xf32>
    %64 = arith.addf %58, %63 : vector<256x128xf32>
    %65 = vector.extract_strided_slice %50 {offsets = [9, 0], sizes = [256, 128], strides = [1, 1]} : vector<272x128xf32> to vector<256x128xf32>
    %66 = arith.truncf %65 : vector<256x128xf32> to vector<256x128xbf16>
    %c2_35 = arith.constant 2 : index
    %c0_36 = arith.constant 0 : index
    %c0_37 = arith.constant 0 : index
    %67 = vector.load %arg4[%c2_35, %c0_36, %c0_37] : memref<3x128x128xbf16, #tpu.memory_space<vmem>>, vector<1x128x128xbf16>
    %68 = vector.shape_cast %67 : vector<1x128x128xbf16> to vector<128x128xbf16>
    %cst_38 = arith.constant dense<0.000000e+00> : vector<256x128xf32>
    %69 = tpu.matmul %66, %68, %cst_38 {dimension_numbers = #tpu.dot_dimension_numbers<[1], [0], [0], [1], [0, 0, 1, 1], [], []>} : vector<256x128xbf16>, vector<128x128xbf16>, vector<256x128xf32> -> vector<256x128xf32>
    %70 = arith.addf %64, %69 : vector<256x128xf32>
    %71 = vector.broadcast %44 : vector<256x1xf32> to vector<256x128xf32>
    %72 = arith.mulf %70, %71 : vector<256x128xf32>
    %c8_39 = arith.constant 8 : index
    %c0_40 = arith.constant 0 : index
    %73 = vector.load %arg9[%c8_39, %c0_40] : memref<272x128xf32, #tpu.memory_space<vmem>>, vector<256x128xf32>
    tpu.vector_store %arg9[%c8_39, %c0_40], %72 {strides = array<i32>} : memref<272x128xf32, #tpu.memory_space<vmem>>, vector<256x128xf32>,
    %c0_41 = arith.constant 0 : index
    %c0_42 = arith.constant 0 : index
    %74 = vector.load %arg9[%c0_41, %c0_42] : memref<272x128xf32, #tpu.memory_space<vmem>>, vector<272x128xf32>
    %cst_43 = arith.constant 0.000000e+00 : f32
    %75 = vector.broadcast %cst_43 : f32 to vector<272x128xf32>
    %76 = arith.maximumf %74, %75 : vector<272x128xf32>
    %c0_44 = arith.constant 0 : index
    %c0_45 = arith.constant 0 : index
    %77 = vector.load %arg5[%c0_44, %c0_45] : memref<1x128xf32, #tpu.memory_space<vmem>>, vector<1x128xf32>
    %78 = vector.extract_strided_slice %76 {offsets = [7, 0], sizes = [256, 128], strides = [1, 1]} : vector<272x128xf32> to vector<256x128xf32>
    %79 = arith.truncf %78 : vector<256x128xf32> to vector<256x128xbf16>
    %c0_46 = arith.constant 0 : index
    %c0_47 = arith.constant 0 : index
    %c0_48 = arith.constant 0 : index
    %80 = vector.load %arg4[%c0_46, %c0_47, %c0_48] : memref<3x128x128xbf16, #tpu.memory_space<vmem>>, vector<1x128x128xbf16>
    %81 = vector.shape_cast %80 : vector<1x128x128xbf16> to vector<128x128xbf16>
    %cst_49 = arith.constant dense<0.000000e+00> : vector<256x128xf32>
    %82 = tpu.matmul %79, %81, %cst_49 {dimension_numbers = #tpu.dot_dimension_numbers<[1], [0], [0], [1], [0, 0, 1, 1], [], []>} : vector<256x128xbf16>, vector<128x128xbf16>, vector<256x128xf32> -> vector<256x128xf32>
    %83 = vector.broadcast %77 : vector<1x128xf32> to vector<256x128xf32>
    %84 = arith.addf %83, %82 : vector<256x128xf32>
    %85 = vector.extract_strided_slice %76 {offsets = [8, 0], sizes = [256, 128], strides = [1, 1]} : vector<272x128xf32> to vector<256x128xf32>
    %86 = arith.truncf %85 : vector<256x128xf32> to vector<256x128xbf16>
    %c1_50 = arith.constant 1 : index
    %c0_51 = arith.constant 0 : index
    %c0_52 = arith.constant 0 : index
    %87 = vector.load %arg4[%c1_50, %c0_51, %c0_52] : memref<3x128x128xbf16, #tpu.memory_space<vmem>>, vector<1x128x128xbf16>
    %88 = vector.shape_cast %87 : vector<1x128x128xbf16> to vector<128x128xbf16>
    %cst_53 = arith.constant dense<0.000000e+00> : vector<256x128xf32>
    %89 = tpu.matmul %86, %88, %cst_53 {dimension_numbers = #tpu.dot_dimension_numbers<[1], [0], [0], [1], [0, 0, 1, 1], [], []>} : vector<256x128xbf16>, vector<128x128xbf16>, vector<256x128xf32> -> vector<256x128xf32>
    %90 = arith.addf %84, %89 : vector<256x128xf32>
    %91 = vector.extract_strided_slice %76 {offsets = [9, 0], sizes = [256, 128], strides = [1, 1]} : vector<272x128xf32> to vector<256x128xf32>
    %92 = arith.truncf %91 : vector<256x128xf32> to vector<256x128xbf16>
    %c2_54 = arith.constant 2 : index
    %c0_55 = arith.constant 0 : index
    %c0_56 = arith.constant 0 : index
    %93 = vector.load %arg4[%c2_54, %c0_55, %c0_56] : memref<3x128x128xbf16, #tpu.memory_space<vmem>>, vector<1x128x128xbf16>
    %94 = vector.shape_cast %93 : vector<1x128x128xbf16> to vector<128x128xbf16>
    %cst_57 = arith.constant dense<0.000000e+00> : vector<256x128xf32>
    %95 = tpu.matmul %92, %94, %cst_57 {dimension_numbers = #tpu.dot_dimension_numbers<[1], [0], [0], [1], [0, 0, 1, 1], [], []>} : vector<256x128xbf16>, vector<128x128xbf16>, vector<256x128xf32> -> vector<256x128xf32>
    %96 = arith.addf %90, %95 : vector<256x128xf32>
    %97 = vector.broadcast %44 : vector<256x1xf32> to vector<256x128xf32>
    %98 = arith.mulf %96, %97 : vector<256x128xf32>
    %c8_58 = arith.constant 8 : index
    %c0_59 = arith.constant 0 : index
    %99 = vector.load %arg9[%c8_58, %c0_59] : memref<272x128xf32, #tpu.memory_space<vmem>>, vector<256x128xf32>
    tpu.vector_store %arg9[%c8_58, %c0_59], %98 {strides = array<i32>} : memref<272x128xf32, #tpu.memory_space<vmem>>, vector<256x128xf32>,
    %100 = tpu.iota {dimensions = array<i32: 0>} : vector<128x1xi32>
    %c8_i32 = arith.constant 8 : i32
    %c0_i32_60 = arith.constant 0 : i32
    %101 = arith.cmpi eq, %c8_i32, %c0_i32_60 : i32
    %c1_i32_61 = arith.constant 1 : i32
    %102 = arith.select %101, %c1_i32_61, %c8_i32 : i32
    %103 = vector.broadcast %102 : i32 to vector<128x1xi32>
    %104 = arith.remsi %100, %103 : vector<128x1xi32>
    %c0_i32_62 = arith.constant 0 : i32
    %105 = vector.broadcast %c0_i32_62 : i32 to vector<128x1xi32>
    %106 = arith.cmpi ne, %104, %105 : vector<128x1xi32>
    %c0_i32_63 = arith.constant 0 : i32
    %107 = vector.broadcast %c0_i32_63 : i32 to vector<128x1xi32>
    %108 = arith.cmpi slt, %104, %107 : vector<128x1xi32>
    %c0_i32_64 = arith.constant 0 : i32
    %109 = arith.cmpi slt, %102, %c0_i32_64 : i32
    %110 = vector.broadcast %109 : i1 to vector<128x1xi1>
    %111 = vector.broadcast %110 : vector<128x1xi1> to vector<128x1xi1>
    %112 = arith.xori %108, %111 : vector<128x1xi1>
    %113 = arith.andi %112, %106 : vector<128x1xi1>
    %114 = vector.broadcast %102 : i32 to vector<128x1xi32>
    %115 = arith.addi %104, %114 : vector<128x1xi32>
    %116 = arith.select %113, %115, %104 : vector<128x1xi1>, vector<128x1xi32>
    %c7_i32 = arith.constant 7 : i32
    %117 = vector.broadcast %c7_i32 : i32 to vector<128x1xi32>
    %118 = arith.cmpi slt, %116, %117 : vector<128x1xi32>
    %119 = arith.extui %118 : vector<128x1xi1> to vector<128x1xi32>
    %120 = arith.sitofp %119 : vector<128x1xi32> to vector<128x1xf32>
    %c8_65 = arith.constant 8 : index
    %c0_66 = arith.constant 0 : index
    %121 = tpu.strided_load %arg9[%c8_65, %c0_66] {strides = array<i32: 2, 1>} : memref<272x128xf32, #tpu.memory_space<vmem>>, vector<128x128xf32>
    %c9 = arith.constant 9 : index
    %c0_67 = arith.constant 0 : index
    %122 = tpu.strided_load %arg9[%c9, %c0_67] {strides = array<i32: 2, 1>} : memref<272x128xf32, #tpu.memory_space<vmem>>, vector<128x128xf32>
    %c10 = arith.constant 10 : index
    %c0_68 = arith.constant 0 : index
    %123 = tpu.strided_load %arg9[%c10, %c0_68] {strides = array<i32: 2, 1>} : memref<272x128xf32, #tpu.memory_space<vmem>>, vector<128x128xf32>
    %124 = arith.maximumf %121, %122 : vector<128x128xf32>
    %125 = arith.maximumf %124, %123 : vector<128x128xf32>
    %126 = vector.broadcast %120 : vector<128x1xf32> to vector<128x128xf32>
    %127 = arith.mulf %125, %126 : vector<128x128xf32>
    %c8_69 = arith.constant 8 : index
    %c0_70 = arith.constant 0 : index
    %128 = vector.load %arg9[%c8_69, %c0_70] : memref<272x128xf32, #tpu.memory_space<vmem>>, vector<128x128xf32>
    tpu.vector_store %arg9[%c8_69, %c0_70], %127 {strides = array<i32>} : memref<272x128xf32, #tpu.memory_space<vmem>>, vector<128x128xf32>,
    %c0_71 = arith.constant 0 : index
    %c0_72 = arith.constant 0 : index
    %129 = vector.load %arg9[%c0_71, %c0_72] : memref<272x128xf32, #tpu.memory_space<vmem>>, vector<144x128xf32>
    %cst_73 = arith.constant 0.000000e+00 : f32
    %130 = vector.broadcast %cst_73 : f32 to vector<144x128xf32>
    %131 = arith.maximumf %129, %130 : vector<144x128xf32>
    %c0_74 = arith.constant 0 : index
    %c0_75 = arith.constant 0 : index
    %132 = vector.load %arg5[%c0_74, %c0_75] : memref<1x128xf32, #tpu.memory_space<vmem>>, vector<1x128xf32>
    %133 = vector.extract_strided_slice %131 {offsets = [7, 0], sizes = [128, 128], strides = [1, 1]} : vector<144x128xf32> to vector<128x128xf32>
    %134 = arith.truncf %133 : vector<128x128xf32> to vector<128x128xbf16>
    %c0_76 = arith.constant 0 : index
    %c0_77 = arith.constant 0 : index
    %c0_78 = arith.constant 0 : index
    %135 = vector.load %arg4[%c0_76, %c0_77, %c0_78] : memref<3x128x128xbf16, #tpu.memory_space<vmem>>, vector<1x128x128xbf16>
    %136 = vector.shape_cast %135 : vector<1x128x128xbf16> to vector<128x128xbf16>
    %cst_79 = arith.constant dense<0.000000e+00> : vector<128x128xf32>
    %137 = tpu.matmul %134, %136, %cst_79 {dimension_numbers = #tpu.dot_dimension_numbers<[1], [0], [0], [1], [0, 0, 1, 1], [], []>} : vector<128x128xbf16>, vector<128x128xbf16>, vector<128x128xf32> -> vector<128x128xf32>
    %138 = vector.broadcast %132 : vector<1x128xf32> to vector<128x128xf32>
    %139 = arith.addf %138, %137 : vector<128x128xf32>
    %140 = vector.extract_strided_slice %131 {offsets = [8, 0], sizes = [128, 128], strides = [1, 1]} : vector<144x128xf32> to vector<128x128xf32>
    %141 = arith.truncf %140 : vector<128x128xf32> to vector<128x128xbf16>
    %c1_80 = arith.constant 1 : index
    %c0_81 = arith.constant 0 : index
    %c0_82 = arith.constant 0 : index
    %142 = vector.load %arg4[%c1_80, %c0_81, %c0_82] : memref<3x128x128xbf16, #tpu.memory_space<vmem>>, vector<1x128x128xbf16>
    %143 = vector.shape_cast %142 : vector<1x128x128xbf16> to vector<128x128xbf16>
    %cst_83 = arith.constant dense<0.000000e+00> : vector<128x128xf32>
    %144 = tpu.matmul %141, %143, %cst_83 {dimension_numbers = #tpu.dot_dimension_numbers<[1], [0], [0], [1], [0, 0, 1, 1], [], []>} : vector<128x128xbf16>, vector<128x128xbf16>, vector<128x128xf32> -> vector<128x128xf32>
    %145 = arith.addf %139, %144 : vector<128x128xf32>
    %146 = vector.extract_strided_slice %131 {offsets = [9, 0], sizes = [128, 128], strides = [1, 1]} : vector<144x128xf32> to vector<128x128xf32>
    %147 = arith.truncf %146 : vector<128x128xf32> to vector<128x128xbf16>
    %c2_84 = arith.constant 2 : index
    %c0_85 = arith.constant 0 : index
    %c0_86 = arith.constant 0 : index
    %148 = vector.load %arg4[%c2_84, %c0_85, %c0_86] : memref<3x128x128xbf16, #tpu.memory_space<vmem>>, vector<1x128x128xbf16>
    %149 = vector.shape_cast %148 : vector<1x128x128xbf16> to vector<128x128xbf16>
    %cst_87 = arith.constant dense<0.000000e+00> : vector<128x128xf32>
    %150 = tpu.matmul %147, %149, %cst_87 {dimension_numbers = #tpu.dot_dimension_numbers<[1], [0], [0], [1], [0, 0, 1, 1], [], []>} : vector<128x128xbf16>, vector<128x128xbf16>, vector<128x128xf32> -> vector<128x128xf32>
    %151 = arith.addf %145, %150 : vector<128x128xf32>
    %152 = vector.broadcast %120 : vector<128x1xf32> to vector<128x128xf32>
    %153 = arith.mulf %151, %152 : vector<128x128xf32>
    %c8_88 = arith.constant 8 : index
    %c0_89 = arith.constant 0 : index
    %154 = vector.load %arg9[%c8_88, %c0_89] : memref<272x128xf32, #tpu.memory_space<vmem>>, vector<128x128xf32>
    tpu.vector_store %arg9[%c8_88, %c0_89], %153 {strides = array<i32>} : memref<272x128xf32, #tpu.memory_space<vmem>>, vector<128x128xf32>,
    %c0_90 = arith.constant 0 : index
    %c0_91 = arith.constant 0 : index
    %155 = vector.load %arg9[%c0_90, %c0_91] : memref<272x128xf32, #tpu.memory_space<vmem>>, vector<144x128xf32>
    %cst_92 = arith.constant 0.000000e+00 : f32
    %156 = vector.broadcast %cst_92 : f32 to vector<144x128xf32>
    %157 = arith.maximumf %155, %156 : vector<144x128xf32>
    %c0_93 = arith.constant 0 : index
    %c0_94 = arith.constant 0 : index
    %158 = vector.load %arg5[%c0_93, %c0_94] : memref<1x128xf32, #tpu.memory_space<vmem>>, vector<1x128xf32>
    %159 = vector.extract_strided_slice %157 {offsets = [7, 0], sizes = [128, 128], strides = [1, 1]} : vector<144x128xf32> to vector<128x128xf32>
    %160 = arith.truncf %159 : vector<128x128xf32> to vector<128x128xbf16>
    %c0_95 = arith.constant 0 : index
    %c0_96 = arith.constant 0 : index
    %c0_97 = arith.constant 0 : index
    %161 = vector.load %arg4[%c0_95, %c0_96, %c0_97] : memref<3x128x128xbf16, #tpu.memory_space<vmem>>, vector<1x128x128xbf16>
    %162 = vector.shape_cast %161 : vector<1x128x128xbf16> to vector<128x128xbf16>
    %cst_98 = arith.constant dense<0.000000e+00> : vector<128x128xf32>
    %163 = tpu.matmul %160, %162, %cst_98 {dimension_numbers = #tpu.dot_dimension_numbers<[1], [0], [0], [1], [0, 0, 1, 1], [], []>} : vector<128x128xbf16>, vector<128x128xbf16>, vector<128x128xf32> -> vector<128x128xf32>
    %164 = vector.broadcast %158 : vector<1x128xf32> to vector<128x128xf32>
    %165 = arith.addf %164, %163 : vector<128x128xf32>
    %166 = vector.extract_strided_slice %157 {offsets = [8, 0], sizes = [128, 128], strides = [1, 1]} : vector<144x128xf32> to vector<128x128xf32>
    %167 = arith.truncf %166 : vector<128x128xf32> to vector<128x128xbf16>
    %c1_99 = arith.constant 1 : index
    %c0_100 = arith.constant 0 : index
    %c0_101 = arith.constant 0 : index
    %168 = vector.load %arg4[%c1_99, %c0_100, %c0_101] : memref<3x128x128xbf16, #tpu.memory_space<vmem>>, vector<1x128x128xbf16>
    %169 = vector.shape_cast %168 : vector<1x128x128xbf16> to vector<128x128xbf16>
    %cst_102 = arith.constant dense<0.000000e+00> : vector<128x128xf32>
    %170 = tpu.matmul %167, %169, %cst_102 {dimension_numbers = #tpu.dot_dimension_numbers<[1], [0], [0], [1], [0, 0, 1, 1], [], []>} : vector<128x128xbf16>, vector<128x128xbf16>, vector<128x128xf32> -> vector<128x128xf32>
    %171 = arith.addf %165, %170 : vector<128x128xf32>
    %172 = vector.extract_strided_slice %157 {offsets = [9, 0], sizes = [128, 128], strides = [1, 1]} : vector<144x128xf32> to vector<128x128xf32>
    %173 = arith.truncf %172 : vector<128x128xf32> to vector<128x128xbf16>
    %c2_103 = arith.constant 2 : index
    %c0_104 = arith.constant 0 : index
    %c0_105 = arith.constant 0 : index
    %174 = vector.load %arg4[%c2_103, %c0_104, %c0_105] : memref<3x128x128xbf16, #tpu.memory_space<vmem>>, vector<1x128x128xbf16>
    %175 = vector.shape_cast %174 : vector<1x128x128xbf16> to vector<128x128xbf16>
    %cst_106 = arith.constant dense<0.000000e+00> : vector<128x128xf32>
    %176 = tpu.matmul %173, %175, %cst_106 {dimension_numbers = #tpu.dot_dimension_numbers<[1], [0], [0], [1], [0, 0, 1, 1], [], []>} : vector<128x128xbf16>, vector<128x128xbf16>, vector<128x128xf32> -> vector<128x128xf32>
    %177 = arith.addf %171, %176 : vector<128x128xf32>
    %178 = vector.broadcast %120 : vector<128x1xf32> to vector<128x128xf32>
    %179 = arith.mulf %177, %178 : vector<128x128xf32>
    %180 = arith.addf %179, %127 : vector<128x128xf32>
    %c8_107 = arith.constant 8 : index
    %c0_108 = arith.constant 0 : index
    %181 = vector.load %arg9[%c8_107, %c0_108] : memref<272x128xf32, #tpu.memory_space<vmem>>, vector<128x128xf32>
    tpu.vector_store %arg9[%c8_107, %c0_108], %180 {strides = array<i32>} : memref<272x128xf32, #tpu.memory_space<vmem>>, vector<128x128xf32>,
    %182 = tpu.iota {dimensions = array<i32: 0>} : vector<64x1xi32>
    %c4_i32 = arith.constant 4 : i32
    %c0_i32_109 = arith.constant 0 : i32
    %183 = arith.cmpi eq, %c4_i32, %c0_i32_109 : i32
    %c1_i32_110 = arith.constant 1 : i32
    %184 = arith.select %183, %c1_i32_110, %c4_i32 : i32
    %185 = vector.broadcast %184 : i32 to vector<64x1xi32>
    %186 = arith.remsi %182, %185 : vector<64x1xi32>
    %c0_i32_111 = arith.constant 0 : i32
    %187 = vector.broadcast %c0_i32_111 : i32 to vector<64x1xi32>
    %188 = arith.cmpi ne, %186, %187 : vector<64x1xi32>
    %c0_i32_112 = arith.constant 0 : i32
    %189 = vector.broadcast %c0_i32_112 : i32 to vector<64x1xi32>
    %190 = arith.cmpi slt, %186, %189 : vector<64x1xi32>
    %c0_i32_113 = arith.constant 0 : i32
    %191 = arith.cmpi slt, %184, %c0_i32_113 : i32
    %192 = vector.broadcast %191 : i1 to vector<64x1xi1>
    %193 = vector.broadcast %192 : vector<64x1xi1> to vector<64x1xi1>
    %194 = arith.xori %190, %193 : vector<64x1xi1>
    %195 = arith.andi %194, %188 : vector<64x1xi1>
    %196 = vector.broadcast %184 : i32 to vector<64x1xi32>
    %197 = arith.addi %186, %196 : vector<64x1xi32>
    %198 = arith.select %195, %197, %186 : vector<64x1xi1>, vector<64x1xi32>
    %c3_i32 = arith.constant 3 : i32
    %199 = vector.broadcast %c3_i32 : i32 to vector<64x1xi32>
    %200 = arith.cmpi slt, %198, %199 : vector<64x1xi32>
    %201 = arith.extui %200 : vector<64x1xi1> to vector<64x1xi32>
    %202 = arith.sitofp %201 : vector<64x1xi32> to vector<64x1xf32>
    %c8_114 = arith.constant 8 : index
    %c0_115 = arith.constant 0 : index
    %203 = tpu.strided_load %arg9[%c8_114, %c0_115] {strides = array<i32: 2, 1>} : memref<272x128xf32, #tpu.memory_space<vmem>>, vector<64x128xf32>
    %c9_116 = arith.constant 9 : index
    %c0_117 = arith.constant 0 : index
    %204 = tpu.strided_load %arg9[%c9_116, %c0_117] {strides = array<i32: 2, 1>} : memref<272x128xf32, #tpu.memory_space<vmem>>, vector<64x128xf32>
    %c10_118 = arith.constant 10 : index
    %c0_119 = arith.constant 0 : index
    %205 = tpu.strided_load %arg9[%c10_118, %c0_119] {strides = array<i32: 2, 1>} : memref<272x128xf32, #tpu.memory_space<vmem>>, vector<64x128xf32>
    %206 = arith.maximumf %203, %204 : vector<64x128xf32>
    %207 = arith.maximumf %206, %205 : vector<64x128xf32>
    %208 = vector.broadcast %202 : vector<64x1xf32> to vector<64x128xf32>
    %209 = arith.mulf %207, %208 : vector<64x128xf32>
    %c8_120 = arith.constant 8 : index
    %c0_121 = arith.constant 0 : index
    %210 = vector.load %arg9[%c8_120, %c0_121] : memref<272x128xf32, #tpu.memory_space<vmem>>, vector<64x128xf32>
    tpu.vector_store %arg9[%c8_120, %c0_121], %209 {strides = array<i32>} : memref<272x128xf32, #tpu.memory_space<vmem>>, vector<64x128xf32>,
    %c0_122 = arith.constant 0 : index
    %c0_123 = arith.constant 0 : index
    %211 = vector.load %arg9[%c0_122, %c0_123] : memref<272x128xf32, #tpu.memory_space<vmem>>, vector<80x128xf32>
    %cst_124 = arith.constant 0.000000e+00 : f32
    %212 = vector.broadcast %cst_124 : f32 to vector<80x128xf32>
    %213 = arith.maximumf %211, %212 : vector<80x128xf32>
    %c0_125 = arith.constant 0 : index
    %c0_126 = arith.constant 0 : index
    %214 = vector.load %arg5[%c0_125, %c0_126] : memref<1x128xf32, #tpu.memory_space<vmem>>, vector<1x128xf32>
    %215 = vector.extract_strided_slice %213 {offsets = [7, 0], sizes = [64, 128], strides = [1, 1]} : vector<80x128xf32> to vector<64x128xf32>
    %216 = arith.truncf %215 : vector<64x128xf32> to vector<64x128xbf16>
    %c0_127 = arith.constant 0 : index
    %c0_128 = arith.constant 0 : index
    %c0_129 = arith.constant 0 : index
    %217 = vector.load %arg4[%c0_127, %c0_128, %c0_129] : memref<3x128x128xbf16, #tpu.memory_space<vmem>>, vector<1x128x128xbf16>
    %218 = vector.shape_cast %217 : vector<1x128x128xbf16> to vector<128x128xbf16>
    %cst_130 = arith.constant dense<0.000000e+00> : vector<64x128xf32>
    %219 = tpu.matmul %216, %218, %cst_130 {dimension_numbers = #tpu.dot_dimension_numbers<[1], [0], [0], [1], [0, 0, 1, 1], [], []>} : vector<64x128xbf16>, vector<128x128xbf16>, vector<64x128xf32> -> vector<64x128xf32>
    %220 = vector.broadcast %214 : vector<1x128xf32> to vector<64x128xf32>
    %221 = arith.addf %220, %219 : vector<64x128xf32>
    %222 = vector.extract_strided_slice %213 {offsets = [8, 0], sizes = [64, 128], strides = [1, 1]} : vector<80x128xf32> to vector<64x128xf32>
    %223 = arith.truncf %222 : vector<64x128xf32> to vector<64x128xbf16>
    %c1_131 = arith.constant 1 : index
    %c0_132 = arith.constant 0 : index
    %c0_133 = arith.constant 0 : index
    %224 = vector.load %arg4[%c1_131, %c0_132, %c0_133] : memref<3x128x128xbf16, #tpu.memory_space<vmem>>, vector<1x128x128xbf16>
    %225 = vector.shape_cast %224 : vector<1x128x128xbf16> to vector<128x128xbf16>
    %cst_134 = arith.constant dense<0.000000e+00> : vector<64x128xf32>
    %226 = tpu.matmul %223, %225, %cst_134 {dimension_numbers = #tpu.dot_dimension_numbers<[1], [0], [0], [1], [0, 0, 1, 1], [], []>} : vector<64x128xbf16>, vector<128x128xbf16>, vector<64x128xf32> -> vector<64x128xf32>
    %227 = arith.addf %221, %226 : vector<64x128xf32>
    %228 = vector.extract_strided_slice %213 {offsets = [9, 0], sizes = [64, 128], strides = [1, 1]} : vector<80x128xf32> to vector<64x128xf32>
    %229 = arith.truncf %228 : vector<64x128xf32> to vector<64x128xbf16>
    %c2_135 = arith.constant 2 : index
    %c0_136 = arith.constant 0 : index
    %c0_137 = arith.constant 0 : index
    %230 = vector.load %arg4[%c2_135, %c0_136, %c0_137] : memref<3x128x128xbf16, #tpu.memory_space<vmem>>, vector<1x128x128xbf16>
    %231 = vector.shape_cast %230 : vector<1x128x128xbf16> to vector<128x128xbf16>
    %cst_138 = arith.constant dense<0.000000e+00> : vector<64x128xf32>
    %232 = tpu.matmul %229, %231, %cst_138 {dimension_numbers = #tpu.dot_dimension_numbers<[1], [0], [0], [1], [0, 0, 1, 1], [], []>} : vector<64x128xbf16>, vector<128x128xbf16>, vector<64x128xf32> -> vector<64x128xf32>
    %233 = arith.addf %227, %232 : vector<64x128xf32>
    %234 = vector.broadcast %202 : vector<64x1xf32> to vector<64x128xf32>
    %235 = arith.mulf %233, %234 : vector<64x128xf32>
    %c8_139 = arith.constant 8 : index
    %c0_140 = arith.constant 0 : index
    %236 = vector.load %arg9[%c8_139, %c0_140] : memref<272x128xf32, #tpu.memory_space<vmem>>, vector<64x128xf32>
    tpu.vector_store %arg9[%c8_139, %c0_140], %235 {strides = array<i32>} : memref<272x128xf32, #tpu.memory_space<vmem>>, vector<64x128xf32>,
    %c0_141 = arith.constant 0 : index
    %c0_142 = arith.constant 0 : index
    %237 = vector.load %arg9[%c0_141, %c0_142] : memref<272x128xf32, #tpu.memory_space<vmem>>, vector<80x128xf32>
    %cst_143 = arith.constant 0.000000e+00 : f32
    %238 = vector.broadcast %cst_143 : f32 to vector<80x128xf32>
    %239 = arith.maximumf %237, %238 : vector<80x128xf32>
    %c0_144 = arith.constant 0 : index
    %c0_145 = arith.constant 0 : index
    %240 = vector.load %arg5[%c0_144, %c0_145] : memref<1x128xf32, #tpu.memory_space<vmem>>, vector<1x128xf32>
    %241 = vector.extract_strided_slice %239 {offsets = [7, 0], sizes = [64, 128], strides = [1, 1]} : vector<80x128xf32> to vector<64x128xf32>
    %242 = arith.truncf %241 : vector<64x128xf32> to vector<64x128xbf16>
    %c0_146 = arith.constant 0 : index
    %c0_147 = arith.constant 0 : index
    %c0_148 = arith.constant 0 : index
    %243 = vector.load %arg4[%c0_146, %c0_147, %c0_148] : memref<3x128x128xbf16, #tpu.memory_space<vmem>>, vector<1x128x128xbf16>
    %244 = vector.shape_cast %243 : vector<1x128x128xbf16> to vector<128x128xbf16>
    %cst_149 = arith.constant dense<0.000000e+00> : vector<64x128xf32>
    %245 = tpu.matmul %242, %244, %cst_149 {dimension_numbers = #tpu.dot_dimension_numbers<[1], [0], [0], [1], [0, 0, 1, 1], [], []>} : vector<64x128xbf16>, vector<128x128xbf16>, vector<64x128xf32> -> vector<64x128xf32>
    %246 = vector.broadcast %240 : vector<1x128xf32> to vector<64x128xf32>
    %247 = arith.addf %246, %245 : vector<64x128xf32>
    %248 = vector.extract_strided_slice %239 {offsets = [8, 0], sizes = [64, 128], strides = [1, 1]} : vector<80x128xf32> to vector<64x128xf32>
    %249 = arith.truncf %248 : vector<64x128xf32> to vector<64x128xbf16>
    %c1_150 = arith.constant 1 : index
    %c0_151 = arith.constant 0 : index
    %c0_152 = arith.constant 0 : index
    %250 = vector.load %arg4[%c1_150, %c0_151, %c0_152] : memref<3x128x128xbf16, #tpu.memory_space<vmem>>, vector<1x128x128xbf16>
    %251 = vector.shape_cast %250 : vector<1x128x128xbf16> to vector<128x128xbf16>
    %cst_153 = arith.constant dense<0.000000e+00> : vector<64x128xf32>
    %252 = tpu.matmul %249, %251, %cst_153 {dimension_numbers = #tpu.dot_dimension_numbers<[1], [0], [0], [1], [0, 0, 1, 1], [], []>} : vector<64x128xbf16>, vector<128x128xbf16>, vector<64x128xf32> -> vector<64x128xf32>
    %253 = arith.addf %247, %252 : vector<64x128xf32>
    %254 = vector.extract_strided_slice %239 {offsets = [9, 0], sizes = [64, 128], strides = [1, 1]} : vector<80x128xf32> to vector<64x128xf32>
    %255 = arith.truncf %254 : vector<64x128xf32> to vector<64x128xbf16>
    %c2_154 = arith.constant 2 : index
    %c0_155 = arith.constant 0 : index
    %c0_156 = arith.constant 0 : index
    %256 = vector.load %arg4[%c2_154, %c0_155, %c0_156] : memref<3x128x128xbf16, #tpu.memory_space<vmem>>, vector<1x128x128xbf16>
    %257 = vector.shape_cast %256 : vector<1x128x128xbf16> to vector<128x128xbf16>
    %cst_157 = arith.constant dense<0.000000e+00> : vector<64x128xf32>
    %258 = tpu.matmul %255, %257, %cst_157 {dimension_numbers = #tpu.dot_dimension_numbers<[1], [0], [0], [1], [0, 0, 1, 1], [], []>} : vector<64x128xbf16>, vector<128x128xbf16>, vector<64x128xf32> -> vector<64x128xf32>
    %259 = arith.addf %253, %258 : vector<64x128xf32>
    %260 = vector.broadcast %202 : vector<64x1xf32> to vector<64x128xf32>
    %261 = arith.mulf %259, %260 : vector<64x128xf32>
    %262 = arith.addf %261, %209 : vector<64x128xf32>
    %c8_158 = arith.constant 8 : index
    %c0_159 = arith.constant 0 : index
    %263 = vector.load %arg9[%c8_158, %c0_159] : memref<272x128xf32, #tpu.memory_space<vmem>>, vector<64x128xf32>
    tpu.vector_store %arg9[%c8_158, %c0_159], %262 {strides = array<i32>} : memref<272x128xf32, #tpu.memory_space<vmem>>, vector<64x128xf32>,
    %264 = tpu.iota {dimensions = array<i32: 0>} : vector<32x1xi32>
    %c2_i32 = arith.constant 2 : i32
    %c0_i32_160 = arith.constant 0 : i32
    %265 = arith.cmpi eq, %c2_i32, %c0_i32_160 : i32
    %c1_i32_161 = arith.constant 1 : i32
    %266 = arith.select %265, %c1_i32_161, %c2_i32 : i32
    %267 = vector.broadcast %266 : i32 to vector<32x1xi32>
    %268 = arith.remsi %264, %267 : vector<32x1xi32>
    %c0_i32_162 = arith.constant 0 : i32
    %269 = vector.broadcast %c0_i32_162 : i32 to vector<32x1xi32>
    %270 = arith.cmpi ne, %268, %269 : vector<32x1xi32>
    %c0_i32_163 = arith.constant 0 : i32
    %271 = vector.broadcast %c0_i32_163 : i32 to vector<32x1xi32>
    %272 = arith.cmpi slt, %268, %271 : vector<32x1xi32>
    %c0_i32_164 = arith.constant 0 : i32
    %273 = arith.cmpi slt, %266, %c0_i32_164 : i32
    %274 = vector.broadcast %273 : i1 to vector<32x1xi1>
    %275 = vector.broadcast %274 : vector<32x1xi1> to vector<32x1xi1>
    %276 = arith.xori %272, %275 : vector<32x1xi1>
    %277 = arith.andi %276, %270 : vector<32x1xi1>
    %278 = vector.broadcast %266 : i32 to vector<32x1xi32>
    %279 = arith.addi %268, %278 : vector<32x1xi32>
    %280 = arith.select %277, %279, %268 : vector<32x1xi1>, vector<32x1xi32>
    %c1_i32_165 = arith.constant 1 : i32
    %281 = vector.broadcast %c1_i32_165 : i32 to vector<32x1xi32>
    %282 = arith.cmpi slt, %280, %281 : vector<32x1xi32>
    %283 = arith.extui %282 : vector<32x1xi1> to vector<32x1xi32>
    %284 = arith.sitofp %283 : vector<32x1xi32> to vector<32x1xf32>
    %c8_166 = arith.constant 8 : index
    %c0_167 = arith.constant 0 : index
    %285 = tpu.strided_load %arg9[%c8_166, %c0_167] {strides = array<i32: 2, 1>} : memref<272x128xf32, #tpu.memory_space<vmem>>, vector<32x128xf32>
    %c9_168 = arith.constant 9 : index
    %c0_169 = arith.constant 0 : index
    %286 = tpu.strided_load %arg9[%c9_168, %c0_169] {strides = array<i32: 2, 1>} : memref<272x128xf32, #tpu.memory_space<vmem>>, vector<32x128xf32>
    %c10_170 = arith.constant 10 : index
    %c0_171 = arith.constant 0 : index
    %287 = tpu.strided_load %arg9[%c10_170, %c0_171] {strides = array<i32: 2, 1>} : memref<272x128xf32, #tpu.memory_space<vmem>>, vector<32x128xf32>
    %288 = arith.maximumf %285, %286 : vector<32x128xf32>
    %289 = arith.maximumf %288, %287 : vector<32x128xf32>
    %290 = vector.broadcast %284 : vector<32x1xf32> to vector<32x128xf32>
    %291 = arith.mulf %289, %290 : vector<32x128xf32>
    %c8_172 = arith.constant 8 : index
    %c0_173 = arith.constant 0 : index
    %292 = vector.load %arg9[%c8_172, %c0_173] : memref<272x128xf32, #tpu.memory_space<vmem>>, vector<32x128xf32>
    tpu.vector_store %arg9[%c8_172, %c0_173], %291 {strides = array<i32>} : memref<272x128xf32, #tpu.memory_space<vmem>>, vector<32x128xf32>,
    %c0_174 = arith.constant 0 : index
    %c0_175 = arith.constant 0 : index
    %293 = vector.load %arg9[%c0_174, %c0_175] : memref<272x128xf32, #tpu.memory_space<vmem>>, vector<48x128xf32>
    %cst_176 = arith.constant 0.000000e+00 : f32
    %294 = vector.broadcast %cst_176 : f32 to vector<48x128xf32>
    %295 = arith.maximumf %293, %294 : vector<48x128xf32>
    %c0_177 = arith.constant 0 : index
    %c0_178 = arith.constant 0 : index
    %296 = vector.load %arg5[%c0_177, %c0_178] : memref<1x128xf32, #tpu.memory_space<vmem>>, vector<1x128xf32>
    %297 = vector.extract_strided_slice %295 {offsets = [7, 0], sizes = [32, 128], strides = [1, 1]} : vector<48x128xf32> to vector<32x128xf32>
    %298 = arith.truncf %297 : vector<32x128xf32> to vector<32x128xbf16>
    %c0_179 = arith.constant 0 : index
    %c0_180 = arith.constant 0 : index
    %c0_181 = arith.constant 0 : index
    %299 = vector.load %arg4[%c0_179, %c0_180, %c0_181] : memref<3x128x128xbf16, #tpu.memory_space<vmem>>, vector<1x128x128xbf16>
    %300 = vector.shape_cast %299 : vector<1x128x128xbf16> to vector<128x128xbf16>
    %cst_182 = arith.constant dense<0.000000e+00> : vector<32x128xf32>
    %301 = tpu.matmul %298, %300, %cst_182 {dimension_numbers = #tpu.dot_dimension_numbers<[1], [0], [0], [1], [0, 0, 1, 1], [], []>} : vector<32x128xbf16>, vector<128x128xbf16>, vector<32x128xf32> -> vector<32x128xf32>
    %302 = vector.broadcast %296 : vector<1x128xf32> to vector<32x128xf32>
    %303 = arith.addf %302, %301 : vector<32x128xf32>
    %304 = vector.extract_strided_slice %295 {offsets = [8, 0], sizes = [32, 128], strides = [1, 1]} : vector<48x128xf32> to vector<32x128xf32>
    %305 = arith.truncf %304 : vector<32x128xf32> to vector<32x128xbf16>
    %c1_183 = arith.constant 1 : index
    %c0_184 = arith.constant 0 : index
    %c0_185 = arith.constant 0 : index
    %306 = vector.load %arg4[%c1_183, %c0_184, %c0_185] : memref<3x128x128xbf16, #tpu.memory_space<vmem>>, vector<1x128x128xbf16>
    %307 = vector.shape_cast %306 : vector<1x128x128xbf16> to vector<128x128xbf16>
    %cst_186 = arith.constant dense<0.000000e+00> : vector<32x128xf32>
    %308 = tpu.matmul %305, %307, %cst_186 {dimension_numbers = #tpu.dot_dimension_numbers<[1], [0], [0], [1], [0, 0, 1, 1], [], []>} : vector<32x128xbf16>, vector<128x128xbf16>, vector<32x128xf32> -> vector<32x128xf32>
    %309 = arith.addf %303, %308 : vector<32x128xf32>
    %310 = vector.extract_strided_slice %295 {offsets = [9, 0], sizes = [32, 128], strides = [1, 1]} : vector<48x128xf32> to vector<32x128xf32>
    %311 = arith.truncf %310 : vector<32x128xf32> to vector<32x128xbf16>
    %c2_187 = arith.constant 2 : index
    %c0_188 = arith.constant 0 : index
    %c0_189 = arith.constant 0 : index
    %312 = vector.load %arg4[%c2_187, %c0_188, %c0_189] : memref<3x128x128xbf16, #tpu.memory_space<vmem>>, vector<1x128x128xbf16>
    %313 = vector.shape_cast %312 : vector<1x128x128xbf16> to vector<128x128xbf16>
    %cst_190 = arith.constant dense<0.000000e+00> : vector<32x128xf32>
    %314 = tpu.matmul %311, %313, %cst_190 {dimension_numbers = #tpu.dot_dimension_numbers<[1], [0], [0], [1], [0, 0, 1, 1], [], []>} : vector<32x128xbf16>, vector<128x128xbf16>, vector<32x128xf32> -> vector<32x128xf32>
    %315 = arith.addf %309, %314 : vector<32x128xf32>
    %316 = vector.broadcast %284 : vector<32x1xf32> to vector<32x128xf32>
    %317 = arith.mulf %315, %316 : vector<32x128xf32>
    %c8_191 = arith.constant 8 : index
    %c0_192 = arith.constant 0 : index
    %318 = vector.load %arg9[%c8_191, %c0_192] : memref<272x128xf32, #tpu.memory_space<vmem>>, vector<32x128xf32>
    tpu.vector_store %arg9[%c8_191, %c0_192], %317 {strides = array<i32>} : memref<272x128xf32, #tpu.memory_space<vmem>>, vector<32x128xf32>,
    %c0_193 = arith.constant 0 : index
    %c0_194 = arith.constant 0 : index
    %319 = vector.load %arg9[%c0_193, %c0_194] : memref<272x128xf32, #tpu.memory_space<vmem>>, vector<48x128xf32>
    %cst_195 = arith.constant 0.000000e+00 : f32
    %320 = vector.broadcast %cst_195 : f32 to vector<48x128xf32>
    %321 = arith.maximumf %319, %320 : vector<48x128xf32>
    %c0_196 = arith.constant 0 : index
    %c0_197 = arith.constant 0 : index
    %322 = vector.load %arg5[%c0_196, %c0_197] : memref<1x128xf32, #tpu.memory_space<vmem>>, vector<1x128xf32>
    %323 = vector.extract_strided_slice %321 {offsets = [7, 0], sizes = [32, 128], strides = [1, 1]} : vector<48x128xf32> to vector<32x128xf32>
    %324 = arith.truncf %323 : vector<32x128xf32> to vector<32x128xbf16>
    %c0_198 = arith.constant 0 : index
    %c0_199 = arith.constant 0 : index
    %c0_200 = arith.constant 0 : index
    %325 = vector.load %arg4[%c0_198, %c0_199, %c0_200] : memref<3x128x128xbf16, #tpu.memory_space<vmem>>, vector<1x128x128xbf16>
    %326 = vector.shape_cast %325 : vector<1x128x128xbf16> to vector<128x128xbf16>
    %cst_201 = arith.constant dense<0.000000e+00> : vector<32x128xf32>
    %327 = tpu.matmul %324, %326, %cst_201 {dimension_numbers = #tpu.dot_dimension_numbers<[1], [0], [0], [1], [0, 0, 1, 1], [], []>} : vector<32x128xbf16>, vector<128x128xbf16>, vector<32x128xf32> -> vector<32x128xf32>
    %328 = vector.broadcast %322 : vector<1x128xf32> to vector<32x128xf32>
    %329 = arith.addf %328, %327 : vector<32x128xf32>
    %330 = vector.extract_strided_slice %321 {offsets = [8, 0], sizes = [32, 128], strides = [1, 1]} : vector<48x128xf32> to vector<32x128xf32>
    %331 = arith.truncf %330 : vector<32x128xf32> to vector<32x128xbf16>
    %c1_202 = arith.constant 1 : index
    %c0_203 = arith.constant 0 : index
    %c0_204 = arith.constant 0 : index
    %332 = vector.load %arg4[%c1_202, %c0_203, %c0_204] : memref<3x128x128xbf16, #tpu.memory_space<vmem>>, vector<1x128x128xbf16>
    %333 = vector.shape_cast %332 : vector<1x128x128xbf16> to vector<128x128xbf16>
    %cst_205 = arith.constant dense<0.000000e+00> : vector<32x128xf32>
    %334 = tpu.matmul %331, %333, %cst_205 {dimension_numbers = #tpu.dot_dimension_numbers<[1], [0], [0], [1], [0, 0, 1, 1], [], []>} : vector<32x128xbf16>, vector<128x128xbf16>, vector<32x128xf32> -> vector<32x128xf32>
    %335 = arith.addf %329, %334 : vector<32x128xf32>
    %336 = vector.extract_strided_slice %321 {offsets = [9, 0], sizes = [32, 128], strides = [1, 1]} : vector<48x128xf32> to vector<32x128xf32>
    %337 = arith.truncf %336 : vector<32x128xf32> to vector<32x128xbf16>
    %c2_206 = arith.constant 2 : index
    %c0_207 = arith.constant 0 : index
    %c0_208 = arith.constant 0 : index
    %338 = vector.load %arg4[%c2_206, %c0_207, %c0_208] : memref<3x128x128xbf16, #tpu.memory_space<vmem>>, vector<1x128x128xbf16>
    %339 = vector.shape_cast %338 : vector<1x128x128xbf16> to vector<128x128xbf16>
    %cst_209 = arith.constant dense<0.000000e+00> : vector<32x128xf32>
    %340 = tpu.matmul %337, %339, %cst_209 {dimension_numbers = #tpu.dot_dimension_numbers<[1], [0], [0], [1], [0, 0, 1, 1], [], []>} : vector<32x128xbf16>, vector<128x128xbf16>, vector<32x128xf32> -> vector<32x128xf32>
    %341 = arith.addf %335, %340 : vector<32x128xf32>
    %342 = vector.broadcast %284 : vector<32x1xf32> to vector<32x128xf32>
    %343 = arith.mulf %341, %342 : vector<32x128xf32>
    %344 = arith.addf %343, %291 : vector<32x128xf32>
    %c8_210 = arith.constant 8 : index
    %c0_211 = arith.constant 0 : index
    %345 = vector.load %arg9[%c8_210, %c0_211] : memref<272x128xf32, #tpu.memory_space<vmem>>, vector<32x128xf32>
    tpu.vector_store %arg9[%c8_210, %c0_211], %344 {strides = array<i32>} : memref<272x128xf32, #tpu.memory_space<vmem>>, vector<32x128xf32>,
    %c8_212 = arith.constant 8 : index
    %c0_213 = arith.constant 0 : index
    %346 = tpu.strided_load %arg9[%c8_212, %c0_213] {strides = array<i32: 2, 1>} : memref<272x128xf32, #tpu.memory_space<vmem>>, vector<16x128xf32>
    %c0_214 = arith.constant 0 : index
    %c0_215 = arith.constant 0 : index
    %347 = vector.load %arg6[%c0_214, %c0_215] : memref<128x128xf32, #tpu.memory_space<vmem>>, vector<128x128xf32>
    %cst_216 = arith.constant dense<0.000000e+00> : vector<16x128xf32>
    %348 = tpu.matmul %346, %347, %cst_216 {dimension_numbers = #tpu.dot_dimension_numbers<[1], [0], [0], [1], [0, 0, 1, 1], [], []>} : vector<16x128xf32>, vector<128x128xf32>, vector<16x128xf32> -> vector<16x128xf32>
    %c0_217 = arith.constant 0 : index
    %c0_218 = arith.constant 0 : index
    %349 = vector.load %arg7[%c0_217, %c0_218] : memref<1x128xf32, #tpu.memory_space<vmem>>, vector<1x128xf32>
    %350 = vector.broadcast %349 : vector<1x128xf32> to vector<16x128xf32>
    %351 = arith.addf %348, %350 : vector<16x128xf32>
    %c0_219 = arith.constant 0 : index
    %c0_220 = arith.constant 0 : index
    %352 = vector.load %arg8[%c0_219, %c0_220] : memref<16x128xf32, #tpu.memory_space<vmem>>, vector<16x128xf32>
    tpu.vector_store %arg8[%c0_219, %c0_220], %351 {strides = array<i32>} : memref<16x128xf32, #tpu.memory_space<vmem>>, vector<16x128xf32>,
    return
  }
  func.func @transform_0(%arg0: i32) -> (i32, i32, i32) {
    %c0_i32 = arith.constant 0 : i32
    %c0_i32_0 = arith.constant 0 : i32
    %c0_i32_1 = arith.constant 0 : i32
    return %arg0, %c0_i32, %c0_i32_0 : i32, i32, i32
  }
  func.func @transform_1(%arg0: i32) -> (i32, i32, i32) {
    %c0_i32 = arith.constant 0 : i32
    %c0_i32_0 = arith.constant 0 : i32
    %c0_i32_1 = arith.constant 0 : i32
    %c0_i32_2 = arith.constant 0 : i32
    return %c0_i32, %c0_i32_0, %c0_i32_1 : i32, i32, i32
  }
  func.func @transform_2(%arg0: i32) -> (i32, i32) {
    %c0_i32 = arith.constant 0 : i32
    %c0_i32_0 = arith.constant 0 : i32
    %c0_i32_1 = arith.constant 0 : i32
    return %c0_i32, %c0_i32_0 : i32, i32
  }
  func.func @transform_3(%arg0: i32) -> (i32, i32, i32) {
    %c0_i32 = arith.constant 0 : i32
    %c0_i32_0 = arith.constant 0 : i32
    %c0_i32_1 = arith.constant 0 : i32
    %c0_i32_2 = arith.constant 0 : i32
    return %c0_i32, %c0_i32_0, %c0_i32_1 : i32, i32, i32
  }
  func.func @transform_4(%arg0: i32) -> (i32, i32) {
    %c0_i32 = arith.constant 0 : i32
    %c0_i32_0 = arith.constant 0 : i32
    %c0_i32_1 = arith.constant 0 : i32
    return %c0_i32, %c0_i32_0 : i32, i32
  }
  func.func @transform_5(%arg0: i32) -> (i32, i32) {
    %c0_i32 = arith.constant 0 : i32
    %c0_i32_0 = arith.constant 0 : i32
    %c0_i32_1 = arith.constant 0 : i32
    return %c0_i32, %c0_i32_0 : i32, i32
  }
  func.func @transform_6(%arg0: i32) -> (i32, i32) {
    %c0_i32 = arith.constant 0 : i32
    %c0_i32_0 = arith.constant 0 : i32
    %c0_i32_1 = arith.constant 0 : i32
    return %c0_i32, %c0_i32_0 : i32, i32
  }
  func.func @transform_7(%arg0: i32) -> (i32, i32) {
    %c0_i32 = arith.constant 0 : i32
    %c0_i32_0 = arith.constant 0 : i32
    return %arg0, %c0_i32 : i32, i32
  }
}

</mosaic_0001>

<llo_original>
// kernel: jeffbert_forward.1
$region0: #{jeffbert_forward.1}
  #allocation0 [shape = 'u32[]', space=smem, size = 0x4, offset = 0x4, fixed_abs, tag = 'smem constant byte address 0x4 - core index']
  #allocation1 [shape = 'u32[72,128]{1,0:T(1,128)}', space=vmem, size = 0x9000, scoped, tag = 'internal scratch']
  #allocation2 [shape = 'f32[272,128]{1,0:T(8,128)}', space=vmem, size = 0x22000, scoped, tag = 'scratch operand']
  %s0 = inlined_call_operand.vmem [shape: bf16[64,16,768], index: 0, kind: input, shape index: {}]
  %s1 = inlined_call_operand.vmem [shape: bf16[3,768,128], index: 1, kind: input, shape index: {}]
  %s2 = inlined_call_operand.vmem [shape: f32[1,128], index: 2, kind: input, shape index: {}]
  %s3 = inlined_call_operand.vmem [shape: bf16[3,128,128], index: 3, kind: input, shape index: {}]
  %s4 = inlined_call_operand.vmem [shape: f32[1,128], index: 4, kind: input, shape index: {}]
  %s5 = inlined_call_operand.vmem [shape: f32[128,128], index: 5, kind: input, shape index: {}]
  %s6 = inlined_call_operand.vmem [shape: f32[1,128], index: 6, kind: input, shape index: {}]
  %s7 = inlined_call_operand.vmem [shape: f32[64,128], index: 7, kind: output, shape index: {}]
  %s8 = sld [smem:[#allocation0]]
  $region61: #{jeffbert_forward.1} parent=0
    _
  %s10 = ssub.s32 1, %s8
  %s11 = scalar_select 0, %s10, %s8
  loop: start=0, step=1, limit=6
  $region2: #{jeffbert_forward.1} parent=0 // loop_pre_header
    _
  $region3: #{jeffbert_forward.1} parent=0 // loop_header
    %s13 = sphi 0, %s17
    %p14 = scmp.ge.s32.totalorder %s13, 6
    %s23 = sphi 0, %s25
    %s26 = sphi 0, %s23
    %s27 = sphi 0, %s26
    %s43 = sphi 0, %s27
    %s47 = sphi 0, %s47
    %s49 = sphi 0, %s47
    %s50 = sphi 0, %s49
    %s64 = sphi 0, %s50
    %s68 = sphi 0, %s68
    %s70 = sphi 0, %s68
    %s71 = sphi 0, %s70
    %s85 = sphi 0, %s71
    %s89 = sphi 0, %s89
    %s91 = sphi 0, %s89
    %s92 = sphi 0, %s91
    %s106 = sphi 0, %s92
    %s110 = sphi 0, %s110
    %s112 = sphi 0, %s110
    %s113 = sphi 0, %s112
    %s127 = sphi 0, %s113
    %s131 = sphi 0, %s131
    %s133 = sphi 0, %s131
    %s134 = sphi 0, %s133
    %s148 = sphi 0, %s134
    %s152 = sphi 0, %s152
    %s154 = sphi 0, %s152
    %s155 = sphi 0, %s154
    %s169 = sphi 0, %s155
    %s175 = sphi 0, %s177
    %s178 = sphi 0, %s175
    %s179 = sphi 0, %s178
    %s195 = sphi 0, %s179
  $region4: #{jeffbert_forward.1} parent=0 // loop_header_branch
    %16 = sbr.rel (%p14) target = $region8
  $region5: #{jeffbert_forward.1} parent=0 // loop_body
    %s18 = ssub.s32 %s13, 1
    %s19 = ssub.s32 %s13, 2
    %s20 = sadd.s32 %s13, 1
    %s21 = ssub.s32 %s13, %s20
    %p22 = scmp.eq.s32.totalorder %s21, 0
    %s24 = sadd.s32 %s23, 1
    %s25 = scalar_select %p22, %s23, %s24
    %p28 = pneg %p22
    %p29 = scmp.eq.s32.totalorder %s13, 3
    %p30 = por %p28, %p29
    %p31 = scmp.ne.s32.totalorder %s23, %s26
    %p32 = scmp.eq.s32.totalorder %s13, 0
    %p33 = por %p31, %p32
    %p34 = scmp.ne.s32.totalorder %s23, %s26
    %p35 = scmp.eq.s32.totalorder %s18, 3
    %p36 = por %p34, %p35
    %p37 = scmp.ne.s32.totalorder %s26, %s27
    %p38 = scmp.eq.s32.totalorder %s18, 0
    %p39 = por %p37, %p38
    %p40 = scmp.ne.s32.totalorder %s26, %s27
    %p41 = scmp.eq.s32.totalorder %s19, 3
    %p42 = por %p40, %p41
    %p44 = scmp.ne.s32.totalorder %s27, %s43
    %p45 = scmp.eq.s32.totalorder %s19, 0
    %p46 = por %p44, %p45
    %s48 = sadd.s32 %s47, 1
    %p51 = scmp.eq.s32.totalorder %s13, 3
    %p52 = scmp.ne.s32.totalorder %s47, %s49
    %p53 = scmp.eq.s32.totalorder %s13, 0
    %p54 = por %p52, %p53
    %p55 = scmp.ne.s32.totalorder %s47, %s49
    %p56 = scmp.eq.s32.totalorder %s18, 3
    %p57 = por %p55, %p56
    %p58 = scmp.ne.s32.totalorder %s49, %s50
    %p59 = scmp.eq.s32.totalorder %s18, 0
    %p60 = por %p58, %p59
    %p61 = scmp.ne.s32.totalorder %s49, %s50
    %p62 = scmp.eq.s32.totalorder %s19, 3
    %p63 = por %p61, %p62
    %p65 = scmp.ne.s32.totalorder %s50, %s64
    %p66 = scmp.eq.s32.totalorder %s19, 0
    %p67 = por %p65, %p66
    %s69 = sadd.s32 %s68, 1
    %p72 = scmp.eq.s32.totalorder %s13, 3
    %p73 = scmp.ne.s32.totalorder %s68, %s70
    %p74 = scmp.eq.s32.totalorder %s13, 0
    %p75 = por %p73, %p74
    %p76 = scmp.ne.s32.totalorder %s68, %s70
    %p77 = scmp.eq.s32.totalorder %s18, 3
    %p78 = por %p76, %p77
    %p79 = scmp.ne.s32.totalorder %s70, %s71
    %p80 = scmp.eq.s32.totalorder %s18, 0
    %p81 = por %p79, %p80
    %p82 = scmp.ne.s32.totalorder %s70, %s71
    %p83 = scmp.eq.s32.totalorder %s19, 3
    %p84 = por %p82, %p83
    %p86 = scmp.ne.s32.totalorder %s71, %s85
    %p87 = scmp.eq.s32.totalorder %s19, 0
    %p88 = por %p86, %p87
    %s90 = sadd.s32 %s89, 1
    %p93 = scmp.eq.s32.totalorder %s13, 3
    %p94 = scmp.ne.s32.totalorder %s89, %s91
    %p95 = scmp.eq.s32.totalorder %s13, 0
    %p96 = por %p94, %p95
    %p97 = scmp.ne.s32.totalorder %s89, %s91
    %p98 = scmp.eq.s32.totalorder %s18, 3
    %p99 = por %p97, %p98
    %p100 = scmp.ne.s32.totalorder %s91, %s92
    %p101 = scmp.eq.s32.totalorder %s18, 0
    %p102 = por %p100, %p101
    %p103 = scmp.ne.s32.totalorder %s91, %s92
    %p104 = scmp.eq.s32.totalorder %s19, 3
    %p105 = por %p103, %p104
    %p107 = scmp.ne.s32.totalorder %s92, %s106
    %p108 = scmp.eq.s32.totalorder %s19, 0
    %p109 = por %p107, %p108
    %s111 = sadd.s32 %s110, 1
    %p114 = scmp.eq.s32.totalorder %s13, 3
    %p115 = scmp.ne.s32.totalorder %s110, %s112
    %p116 = scmp.eq.s32.totalorder %s13, 0
    %p117 = por %p115, %p116
    %p118 = scmp.ne.s32.totalorder %s110, %s112
    %p119 = scmp.eq.s32.totalorder %s18, 3
    %p120 = por %p118, %p119
    %p121 = scmp.ne.s32.totalorder %s112, %s113
    %p122 = scmp.eq.s32.totalorder %s18, 0
    %p123 = por %p121, %p122
    %p124 = scmp.ne.s32.totalorder %s112, %s113
    %p125 = scmp.eq.s32.totalorder %s19, 3
    %p126 = por %p124, %p125
    %p128 = scmp.ne.s32.totalorder %s113, %s127
    %p129 = scmp.eq.s32.totalorder %s19, 0
    %p130 = por %p128, %p129
    %s132 = sadd.s32 %s131, 1
    %p135 = scmp.eq.s32.totalorder %s13, 3
    %p136 = scmp.ne.s32.totalorder %s131, %s133
    %p137 = scmp.eq.s32.totalorder %s13, 0
    %p138 = por %p136, %p137
    %p139 = scmp.ne.s32.totalorder %s131, %s133
    %p140 = scmp.eq.s32.totalorder %s18, 3
    %p141 = por %p139, %p140
    %p142 = scmp.ne.s32.totalorder %s133, %s134
    %p143 = scmp.eq.s32.totalorder %s18, 0
    %p144 = por %p142, %p143
    %p145 = scmp.ne.s32.totalorder %s133, %s134
    %p146 = scmp.eq.s32.totalorder %s19, 3
    %p147 = por %p145, %p146
    %p149 = scmp.ne.s32.totalorder %s134, %s148
    %p150 = scmp.eq.s32.totalorder %s19, 0
    %p151 = por %p149, %p150
    %s153 = sadd.s32 %s152, 1
    %p156 = scmp.eq.s32.totalorder %s13, 3
    %p157 = scmp.ne.s32.totalorder %s152, %s154
    %p158 = scmp.eq.s32.totalorder %s13, 0
    %p159 = por %p157, %p158
    %p160 = scmp.ne.s32.totalorder %s152, %s154
    %p161 = scmp.eq.s32.totalorder %s18, 3
    %p162 = por %p160, %p161
    %p163 = scmp.ne.s32.totalorder %s154, %s155
    %p164 = scmp.eq.s32.totalorder %s18, 0
    %p165 = por %p163, %p164
    %p166 = scmp.ne.s32.totalorder %s154, %s155
    %p167 = scmp.eq.s32.totalorder %s19, 3
    %p168 = por %p166, %p167
    %p170 = scmp.ne.s32.totalorder %s155, %s169
    %p171 = scmp.eq.s32.totalorder %s19, 0
    %p172 = por %p170, %p171
    %s173 = ssub.s32 %s13, %s20
    %p174 = scmp.eq.s32.totalorder %s173, 0
    %s176 = sadd.s32 %s175, 1
    %s177 = scalar_select %p174, %s175, %s176
    %p180 = pneg %p174
    %p181 = scmp.eq.s32.totalorder %s13, 3
    %p182 = por %p180, %p181
    %p183 = scmp.ne.s32.totalorder %s175, %s178
    %p184 = scmp.eq.s32.totalorder %s13, 0
    %p185 = por %p183, %p184
    %p186 = scmp.ne.s32.totalorder %s175, %s178
    %p187 = scmp.eq.s32.totalorder %s18, 3
    %p188 = por %p186, %p187
    %p189 = scmp.ne.s32.totalorder %s178, %s179
    %p190 = scmp.eq.s32.totalorder %s18, 0
    %p191 = por %p189, %p190
    %p192 = scmp.ne.s32.totalorder %s178, %s179
    %p193 = scmp.eq.s32.totalorder %s19, 3
    %p194 = por %p192, %p193
    %p196 = scmp.ne.s32.totalorder %s179, %s195
    %p197 = scmp.eq.s32.totalorder %s19, 0
    %p198 = por %p196, %p197
    %p199 = scmp.le.s32.totalorder 1, %s13
    %p200 = scmp.lt.s32.totalorder %s13, 5
    %p201 = pnand %p199, %p200
    %p202 = pneg %p201
    // Predicated region
    $region9: #{jeffbert_forward.1} parent=5 // pred_check
      _
    $region10: #{jeffbert_forward.1} parent=5 // pred_check_branch
      %204 = sbr.rel (%p201) target = $region12
    $region11: #{jeffbert_forward.1} parent=5 // pred_region
      %s205 = ssub.s32 %s13, 1
      // Predicated region
      $region13: #{jeffbert_forward.1} parent=11 // pred_check
        %p206 = pneg %p60
      $region14: #{jeffbert_forward.1} parent=11 // pred_check_branch
        %208 = sbr.rel (%p206) target = $region16
      $region15: #{jeffbert_forward.1} parent=11 // pred_region
        _
      $region16: #{jeffbert_forward.1} parent=11 // pred_fallthru
        _
      // Predicated region
      $region17: #{jeffbert_forward.1} parent=11 // pred_check
        %p209 = pneg %p81
      $region18: #{jeffbert_forward.1} parent=11 // pred_check_branch
        %211 = sbr.rel (%p209) target = $region20
      $region19: #{jeffbert_forward.1} parent=11 // pred_region
        _
      $region20: #{jeffbert_forward.1} parent=11 // pred_fallthru
        _
      // Predicated region
      $region21: #{jeffbert_forward.1} parent=11 // pred_check
        %p212 = pneg %p102
      $region22: #{jeffbert_forward.1} parent=11 // pred_check_branch
        %214 = sbr.rel (%p212) target = $region24
      $region23: #{jeffbert_forward.1} parent=11 // pred_region
        _
      $region24: #{jeffbert_forward.1} parent=11 // pred_fallthru
        _
      // Predicated region
      $region25: #{jeffbert_forward.1} parent=11 // pred_check
        %p215 = pneg %p123
      $region26: #{jeffbert_forward.1} parent=11 // pred_check_branch
        %217 = sbr.rel (%p215) target = $region28
      $region27: #{jeffbert_forward.1} parent=11 // pred_region
        _
      $region28: #{jeffbert_forward.1} parent=11 // pred_fallthru
        _
      // Predicated region
      $region29: #{jeffbert_forward.1} parent=11 // pred_check
        %p218 = pneg %p144
      $region30: #{jeffbert_forward.1} parent=11 // pred_check_branch
        %220 = sbr.rel (%p218) target = $region32
      $region31: #{jeffbert_forward.1} parent=11 // pred_region
        _
      $region32: #{jeffbert_forward.1} parent=11 // pred_fallthru
        _
      // Predicated region
      $region33: #{jeffbert_forward.1} parent=11 // pred_check
        %p221 = pneg %p165
      $region34: #{jeffbert_forward.1} parent=11 // pred_check_branch
        %223 = sbr.rel (%p221) target = $region36
      $region35: #{jeffbert_forward.1} parent=11 // pred_region
        _
      $region36: #{jeffbert_forward.1} parent=11 // pred_fallthru
        _
    $region12: #{jeffbert_forward.1} parent=5 // pred_fallthru
      _
    %p224 = scmp.lt.s32.totalorder %s13, 4
    // Predicated region
    $region37: #{jeffbert_forward.1} parent=5 // pred_check
      %p225 = pneg %p224
    $region38: #{jeffbert_forward.1} parent=5 // pred_check_branch
      %227 = sbr.rel (%p225) target = $region40
    $region39: #{jeffbert_forward.1} parent=5 // pred_region
      // Predicated region
      $region41: #{jeffbert_forward.1} parent=39 // pred_check
        %p228 = pneg %p33
      $region42: #{jeffbert_forward.1} parent=39 // pred_check_branch
        %230 = sbr.rel (%p228) target = $region44
      $region43: #{jeffbert_forward.1} parent=39 // pred_region
        %s231 = smul.u32 16, %s13
        %p232 = scmp.lt.s32.totalorder %s231, 63
        %s233 = scalar_select %p232, %s231, 63
        %s234 = smul.addr %s233, 12
        %s235 = smul.addr %s234, 4
        %s236 = scalar_lea.vmem %s0, %s235
        %s237 = smul.u32 16, %s13
      $region44: #{jeffbert_forward.1} parent=39 // pred_fallthru
        _
    $region40: #{jeffbert_forward.1} parent=5 // pred_fallthru
      _
    %p238 = scmp.le.s32.totalorder 1, %s13
    %p239 = scmp.lt.s32.totalorder %s13, 5
    %p240 = pnand %p238, %p239
    %p241 = pneg %p240
    // Predicated region
    $region45: #{jeffbert_forward.1} parent=5 // pred_check
      _
    $region46: #{jeffbert_forward.1} parent=5 // pred_check_branch
      %243 = sbr.rel (%p240) target = $region48
    $region47: #{jeffbert_forward.1} parent=5 // pred_region
      %s244 = ssub.s32 %s13, 1
      %s245 = smul.u32 16, %s18
      %p246 = scmp.lt.s32.totalorder %s245, 63
      %s247 = scalar_select %p246, %s245, 63
      %s248 = smul.addr %s247, 12
      %s249 = smul.addr %s248, 4
      %s250 = scalar_lea.vmem %s0, %s249
      %p251 = pneg %p39
      %p252 = pneg %p36
      %p253 = pneg %p60
      %p254 = pneg %p57
      %p255 = pneg %p81
      %p256 = pneg %p78
      %p257 = pneg %p102
      %p258 = pneg %p99
      %p259 = pneg %p123
      %p260 = pneg %p120
      %p261 = pneg %p144
      %p262 = pneg %p141
      %p263 = pneg %p165
      %p264 = pneg %p162
      %p265 = pneg %p191
      %p266 = pneg %p188
      %s267 = smul.u32 2, %s18
      %p268 = scmp.lt.s32.totalorder %s267, 7
      %s269 = scalar_select %p268, %s267, 7
      %s270 = smul.addr %s269, 8
      %s271 = scalar_lea.vmem %s7, %s270
      %s272 = smul.u32 16, %s18
      %p273 = scmp.lt.s32.totalorder %s272, 63
      %s274 = scalar_select %p273, %s272, 63
      %s275 = smul.addr %s274, 12
      %s276 = smul.addr %s275, 4
      %s277 = scalar_lea.vmem %s0, %s276
      %s278 = smul.u32 16, %s18
      %s279 = smul.u32 2, %s18
      %p280 = scmp.lt.s32.totalorder %s279, 7
      %s281 = scalar_select %p280, %s279, 7
      %s282 = smul.addr %s281, 8
      %s283 = scalar_lea.vmem %s7, %s282
      %s284 = smul.u32 2, %s18
      %286 = vst [vmem:[#allocation2] sm:$0xff] 0.0
      %287 = vst [vmem:[#allocation2 + $0x108] sm:$0xff] 0.0
      %v288 = vld [vmem:[%s277] sm:$0xff]
      %v289 = vld [vmem:[%s277 + $0x8] sm:$0xff]
      %v290 = vld [vmem:[%s277 + $0x10] sm:$0xff]
      %v291 = vld [vmem:[%s277 + $0x18] sm:$0xff]
      %v292 = vld [vmem:[%s277 + $0x20] sm:$0xff]
      %v293 = vld [vmem:[%s277 + $0x28] sm:$0xff]
      %v294 = vld [vmem:[%s277 + $0x30] sm:$0xff]
      %v295 = vld [vmem:[%s277 + $0x38] sm:$0xff]
      %v296 = vld [vmem:[%s277 + $0x40] sm:$0xff]
      %v297 = vld [vmem:[%s277 + $0x48] sm:$0xff]
      %v298 = vld [vmem:[%s277 + $0x50] sm:$0xff]
      %v299 = vld [vmem:[%s277 + $0x58] sm:$0xff]
      %v300 = vld [vmem:[%s277 + $0x60] sm:$0xff]
      %v301 = vld [vmem:[%s277 + $0x68] sm:$0xff]
      %v302 = vld [vmem:[%s277 + $0x70] sm:$0xff]
      %v303 = vld [vmem:[%s277 + $0x78] sm:$0xff]
      %v304 = vld [vmem:[%s277 + $0x80] sm:$0xff]
      %v305 = vld [vmem:[%s277 + $0x88] sm:$0xff]
      %v306 = vld [vmem:[%s277 + $0x90] sm:$0xff]
      %v307 = vld [vmem:[%s277 + $0x98] sm:$0xff]
      %v308 = vld [vmem:[%s277 + $0xa0] sm:$0xff]
      %v309 = vld [vmem:[%s277 + $0xa8] sm:$0xff]
      %v310 = vld [vmem:[%s277 + $0xb0] sm:$0xff]
      %v311 = vld [vmem:[%s277 + $0xb8] sm:$0xff]
      %v312 = vld [vmem:[%s277 + $0xc0] sm:$0xff]
      %v313 = vld [vmem:[%s277 + $0xc8] sm:$0xff]
      %v314 = vld [vmem:[%s277 + $0xd0] sm:$0xff]
      %v315 = vld [vmem:[%s277 + $0xd8] sm:$0xff]
      %v316 = vld [vmem:[%s277 + $0xe0] sm:$0xff]
      %v317 = vld [vmem:[%s277 + $0xe8] sm:$0xff]
      %v318 = vld [vmem:[%s277 + $0xf0] sm:$0xff]
      %v319 = vld [vmem:[%s277 + $0xf8] sm:$0xff]
      %v320 = vld [vmem:[%s277 + $0x100] sm:$0xff]
      %v321 = vld [vmem:[%s277 + $0x108] sm:$0xff]
      %v322 = vld [vmem:[%s277 + $0x110] sm:$0xff]
      %v323 = vld [vmem:[%s277 + $0x118] sm:$0xff]
      %v324 = vld [vmem:[%s277 + $0x120] sm:$0xff]
      %v325 = vld [vmem:[%s277 + $0x128] sm:$0xff]
      %v326 = vld [vmem:[%s277 + $0x130] sm:$0xff]
      %v327 = vld [vmem:[%s277 + $0x138] sm:$0xff]
      %v328 = vld [vmem:[%s277 + $0x140] sm:$0xff]
      %v329 = vld [vmem:[%s277 + $0x148] sm:$0xff]
      %v330 = vld [vmem:[%s277 + $0x150] sm:$0xff]
      %v331 = vld [vmem:[%s277 + $0x158] sm:$0xff]
      %v332 = vld [vmem:[%s277 + $0x160] sm:$0xff]
      %v333 = vld [vmem:[%s277 + $0x168] sm:$0xff]
      %v334 = vld [vmem:[%s277 + $0x170] sm:$0xff]
      %v335 = vld [vmem:[%s277 + $0x178] sm:$0xff]
      %v336 = vld [vmem:[%s277 + $0x180] sm:$0xff]
      %v337 = vld [vmem:[%s277 + $0x188] sm:$0xff]
      %v338 = vld [vmem:[%s277 + $0x190] sm:$0xff]
      %v339 = vld [vmem:[%s277 + $0x198] sm:$0xff]
      %v340 = vld [vmem:[%s277 + $0x1a0] sm:$0xff]
      %v341 = vld [vmem:[%s277 + $0x1a8] sm:$0xff]
      %v342 = vld [vmem:[%s277 + $0x1b0] sm:$0xff]
      %v343 = vld [vmem:[%s277 + $0x1b8] sm:$0xff]
      %v344 = vld [vmem:[%s277 + $0x1c0] sm:$0xff]
      %v345 = vld [vmem:[%s277 + $0x1c8] sm:$0xff]
      %v346 = vld [vmem:[%s277 + $0x1d0] sm:$0xff]
      %v347 = vld [vmem:[%s277 + $0x1d8] sm:$0xff]
      %v348 = vld [vmem:[%s277 + $0x1e0] sm:$0xff]
      %v349 = vld [vmem:[%s277 + $0x1e8] sm:$0xff]
      %v350 = vld [vmem:[%s277 + $0x1f0] sm:$0xff]
      %v351 = vld [vmem:[%s277 + $0x1f8] sm:$0xff]
      %v352 = vld [vmem:[%s277 + $0x200] sm:$0xff]
      %v353 = vld [vmem:[%s277 + $0x208] sm:$0xff]
      %v354 = vld [vmem:[%s277 + $0x210] sm:$0xff]
      %v355 = vld [vmem:[%s277 + $0x218] sm:$0xff]
      %v356 = vld [vmem:[%s277 + $0x220] sm:$0xff]
      %v357 = vld [vmem:[%s277 + $0x228] sm:$0xff]
      %v358 = vld [vmem:[%s277 + $0x230] sm:$0xff]
      %v359 = vld [vmem:[%s277 + $0x238] sm:$0xff]
      %v360 = vld [vmem:[%s277 + $0x240] sm:$0xff]
      %v361 = vld [vmem:[%s277 + $0x248] sm:$0xff]
      %v362 = vld [vmem:[%s277 + $0x250] sm:$0xff]
      %v363 = vld [vmem:[%s277 + $0x258] sm:$0xff]
      %v364 = vld [vmem:[%s277 + $0x260] sm:$0xff]
      %v365 = vld [vmem:[%s277 + $0x268] sm:$0xff]
      %v366 = vld [vmem:[%s277 + $0x270] sm:$0xff]
      %v367 = vld [vmem:[%s277 + $0x278] sm:$0xff]
      %v368 = vld [vmem:[%s277 + $0x280] sm:$0xff]
      %v369 = vld [vmem:[%s277 + $0x288] sm:$0xff]
      %v370 = vld [vmem:[%s277 + $0x290] sm:$0xff]
      %v371 = vld [vmem:[%s277 + $0x298] sm:$0xff]
      %v372 = vld [vmem:[%s277 + $0x2a0] sm:$0xff]
      %v373 = vld [vmem:[%s277 + $0x2a8] sm:$0xff]
      %v374 = vld [vmem:[%s277 + $0x2b0] sm:$0xff]
      %v375 = vld [vmem:[%s277 + $0x2b8] sm:$0xff]
      %v376 = vld [vmem:[%s277 + $0x2c0] sm:$0xff]
      %v377 = vld [vmem:[%s277 + $0x2c8] sm:$0xff]
      %v378 = vld [vmem:[%s277 + $0x2d0] sm:$0xff]
      %v379 = vld [vmem:[%s277 + $0x2d8] sm:$0xff]
      %v380 = vld [vmem:[%s277 + $0x2e0] sm:$0xff]
      %v381 = vld [vmem:[%s277 + $0x2e8] sm:$0xff]
      %v382 = vld [vmem:[%s277 + $0x2f0] sm:$0xff]
      %v383 = vld [vmem:[%s277 + $0x2f8] sm:$0xff]
      %v480 = vunpack.c.l.b16 %v288
      %v481 = vunpack.c.h.b16 %v288
      %v482 = vunpack.c.l.b16 %v289
      %v483 = vunpack.c.h.b16 %v289
      %v484 = vunpack.c.l.b16 %v290
      %v485 = vunpack.c.h.b16 %v290
      %v486 = vunpack.c.l.b16 %v291
      %v487 = vunpack.c.h.b16 %v291
      %v488 = vunpack.c.l.b16 %v292
      %v489 = vunpack.c.h.b16 %v292
      %v490 = vunpack.c.l.b16 %v293
      %v491 = vunpack.c.h.b16 %v293
      %v492 = vunpack.c.l.b16 %v294
      %v493 = vunpack.c.h.b16 %v294
      %v494 = vunpack.c.l.b16 %v295
      %v495 = vunpack.c.h.b16 %v295
      %v496 = vunpack.c.l.b16 %v296
      %v497 = vunpack.c.h.b16 %v296
      %v498 = vunpack.c.l.b16 %v297
      %v499 = vunpack.c.h.b16 %v297
      %v500 = vunpack.c.l.b16 %v298
      %v501 = vunpack.c.h.b16 %v298
      %v502 = vunpack.c.l.b16 %v299
      %v503 = vunpack.c.h.b16 %v299
      %v504 = vunpack.c.l.b16 %v300
      %v505 = vunpack.c.h.b16 %v300
      %v506 = vunpack.c.l.b16 %v301
      %v507 = vunpack.c.h.b16 %v301
      %v508 = vunpack.c.l.b16 %v302
      %v509 = vunpack.c.h.b16 %v302
      %v510 = vunpack.c.l.b16 %v303
      %v511 = vunpack.c.h.b16 %v303
      %v512 = vunpack.c.l.b16 %v304
      %v513 = vunpack.c.h.b16 %v304
      %v514 = vunpack.c.l.b16 %v305
      %v515 = vunpack.c.h.b16 %v305
      %v516 = vunpack.c.l.b16 %v306
      %v517 = vunpack.c.h.b16 %v306
      %v518 = vunpack.c.l.b16 %v307
      %v519 = vunpack.c.h.b16 %v307
      %v520 = vunpack.c.l.b16 %v308
      %v521 = vunpack.c.h.b16 %v308
      %v522 = vunpack.c.l.b16 %v309
      %v523 = vunpack.c.h.b16 %v309
      %v524 = vunpack.c.l.b16 %v310
      %v525 = vunpack.c.h.b16 %v310
      %v526 = vunpack.c.l.b16 %v311
      %v527 = vunpack.c.h.b16 %v311
      %v528 = vunpack.c.l.b16 %v312
      %v529 = vunpack.c.h.b16 %v312
      %v530 = vunpack.c.l.b16 %v313
      %v531 = vunpack.c.h.b16 %v313
      %v532 = vunpack.c.l.b16 %v314
      %v533 = vunpack.c.h.b16 %v314
      %v534 = vunpack.c.l.b16 %v315
      %v535 = vunpack.c.h.b16 %v315
      %v536 = vunpack.c.l.b16 %v316
      %v537 = vunpack.c.h.b16 %v316
      %v538 = vunpack.c.l.b16 %v317
      %v539 = vunpack.c.h.b16 %v317
      %v540 = vunpack.c.l.b16 %v318
      %v541 = vunpack.c.h.b16 %v318
      %v542 = vunpack.c.l.b16 %v319
      %v543 = vunpack.c.h.b16 %v319
      %v544 = vunpack.c.l.b16 %v320
      %v545 = vunpack.c.h.b16 %v320
      %v546 = vunpack.c.l.b16 %v321
      %v547 = vunpack.c.h.b16 %v321
      %v548 = vunpack.c.l.b16 %v322
      %v549 = vunpack.c.h.b16 %v322
      %v550 = vunpack.c.l.b16 %v323
      %v551 = vunpack.c.h.b16 %v323
      %v552 = vunpack.c.l.b16 %v324
      %v553 = vunpack.c.h.b16 %v324
      %v554 = vunpack.c.l.b16 %v325
      %v555 = vunpack.c.h.b16 %v325
      %v556 = vunpack.c.l.b16 %v326
      %v557 = vunpack.c.h.b16 %v326
      %v558 = vunpack.c.l.b16 %v327
      %v559 = vunpack.c.h.b16 %v327
      %v560 = vunpack.c.l.b16 %v328
      %v561 = vunpack.c.h.b16 %v328
      %v562 = vunpack.c.l.b16 %v329
      %v563 = vunpack.c.h.b16 %v329
      %v564 = vunpack.c.l.b16 %v330
      %v565 = vunpack.c.h.b16 %v330
      %v566 = vunpack.c.l.b16 %v331
      %v567 = vunpack.c.h.b16 %v331
      %v568 = vunpack.c.l.b16 %v332
      %v569 = vunpack.c.h.b16 %v332
      %v570 = vunpack.c.l.b16 %v333
      %v571 = vunpack.c.h.b16 %v333
      %v572 = vunpack.c.l.b16 %v334
      %v573 = vunpack.c.h.b16 %v334
      %v574 = vunpack.c.l.b16 %v335
      %v575 = vunpack.c.h.b16 %v335
      %v576 = vunpack.c.l.b16 %v336
      %v577 = vunpack.c.h.b16 %v336
      %v578 = vunpack.c.l.b16 %v337
      %v579 = vunpack.c.h.b16 %v337
      %v580 = vunpack.c.l.b16 %v338
      %v581 = vunpack.c.h.b16 %v338
      %v582 = vunpack.c.l.b16 %v339
      %v583 = vunpack.c.h.b16 %v339
      %v584 = vunpack.c.l.b16 %v340
      %v585 = vunpack.c.h.b16 %v340
      %v586 = vunpack.c.l.b16 %v341
      %v587 = vunpack.c.h.b16 %v341
      %v588 = vunpack.c.l.b16 %v342
      %v589 = vunpack.c.h.b16 %v342
      %v590 = vunpack.c.l.b16 %v343
      %v591 = vunpack.c.h.b16 %v343
      %v592 = vunpack.c.l.b16 %v344
      %v593 = vunpack.c.h.b16 %v344
      %v594 = vunpack.c.l.b16 %v345
      %v595 = vunpack.c.h.b16 %v345
      %v596 = vunpack.c.l.b16 %v346
      %v597 = vunpack.c.h.b16 %v346
      %v598 = vunpack.c.l.b16 %v347
      %v599 = vunpack.c.h.b16 %v347
      %v600 = vunpack.c.l.b16 %v348
      %v601 = vunpack.c.h.b16 %v348
      %v602 = vunpack.c.l.b16 %v349
      %v603 = vunpack.c.h.b16 %v349
      %v604 = vunpack.c.l.b16 %v350
      %v605 = vunpack.c.h.b16 %v350
      %v606 = vunpack.c.l.b16 %v351
      %v607 = vunpack.c.h.b16 %v351
      %v608 = vunpack.c.l.b16 %v352
      %v609 = vunpack.c.h.b16 %v352
      %v610 = vunpack.c.l.b16 %v353
      %v611 = vunpack.c.h.b16 %v353
      %v612 = vunpack.c.l.b16 %v354
      %v613 = vunpack.c.h.b16 %v354
      %v614 = vunpack.c.l.b16 %v355
      %v615 = vunpack.c.h.b16 %v355
      %v616 = vunpack.c.l.b16 %v356
      %v617 = vunpack.c.h.b16 %v356
      %v618 = vunpack.c.l.b16 %v357
      %v619 = vunpack.c.h.b16 %v357
      %v620 = vunpack.c.l.b16 %v358
      %v621 = vunpack.c.h.b16 %v358
      %v622 = vunpack.c.l.b16 %v359
      %v623 = vunpack.c.h.b16 %v359
      %v624 = vunpack.c.l.b16 %v360
      %v625 = vunpack.c.h.b16 %v360
      %v626 = vunpack.c.l.b16 %v361
      %v627 = vunpack.c.h.b16 %v361
      %v628 = vunpack.c.l.b16 %v362
      %v629 = vunpack.c.h.b16 %v362
      %v630 = vunpack.c.l.b16 %v363
      %v631 = vunpack.c.h.b16 %v363
      %v632 = vunpack.c.l.b16 %v364
      %v633 = vunpack.c.h.b16 %v364
      %v634 = vunpack.c.l.b16 %v365
      %v635 = vunpack.c.h.b16 %v365
      %v636 = vunpack.c.l.b16 %v366
      %v637 = vunpack.c.h.b16 %v366
      %v638 = vunpack.c.l.b16 %v367
      %v639 = vunpack.c.h.b16 %v367
      %v640 = vunpack.c.l.b16 %v368
      %v641 = vunpack.c.h.b16 %v368
      %v642 = vunpack.c.l.b16 %v369
      %v643 = vunpack.c.h.b16 %v369
      %v644 = vunpack.c.l.b16 %v370
      %v645 = vunpack.c.h.b16 %v370
      %v646 = vunpack.c.l.b16 %v371
      %v647 = vunpack.c.h.b16 %v371
      %v648 = vunpack.c.l.b16 %v372
      %v649 = vunpack.c.h.b16 %v372
      %v650 = vunpack.c.l.b16 %v373
      %v651 = vunpack.c.h.b16 %v373
      %v652 = vunpack.c.l.b16 %v374
      %v653 = vunpack.c.h.b16 %v374
      %v654 = vunpack.c.l.b16 %v375
      %v655 = vunpack.c.h.b16 %v375
      %v656 = vunpack.c.l.b16 %v376
      %v657 = vunpack.c.h.b16 %v376
      %v658 = vunpack.c.l.b16 %v377
      %v659 = vunpack.c.h.b16 %v377
      %v660 = vunpack.c.l.b16 %v378
      %v661 = vunpack.c.h.b16 %v378
      %v662 = vunpack.c.l.b16 %v379
      %v663 = vunpack.c.h.b16 %v379
      %v664 = vunpack.c.l.b16 %v380
      %v665 = vunpack.c.h.b16 %v380
      %v666 = vunpack.c.l.b16 %v381
      %v667 = vunpack.c.h.b16 %v381
      %v668 = vunpack.c.l.b16 %v382
      %v669 = vunpack.c.h.b16 %v382
      %v670 = vunpack.c.l.b16 %v383
      %v671 = vunpack.c.h.b16 %v383
      %v672 = vpack.c.b16 %v486, %v480
      %v673 = vpack.c.b16 %v487, %v481
      %v674 = vpack.c.b16 %v488, %v482
      %v675 = vpack.c.b16 %v489, %v483
      %v676 = vpack.c.b16 %v490, %v484
      %v677 = vpack.c.b16 %v491, %v485
      %v678 = vpack.c.b16 %v498, %v492
      %v679 = vpack.c.b16 %v499, %v493
      %v680 = vpack.c.b16 %v500, %v494
      %v681 = vpack.c.b16 %v501, %v495
      %v682 = vpack.c.b16 %v502, %v496
      %v683 = vpack.c.b16 %v503, %v497
      %v684 = vpack.c.b16 %v510, %v504
      %v685 = vpack.c.b16 %v511, %v505
      %v686 = vpack.c.b16 %v512, %v506
      %v687 = vpack.c.b16 %v513, %v507
      %v688 = vpack.c.b16 %v514, %v508
      %v689 = vpack.c.b16 %v515, %v509
      %v690 = vpack.c.b16 %v522, %v516
      %v691 = vpack.c.b16 %v523, %v517
      %v692 = vpack.c.b16 %v524, %v518
      %v693 = vpack.c.b16 %v525, %v519
      %v694 = vpack.c.b16 %v526, %v520
      %v695 = vpack.c.b16 %v527, %v521
      %v696 = vpack.c.b16 %v534, %v528
      %v697 = vpack.c.b16 %v535, %v529
      %v698 = vpack.c.b16 %v536, %v530
      %v699 = vpack.c.b16 %v537, %v531
      %v700 = vpack.c.b16 %v538, %v532
      %v701 = vpack.c.b16 %v539, %v533
      %v702 = vpack.c.b16 %v546, %v540
      %v703 = vpack.c.b16 %v547, %v541
      %v704 = vpack.c.b16 %v548, %v542
      %v705 = vpack.c.b16 %v549, %v543
      %v706 = vpack.c.b16 %v550, %v544
      %v707 = vpack.c.b16 %v551, %v545
      %v708 = vpack.c.b16 %v558, %v552
      %v709 = vpack.c.b16 %v559, %v553
      %v710 = vpack.c.b16 %v560, %v554
      %v711 = vpack.c.b16 %v561, %v555
      %v712 = vpack.c.b16 %v562, %v556
      %v713 = vpack.c.b16 %v563, %v557
      %v714 = vpack.c.b16 %v570, %v564
      %v715 = vpack.c.b16 %v571, %v565
      %v716 = vpack.c.b16 %v572, %v566
      %v717 = vpack.c.b16 %v573, %v567
      %v718 = vpack.c.b16 %v574, %v568
      %v719 = vpack.c.b16 %v575, %v569
      %v720 = vpack.c.b16 %v582, %v576
      %v721 = vpack.c.b16 %v583, %v577
      %v722 = vpack.c.b16 %v584, %v578
      %v723 = vpack.c.b16 %v585, %v579
      %v724 = vpack.c.b16 %v586, %v580
      %v725 = vpack.c.b16 %v587, %v581
      %v726 = vpack.c.b16 %v594, %v588
      %v727 = vpack.c.b16 %v595, %v589
      %v728 = vpack.c.b16 %v596, %v590
      %v729 = vpack.c.b16 %v597, %v591
      %v730 = vpack.c.b16 %v598, %v592
      %v731 = vpack.c.b16 %v599, %v593
      %v732 = vpack.c.b16 %v606, %v600
      %v733 = vpack.c.b16 %v607, %v601
      %v734 = vpack.c.b16 %v608, %v602
      %v735 = vpack.c.b16 %v609, %v603
      %v736 = vpack.c.b16 %v610, %v604
      %v737 = vpack.c.b16 %v611, %v605
      %v738 = vpack.c.b16 %v618, %v612
      %v739 = vpack.c.b16 %v619, %v613
      %v740 = vpack.c.b16 %v620, %v614
      %v741 = vpack.c.b16 %v621, %v615
      %v742 = vpack.c.b16 %v622, %v616
      %v743 = vpack.c.b16 %v623, %v617
      %v744 = vpack.c.b16 %v630, %v624
      %v745 = vpack.c.b16 %v631, %v625
      %v746 = vpack.c.b16 %v632, %v626
      %v747 = vpack.c.b16 %v633, %v627
      %v748 = vpack.c.b16 %v634, %v628
      %v749 = vpack.c.b16 %v635, %v629
      %v750 = vpack.c.b16 %v642, %v636
      %v751 = vpack.c.b16 %v643, %v637
      %v752 = vpack.c.b16 %v644, %v638
      %v753 = vpack.c.b16 %v645, %v639
      %v754 = vpack.c.b16 %v646, %v640
      %v755 = vpack.c.b16 %v647, %v641
      %v756 = vpack.c.b16 %v654, %v648
      %v757 = vpack.c.b16 %v655, %v649
      %v758 = vpack.c.b16 %v656, %v650
      %v759 = vpack.c.b16 %v657, %v651
      %v760 = vpack.c.b16 %v658, %v652
      %v761 = vpack.c.b16 %v659, %v653
      %v762 = vpack.c.b16 %v666, %v660
      %v763 = vpack.c.b16 %v667, %v661
      %v764 = vpack.c.b16 %v668, %v662
      %v765 = vpack.c.b16 %v669, %v663
      %v766 = vpack.c.b16 %v670, %v664
      %v767 = vpack.c.b16 %v671, %v665
      %v864 = vld [vmem:[%s2] sm:$0x1]
      %v865 = vld [vmem:[%s1] sm:$0xf]
      %v866 = vld [vmem:[%s1 + $0x4] sm:$0xf]
      %v867 = vld [vmem:[%s1 + $0x8] sm:$0xf]
      %v868 = vld [vmem:[%s1 + $0xc] sm:$0xf]
      %v869 = vld [vmem:[%s1 + $0x10] sm:$0xf]
      %v870 = vld [vmem:[%s1 + $0x14] sm:$0xf]
      %v871 = vld [vmem:[%s1 + $0x18] sm:$0xf]
      %v872 = vld [vmem:[%s1 + $0x1c] sm:$0xf]
      %v873 = vld [vmem:[%s1 + $0x20] sm:$0xf]
      %v874 = vld [vmem:[%s1 + $0x24] sm:$0xf]
      %v875 = vld [vmem:[%s1 + $0x28] sm:$0xf]
      %v876 = vld [vmem:[%s1 + $0x2c] sm:$0xf]
      %v877 = vld [vmem:[%s1 + $0x30] sm:$0xf]
      %v878 = vld [vmem:[%s1 + $0x34] sm:$0xf]
      %v879 = vld [vmem:[%s1 + $0x38] sm:$0xf]
      %v880 = vld [vmem:[%s1 + $0x3c] sm:$0xf]
      %v881 = vld [vmem:[%s1 + $0x40] sm:$0xf]
      %v882 = vld [vmem:[%s1 + $0x44] sm:$0xf]
      %v883 = vld [vmem:[%s1 + $0x48] sm:$0xf]
      %v884 = vld [vmem:[%s1 + $0x4c] sm:$0xf]
      %v885 = vld [vmem:[%s1 + $0x50] sm:$0xf]
      %v886 = vld [vmem:[%s1 + $0x54] sm:$0xf]
      %v887 = vld [vmem:[%s1 + $0x58] sm:$0xf]
      %v888 = vld [vmem:[%s1 + $0x5c] sm:$0xf]
      %v889 = vld [vmem:[%s1 + $0x60] sm:$0xf]
      %v890 = vld [vmem:[%s1 + $0x64] sm:$0xf]
      %v891 = vld [vmem:[%s1 + $0x68] sm:$0xf]
      %v892 = vld [vmem:[%s1 + $0x6c] sm:$0xf]
      %v893 = vld [vmem:[%s1 + $0x70] sm:$0xf]
      %v894 = vld [vmem:[%s1 + $0x74] sm:$0xf]
      %v895 = vld [vmem:[%s1 + $0x78] sm:$0xf]
      %v896 = vld [vmem:[%s1 + $0x7c] sm:$0xf]
      %v897 = vld [vmem:[%s1 + $0x80] sm:$0xf]
      %v898 = vld [vmem:[%s1 + $0x84] sm:$0xf]
      %v899 = vld [vmem:[%s1 + $0x88] sm:$0xf]
      %v900 = vld [vmem:[%s1 + $0x8c] sm:$0xf]
      %v901 = vld [vmem:[%s1 + $0x90] sm:$0xf]
      %v902 = vld [vmem:[%s1 + $0x94] sm:$0xf]
      %v903 = vld [vmem:[%s1 + $0x98] sm:$0xf]
      %v904 = vld [vmem:[%s1 + $0x9c] sm:$0xf]
      %v905 = vld [vmem:[%s1 + $0xa0] sm:$0xf]
      %v906 = vld [vmem:[%s1 + $0xa4] sm:$0xf]
      %v907 = vld [vmem:[%s1 + $0xa8] sm:$0xf]
      %v908 = vld [vmem:[%s1 + $0xac] sm:$0xf]
      %v909 = vld [vmem:[%s1 + $0xb0] sm:$0xf]
      %v910 = vld [vmem:[%s1 + $0xb4] sm:$0xf]
      %v911 = vld [vmem:[%s1 + $0xb8] sm:$0xf]
      %v912 = vld [vmem:[%s1 + $0xbc] sm:$0xf]
      %v913 = vld [vmem:[%s1 + $0xc0] sm:$0xf]
      %v914 = vld [vmem:[%s1 + $0xc4] sm:$0xf]
      %v915 = vld [vmem:[%s1 + $0xc8] sm:$0xf]
      %v916 = vld [vmem:[%s1 + $0xcc] sm:$0xf]
      %v917 = vld [vmem:[%s1 + $0xd0] sm:$0xf]
      %v918 = vld [vmem:[%s1 + $0xd4] sm:$0xf]
      %v919 = vld [vmem:[%s1 + $0xd8] sm:$0xf]
      %v920 = vld [vmem:[%s1 + $0xdc] sm:$0xf]
      %v921 = vld [vmem:[%s1 + $0xe0] sm:$0xf]
      %v922 = vld [vmem:[%s1 + $0xe4] sm:$0xf]
      %v923 = vld [vmem:[%s1 + $0xe8] sm:$0xf]
      %v924 = vld [vmem:[%s1 + $0xec] sm:$0xf]
      %v925 = vld [vmem:[%s1 + $0xf0] sm:$0xf]
      %v926 = vld [vmem:[%s1 + $0xf4] sm:$0xf]
      %v927 = vld [vmem:[%s1 + $0xf8] sm:$0xf]
      %v928 = vld [vmem:[%s1 + $0xfc] sm:$0xf]
      %v929 = vld [vmem:[%s1 + $0x100] sm:$0xf]
      %v930 = vld [vmem:[%s1 + $0x104] sm:$0xf]
      %v931 = vld [vmem:[%s1 + $0x108] sm:$0xf]
      %v932 = vld [vmem:[%s1 + $0x10c] sm:$0xf]
      %v933 = vld [vmem:[%s1 + $0x110] sm:$0xf]
      %v934 = vld [vmem:[%s1 + $0x114] sm:$0xf]
      %v935 = vld [vmem:[%s1 + $0x118] sm:$0xf]
      %v936 = vld [vmem:[%s1 + $0x11c] sm:$0xf]
      %v937 = vld [vmem:[%s1 + $0x120] sm:$0xf]
      %v938 = vld [vmem:[%s1 + $0x124] sm:$0xf]
      %v939 = vld [vmem:[%s1 + $0x128] sm:$0xf]
      %v940 = vld [vmem:[%s1 + $0x12c] sm:$0xf]
      %v941 = vld [vmem:[%s1 + $0x130] sm:$0xf]
      %v942 = vld [vmem:[%s1 + $0x134] sm:$0xf]
      %v943 = vld [vmem:[%s1 + $0x138] sm:$0xf]
      %v944 = vld [vmem:[%s1 + $0x13c] sm:$0xf]
      %v945 = vld [vmem:[%s1 + $0x140] sm:$0xf]
      %v946 = vld [vmem:[%s1 + $0x144] sm:$0xf]
      %v947 = vld [vmem:[%s1 + $0x148] sm:$0xf]
      %v948 = vld [vmem:[%s1 + $0x14c] sm:$0xf]
      %v949 = vld [vmem:[%s1 + $0x150] sm:$0xf]
      %v950 = vld [vmem:[%s1 + $0x154] sm:$0xf]
      %v951 = vld [vmem:[%s1 + $0x158] sm:$0xf]
      %v952 = vld [vmem:[%s1 + $0x15c] sm:$0xf]
      %v953 = vld [vmem:[%s1 + $0x160] sm:$0xf]
      %v954 = vld [vmem:[%s1 + $0x164] sm:$0xf]
      %v955 = vld [vmem:[%s1 + $0x168] sm:$0xf]
      %v956 = vld [vmem:[%s1 + $0x16c] sm:$0xf]
      %v957 = vld [vmem:[%s1 + $0x170] sm:$0xf]
      %v958 = vld [vmem:[%s1 + $0x174] sm:$0xf]
      %v959 = vld [vmem:[%s1 + $0x178] sm:$0xf]
      %v960 = vld [vmem:[%s1 + $0x17c] sm:$0xf]
      %v1057 = vunpack.c.l.b16 %v865
      %v1058 = vunpack.c.l.b16 %v866
      %v1059 = vunpack.c.l.b16 %v867
      %v1060 = vunpack.c.l.b16 %v868
      %v1061 = vunpack.c.l.b16 %v869
      %v1062 = vunpack.c.l.b16 %v870
      %v1063 = vunpack.c.l.b16 %v871
      %v1064 = vunpack.c.l.b16 %v872
      %v1065 = vunpack.c.l.b16 %v873
      %v1066 = vunpack.c.l.b16 %v874
      %v1067 = vunpack.c.l.b16 %v875
      %v1068 = vunpack.c.l.b16 %v876
      %v1069 = vunpack.c.l.b16 %v877
      %v1070 = vunpack.c.l.b16 %v878
      %v1071 = vunpack.c.l.b16 %v879
      %v1072 = vunpack.c.l.b16 %v880
      %v1073 = vunpack.c.l.b16 %v881
      %v1074 = vunpack.c.l.b16 %v882
      %v1075 = vunpack.c.l.b16 %v883
      %v1076 = vunpack.c.l.b16 %v884
      %v1077 = vunpack.c.l.b16 %v885
      %v1078 = vunpack.c.l.b16 %v886
      %v1079 = vunpack.c.l.b16 %v887
      %v1080 = vunpack.c.l.b16 %v888
      %v1081 = vunpack.c.l.b16 %v889
      %v1082 = vunpack.c.l.b16 %v890
      %v1083 = vunpack.c.l.b16 %v891
      %v1084 = vunpack.c.l.b16 %v892
      %v1085 = vunpack.c.l.b16 %v893
      %v1086 = vunpack.c.l.b16 %v894
      %v1087 = vunpack.c.l.b16 %v895
      %v1088 = vunpack.c.l.b16 %v896
      %v1089 = vunpack.c.l.b16 %v897
      %v1090 = vunpack.c.l.b16 %v898
      %v1091 = vunpack.c.l.b16 %v899
      %v1092 = vunpack.c.l.b16 %v900
      %v1093 = vunpack.c.l.b16 %v901
      %v1094 = vunpack.c.l.b16 %v902
      %v1095 = vunpack.c.l.b16 %v903
      %v1096 = vunpack.c.l.b16 %v904
      %v1097 = vunpack.c.l.b16 %v905
      %v1098 = vunpack.c.l.b16 %v906
      %v1099 = vunpack.c.l.b16 %v907
      %v1100 = vunpack.c.l.b16 %v908
      %v1101 = vunpack.c.l.b16 %v909
      %v1102 = vunpack.c.l.b16 %v910
      %v1103 = vunpack.c.l.b16 %v911
      %v1104 = vunpack.c.l.b16 %v912
      %v1105 = vunpack.c.l.b16 %v913
      %v1106 = vunpack.c.l.b16 %v914
      %v1107 = vunpack.c.l.b16 %v915
      %v1108 = vunpack.c.l.b16 %v916
      %v1109 = vunpack.c.l.b16 %v917
      %v1110 = vunpack.c.l.b16 %v918
      %v1111 = vunpack.c.l.b16 %v919
      %v1112 = vunpack.c.l.b16 %v920
      %v1113 = vunpack.c.l.b16 %v921
      %v1114 = vunpack.c.l.b16 %v922
      %v1115 = vunpack.c.l.b16 %v923
      %v1116 = vunpack.c.l.b16 %v924
      %v1117 = vunpack.c.l.b16 %v925
      %v1118 = vunpack.c.l.b16 %v926
      %v1119 = vunpack.c.l.b16 %v927
      %v1120 = vunpack.c.l.b16 %v928
      %v1121 = vunpack.c.l.b16 %v929
      %v1122 = vunpack.c.l.b16 %v930
      %v1123 = vunpack.c.l.b16 %v931
      %v1124 = vunpack.c.l.b16 %v932
      %v1125 = vunpack.c.l.b16 %v933
      %v1126 = vunpack.c.l.b16 %v934
      %v1127 = vunpack.c.l.b16 %v935
      %v1128 = vunpack.c.l.b16 %v936
      %v1129 = vunpack.c.l.b16 %v937
      %v1130 = vunpack.c.l.b16 %v938
      %v1131 = vunpack.c.l.b16 %v939
      %v1132 = vunpack.c.l.b16 %v940
      %v1133 = vunpack.c.l.b16 %v941
      %v1134 = vunpack.c.l.b16 %v942
      %v1135 = vunpack.c.l.b16 %v943
      %v1136 = vunpack.c.l.b16 %v944
      %v1137 = vunpack.c.l.b16 %v945
      %v1138 = vunpack.c.l.b16 %v946
      %v1139 = vunpack.c.l.b16 %v947
      %v1140 = vunpack.c.l.b16 %v948
      %v1141 = vunpack.c.l.b16 %v949
      %v1142 = vunpack.c.l.b16 %v950
      %v1143 = vunpack.c.l.b16 %v951
      %v1144 = vunpack.c.l.b16 %v952
      %v1145 = vunpack.c.l.b16 %v953
      %v1146 = vunpack.c.l.b16 %v954
      %v1147 = vunpack.c.l.b16 %v955
      %v1148 = vunpack.c.l.b16 %v956
      %v1149 = vunpack.c.l.b16 %v957
      %v1150 = vunpack.c.l.b16 %v958
      %v1151 = vunpack.c.l.b16 %v959
      %v1152 = vunpack.c.l.b16 %v960
      %v1153 = vpack.c.b16 %v1058, %v1057
      %v1154 = vpack.c.b16 %v1060, %v1059
      %v1155 = vpack.c.b16 %v1062, %v1061
      %v1156 = vpack.c.b16 %v1064, %v1063
      %v1157 = vpack.c.b16 %v1066, %v1065
      %v1158 = vpack.c.b16 %v1068, %v1067
      %v1159 = vpack.c.b16 %v1070, %v1069
      %v1160 = vpack.c.b16 %v1072, %v1071
      %v1161 = vpack.c.b16 %v1074, %v1073
      %v1162 = vpack.c.b16 %v1076, %v1075
      %v1163 = vpack.c.b16 %v1078, %v1077
      %v1164 = vpack.c.b16 %v1080, %v1079
      %v1165 = vpack.c.b16 %v1082, %v1081
      %v1166 = vpack.c.b16 %v1084, %v1083
      %v1167 = vpack.c.b16 %v1086, %v1085
      %v1168 = vpack.c.b16 %v1088, %v1087
      %v1169 = vpack.c.b16 %v1090, %v1089
      %v1170 = vpack.c.b16 %v1092, %v1091
      %v1171 = vpack.c.b16 %v1094, %v1093
      %v1172 = vpack.c.b16 %v1096, %v1095
      %v1173 = vpack.c.b16 %v1098, %v1097
      %v1174 = vpack.c.b16 %v1100, %v1099
      %v1175 = vpack.c.b16 %v1102, %v1101
      %v1176 = vpack.c.b16 %v1104, %v1103
      %v1177 = vpack.c.b16 %v1106, %v1105
      %v1178 = vpack.c.b16 %v1108, %v1107
      %v1179 = vpack.c.b16 %v1110, %v1109
      %v1180 = vpack.c.b16 %v1112, %v1111
      %v1181 = vpack.c.b16 %v1114, %v1113
      %v1182 = vpack.c.b16 %v1116, %v1115
      %v1183 = vpack.c.b16 %v1118, %v1117
      %v1184 = vpack.c.b16 %v1120, %v1119
      %v1185 = vpack.c.b16 %v1122, %v1121
      %v1186 = vpack.c.b16 %v1124, %v1123
      %v1187 = vpack.c.b16 %v1126, %v1125
      %v1188 = vpack.c.b16 %v1128, %v1127
      %v1189 = vpack.c.b16 %v1130, %v1129
      %v1190 = vpack.c.b16 %v1132, %v1131
      %v1191 = vpack.c.b16 %v1134, %v1133
      %v1192 = vpack.c.b16 %v1136, %v1135
      %v1193 = vpack.c.b16 %v1138, %v1137
      %v1194 = vpack.c.b16 %v1140, %v1139
      %v1195 = vpack.c.b16 %v1142, %v1141
      %v1196 = vpack.c.b16 %v1144, %v1143
      %v1197 = vpack.c.b16 %v1146, %v1145
      %v1198 = vpack.c.b16 %v1148, %v1147
      %v1199 = vpack.c.b16 %v1150, %v1149
      %v1200 = vpack.c.b16 %v1152, %v1151
      %1249 = vmatpush.bf16.msra.mxu0 %v1160
      %1250 = vmatpush.bf16.msra.mxu0 %v1159
      %1251 = vmatpush.bf16.msra.mxu0 %v1158
      %1252 = vmatpush.bf16.msra.mxu0 %v1157
      %1253 = vmatpush.bf16.msra.mxu0 %v1156
      %1254 = vmatpush.bf16.msra.mxu0 %v1155
      %1255 = vmatpush.bf16.msra.mxu0 %v1154
      %1256 = vmatpush.bf16.msra.mxu0 %v1153
      %1257 = vmatmul.bf16.gmra.mxu0 %v672
      %v1258 = vpop.f32.mrf.mxu0
      %v1259 = vadd.f32 0.0, %v1258
      %v1260 = vpop.f32.mrf.mxu0
      %v1261 = vadd.f32 0.0, %v1260
      %1262 = vmatmul.bf16.gmra.mxu0 %v678
      %v1263 = vpop.f32.mrf.mxu0
      %v1264 = vadd.f32 0.0, %v1263
      %v1265 = vpop.f32.mrf.mxu0
      %v1266 = vadd.f32 0.0, %v1265
      %1267 = vmatmul.bf16.gmra.mxu0 %v684
      %v1268 = vpop.f32.mrf.mxu0
      %v1269 = vadd.f32 0.0, %v1268
      %v1270 = vpop.f32.mrf.mxu0
      %v1271 = vadd.f32 0.0, %v1270
      %1272 = vmatmul.bf16.gmra.mxu0 %v690
      %v1273 = vpop.f32.mrf.mxu0
      %v1274 = vadd.f32 0.0, %v1273
      %v1275 = vpop.f32.mrf.mxu0
      %v1276 = vadd.f32 0.0, %v1275
      %1277 = vmatmul.bf16.gmra.mxu0 %v696
      %v1278 = vpop.f32.mrf.mxu0
      %v1279 = vadd.f32 0.0, %v1278
      %v1280 = vpop.f32.mrf.mxu0
      %v1281 = vadd.f32 0.0, %v1280
      %1282 = vmatmul.bf16.gmra.mxu0 %v702
      %v1283 = vpop.f32.mrf.mxu0
      %v1284 = vadd.f32 0.0, %v1283
      %v1285 = vpop.f32.mrf.mxu0
      %v1286 = vadd.f32 0.0, %v1285
      %1287 = vmatmul.bf16.gmra.mxu0 %v708
      %v1288 = vpop.f32.mrf.mxu0
      %v1289 = vadd.f32 0.0, %v1288
      %v1290 = vpop.f32.mrf.mxu0
      %v1291 = vadd.f32 0.0, %v1290
      %1292 = vmatmul.bf16.gmra.mxu0 %v714
      %v1293 = vpop.f32.mrf.mxu0
      %v1294 = vadd.f32 0.0, %v1293
      %v1295 = vpop.f32.mrf.mxu0
      %v1296 = vadd.f32 0.0, %v1295
      %1297 = vmatmul.bf16.gmra.mxu0 %v720
      %v1298 = vpop.f32.mrf.mxu0
      %v1299 = vadd.f32 0.0, %v1298
      %v1300 = vpop.f32.mrf.mxu0
      %v1301 = vadd.f32 0.0, %v1300
      %1302 = vmatmul.bf16.gmra.mxu0 %v726
      %v1303 = vpop.f32.mrf.mxu0
      %v1304 = vadd.f32 0.0, %v1303
      %v1305 = vpop.f32.mrf.mxu0
      %v1306 = vadd.f32 0.0, %v1305
      %1307 = vmatmul.bf16.gmra.mxu0 %v732
      %v1308 = vpop.f32.mrf.mxu0
      %v1309 = vadd.f32 0.0, %v1308
      %v1310 = vpop.f32.mrf.mxu0
      %v1311 = vadd.f32 0.0, %v1310
      %1312 = vmatmul.bf16.gmra.mxu0 %v738
      %v1313 = vpop.f32.mrf.mxu0
      %v1314 = vadd.f32 0.0, %v1313
      %v1315 = vpop.f32.mrf.mxu0
      %v1316 = vadd.f32 0.0, %v1315
      %1317 = vmatmul.bf16.gmra.mxu0 %v744
      %v1318 = vpop.f32.mrf.mxu0
      %v1319 = vadd.f32 0.0, %v1318
      %v1320 = vpop.f32.mrf.mxu0
      %v1321 = vadd.f32 0.0, %v1320
      %1322 = vmatmul.bf16.gmra.mxu0 %v750
      %v1323 = vpop.f32.mrf.mxu0
      %v1324 = vadd.f32 0.0, %v1323
      %v1325 = vpop.f32.mrf.mxu0
      %v1326 = vadd.f32 0.0, %v1325
      %1327 = vmatmul.bf16.gmra.mxu0 %v756
      %v1328 = vpop.f32.mrf.mxu0
      %v1329 = vadd.f32 0.0, %v1328
      %v1330 = vpop.f32.mrf.mxu0
      %v1331 = vadd.f32 0.0, %v1330
      %1332 = vmatmul.bf16.gmra.mxu0 %v762
      %v1333 = vpop.f32.mrf.mxu0
      %v1334 = vadd.f32 0.0, %v1333
      %v1335 = vpop.f32.mrf.mxu0
      %v1336 = vadd.f32 0.0, %v1335
      %1337 = vdwg.mxu0
      %1338 = vmatpush.bf16.msra.mxu0 %v1168
      %1339 = vmatpush.bf16.msra.mxu0 %v1167
      %1340 = vmatpush.bf16.msra.mxu0 %v1166
      %1341 = vmatpush.bf16.msra.mxu0 %v1165
      %1342 = vmatpush.bf16.msra.mxu0 %v1164
      %1343 = vmatpush.bf16.msra.mxu0 %v1163
      %1344 = vmatpush.bf16.msra.mxu0 %v1162
      %1345 = vmatpush.bf16.msra.mxu0 %v1161
      %1346 = vmatmul.bf16.gmra.mxu0 %v673
      %v1347 = vpop.f32.mrf.mxu0
      %v1348 = vadd.f32 %v1259, %v1347
      %v1349 = vpop.f32.mrf.mxu0
      %v1350 = vadd.f32 %v1261, %v1349
      %1351 = vmatmul.bf16.gmra.mxu0 %v679
      %v1352 = vpop.f32.mrf.mxu0
      %v1353 = vadd.f32 %v1264, %v1352
      %v1354 = vpop.f32.mrf.mxu0
      %v1355 = vadd.f32 %v1266, %v1354
      %1356 = vmatmul.bf16.gmra.mxu0 %v685
      %v1357 = vpop.f32.mrf.mxu0
      %v1358 = vadd.f32 %v1269, %v1357
      %v1359 = vpop.f32.mrf.mxu0
      %v1360 = vadd.f32 %v1271, %v1359
      %1361 = vmatmul.bf16.gmra.mxu0 %v691
      %v1362 = vpop.f32.mrf.mxu0
      %v1363 = vadd.f32 %v1274, %v1362
      %v1364 = vpop.f32.mrf.mxu0
      %v1365 = vadd.f32 %v1276, %v1364
      %1366 = vmatmul.bf16.gmra.mxu0 %v697
      %v1367 = vpop.f32.mrf.mxu0
      %v1368 = vadd.f32 %v1279, %v1367
      %v1369 = vpop.f32.mrf.mxu0
      %v1370 = vadd.f32 %v1281, %v1369
      %1371 = vmatmul.bf16.gmra.mxu0 %v703
      %v1372 = vpop.f32.mrf.mxu0
      %v1373 = vadd.f32 %v1284, %v1372
      %v1374 = vpop.f32.mrf.mxu0
      %v1375 = vadd.f32 %v1286, %v1374
      %1376 = vmatmul.bf16.gmra.mxu0 %v709
      %v1377 = vpop.f32.mrf.mxu0
      %v1378 = vadd.f32 %v1289, %v1377
      %v1379 = vpop.f32.mrf.mxu0
      %v1380 = vadd.f32 %v1291, %v1379
      %1381 = vmatmul.bf16.gmra.mxu0 %v715
      %v1382 = vpop.f32.mrf.mxu0
      %v1383 = vadd.f32 %v1294, %v1382
      %v1384 = vpop.f32.mrf.mxu0
      %v1385 = vadd.f32 %v1296, %v1384
      %1386 = vmatmul.bf16.gmra.mxu0 %v721
      %v1387 = vpop.f32.mrf.mxu0
      %v1388 = vadd.f32 %v1299, %v1387
      %v1389 = vpop.f32.mrf.mxu0
      %v1390 = vadd.f32 %v1301, %v1389
      %1391 = vmatmul.bf16.gmra.mxu0 %v727
      %v1392 = vpop.f32.mrf.mxu0
      %v1393 = vadd.f32 %v1304, %v1392
      %v1394 = vpop.f32.mrf.mxu0
      %v1395 = vadd.f32 %v1306, %v1394
      %1396 = vmatmul.bf16.gmra.mxu0 %v733
      %v1397 = vpop.f32.mrf.mxu0
      %v1398 = vadd.f32 %v1309, %v1397
      %v1399 = vpop.f32.mrf.mxu0
      %v1400 = vadd.f32 %v1311, %v1399
      %1401 = vmatmul.bf16.gmra.mxu0 %v739
      %v1402 = vpop.f32.mrf.mxu0
      %v1403 = vadd.f32 %v1314, %v1402
      %v1404 = vpop.f32.mrf.mxu0
      %v1405 = vadd.f32 %v1316, %v1404
      %1406 = vmatmul.bf16.gmra.mxu0 %v745
      %v1407 = vpop.f32.mrf.mxu0
      %v1408 = vadd.f32 %v1319, %v1407
      %v1409 = vpop.f32.mrf.mxu0
      %v1410 = vadd.f32 %v1321, %v1409
      %1411 = vmatmul.bf16.gmra.mxu0 %v751
      %v1412 = vpop.f32.mrf.mxu0
      %v1413 = vadd.f32 %v1324, %v1412
      %v1414 = vpop.f32.mrf.mxu0
      %v1415 = vadd.f32 %v1326, %v1414
      %1416 = vmatmul.bf16.gmra.mxu0 %v757
      %v1417 = vpop.f32.mrf.mxu0
      %v1418 = vadd.f32 %v1329, %v1417
      %v1419 = vpop.f32.mrf.mxu0
      %v1420 = vadd.f32 %v1331, %v1419
      %1421 = vmatmul.bf16.gmra.mxu0 %v763
      %v1422 = vpop.f32.mrf.mxu0
      %v1423 = vadd.f32 %v1334, %v1422
      %v1424 = vpop.f32.mrf.mxu0
      %v1425 = vadd.f32 %v1336, %v1424
      %1426 = vdwg.mxu0
      %1427 = vmatpush.bf16.msra.mxu0 %v1176
      %1428 = vmatpush.bf16.msra.mxu0 %v1175
      %1429 = vmatpush.bf16.msra.mxu0 %v1174
      %1430 = vmatpush.bf16.msra.mxu0 %v1173
      %1431 = vmatpush.bf16.msra.mxu0 %v1172
      %1432 = vmatpush.bf16.msra.mxu0 %v1171
      %1433 = vmatpush.bf16.msra.mxu0 %v1170
      %1434 = vmatpush.bf16.msra.mxu0 %v1169
      %1435 = vmatmul.bf16.gmra.mxu0 %v674
      %v1436 = vpop.f32.mrf.mxu0
      %v1437 = vadd.f32 %v1348, %v1436
      %v1438 = vpop.f32.mrf.mxu0
      %v1439 = vadd.f32 %v1350, %v1438
      %1440 = vmatmul.bf16.gmra.mxu0 %v680
      %v1441 = vpop.f32.mrf.mxu0
      %v1442 = vadd.f32 %v1353, %v1441
      %v1443 = vpop.f32.mrf.mxu0
      %v1444 = vadd.f32 %v1355, %v1443
      %1445 = vmatmul.bf16.gmra.mxu0 %v686
      %v1446 = vpop.f32.mrf.mxu0
      %v1447 = vadd.f32 %v1358, %v1446
      %v1448 = vpop.f32.mrf.mxu0
      %v1449 = vadd.f32 %v1360, %v1448
      %1450 = vmatmul.bf16.gmra.mxu0 %v692
      %v1451 = vpop.f32.mrf.mxu0
      %v1452 = vadd.f32 %v1363, %v1451
      %v1453 = vpop.f32.mrf.mxu0
      %v1454 = vadd.f32 %v1365, %v1453
      %1455 = vmatmul.bf16.gmra.mxu0 %v698
      %v1456 = vpop.f32.mrf.mxu0
      %v1457 = vadd.f32 %v1368, %v1456
      %v1458 = vpop.f32.mrf.mxu0
      %v1459 = vadd.f32 %v1370, %v1458
      %1460 = vmatmul.bf16.gmra.mxu0 %v704
      %v1461 = vpop.f32.mrf.mxu0
      %v1462 = vadd.f32 %v1373, %v1461
      %v1463 = vpop.f32.mrf.mxu0
      %v1464 = vadd.f32 %v1375, %v1463
      %1465 = vmatmul.bf16.gmra.mxu0 %v710
      %v1466 = vpop.f32.mrf.mxu0
      %v1467 = vadd.f32 %v1378, %v1466
      %v1468 = vpop.f32.mrf.mxu0
      %v1469 = vadd.f32 %v1380, %v1468
      %1470 = vmatmul.bf16.gmra.mxu0 %v716
      %v1471 = vpop.f32.mrf.mxu0
      %v1472 = vadd.f32 %v1383, %v1471
      %v1473 = vpop.f32.mrf.mxu0
      %v1474 = vadd.f32 %v1385, %v1473
      %1475 = vmatmul.bf16.gmra.mxu0 %v722
      %v1476 = vpop.f32.mrf.mxu0
      %v1477 = vadd.f32 %v1388, %v1476
      %v1478 = vpop.f32.mrf.mxu0
      %v1479 = vadd.f32 %v1390, %v1478
      %1480 = vmatmul.bf16.gmra.mxu0 %v728
      %v1481 = vpop.f32.mrf.mxu0
      %v1482 = vadd.f32 %v1393, %v1481
      %v1483 = vpop.f32.mrf.mxu0
      %v1484 = vadd.f32 %v1395, %v1483
      %1485 = vmatmul.bf16.gmra.mxu0 %v734
      %v1486 = vpop.f32.mrf.mxu0
      %v1487 = vadd.f32 %v1398, %v1486
      %v1488 = vpop.f32.mrf.mxu0
      %v1489 = vadd.f32 %v1400, %v1488
      %1490 = vmatmul.bf16.gmra.mxu0 %v740
      %v1491 = vpop.f32.mrf.mxu0
      %v1492 = vadd.f32 %v1403, %v1491
      %v1493 = vpop.f32.mrf.mxu0
      %v1494 = vadd.f32 %v1405, %v1493
      %1495 = vmatmul.bf16.gmra.mxu0 %v746
      %v1496 = vpop.f32.mrf.mxu0
      %v1497 = vadd.f32 %v1408, %v1496
      %v1498 = vpop.f32.mrf.mxu0
      %v1499 = vadd.f32 %v1410, %v1498
      %1500 = vmatmul.bf16.gmra.mxu0 %v752
      %v1501 = vpop.f32.mrf.mxu0
      %v1502 = vadd.f32 %v1413, %v1501
      %v1503 = vpop.f32.mrf.mxu0
      %v1504 = vadd.f32 %v1415, %v1503
      %1505 = vmatmul.bf16.gmra.mxu0 %v758
      %v1506 = vpop.f32.mrf.mxu0
      %v1507 = vadd.f32 %v1418, %v1506
      %v1508 = vpop.f32.mrf.mxu0
      %v1509 = vadd.f32 %v1420, %v1508
      %1510 = vmatmul.bf16.gmra.mxu0 %v764
      %v1511 = vpop.f32.mrf.mxu0
      %v1512 = vadd.f32 %v1423, %v1511
      %v1513 = vpop.f32.mrf.mxu0
      %v1514 = vadd.f32 %v1425, %v1513
      %1515 = vdwg.mxu0
      %1516 = vmatpush.bf16.msra.mxu0 %v1184
      %1517 = vmatpush.bf16.msra.mxu0 %v1183
      %1518 = vmatpush.bf16.msra.mxu0 %v1182
      %1519 = vmatpush.bf16.msra.mxu0 %v1181
      %1520 = vmatpush.bf16.msra.mxu0 %v1180
      %1521 = vmatpush.bf16.msra.mxu0 %v1179
      %1522 = vmatpush.bf16.msra.mxu0 %v1178
      %1523 = vmatpush.bf16.msra.mxu0 %v1177
      %1524 = vmatmul.bf16.gmra.mxu0 %v675
      %v1525 = vpop.f32.mrf.mxu0
      %v1526 = vadd.f32 %v1437, %v1525
      %v1527 = vpop.f32.mrf.mxu0
      %v1528 = vadd.f32 %v1439, %v1527
      %1529 = vmatmul.bf16.gmra.mxu0 %v681
      %v1530 = vpop.f32.mrf.mxu0
      %v1531 = vadd.f32 %v1442, %v1530
      %v1532 = vpop.f32.mrf.mxu0
      %v1533 = vadd.f32 %v1444, %v1532
      %1534 = vmatmul.bf16.gmra.mxu0 %v687
      %v1535 = vpop.f32.mrf.mxu0
      %v1536 = vadd.f32 %v1447, %v1535
      %v1537 = vpop.f32.mrf.mxu0
      %v1538 = vadd.f32 %v1449, %v1537
      %1539 = vmatmul.bf16.gmra.mxu0 %v693
      %v1540 = vpop.f32.mrf.mxu0
      %v1541 = vadd.f32 %v1452, %v1540
      %v1542 = vpop.f32.mrf.mxu0
      %v1543 = vadd.f32 %v1454, %v1542
      %1544 = vmatmul.bf16.gmra.mxu0 %v699
      %v1545 = vpop.f32.mrf.mxu0
      %v1546 = vadd.f32 %v1457, %v1545
      %v1547 = vpop.f32.mrf.mxu0
      %v1548 = vadd.f32 %v1459, %v1547
      %1549 = vmatmul.bf16.gmra.mxu0 %v705
      %v1550 = vpop.f32.mrf.mxu0
      %v1551 = vadd.f32 %v1462, %v1550
      %v1552 = vpop.f32.mrf.mxu0
      %v1553 = vadd.f32 %v1464, %v1552
      %1554 = vmatmul.bf16.gmra.mxu0 %v711
      %v1555 = vpop.f32.mrf.mxu0
      %v1556 = vadd.f32 %v1467, %v1555
      %v1557 = vpop.f32.mrf.mxu0
      %v1558 = vadd.f32 %v1469, %v1557
      %1559 = vmatmul.bf16.gmra.mxu0 %v717
      %v1560 = vpop.f32.mrf.mxu0
      %v1561 = vadd.f32 %v1472, %v1560
      %v1562 = vpop.f32.mrf.mxu0
      %v1563 = vadd.f32 %v1474, %v1562
      %1564 = vmatmul.bf16.gmra.mxu0 %v723
      %v1565 = vpop.f32.mrf.mxu0
      %v1566 = vadd.f32 %v1477, %v1565
      %v1567 = vpop.f32.mrf.mxu0
      %v1568 = vadd.f32 %v1479, %v1567
      %1569 = vmatmul.bf16.gmra.mxu0 %v729
      %v1570 = vpop.f32.mrf.mxu0
      %v1571 = vadd.f32 %v1482, %v1570
      %v1572 = vpop.f32.mrf.mxu0
      %v1573 = vadd.f32 %v1484, %v1572
      %1574 = vmatmul.bf16.gmra.mxu0 %v735
      %v1575 = vpop.f32.mrf.mxu0
      %v1576 = vadd.f32 %v1487, %v1575
      %v1577 = vpop.f32.mrf.mxu0
      %v1578 = vadd.f32 %v1489, %v1577
      %1579 = vmatmul.bf16.gmra.mxu0 %v741
      %v1580 = vpop.f32.mrf.mxu0
      %v1581 = vadd.f32 %v1492, %v1580
      %v1582 = vpop.f32.mrf.mxu0
      %v1583 = vadd.f32 %v1494, %v1582
      %1584 = vmatmul.bf16.gmra.mxu0 %v747
      %v1585 = vpop.f32.mrf.mxu0
      %v1586 = vadd.f32 %v1497, %v1585
      %v1587 = vpop.f32.mrf.mxu0
      %v1588 = vadd.f32 %v1499, %v1587
      %1589 = vmatmul.bf16.gmra.mxu0 %v753
      %v1590 = vpop.f32.mrf.mxu0
      %v1591 = vadd.f32 %v1502, %v1590
      %v1592 = vpop.f32.mrf.mxu0
      %v1593 = vadd.f32 %v1504, %v1592
      %1594 = vmatmul.bf16.gmra.mxu0 %v759
      %v1595 = vpop.f32.mrf.mxu0
      %v1596 = vadd.f32 %v1507, %v1595
      %v1597 = vpop.f32.mrf.mxu0
      %v1598 = vadd.f32 %v1509, %v1597
      %1599 = vmatmul.bf16.gmra.mxu0 %v765
      %v1600 = vpop.f32.mrf.mxu0
      %v1601 = vadd.f32 %v1512, %v1600
      %v1602 = vpop.f32.mrf.mxu0
      %v1603 = vadd.f32 %v1514, %v1602
      %1604 = vdwg.mxu0
      %1605 = vmatpush.bf16.msra.mxu0 %v1192
      %1606 = vmatpush.bf16.msra.mxu0 %v1191
      %1607 = vmatpush.bf16.msra.mxu0 %v1190
      %1608 = vmatpush.bf16.msra.mxu0 %v1189
      %1609 = vmatpush.bf16.msra.mxu0 %v1188
      %1610 = vmatpush.bf16.msra.mxu0 %v1187
      %1611 = vmatpush.bf16.msra.mxu0 %v1186
      %1612 = vmatpush.bf16.msra.mxu0 %v1185
      %1613 = vmatmul.bf16.gmra.mxu0 %v676
      %v1614 = vpop.f32.mrf.mxu0
      %v1615 = vadd.f32 %v1526, %v1614
      %v1616 = vpop.f32.mrf.mxu0
      %v1617 = vadd.f32 %v1528, %v1616
      %1618 = vmatmul.bf16.gmra.mxu0 %v682
      %v1619 = vpop.f32.mrf.mxu0
      %v1620 = vadd.f32 %v1531, %v1619
      %v1621 = vpop.f32.mrf.mxu0
      %v1622 = vadd.f32 %v1533, %v1621
      %1623 = vmatmul.bf16.gmra.mxu0 %v688
      %v1624 = vpop.f32.mrf.mxu0
      %v1625 = vadd.f32 %v1536, %v1624
      %v1626 = vpop.f32.mrf.mxu0
      %v1627 = vadd.f32 %v1538, %v1626
      %1628 = vmatmul.bf16.gmra.mxu0 %v694
      %v1629 = vpop.f32.mrf.mxu0
      %v1630 = vadd.f32 %v1541, %v1629
      %v1631 = vpop.f32.mrf.mxu0
      %v1632 = vadd.f32 %v1543, %v1631
      %1633 = vmatmul.bf16.gmra.mxu0 %v700
      %v1634 = vpop.f32.mrf.mxu0
      %v1635 = vadd.f32 %v1546, %v1634
      %v1636 = vpop.f32.mrf.mxu0
      %v1637 = vadd.f32 %v1548, %v1636
      %1638 = vmatmul.bf16.gmra.mxu0 %v706
      %v1639 = vpop.f32.mrf.mxu0
      %v1640 = vadd.f32 %v1551, %v1639
      %v1641 = vpop.f32.mrf.mxu0
      %v1642 = vadd.f32 %v1553, %v1641
      %1643 = vmatmul.bf16.gmra.mxu0 %v712
      %v1644 = vpop.f32.mrf.mxu0
      %v1645 = vadd.f32 %v1556, %v1644
      %v1646 = vpop.f32.mrf.mxu0
      %v1647 = vadd.f32 %v1558, %v1646
      %1648 = vmatmul.bf16.gmra.mxu0 %v718
      %v1649 = vpop.f32.mrf.mxu0
      %v1650 = vadd.f32 %v1561, %v1649
      %v1651 = vpop.f32.mrf.mxu0
      %v1652 = vadd.f32 %v1563, %v1651
      %1653 = vmatmul.bf16.gmra.mxu0 %v724
      %v1654 = vpop.f32.mrf.mxu0
      %v1655 = vadd.f32 %v1566, %v1654
      %v1656 = vpop.f32.mrf.mxu0
      %v1657 = vadd.f32 %v1568, %v1656
      %1658 = vmatmul.bf16.gmra.mxu0 %v730
      %v1659 = vpop.f32.mrf.mxu0
      %v1660 = vadd.f32 %v1571, %v1659
      %v1661 = vpop.f32.mrf.mxu0
      %v1662 = vadd.f32 %v1573, %v1661
      %1663 = vmatmul.bf16.gmra.mxu0 %v736
      %v1664 = vpop.f32.mrf.mxu0
      %v1665 = vadd.f32 %v1576, %v1664
      %v1666 = vpop.f32.mrf.mxu0
      %v1667 = vadd.f32 %v1578, %v1666
      %1668 = vmatmul.bf16.gmra.mxu0 %v742
      %v1669 = vpop.f32.mrf.mxu0
      %v1670 = vadd.f32 %v1581, %v1669
      %v1671 = vpop.f32.mrf.mxu0
      %v1672 = vadd.f32 %v1583, %v1671
      %1673 = vmatmul.bf16.gmra.mxu0 %v748
      %v1674 = vpop.f32.mrf.mxu0
      %v1675 = vadd.f32 %v1586, %v1674
      %v1676 = vpop.f32.mrf.mxu0
      %v1677 = vadd.f32 %v1588, %v1676
      %1678 = vmatmul.bf16.gmra.mxu0 %v754
      %v1679 = vpop.f32.mrf.mxu0
      %v1680 = vadd.f32 %v1591, %v1679
      %v1681 = vpop.f32.mrf.mxu0
      %v1682 = vadd.f32 %v1593, %v1681
      %1683 = vmatmul.bf16.gmra.mxu0 %v760
      %v1684 = vpop.f32.mrf.mxu0
      %v1685 = vadd.f32 %v1596, %v1684
      %v1686 = vpop.f32.mrf.mxu0
      %v1687 = vadd.f32 %v1598, %v1686
      %1688 = vmatmul.bf16.gmra.mxu0 %v766
      %v1689 = vpop.f32.mrf.mxu0
      %v1690 = vadd.f32 %v1601, %v1689
      %v1691 = vpop.f32.mrf.mxu0
      %v1692 = vadd.f32 %v1603, %v1691
      %1693 = vdwg.mxu0
      %1694 = vmatpush.bf16.msra.mxu0 %v1200
      %1695 = vmatpush.bf16.msra.mxu0 %v1199
      %1696 = vmatpush.bf16.msra.mxu0 %v1198
      %1697 = vmatpush.bf16.msra.mxu0 %v1197
      %1698 = vmatpush.bf16.msra.mxu0 %v1196
      %1699 = vmatpush.bf16.msra.mxu0 %v1195
      %1700 = vmatpush.bf16.msra.mxu0 %v1194
      %1701 = vmatpush.bf16.msra.mxu0 %v1193
      %1702 = vmatmul.bf16.gmra.mxu0 %v677
      %v1703 = vpop.f32.mrf.mxu0
      %v1704 = vadd.f32 %v1615, %v1703
      %v1705 = vpop.f32.mrf.mxu0
      %v1706 = vadd.f32 %v1617, %v1705
      %1707 = vmatmul.bf16.gmra.mxu0 %v683
      %v1708 = vpop.f32.mrf.mxu0
      %v1709 = vadd.f32 %v1620, %v1708
      %v1710 = vpop.f32.mrf.mxu0
      %v1711 = vadd.f32 %v1622, %v1710
      %1712 = vmatmul.bf16.gmra.mxu0 %v689
      %v1713 = vpop.f32.mrf.mxu0
      %v1714 = vadd.f32 %v1625, %v1713
      %v1715 = vpop.f32.mrf.mxu0
      %v1716 = vadd.f32 %v1627, %v1715
      %1717 = vmatmul.bf16.gmra.mxu0 %v695
      %v1718 = vpop.f32.mrf.mxu0
      %v1719 = vadd.f32 %v1630, %v1718
      %v1720 = vpop.f32.mrf.mxu0
      %v1721 = vadd.f32 %v1632, %v1720
      %1722 = vmatmul.bf16.gmra.mxu0 %v701
      %v1723 = vpop.f32.mrf.mxu0
      %v1724 = vadd.f32 %v1635, %v1723
      %v1725 = vpop.f32.mrf.mxu0
      %v1726 = vadd.f32 %v1637, %v1725
      %1727 = vmatmul.bf16.gmra.mxu0 %v707
      %v1728 = vpop.f32.mrf.mxu0
      %v1729 = vadd.f32 %v1640, %v1728
      %v1730 = vpop.f32.mrf.mxu0
      %v1731 = vadd.f32 %v1642, %v1730
      %1732 = vmatmul.bf16.gmra.mxu0 %v713
      %v1733 = vpop.f32.mrf.mxu0
      %v1734 = vadd.f32 %v1645, %v1733
      %v1735 = vpop.f32.mrf.mxu0
      %v1736 = vadd.f32 %v1647, %v1735
      %1737 = vmatmul.bf16.gmra.mxu0 %v719
      %v1738 = vpop.f32.mrf.mxu0
      %v1739 = vadd.f32 %v1650, %v1738
      %v1740 = vpop.f32.mrf.mxu0
      %v1741 = vadd.f32 %v1652, %v1740
      %1742 = vmatmul.bf16.gmra.mxu0 %v725
      %v1743 = vpop.f32.mrf.mxu0
      %v1744 = vadd.f32 %v1655, %v1743
      %v1745 = vpop.f32.mrf.mxu0
      %v1746 = vadd.f32 %v1657, %v1745
      %1747 = vmatmul.bf16.gmra.mxu0 %v731
      %v1748 = vpop.f32.mrf.mxu0
      %v1749 = vadd.f32 %v1660, %v1748
      %v1750 = vpop.f32.mrf.mxu0
      %v1751 = vadd.f32 %v1662, %v1750
      %1752 = vmatmul.bf16.gmra.mxu0 %v737
      %v1753 = vpop.f32.mrf.mxu0
      %v1754 = vadd.f32 %v1665, %v1753
      %v1755 = vpop.f32.mrf.mxu0
      %v1756 = vadd.f32 %v1667, %v1755
      %1757 = vmatmul.bf16.gmra.mxu0 %v743
      %v1758 = vpop.f32.mrf.mxu0
      %v1759 = vadd.f32 %v1670, %v1758
      %v1760 = vpop.f32.mrf.mxu0
      %v1761 = vadd.f32 %v1672, %v1760
      %1762 = vmatmul.bf16.gmra.mxu0 %v749
      %v1763 = vpop.f32.mrf.mxu0
      %v1764 = vadd.f32 %v1675, %v1763
      %v1765 = vpop.f32.mrf.mxu0
      %v1766 = vadd.f32 %v1677, %v1765
      %1767 = vmatmul.bf16.gmra.mxu0 %v755
      %v1768 = vpop.f32.mrf.mxu0
      %v1769 = vadd.f32 %v1680, %v1768
      %v1770 = vpop.f32.mrf.mxu0
      %v1771 = vadd.f32 %v1682, %v1770
      %1772 = vmatmul.bf16.gmra.mxu0 %v761
      %v1773 = vpop.f32.mrf.mxu0
      %v1774 = vadd.f32 %v1685, %v1773
      %v1775 = vpop.f32.mrf.mxu0
      %v1776 = vadd.f32 %v1687, %v1775
      %1777 = vmatmul.bf16.gmra.mxu0 %v767
      %v1778 = vpop.f32.mrf.mxu0
      %v1779 = vadd.f32 %v1690, %v1778
      %v1780 = vpop.f32.mrf.mxu0
      %v1781 = vadd.f32 %v1692, %v1780
      %1782 = vdwg.mxu0
      %v1784 = vperm.slane %v864, 0
      %v1786 = vadd.f32 %v1784, %v1704
      %v1787 = vadd.f32 %v1784, %v1706
      %v1788 = vadd.f32 %v1784, %v1709
      %v1789 = vadd.f32 %v1784, %v1711
      %v1790 = vadd.f32 %v1784, %v1714
      %v1791 = vadd.f32 %v1784, %v1716
      %v1792 = vadd.f32 %v1784, %v1719
      %v1793 = vadd.f32 %v1784, %v1721
      %v1794 = vadd.f32 %v1784, %v1724
      %v1795 = vadd.f32 %v1784, %v1726
      %v1796 = vadd.f32 %v1784, %v1729
      %v1797 = vadd.f32 %v1784, %v1731
      %v1798 = vadd.f32 %v1784, %v1734
      %v1799 = vadd.f32 %v1784, %v1736
      %v1800 = vadd.f32 %v1784, %v1739
      %v1801 = vadd.f32 %v1784, %v1741
      %v1802 = vadd.f32 %v1784, %v1744
      %v1803 = vadd.f32 %v1784, %v1746
      %v1804 = vadd.f32 %v1784, %v1749
      %v1805 = vadd.f32 %v1784, %v1751
      %v1806 = vadd.f32 %v1784, %v1754
      %v1807 = vadd.f32 %v1784, %v1756
      %v1808 = vadd.f32 %v1784, %v1759
      %v1809 = vadd.f32 %v1784, %v1761
      %v1810 = vadd.f32 %v1784, %v1764
      %v1811 = vadd.f32 %v1784, %v1766
      %v1812 = vadd.f32 %v1784, %v1769
      %v1813 = vadd.f32 %v1784, %v1771
      %v1814 = vadd.f32 %v1784, %v1774
      %v1815 = vadd.f32 %v1784, %v1776
      %v1816 = vadd.f32 %v1784, %v1779
      %v1817 = vadd.f32 %v1784, %v1781
      %s1818 = scalar_lea.vmem %s1, 384
      %v1819 = vld [vmem:[%s1818] sm:$0xf]
      %v1820 = vld [vmem:[%s1818 + $0x4] sm:$0xf]
      %v1821 = vld [vmem:[%s1818 + $0x8] sm:$0xf]
      %v1822 = vld [vmem:[%s1818 + $0xc] sm:$0xf]
      %v1823 = vld [vmem:[%s1818 + $0x10] sm:$0xf]
      %v1824 = vld [vmem:[%s1818 + $0x14] sm:$0xf]
      %v1825 = vld [vmem:[%s1818 + $0x18] sm:$0xf]
      %v1826 = vld [vmem:[%s1818 + $0x1c] sm:$0xf]
      %v1827 = vld [vmem:[%s1818 + $0x20] sm:$0xf]
      %v1828 = vld [vmem:[%s1818 + $0x24] sm:$0xf]
      %v1829 = vld [vmem:[%s1818 + $0x28] sm:$0xf]
      %v1830 = vld [vmem:[%s1818 + $0x2c] sm:$0xf]
      %v1831 = vld [vmem:[%s1818 + $0x30] sm:$0xf]
      %v1832 = vld [vmem:[%s1818 + $0x34] sm:$0xf]
      %v1833 = vld [vmem:[%s1818 + $0x38] sm:$0xf]
      %v1834 = vld [vmem:[%s1818 + $0x3c] sm:$0xf]
      %v1835 = vld [vmem:[%s1818 + $0x40] sm:$0xf]
      %v1836 = vld [vmem:[%s1818 + $0x44] sm:$0xf]
      %v1837 = vld [vmem:[%s1818 + $0x48] sm:$0xf]
      %v1838 = vld [vmem:[%s1818 + $0x4c] sm:$0xf]
      %v1839 = vld [vmem:[%s1818 + $0x50] sm:$0xf]
      %v1840 = vld [vmem:[%s1818 + $0x54] sm:$0xf]
      %v1841 = vld [vmem:[%s1818 + $0x58] sm:$0xf]
      %v1842 = vld [vmem:[%s1818 + $0x5c] sm:$0xf]
      %v1843 = vld [vmem:[%s1818 + $0x60] sm:$0xf]
      %v1844 = vld [vmem:[%s1818 + $0x64] sm:$0xf]
      %v1845 = vld [vmem:[%s1818 + $0x68] sm:$0xf]
      %v1846 = vld [vmem:[%s1818 + $0x6c] sm:$0xf]
      %v1847 = vld [vmem:[%s1818 + $0x70] sm:$0xf]
      %v1848 = vld [vmem:[%s1818 + $0x74] sm:$0xf]
      %v1849 = vld [vmem:[%s1818 + $0x78] sm:$0xf]
      %v1850 = vld [vmem:[%s1818 + $0x7c] sm:$0xf]
      %v1851 = vld [vmem:[%s1818 + $0x80] sm:$0xf]
      %v1852 = vld [vmem:[%s1818 + $0x84] sm:$0xf]
      %v1853 = vld [vmem:[%s1818 + $0x88] sm:$0xf]
      %v1854 = vld [vmem:[%s1818 + $0x8c] sm:$0xf]
      %v1855 = vld [vmem:[%s1818 + $0x90] sm:$0xf]
      %v1856 = vld [vmem:[%s1818 + $0x94] sm:$0xf]
      %v1857 = vld [vmem:[%s1818 + $0x98] sm:$0xf]
      %v1858 = vld [vmem:[%s1818 + $0x9c] sm:$0xf]
      %v1859 = vld [vmem:[%s1818 + $0xa0] sm:$0xf]
      %v1860 = vld [vmem:[%s1818 + $0xa4] sm:$0xf]
      %v1861 = vld [vmem:[%s1818 + $0xa8] sm:$0xf]
      %v1862 = vld [vmem:[%s1818 + $0xac] sm:$0xf]
      %v1863 = vld [vmem:[%s1818 + $0xb0] sm:$0xf]
      %v1864 = vld [vmem:[%s1818 + $0xb4] sm:$0xf]
      %v1865 = vld [vmem:[%s1818 + $0xb8] sm:$0xf]
      %v1866 = vld [vmem:[%s1818 + $0xbc] sm:$0xf]
      %v1867 = vld [vmem:[%s1818 + $0xc0] sm:$0xf]
      %v1868 = vld [vmem:[%s1818 + $0xc4] sm:$0xf]
      %v1869 = vld [vmem:[%s1818 + $0xc8] sm:$0xf]
      %v1870 = vld [vmem:[%s1818 + $0xcc] sm:$0xf]
      %v1871 = vld [vmem:[%s1818 + $0xd0] sm:$0xf]
      %v1872 = vld [vmem:[%s1818 + $0xd4] sm:$0xf]
      %v1873 = vld [vmem:[%s1818 + $0xd8] sm:$0xf]
      %v1874 = vld [vmem:[%s1818 + $0xdc] sm:$0xf]
      %v1875 = vld [vmem:[%s1818 + $0xe0] sm:$0xf]
      %v1876 = vld [vmem:[%s1818 + $0xe4] sm:$0xf]
      %v1877 = vld [vmem:[%s1818 + $0xe8] sm:$0xf]
      %v1878 = vld [vmem:[%s1818 + $0xec] sm:$0xf]
      %v1879 = vld [vmem:[%s1818 + $0xf0] sm:$0xf]
      %v1880 = vld [vmem:[%s1818 + $0xf4] sm:$0xf]
      %v1881 = vld [vmem:[%s1818 + $0xf8] sm:$0xf]
      %v1882 = vld [vmem:[%s1818 + $0xfc] sm:$0xf]
      %v1883 = vld [vmem:[%s1818 + $0x100] sm:$0xf]
      %v1884 = vld [vmem:[%s1818 + $0x104] sm:$0xf]
      %v1885 = vld [vmem:[%s1818 + $0x108] sm:$0xf]
      %v1886 = vld [vmem:[%s1818 + $0x10c] sm:$0xf]
      %v1887 = vld [vmem:[%s1818 + $0x110] sm:$0xf]
      %v1888 = vld [vmem:[%s1818 + $0x114] sm:$0xf]
      %v1889 = vld [vmem:[%s1818 + $0x118] sm:$0xf]
      %v1890 = vld [vmem:[%s1818 + $0x11c] sm:$0xf]
      %v1891 = vld [vmem:[%s1818 + $0x120] sm:$0xf]
      %v1892 = vld [vmem:[%s1818 + $0x124] sm:$0xf]
      %v1893 = vld [vmem:[%s1818 + $0x128] sm:$0xf]
      %v1894 = vld [vmem:[%s1818 + $0x12c] sm:$0xf]
      %v1895 = vld [vmem:[%s1818 + $0x130] sm:$0xf]
      %v1896 = vld [vmem:[%s1818 + $0x134] sm:$0xf]
      %v1897 = vld [vmem:[%s1818 + $0x138] sm:$0xf]
      %v1898 = vld [vmem:[%s1818 + $0x13c] sm:$0xf]
      %v1899 = vld [vmem:[%s1818 + $0x140] sm:$0xf]
      %v1900 = vld [vmem:[%s1818 + $0x144] sm:$0xf]
      %v1901 = vld [vmem:[%s1818 + $0x148] sm:$0xf]
      %v1902 = vld [vmem:[%s1818 + $0x14c] sm:$0xf]
      %v1903 = vld [vmem:[%s1818 + $0x150] sm:$0xf]
      %v1904 = vld [vmem:[%s1818 + $0x154] sm:$0xf]
      %v1905 = vld [vmem:[%s1818 + $0x158] sm:$0xf]
      %v1906 = vld [vmem:[%s1818 + $0x15c] sm:$0xf]
      %v1907 = vld [vmem:[%s1818 + $0x160] sm:$0xf]
      %v1908 = vld [vmem:[%s1818 + $0x164] sm:$0xf]
      %v1909 = vld [vmem:[%s1818 + $0x168] sm:$0xf]
      %v1910 = vld [vmem:[%s1818 + $0x16c] sm:$0xf]
      %v1911 = vld [vmem:[%s1818 + $0x170] sm:$0xf]
      %v1912 = vld [vmem:[%s1818 + $0x174] sm:$0xf]
      %v1913 = vld [vmem:[%s1818 + $0x178] sm:$0xf]
      %v1914 = vld [vmem:[%s1818 + $0x17c] sm:$0xf]
      %vm1915 = vsmask.f32 7424
      %v1917 = vshrl.u32 %v672, 16
      %v1919 = vshll.u32 %v672, 16
      %v1921 = vrot.slane %v1919, 1
      %v1922 = vor.u32 %v1917, %v1921
      %v1924 = vshll.u32 %v678, 16
      %v1926 = vrot.slane %v1924, 1
      %v1927 = vsel %vm1915, %v1922, %v1926
      %v1929 = vshrl.u32 %v673, 16
      %v1931 = vshll.u32 %v673, 16
      %v1933 = vrot.slane %v1931, 1
      %v1934 = vor.u32 %v1929, %v1933
      %v1936 = vshll.u32 %v679, 16
      %v1938 = vrot.slane %v1936, 1
      %v1939 = vsel %vm1915, %v1934, %v1938
      %v1941 = vshrl.u32 %v674, 16
      %v1943 = vshll.u32 %v674, 16
      %v1945 = vrot.slane %v1943, 1
      %v1946 = vor.u32 %v1941, %v1945
      %v1948 = vshll.u32 %v680, 16
      %v1950 = vrot.slane %v1948, 1
      %v1951 = vsel %vm1915, %v1946, %v1950
      %v1953 = vshrl.u32 %v675, 16
      %v1955 = vshll.u32 %v675, 16
      %v1957 = vrot.slane %v1955, 1
      %v1958 = vor.u32 %v1953, %v1957
      %v1960 = vshll.u32 %v681, 16
      %v1962 = vrot.slane %v1960, 1
      %v1963 = vsel %vm1915, %v1958, %v1962
      %v1965 = vshrl.u32 %v676, 16
      %v1967 = vshll.u32 %v676, 16
      %v1969 = vrot.slane %v1967, 1
      %v1970 = vor.u32 %v1965, %v1969
      %v1972 = vshll.u32 %v682, 16
      %v1974 = vrot.slane %v1972, 1
      %v1975 = vsel %vm1915, %v1970, %v1974
      %v1977 = vshrl.u32 %v677, 16
      %v1979 = vshll.u32 %v677, 16
      %v1981 = vrot.slane %v1979, 1
      %v1982 = vor.u32 %v1977, %v1981
      %v1984 = vshll.u32 %v683, 16
      %v1986 = vrot.slane %v1984, 1
      %v1987 = vsel %vm1915, %v1982, %v1986
      %v1988 = vshrl.u32 %v678, 16
      %v1990 = vor.u32 %v1988, %v1926
      %v1992 = vshll.u32 %v684, 16
      %v1994 = vrot.slane %v1992, 1
      %v1995 = vsel %vm1915, %v1990, %v1994
      %v1996 = vshrl.u32 %v679, 16
      %v1998 = vor.u32 %v1996, %v1938
      %v2000 = vshll.u32 %v685, 16
      %v2002 = vrot.slane %v2000, 1
      %v2003 = vsel %vm1915, %v1998, %v2002
      %v2004 = vshrl.u32 %v680, 16
      %v2006 = vor.u32 %v2004, %v1950
      %v2008 = vshll.u32 %v686, 16
      %v2010 = vrot.slane %v2008, 1
      %v2011 = vsel %vm1915, %v2006, %v2010
      %v2012 = vshrl.u32 %v681, 16
      %v2014 = vor.u32 %v2012, %v1962
      %v2016 = vshll.u32 %v687, 16
      %v2018 = vrot.slane %v2016, 1
      %v2019 = vsel %vm1915, %v2014, %v2018
      %v2020 = vshrl.u32 %v682, 16
      %v2022 = vor.u32 %v2020, %v1974
      %v2024 = vshll.u32 %v688, 16
      %v2026 = vrot.slane %v2024, 1
      %v2027 = vsel %vm1915, %v2022, %v2026
      %v2028 = vshrl.u32 %v683, 16
      %v2030 = vor.u32 %v2028, %v1986
      %v2032 = vshll.u32 %v689, 16
      %v2034 = vrot.slane %v2032, 1
      %v2035 = vsel %vm1915, %v2030, %v2034
      %v2036 = vshrl.u32 %v684, 16
      %v2038 = vor.u32 %v2036, %v1994
      %v2040 = vshll.u32 %v690, 16
      %v2042 = vrot.slane %v2040, 1
      %v2043 = vsel %vm1915, %v2038, %v2042
      %v2044 = vshrl.u32 %v685, 16
      %v2046 = vor.u32 %v2044, %v2002
      %v2048 = vshll.u32 %v691, 16
      %v2050 = vrot.slane %v2048, 1
      %v2051 = vsel %vm1915, %v2046, %v2050
      %v2052 = vshrl.u32 %v686, 16
      %v2054 = vor.u32 %v2052, %v2010
      %v2056 = vshll.u32 %v692, 16
      %v2058 = vrot.slane %v2056, 1
      %v2059 = vsel %vm1915, %v2054, %v2058
      %v2060 = vshrl.u32 %v687, 16
      %v2062 = vor.u32 %v2060, %v2018
      %v2064 = vshll.u32 %v693, 16
      %v2066 = vrot.slane %v2064, 1
      %v2067 = vsel %vm1915, %v2062, %v2066
      %v2068 = vshrl.u32 %v688, 16
      %v2070 = vor.u32 %v2068, %v2026
      %v2072 = vshll.u32 %v694, 16
      %v2074 = vrot.slane %v2072, 1
      %v2075 = vsel %vm1915, %v2070, %v2074
      %v2076 = vshrl.u32 %v689, 16
      %v2078 = vor.u32 %v2076, %v2034
      %v2080 = vshll.u32 %v695, 16
      %v2082 = vrot.slane %v2080, 1
      %v2083 = vsel %vm1915, %v2078, %v2082
      %v2084 = vshrl.u32 %v690, 16
      %v2086 = vor.u32 %v2084, %v2042
      %v2088 = vshll.u32 %v696, 16
      %v2090 = vrot.slane %v2088, 1
      %v2091 = vsel %vm1915, %v2086, %v2090
      %v2092 = vshrl.u32 %v691, 16
      %v2094 = vor.u32 %v2092, %v2050
      %v2096 = vshll.u32 %v697, 16
      %v2098 = vrot.slane %v2096, 1
      %v2099 = vsel %vm1915, %v2094, %v2098
      %v2100 = vshrl.u32 %v692, 16
      %v2102 = vor.u32 %v2100, %v2058
      %v2104 = vshll.u32 %v698, 16
      %v2106 = vrot.slane %v2104, 1
      %v2107 = vsel %vm1915, %v2102, %v2106
      %v2108 = vshrl.u32 %v693, 16
      %v2110 = vor.u32 %v2108, %v2066
      %v2112 = vshll.u32 %v699, 16
      %v2114 = vrot.slane %v2112, 1
      %v2115 = vsel %vm1915, %v2110, %v2114
      %v2116 = vshrl.u32 %v694, 16
      %v2118 = vor.u32 %v2116, %v2074
      %v2120 = vshll.u32 %v700, 16
      %v2122 = vrot.slane %v2120, 1
      %v2123 = vsel %vm1915, %v2118, %v2122
      %v2124 = vshrl.u32 %v695, 16
      %v2126 = vor.u32 %v2124, %v2082
      %v2128 = vshll.u32 %v701, 16
      %v2130 = vrot.slane %v2128, 1
      %v2131 = vsel %vm1915, %v2126, %v2130
      %v2132 = vshrl.u32 %v696, 16
      %v2134 = vor.u32 %v2132, %v2090
      %v2136 = vshll.u32 %v702, 16
      %v2138 = vrot.slane %v2136, 1
      %v2139 = vsel %vm1915, %v2134, %v2138
      %v2140 = vshrl.u32 %v697, 16
      %v2142 = vor.u32 %v2140, %v2098
      %v2144 = vshll.u32 %v703, 16
      %v2146 = vrot.slane %v2144, 1
      %v2147 = vsel %vm1915, %v2142, %v2146
      %v2148 = vshrl.u32 %v698, 16
      %v2150 = vor.u32 %v2148, %v2106
      %v2152 = vshll.u32 %v704, 16
      %v2154 = vrot.slane %v2152, 1
      %v2155 = vsel %vm1915, %v2150, %v2154
      %v2156 = vshrl.u32 %v699, 16
      %v2158 = vor.u32 %v2156, %v2114
      %v2160 = vshll.u32 %v705, 16
      %v2162 = vrot.slane %v2160, 1
      %v2163 = vsel %vm1915, %v2158, %v2162
      %v2164 = vshrl.u32 %v700, 16
      %v2166 = vor.u32 %v2164, %v2122
      %v2168 = vshll.u32 %v706, 16
      %v2170 = vrot.slane %v2168, 1
      %v2171 = vsel %vm1915, %v2166, %v2170
      %v2172 = vshrl.u32 %v701, 16
      %v2174 = vor.u32 %v2172, %v2130
      %v2176 = vshll.u32 %v707, 16
      %v2178 = vrot.slane %v2176, 1
      %v2179 = vsel %vm1915, %v2174, %v2178
      %v2180 = vshrl.u32 %v702, 16
      %v2182 = vor.u32 %v2180, %v2138
      %v2184 = vshll.u32 %v708, 16
      %v2186 = vrot.slane %v2184, 1
      %v2187 = vsel %vm1915, %v2182, %v2186
      %v2188 = vshrl.u32 %v703, 16
      %v2190 = vor.u32 %v2188, %v2146
      %v2192 = vshll.u32 %v709, 16
      %v2194 = vrot.slane %v2192, 1
      %v2195 = vsel %vm1915, %v2190, %v2194
      %v2196 = vshrl.u32 %v704, 16
      %v2198 = vor.u32 %v2196, %v2154
      %v2200 = vshll.u32 %v710, 16
      %v2202 = vrot.slane %v2200, 1
      %v2203 = vsel %vm1915, %v2198, %v2202
      %v2204 = vshrl.u32 %v705, 16
      %v2206 = vor.u32 %v2204, %v2162
      %v2208 = vshll.u32 %v711, 16
      %v2210 = vrot.slane %v2208, 1
      %v2211 = vsel %vm1915, %v2206, %v2210
      %v2212 = vshrl.u32 %v706, 16
      %v2214 = vor.u32 %v2212, %v2170
      %v2216 = vshll.u32 %v712, 16
      %v2218 = vrot.slane %v2216, 1
      %v2219 = vsel %vm1915, %v2214, %v2218
      %v2220 = vshrl.u32 %v707, 16
      %v2222 = vor.u32 %v2220, %v2178
      %v2224 = vshll.u32 %v713, 16
      %v2226 = vrot.slane %v2224, 1
      %v2227 = vsel %vm1915, %v2222, %v2226
      %v2228 = vshrl.u32 %v708, 16
      %v2230 = vor.u32 %v2228, %v2186
      %v2232 = vshll.u32 %v714, 16
      %v2234 = vrot.slane %v2232, 1
      %v2235 = vsel %vm1915, %v2230, %v2234
      %v2236 = vshrl.u32 %v709, 16
      %v2238 = vor.u32 %v2236, %v2194
      %v2240 = vshll.u32 %v715, 16
      %v2242 = vrot.slane %v2240, 1
      %v2243 = vsel %vm1915, %v2238, %v2242
      %v2244 = vshrl.u32 %v710, 16
      %v2246 = vor.u32 %v2244, %v2202
      %v2248 = vshll.u32 %v716, 16
      %v2250 = vrot.slane %v2248, 1
      %v2251 = vsel %vm1915, %v2246, %v2250
      %v2252 = vshrl.u32 %v711, 16
      %v2254 = vor.u32 %v2252, %v2210
      %v2256 = vshll.u32 %v717, 16
      %v2258 = vrot.slane %v2256, 1
      %v2259 = vsel %vm1915, %v2254, %v2258
      %v2260 = vshrl.u32 %v712, 16
      %v2262 = vor.u32 %v2260, %v2218
      %v2264 = vshll.u32 %v718, 16
      %v2266 = vrot.slane %v2264, 1
      %v2267 = vsel %vm1915, %v2262, %v2266
      %v2268 = vshrl.u32 %v713, 16
      %v2270 = vor.u32 %v2268, %v2226
      %v2272 = vshll.u32 %v719, 16
      %v2274 = vrot.slane %v2272, 1
      %v2275 = vsel %vm1915, %v2270, %v2274
      %v2276 = vshrl.u32 %v714, 16
      %v2278 = vor.u32 %v2276, %v2234
      %v2280 = vshll.u32 %v720, 16
      %v2282 = vrot.slane %v2280, 1
      %v2283 = vsel %vm1915, %v2278, %v2282
      %v2284 = vshrl.u32 %v715, 16
      %v2286 = vor.u32 %v2284, %v2242
      %v2288 = vshll.u32 %v721, 16
      %v2290 = vrot.slane %v2288, 1
      %v2291 = vsel %vm1915, %v2286, %v2290
      %v2292 = vshrl.u32 %v716, 16
      %v2294 = vor.u32 %v2292, %v2250
      %v2296 = vshll.u32 %v722, 16
      %v2298 = vrot.slane %v2296, 1
      %v2299 = vsel %vm1915, %v2294, %v2298
      %v2300 = vshrl.u32 %v717, 16
      %v2302 = vor.u32 %v2300, %v2258
      %v2304 = vshll.u32 %v723, 16
      %v2306 = vrot.slane %v2304, 1
      %v2307 = vsel %vm1915, %v2302, %v2306
      %v2308 = vshrl.u32 %v718, 16
      %v2310 = vor.u32 %v2308, %v2266
      %v2312 = vshll.u32 %v724, 16
      %v2314 = vrot.slane %v2312, 1
      %v2315 = vsel %vm1915, %v2310, %v2314
      %v2316 = vshrl.u32 %v719, 16
      %v2318 = vor.u32 %v2316, %v2274
      %v2320 = vshll.u32 %v725, 16
      %v2322 = vrot.slane %v2320, 1
      %v2323 = vsel %vm1915, %v2318, %v2322
      %v2324 = vshrl.u32 %v720, 16
      %v2326 = vor.u32 %v2324, %v2282
      %v2328 = vshll.u32 %v726, 16
      %v2330 = vrot.slane %v2328, 1
      %v2331 = vsel %vm1915, %v2326, %v2330
      %v2332 = vshrl.u32 %v721, 16
      %v2334 = vor.u32 %v2332, %v2290
      %v2336 = vshll.u32 %v727, 16
      %v2338 = vrot.slane %v2336, 1
      %v2339 = vsel %vm1915, %v2334, %v2338
      %v2340 = vshrl.u32 %v722, 16
      %v2342 = vor.u32 %v2340, %v2298
      %v2344 = vshll.u32 %v728, 16
      %v2346 = vrot.slane %v2344, 1
      %v2347 = vsel %vm1915, %v2342, %v2346
      %v2348 = vshrl.u32 %v723, 16
      %v2350 = vor.u32 %v2348, %v2306
      %v2352 = vshll.u32 %v729, 16
      %v2354 = vrot.slane %v2352, 1
      %v2355 = vsel %vm1915, %v2350, %v2354
      %v2356 = vshrl.u32 %v724, 16
      %v2358 = vor.u32 %v2356, %v2314
      %v2360 = vshll.u32 %v730, 16
      %v2362 = vrot.slane %v2360, 1
      %v2363 = vsel %vm1915, %v2358, %v2362
      %v2364 = vshrl.u32 %v725, 16
      %v2366 = vor.u32 %v2364, %v2322
      %v2368 = vshll.u32 %v731, 16
      %v2370 = vrot.slane %v2368, 1
      %v2371 = vsel %vm1915, %v2366, %v2370
      %v2372 = vshrl.u32 %v726, 16
      %v2374 = vor.u32 %v2372, %v2330
      %v2376 = vshll.u32 %v732, 16
      %v2378 = vrot.slane %v2376, 1
      %v2379 = vsel %vm1915, %v2374, %v2378
      %v2380 = vshrl.u32 %v727, 16
      %v2382 = vor.u32 %v2380, %v2338
      %v2384 = vshll.u32 %v733, 16
      %v2386 = vrot.slane %v2384, 1
      %v2387 = vsel %vm1915, %v2382, %v2386
      %v2388 = vshrl.u32 %v728, 16
      %v2390 = vor.u32 %v2388, %v2346
      %v2392 = vshll.u32 %v734, 16
      %v2394 = vrot.slane %v2392, 1
      %v2395 = vsel %vm1915, %v2390, %v2394
      %v2396 = vshrl.u32 %v729, 16
      %v2398 = vor.u32 %v2396, %v2354
      %v2400 = vshll.u32 %v735, 16
      %v2402 = vrot.slane %v2400, 1
      %v2403 = vsel %vm1915, %v2398, %v2402
      %v2404 = vshrl.u32 %v730, 16
      %v2406 = vor.u32 %v2404, %v2362
      %v2408 = vshll.u32 %v736, 16
      %v2410 = vrot.slane %v2408, 1
      %v2411 = vsel %vm1915, %v2406, %v2410
      %v2412 = vshrl.u32 %v731, 16
      %v2414 = vor.u32 %v2412, %v2370
      %v2416 = vshll.u32 %v737, 16
      %v2418 = vrot.slane %v2416, 1
      %v2419 = vsel %vm1915, %v2414, %v2418
      %v2420 = vshrl.u32 %v732, 16
      %v2422 = vor.u32 %v2420, %v2378
      %v2424 = vshll.u32 %v738, 16
      %v2426 = vrot.slane %v2424, 1
      %v2427 = vsel %vm1915, %v2422, %v2426
      %v2428 = vshrl.u32 %v733, 16
      %v2430 = vor.u32 %v2428, %v2386
      %v2432 = vshll.u32 %v739, 16
      %v2434 = vrot.slane %v2432, 1
      %v2435 = vsel %vm1915, %v2430, %v2434
      %v2436 = vshrl.u32 %v734, 16
      %v2438 = vor.u32 %v2436, %v2394
      %v2440 = vshll.u32 %v740, 16
      %v2442 = vrot.slane %v2440, 1
      %v2443 = vsel %vm1915, %v2438, %v2442
      %v2444 = vshrl.u32 %v735, 16
      %v2446 = vor.u32 %v2444, %v2402
      %v2448 = vshll.u32 %v741, 16
      %v2450 = vrot.slane %v2448, 1
      %v2451 = vsel %vm1915, %v2446, %v2450
      %v2452 = vshrl.u32 %v736, 16
      %v2454 = vor.u32 %v2452, %v2410
      %v2456 = vshll.u32 %v742, 16
      %v2458 = vrot.slane %v2456, 1
      %v2459 = vsel %vm1915, %v2454, %v2458
      %v2460 = vshrl.u32 %v737, 16
      %v2462 = vor.u32 %v2460, %v2418
      %v2464 = vshll.u32 %v743, 16
      %v2466 = vrot.slane %v2464, 1
      %v2467 = vsel %vm1915, %v2462, %v2466
      %v2468 = vshrl.u32 %v738, 16
      %v2470 = vor.u32 %v2468, %v2426
      %v2472 = vshll.u32 %v744, 16
      %v2474 = vrot.slane %v2472, 1
      %v2475 = vsel %vm1915, %v2470, %v2474
      %v2476 = vshrl.u32 %v739, 16
      %v2478 = vor.u32 %v2476, %v2434
      %v2480 = vshll.u32 %v745, 16
      %v2482 = vrot.slane %v2480, 1
      %v2483 = vsel %vm1915, %v2478, %v2482
      %v2484 = vshrl.u32 %v740, 16
      %v2486 = vor.u32 %v2484, %v2442
      %v2488 = vshll.u32 %v746, 16
      %v2490 = vrot.slane %v2488, 1
      %v2491 = vsel %vm1915, %v2486, %v2490
      %v2492 = vshrl.u32 %v741, 16
      %v2494 = vor.u32 %v2492, %v2450
      %v2496 = vshll.u32 %v747, 16
      %v2498 = vrot.slane %v2496, 1
      %v2499 = vsel %vm1915, %v2494, %v2498
      %v2500 = vshrl.u32 %v742, 16
      %v2502 = vor.u32 %v2500, %v2458
      %v2504 = vshll.u32 %v748, 16
      %v2506 = vrot.slane %v2504, 1
      %v2507 = vsel %vm1915, %v2502, %v2506
      %v2508 = vshrl.u32 %v743, 16
      %v2510 = vor.u32 %v2508, %v2466
      %v2512 = vshll.u32 %v749, 16
      %v2514 = vrot.slane %v2512, 1
      %v2515 = vsel %vm1915, %v2510, %v2514
      %v2516 = vshrl.u32 %v744, 16
      %v2518 = vor.u32 %v2516, %v2474
      %v2520 = vshll.u32 %v750, 16
      %v2522 = vrot.slane %v2520, 1
      %v2523 = vsel %vm1915, %v2518, %v2522
      %v2524 = vshrl.u32 %v745, 16
      %v2526 = vor.u32 %v2524, %v2482
      %v2528 = vshll.u32 %v751, 16
      %v2530 = vrot.slane %v2528, 1
      %v2531 = vsel %vm1915, %v2526, %v2530
      %v2532 = vshrl.u32 %v746, 16
      %v2534 = vor.u32 %v2532, %v2490
      %v2536 = vshll.u32 %v752, 16
      %v2538 = vrot.slane %v2536, 1
      %v2539 = vsel %vm1915, %v2534, %v2538
      %v2540 = vshrl.u32 %v747, 16
      %v2542 = vor.u32 %v2540, %v2498
      %v2544 = vshll.u32 %v753, 16
      %v2546 = vrot.slane %v2544, 1
      %v2547 = vsel %vm1915, %v2542, %v2546
      %v2548 = vshrl.u32 %v748, 16
      %v2550 = vor.u32 %v2548, %v2506
      %v2552 = vshll.u32 %v754, 16
      %v2554 = vrot.slane %v2552, 1
      %v2555 = vsel %vm1915, %v2550, %v2554
      %v2556 = vshrl.u32 %v749, 16
      %v2558 = vor.u32 %v2556, %v2514
      %v2560 = vshll.u32 %v755, 16
      %v2562 = vrot.slane %v2560, 1
      %v2563 = vsel %vm1915, %v2558, %v2562
      %v2564 = vshrl.u32 %v750, 16
      %v2566 = vor.u32 %v2564, %v2522
      %v2568 = vshll.u32 %v756, 16
      %v2570 = vrot.slane %v2568, 1
      %v2571 = vsel %vm1915, %v2566, %v2570
      %v2572 = vshrl.u32 %v751, 16
      %v2574 = vor.u32 %v2572, %v2530
      %v2576 = vshll.u32 %v757, 16
      %v2578 = vrot.slane %v2576, 1
      %v2579 = vsel %vm1915, %v2574, %v2578
      %v2580 = vshrl.u32 %v752, 16
      %v2582 = vor.u32 %v2580, %v2538
      %v2584 = vshll.u32 %v758, 16
      %v2586 = vrot.slane %v2584, 1
      %v2587 = vsel %vm1915, %v2582, %v2586
      %v2588 = vshrl.u32 %v753, 16
      %v2590 = vor.u32 %v2588, %v2546
      %v2592 = vshll.u32 %v759, 16
      %v2594 = vrot.slane %v2592, 1
      %v2595 = vsel %vm1915, %v2590, %v2594
      %v2596 = vshrl.u32 %v754, 16
      %v2598 = vor.u32 %v2596, %v2554
      %v2600 = vshll.u32 %v760, 16
      %v2602 = vrot.slane %v2600, 1
      %v2603 = vsel %vm1915, %v2598, %v2602
      %v2604 = vshrl.u32 %v755, 16
      %v2606 = vor.u32 %v2604, %v2562
      %v2608 = vshll.u32 %v761, 16
      %v2610 = vrot.slane %v2608, 1
      %v2611 = vsel %vm1915, %v2606, %v2610
      %v2612 = vshrl.u32 %v756, 16
      %v2614 = vor.u32 %v2612, %v2570
      %v2616 = vshll.u32 %v762, 16
      %v2618 = vrot.slane %v2616, 1
      %v2619 = vsel %vm1915, %v2614, %v2618
      %v2620 = vshrl.u32 %v757, 16
      %v2622 = vor.u32 %v2620, %v2578
      %v2624 = vshll.u32 %v763, 16
      %v2626 = vrot.slane %v2624, 1
      %v2627 = vsel %vm1915, %v2622, %v2626
      %v2628 = vshrl.u32 %v758, 16
      %v2630 = vor.u32 %v2628, %v2586
      %v2632 = vshll.u32 %v764, 16
      %v2634 = vrot.slane %v2632, 1
      %v2635 = vsel %vm1915, %v2630, %v2634
      %v2636 = vshrl.u32 %v759, 16
      %v2638 = vor.u32 %v2636, %v2594
      %v2640 = vshll.u32 %v765, 16
      %v2642 = vrot.slane %v2640, 1
      %v2643 = vsel %vm1915, %v2638, %v2642
      %v2644 = vshrl.u32 %v760, 16
      %v2646 = vor.u32 %v2644, %v2602
      %v2648 = vshll.u32 %v766, 16
      %v2650 = vrot.slane %v2648, 1
      %v2651 = vsel %vm1915, %v2646, %v2650
      %v2652 = vshrl.u32 %v761, 16
      %v2654 = vor.u32 %v2652, %v2610
      %v2656 = vshll.u32 %v767, 16
      %v2658 = vrot.slane %v2656, 1
      %v2659 = vsel %vm1915, %v2654, %v2658
      %v2660 = vshrl.u32 %v762, 16
      %v2662 = vor.u32 %v2660, %v2618
      %v2664 = vshll.u32 0, 16
      %v2666 = vrot.slane %v2664, 1
      %v2667 = vsel %vm1915, %v2662, %v2666
      %v2668 = vshrl.u32 %v763, 16
      %v2670 = vor.u32 %v2668, %v2626
      %v2671 = vsel %vm1915, %v2670, %v2666
      %v2672 = vshrl.u32 %v764, 16
      %v2674 = vor.u32 %v2672, %v2634
      %v2675 = vsel %vm1915, %v2674, %v2666
      %v2676 = vshrl.u32 %v765, 16
      %v2678 = vor.u32 %v2676, %v2642
      %v2679 = vsel %vm1915, %v2678, %v2666
      %v2680 = vshrl.u32 %v766, 16
      %v2682 = vor.u32 %v2680, %v2650
      %v2683 = vsel %vm1915, %v2682, %v2666
      %v2684 = vshrl.u32 %v767, 16
      %v2686 = vor.u32 %v2684, %v2658
      %v2687 = vsel %vm1915, %v2686, %v2666
      %v2880 = vunpack.c.l.b16 %v1819
      %v2881 = vunpack.c.l.b16 %v1820
      %v2882 = vunpack.c.l.b16 %v1821
      %v2883 = vunpack.c.l.b16 %v1822
      %v2884 = vunpack.c.l.b16 %v1823
      %v2885 = vunpack.c.l.b16 %v1824
      %v2886 = vunpack.c.l.b16 %v1825
      %v2887 = vunpack.c.l.b16 %v1826
      %v2888 = vunpack.c.l.b16 %v1827
      %v2889 = vunpack.c.l.b16 %v1828
      %v2890 = vunpack.c.l.b16 %v1829
      %v2891 = vunpack.c.l.b16 %v1830
      %v2892 = vunpack.c.l.b16 %v1831
      %v2893 = vunpack.c.l.b16 %v1832
      %v2894 = vunpack.c.l.b16 %v1833
      %v2895 = vunpack.c.l.b16 %v1834
      %v2896 = vunpack.c.l.b16 %v1835
      %v2897 = vunpack.c.l.b16 %v1836
      %v2898 = vunpack.c.l.b16 %v1837
      %v2899 = vunpack.c.l.b16 %v1838
      %v2900 = vunpack.c.l.b16 %v1839
      %v2901 = vunpack.c.l.b16 %v1840
      %v2902 = vunpack.c.l.b16 %v1841
      %v2903 = vunpack.c.l.b16 %v1842
      %v2904 = vunpack.c.l.b16 %v1843
      %v2905 = vunpack.c.l.b16 %v1844
      %v2906 = vunpack.c.l.b16 %v1845
      %v2907 = vunpack.c.l.b16 %v1846
      %v2908 = vunpack.c.l.b16 %v1847
      %v2909 = vunpack.c.l.b16 %v1848
      %v2910 = vunpack.c.l.b16 %v1849
      %v2911 = vunpack.c.l.b16 %v1850
      %v2912 = vunpack.c.l.b16 %v1851
      %v2913 = vunpack.c.l.b16 %v1852
      %v2914 = vunpack.c.l.b16 %v1853
      %v2915 = vunpack.c.l.b16 %v1854
      %v2916 = vunpack.c.l.b16 %v1855
      %v2917 = vunpack.c.l.b16 %v1856
      %v2918 = vunpack.c.l.b16 %v1857
      %v2919 = vunpack.c.l.b16 %v1858
      %v2920 = vunpack.c.l.b16 %v1859
      %v2921 = vunpack.c.l.b16 %v1860
      %v2922 = vunpack.c.l.b16 %v1861
      %v2923 = vunpack.c.l.b16 %v1862
      %v2924 = vunpack.c.l.b16 %v1863
      %v2925 = vunpack.c.l.b16 %v1864
      %v2926 = vunpack.c.l.b16 %v1865
      %v2927 = vunpack.c.l.b16 %v1866
      %v2928 = vunpack.c.l.b16 %v1867
      %v2929 = vunpack.c.l.b16 %v1868
      %v2930 = vunpack.c.l.b16 %v1869
      %v2931 = vunpack.c.l.b16 %v1870
      %v2932 = vunpack.c.l.b16 %v1871
      %v2933 = vunpack.c.l.b16 %v1872
      %v2934 = vunpack.c.l.b16 %v1873
      %v2935 = vunpack.c.l.b16 %v1874
      %v2936 = vunpack.c.l.b16 %v1875
      %v2937 = vunpack.c.l.b16 %v1876
      %v2938 = vunpack.c.l.b16 %v1877
      %v2939 = vunpack.c.l.b16 %v1878
      %v2940 = vunpack.c.l.b16 %v1879
      %v2941 = vunpack.c.l.b16 %v1880
      %v2942 = vunpack.c.l.b16 %v1881
      %v2943 = vunpack.c.l.b16 %v1882
      %v2944 = vunpack.c.l.b16 %v1883
      %v2945 = vunpack.c.l.b16 %v1884
      %v2946 = vunpack.c.l.b16 %v1885
      %v2947 = vunpack.c.l.b16 %v1886
      %v2948 = vunpack.c.l.b16 %v1887
      %v2949 = vunpack.c.l.b16 %v1888
      %v2950 = vunpack.c.l.b16 %v1889
      %v2951 = vunpack.c.l.b16 %v1890
      %v2952 = vunpack.c.l.b16 %v1891
      %v2953 = vunpack.c.l.b16 %v1892
      %v2954 = vunpack.c.l.b16 %v1893
      %v2955 = vunpack.c.l.b16 %v1894
      %v2956 = vunpack.c.l.b16 %v1895
      %v2957 = vunpack.c.l.b16 %v1896
      %v2958 = vunpack.c.l.b16 %v1897
      %v2959 = vunpack.c.l.b16 %v1898
      %v2960 = vunpack.c.l.b16 %v1899
      %v2961 = vunpack.c.l.b16 %v1900
      %v2962 = vunpack.c.l.b16 %v1901
      %v2963 = vunpack.c.l.b16 %v1902
      %v2964 = vunpack.c.l.b16 %v1903
      %v2965 = vunpack.c.l.b16 %v1904
      %v2966 = vunpack.c.l.b16 %v1905
      %v2967 = vunpack.c.l.b16 %v1906
      %v2968 = vunpack.c.l.b16 %v1907
      %v2969 = vunpack.c.l.b16 %v1908
      %v2970 = vunpack.c.l.b16 %v1909
      %v2971 = vunpack.c.l.b16 %v1910
      %v2972 = vunpack.c.l.b16 %v1911
      %v2973 = vunpack.c.l.b16 %v1912
      %v2974 = vunpack.c.l.b16 %v1913
      %v2975 = vunpack.c.l.b16 %v1914
      %v2976 = vpack.c.b16 %v2881, %v2880
      %v2977 = vpack.c.b16 %v2883, %v2882
      %v2978 = vpack.c.b16 %v2885, %v2884
      %v2979 = vpack.c.b16 %v2887, %v2886
      %v2980 = vpack.c.b16 %v2889, %v2888
      %v2981 = vpack.c.b16 %v2891, %v2890
      %v2982 = vpack.c.b16 %v2893, %v2892
      %v2983 = vpack.c.b16 %v2895, %v2894
      %v2984 = vpack.c.b16 %v2897, %v2896
      %v2985 = vpack.c.b16 %v2899, %v2898
      %v2986 = vpack.c.b16 %v2901, %v2900
      %v2987 = vpack.c.b16 %v2903, %v2902
      %v2988 = vpack.c.b16 %v2905, %v2904
      %v2989 = vpack.c.b16 %v2907, %v2906
      %v2990 = vpack.c.b16 %v2909, %v2908
      %v2991 = vpack.c.b16 %v2911, %v2910
      %v2992 = vpack.c.b16 %v2913, %v2912
      %v2993 = vpack.c.b16 %v2915, %v2914
      %v2994 = vpack.c.b16 %v2917, %v2916
      %v2995 = vpack.c.b16 %v2919, %v2918
      %v2996 = vpack.c.b16 %v2921, %v2920
      %v2997 = vpack.c.b16 %v2923, %v2922
      %v2998 = vpack.c.b16 %v2925, %v2924
      %v2999 = vpack.c.b16 %v2927, %v2926
      %v3000 = vpack.c.b16 %v2929, %v2928
      %v3001 = vpack.c.b16 %v2931, %v2930
      %v3002 = vpack.c.b16 %v2933, %v2932
      %v3003 = vpack.c.b16 %v2935, %v2934
      %v3004 = vpack.c.b16 %v2937, %v2936
      %v3005 = vpack.c.b16 %v2939, %v2938
      %v3006 = vpack.c.b16 %v2941, %v2940
      %v3007 = vpack.c.b16 %v2943, %v2942
      %v3008 = vpack.c.b16 %v2945, %v2944
      %v3009 = vpack.c.b16 %v2947, %v2946
      %v3010 = vpack.c.b16 %v2949, %v2948
      %v3011 = vpack.c.b16 %v2951, %v2950
      %v3012 = vpack.c.b16 %v2953, %v2952
      %v3013 = vpack.c.b16 %v2955, %v2954
      %v3014 = vpack.c.b16 %v2957, %v2956
      %v3015 = vpack.c.b16 %v2959, %v2958
      %v3016 = vpack.c.b16 %v2961, %v2960
      %v3017 = vpack.c.b16 %v2963, %v2962
      %v3018 = vpack.c.b16 %v2965, %v2964
      %v3019 = vpack.c.b16 %v2967, %v2966
      %v3020 = vpack.c.b16 %v2969, %v2968
      %v3021 = vpack.c.b16 %v2971, %v2970
      %v3022 = vpack.c.b16 %v2973, %v2972
      %v3023 = vpack.c.b16 %v2975, %v2974
      %3072 = vmatpush.bf16.msra.mxu0 %v2983
      %3073 = vmatpush.bf16.msra.mxu0 %v2982
      %3074 = vmatpush.bf16.msra.mxu0 %v2981
      %3075 = vmatpush.bf16.msra.mxu0 %v2980
      %3076 = vmatpush.bf16.msra.mxu0 %v2979
      %3077 = vmatpush.bf16.msra.mxu0 %v2978
      %3078 = vmatpush.bf16.msra.mxu0 %v2977
      %3079 = vmatpush.bf16.msra.mxu0 %v2976
      %3080 = vmatmul.bf16.gmra.mxu0 %v1927
      %v3081 = vpop.f32.mrf.mxu0
      %v3082 = vadd.f32 0.0, %v3081
      %v3083 = vpop.f32.mrf.mxu0
      %v3084 = vadd.f32 0.0, %v3083
      %3085 = vmatmul.bf16.gmra.mxu0 %v1995
      %v3086 = vpop.f32.mrf.mxu0
      %v3087 = vadd.f32 0.0, %v3086
      %v3088 = vpop.f32.mrf.mxu0
      %v3089 = vadd.f32 0.0, %v3088
      %3090 = vmatmul.bf16.gmra.mxu0 %v2043
      %v3091 = vpop.f32.mrf.mxu0
      %v3092 = vadd.f32 0.0, %v3091
      %v3093 = vpop.f32.mrf.mxu0
      %v3094 = vadd.f32 0.0, %v3093
      %3095 = vmatmul.bf16.gmra.mxu0 %v2091
      %v3096 = vpop.f32.mrf.mxu0
      %v3097 = vadd.f32 0.0, %v3096
      %v3098 = vpop.f32.mrf.mxu0
      %v3099 = vadd.f32 0.0, %v3098
      %3100 = vmatmul.bf16.gmra.mxu0 %v2139
      %v3101 = vpop.f32.mrf.mxu0
      %v3102 = vadd.f32 0.0, %v3101
      %v3103 = vpop.f32.mrf.mxu0
      %v3104 = vadd.f32 0.0, %v3103
      %3105 = vmatmul.bf16.gmra.mxu0 %v2187
      %v3106 = vpop.f32.mrf.mxu0
      %v3107 = vadd.f32 0.0, %v3106
      %v3108 = vpop.f32.mrf.mxu0
      %v3109 = vadd.f32 0.0, %v3108
      %3110 = vmatmul.bf16.gmra.mxu0 %v2235
      %v3111 = vpop.f32.mrf.mxu0
      %v3112 = vadd.f32 0.0, %v3111
      %v3113 = vpop.f32.mrf.mxu0
      %v3114 = vadd.f32 0.0, %v3113
      %3115 = vmatmul.bf16.gmra.mxu0 %v2283
      %v3116 = vpop.f32.mrf.mxu0
      %v3117 = vadd.f32 0.0, %v3116
      %v3118 = vpop.f32.mrf.mxu0
      %v3119 = vadd.f32 0.0, %v3118
      %3120 = vmatmul.bf16.gmra.mxu0 %v2331
      %v3121 = vpop.f32.mrf.mxu0
      %v3122 = vadd.f32 0.0, %v3121
      %v3123 = vpop.f32.mrf.mxu0
      %v3124 = vadd.f32 0.0, %v3123
      %3125 = vmatmul.bf16.gmra.mxu0 %v2379
      %v3126 = vpop.f32.mrf.mxu0
      %v3127 = vadd.f32 0.0, %v3126
      %v3128 = vpop.f32.mrf.mxu0
      %v3129 = vadd.f32 0.0, %v3128
      %3130 = vmatmul.bf16.gmra.mxu0 %v2427
      %v3131 = vpop.f32.mrf.mxu0
      %v3132 = vadd.f32 0.0, %v3131
      %v3133 = vpop.f32.mrf.mxu0
      %v3134 = vadd.f32 0.0, %v3133
      %3135 = vmatmul.bf16.gmra.mxu0 %v2475
      %v3136 = vpop.f32.mrf.mxu0
      %v3137 = vadd.f32 0.0, %v3136
      %v3138 = vpop.f32.mrf.mxu0
      %v3139 = vadd.f32 0.0, %v3138
      %3140 = vmatmul.bf16.gmra.mxu0 %v2523
      %v3141 = vpop.f32.mrf.mxu0
      %v3142 = vadd.f32 0.0, %v3141
      %v3143 = vpop.f32.mrf.mxu0
      %v3144 = vadd.f32 0.0, %v3143
      %3145 = vmatmul.bf16.gmra.mxu0 %v2571
      %v3146 = vpop.f32.mrf.mxu0
      %v3147 = vadd.f32 0.0, %v3146
      %v3148 = vpop.f32.mrf.mxu0
      %v3149 = vadd.f32 0.0, %v3148
      %3150 = vmatmul.bf16.gmra.mxu0 %v2619
      %v3151 = vpop.f32.mrf.mxu0
      %v3152 = vadd.f32 0.0, %v3151
      %v3153 = vpop.f32.mrf.mxu0
      %v3154 = vadd.f32 0.0, %v3153
      %3155 = vmatmul.bf16.gmra.mxu0 %v2667
      %v3156 = vpop.f32.mrf.mxu0
      %v3157 = vadd.f32 0.0, %v3156
      %v3158 = vpop.f32.mrf.mxu0
      %v3159 = vadd.f32 0.0, %v3158
      %3160 = vdwg.mxu0
      %3161 = vmatpush.bf16.msra.mxu0 %v2991
      %3162 = vmatpush.bf16.msra.mxu0 %v2990
      %3163 = vmatpush.bf16.msra.mxu0 %v2989
      %3164 = vmatpush.bf16.msra.mxu0 %v2988
      %3165 = vmatpush.bf16.msra.mxu0 %v2987
      %3166 = vmatpush.bf16.msra.mxu0 %v2986
      %3167 = vmatpush.bf16.msra.mxu0 %v2985
      %3168 = vmatpush.bf16.msra.mxu0 %v2984
      %3169 = vmatmul.bf16.gmra.mxu0 %v1939
      %v3170 = vpop.f32.mrf.mxu0
      %v3171 = vadd.f32 %v3082, %v3170
      %v3172 = vpop.f32.mrf.mxu0
      %v3173 = vadd.f32 %v3084, %v3172
      %3174 = vmatmul.bf16.gmra.mxu0 %v2003
      %v3175 = vpop.f32.mrf.mxu0
      %v3176 = vadd.f32 %v3087, %v3175
      %v3177 = vpop.f32.mrf.mxu0
      %v3178 = vadd.f32 %v3089, %v3177
      %3179 = vmatmul.bf16.gmra.mxu0 %v2051
      %v3180 = vpop.f32.mrf.mxu0
      %v3181 = vadd.f32 %v3092, %v3180
      %v3182 = vpop.f32.mrf.mxu0
      %v3183 = vadd.f32 %v3094, %v3182
      %3184 = vmatmul.bf16.gmra.mxu0 %v2099
      %v3185 = vpop.f32.mrf.mxu0
      %v3186 = vadd.f32 %v3097, %v3185
      %v3187 = vpop.f32.mrf.mxu0
      %v3188 = vadd.f32 %v3099, %v3187
      %3189 = vmatmul.bf16.gmra.mxu0 %v2147
      %v3190 = vpop.f32.mrf.mxu0
      %v3191 = vadd.f32 %v3102, %v3190
      %v3192 = vpop.f32.mrf.mxu0
      %v3193 = vadd.f32 %v3104, %v3192
      %3194 = vmatmul.bf16.gmra.mxu0 %v2195
      %v3195 = vpop.f32.mrf.mxu0
      %v3196 = vadd.f32 %v3107, %v3195
      %v3197 = vpop.f32.mrf.mxu0
      %v3198 = vadd.f32 %v3109, %v3197
      %3199 = vmatmul.bf16.gmra.mxu0 %v2243
      %v3200 = vpop.f32.mrf.mxu0
      %v3201 = vadd.f32 %v3112, %v3200
      %v3202 = vpop.f32.mrf.mxu0
      %v3203 = vadd.f32 %v3114, %v3202
      %3204 = vmatmul.bf16.gmra.mxu0 %v2291
      %v3205 = vpop.f32.mrf.mxu0
      %v3206 = vadd.f32 %v3117, %v3205
      %v3207 = vpop.f32.mrf.mxu0
      %v3208 = vadd.f32 %v3119, %v3207
      %3209 = vmatmul.bf16.gmra.mxu0 %v2339
      %v3210 = vpop.f32.mrf.mxu0
      %v3211 = vadd.f32 %v3122, %v3210
      %v3212 = vpop.f32.mrf.mxu0
      %v3213 = vadd.f32 %v3124, %v3212
      %3214 = vmatmul.bf16.gmra.mxu0 %v2387
      %v3215 = vpop.f32.mrf.mxu0
      %v3216 = vadd.f32 %v3127, %v3215
      %v3217 = vpop.f32.mrf.mxu0
      %v3218 = vadd.f32 %v3129, %v3217
      %3219 = vmatmul.bf16.gmra.mxu0 %v2435
      %v3220 = vpop.f32.mrf.mxu0
      %v3221 = vadd.f32 %v3132, %v3220
      %v3222 = vpop.f32.mrf.mxu0
      %v3223 = vadd.f32 %v3134, %v3222
      %3224 = vmatmul.bf16.gmra.mxu0 %v2483
      %v3225 = vpop.f32.mrf.mxu0
      %v3226 = vadd.f32 %v3137, %v3225
      %v3227 = vpop.f32.mrf.mxu0
      %v3228 = vadd.f32 %v3139, %v3227
      %3229 = vmatmul.bf16.gmra.mxu0 %v2531
      %v3230 = vpop.f32.mrf.mxu0
      %v3231 = vadd.f32 %v3142, %v3230
      %v3232 = vpop.f32.mrf.mxu0
      %v3233 = vadd.f32 %v3144, %v3232
      %3234 = vmatmul.bf16.gmra.mxu0 %v2579
      %v3235 = vpop.f32.mrf.mxu0
      %v3236 = vadd.f32 %v3147, %v3235
      %v3237 = vpop.f32.mrf.mxu0
      %v3238 = vadd.f32 %v3149, %v3237
      %3239 = vmatmul.bf16.gmra.mxu0 %v2627
      %v3240 = vpop.f32.mrf.mxu0
      %v3241 = vadd.f32 %v3152, %v3240
      %v3242 = vpop.f32.mrf.mxu0
      %v3243 = vadd.f32 %v3154, %v3242
      %3244 = vmatmul.bf16.gmra.mxu0 %v2671
      %v3245 = vpop.f32.mrf.mxu0
      %v3246 = vadd.f32 %v3157, %v3245
      %v3247 = vpop.f32.mrf.mxu0
      %v3248 = vadd.f32 %v3159, %v3247
      %3249 = vdwg.mxu0
      %3250 = vmatpush.bf16.msra.mxu0 %v2999
      %3251 = vmatpush.bf16.msra.mxu0 %v2998
      %3252 = vmatpush.bf16.msra.mxu0 %v2997
      %3253 = vmatpush.bf16.msra.mxu0 %v2996
      %3254 = vmatpush.bf16.msra.mxu0 %v2995
      %3255 = vmatpush.bf16.msra.mxu0 %v2994
      %3256 = vmatpush.bf16.msra.mxu0 %v2993
      %3257 = vmatpush.bf16.msra.mxu0 %v2992
      %3258 = vmatmul.bf16.gmra.mxu0 %v1951
      %v3259 = vpop.f32.mrf.mxu0
      %v3260 = vadd.f32 %v3171, %v3259
      %v3261 = vpop.f32.mrf.mxu0
      %v3262 = vadd.f32 %v3173, %v3261
      %3263 = vmatmul.bf16.gmra.mxu0 %v2011
      %v3264 = vpop.f32.mrf.mxu0
      %v3265 = vadd.f32 %v3176, %v3264
      %v3266 = vpop.f32.mrf.mxu0
      %v3267 = vadd.f32 %v3178, %v3266
      %3268 = vmatmul.bf16.gmra.mxu0 %v2059
      %v3269 = vpop.f32.mrf.mxu0
      %v3270 = vadd.f32 %v3181, %v3269
      %v3271 = vpop.f32.mrf.mxu0
      %v3272 = vadd.f32 %v3183, %v3271
      %3273 = vmatmul.bf16.gmra.mxu0 %v2107
      %v3274 = vpop.f32.mrf.mxu0
      %v3275 = vadd.f32 %v3186, %v3274
      %v3276 = vpop.f32.mrf.mxu0
      %v3277 = vadd.f32 %v3188, %v3276
      %3278 = vmatmul.bf16.gmra.mxu0 %v2155
      %v3279 = vpop.f32.mrf.mxu0
      %v3280 = vadd.f32 %v3191, %v3279
      %v3281 = vpop.f32.mrf.mxu0
      %v3282 = vadd.f32 %v3193, %v3281
      %3283 = vmatmul.bf16.gmra.mxu0 %v2203
      %v3284 = vpop.f32.mrf.mxu0
      %v3285 = vadd.f32 %v3196, %v3284
      %v3286 = vpop.f32.mrf.mxu0
      %v3287 = vadd.f32 %v3198, %v3286
      %3288 = vmatmul.bf16.gmra.mxu0 %v2251
      %v3289 = vpop.f32.mrf.mxu0
      %v3290 = vadd.f32 %v3201, %v3289
      %v3291 = vpop.f32.mrf.mxu0
      %v3292 = vadd.f32 %v3203, %v3291
      %3293 = vmatmul.bf16.gmra.mxu0 %v2299
      %v3294 = vpop.f32.mrf.mxu0
      %v3295 = vadd.f32 %v3206, %v3294
      %v3296 = vpop.f32.mrf.mxu0
      %v3297 = vadd.f32 %v3208, %v3296
      %3298 = vmatmul.bf16.gmra.mxu0 %v2347
      %v3299 = vpop.f32.mrf.mxu0
      %v3300 = vadd.f32 %v3211, %v3299
      %v3301 = vpop.f32.mrf.mxu0
      %v3302 = vadd.f32 %v3213, %v3301
      %3303 = vmatmul.bf16.gmra.mxu0 %v2395
      %v3304 = vpop.f32.mrf.mxu0
      %v3305 = vadd.f32 %v3216, %v3304
      %v3306 = vpop.f32.mrf.mxu0
      %v3307 = vadd.f32 %v3218, %v3306
      %3308 = vmatmul.bf16.gmra.mxu0 %v2443
      %v3309 = vpop.f32.mrf.mxu0
      %v3310 = vadd.f32 %v3221, %v3309
      %v3311 = vpop.f32.mrf.mxu0
      %v3312 = vadd.f32 %v3223, %v3311
      %3313 = vmatmul.bf16.gmra.mxu0 %v2491
      %v3314 = vpop.f32.mrf.mxu0
      %v3315 = vadd.f32 %v3226, %v3314
      %v3316 = vpop.f32.mrf.mxu0
      %v3317 = vadd.f32 %v3228, %v3316
      %3318 = vmatmul.bf16.gmra.mxu0 %v2539
      %v3319 = vpop.f32.mrf.mxu0
      %v3320 = vadd.f32 %v3231, %v3319
      %v3321 = vpop.f32.mrf.mxu0
      %v3322 = vadd.f32 %v3233, %v3321
      %3323 = vmatmul.bf16.gmra.mxu0 %v2587
      %v3324 = vpop.f32.mrf.mxu0
      %v3325 = vadd.f32 %v3236, %v3324
      %v3326 = vpop.f32.mrf.mxu0
      %v3327 = vadd.f32 %v3238, %v3326
      %3328 = vmatmul.bf16.gmra.mxu0 %v2635
      %v3329 = vpop.f32.mrf.mxu0
      %v3330 = vadd.f32 %v3241, %v3329
      %v3331 = vpop.f32.mrf.mxu0
      %v3332 = vadd.f32 %v3243, %v3331
      %3333 = vmatmul.bf16.gmra.mxu0 %v2675
      %v3334 = vpop.f32.mrf.mxu0
      %v3335 = vadd.f32 %v3246, %v3334
      %v3336 = vpop.f32.mrf.mxu0
      %v3337 = vadd.f32 %v3248, %v3336
      %3338 = vdwg.mxu0
      %3339 = vmatpush.bf16.msra.mxu0 %v3007
      %3340 = vmatpush.bf16.msra.mxu0 %v3006
      %3341 = vmatpush.bf16.msra.mxu0 %v3005
      %3342 = vmatpush.bf16.msra.mxu0 %v3004
      %3343 = vmatpush.bf16.msra.mxu0 %v3003
      %3344 = vmatpush.bf16.msra.mxu0 %v3002
      %3345 = vmatpush.bf16.msra.mxu0 %v3001
      %3346 = vmatpush.bf16.msra.mxu0 %v3000
      %3347 = vmatmul.bf16.gmra.mxu0 %v1963
      %v3348 = vpop.f32.mrf.mxu0
      %v3349 = vadd.f32 %v3260, %v3348
      %v3350 = vpop.f32.mrf.mxu0
      %v3351 = vadd.f32 %v3262, %v3350
      %3352 = vmatmul.bf16.gmra.mxu0 %v2019
      %v3353 = vpop.f32.mrf.mxu0
      %v3354 = vadd.f32 %v3265, %v3353
      %v3355 = vpop.f32.mrf.mxu0
      %v3356 = vadd.f32 %v3267, %v3355
      %3357 = vmatmul.bf16.gmra.mxu0 %v2067
      %v3358 = vpop.f32.mrf.mxu0
      %v3359 = vadd.f32 %v3270, %v3358
      %v3360 = vpop.f32.mrf.mxu0
      %v3361 = vadd.f32 %v3272, %v3360
      %3362 = vmatmul.bf16.gmra.mxu0 %v2115
      %v3363 = vpop.f32.mrf.mxu0
      %v3364 = vadd.f32 %v3275, %v3363
      %v3365 = vpop.f32.mrf.mxu0
      %v3366 = vadd.f32 %v3277, %v3365
      %3367 = vmatmul.bf16.gmra.mxu0 %v2163
      %v3368 = vpop.f32.mrf.mxu0
      %v3369 = vadd.f32 %v3280, %v3368
      %v3370 = vpop.f32.mrf.mxu0
      %v3371 = vadd.f32 %v3282, %v3370
      %3372 = vmatmul.bf16.gmra.mxu0 %v2211
      %v3373 = vpop.f32.mrf.mxu0
      %v3374 = vadd.f32 %v3285, %v3373
      %v3375 = vpop.f32.mrf.mxu0
      %v3376 = vadd.f32 %v3287, %v3375
      %3377 = vmatmul.bf16.gmra.mxu0 %v2259
      %v3378 = vpop.f32.mrf.mxu0
      %v3379 = vadd.f32 %v3290, %v3378
      %v3380 = vpop.f32.mrf.mxu0
      %v3381 = vadd.f32 %v3292, %v3380
      %3382 = vmatmul.bf16.gmra.mxu0 %v2307
      %v3383 = vpop.f32.mrf.mxu0
      %v3384 = vadd.f32 %v3295, %v3383
      %v3385 = vpop.f32.mrf.mxu0
      %v3386 = vadd.f32 %v3297, %v3385
      %3387 = vmatmul.bf16.gmra.mxu0 %v2355
      %v3388 = vpop.f32.mrf.mxu0
      %v3389 = vadd.f32 %v3300, %v3388
      %v3390 = vpop.f32.mrf.mxu0
      %v3391 = vadd.f32 %v3302, %v3390
      %3392 = vmatmul.bf16.gmra.mxu0 %v2403
      %v3393 = vpop.f32.mrf.mxu0
      %v3394 = vadd.f32 %v3305, %v3393
      %v3395 = vpop.f32.mrf.mxu0
      %v3396 = vadd.f32 %v3307, %v3395
      %3397 = vmatmul.bf16.gmra.mxu0 %v2451
      %v3398 = vpop.f32.mrf.mxu0
      %v3399 = vadd.f32 %v3310, %v3398
      %v3400 = vpop.f32.mrf.mxu0
      %v3401 = vadd.f32 %v3312, %v3400
      %3402 = vmatmul.bf16.gmra.mxu0 %v2499
      %v3403 = vpop.f32.mrf.mxu0
      %v3404 = vadd.f32 %v3315, %v3403
      %v3405 = vpop.f32.mrf.mxu0
      %v3406 = vadd.f32 %v3317, %v3405
      %3407 = vmatmul.bf16.gmra.mxu0 %v2547
      %v3408 = vpop.f32.mrf.mxu0
      %v3409 = vadd.f32 %v3320, %v3408
      %v3410 = vpop.f32.mrf.mxu0
      %v3411 = vadd.f32 %v3322, %v3410
      %3412 = vmatmul.bf16.gmra.mxu0 %v2595
      %v3413 = vpop.f32.mrf.mxu0
      %v3414 = vadd.f32 %v3325, %v3413
      %v3415 = vpop.f32.mrf.mxu0
      %v3416 = vadd.f32 %v3327, %v3415
      %3417 = vmatmul.bf16.gmra.mxu0 %v2643
      %v3418 = vpop.f32.mrf.mxu0
      %v3419 = vadd.f32 %v3330, %v3418
      %v3420 = vpop.f32.mrf.mxu0
      %v3421 = vadd.f32 %v3332, %v3420
      %3422 = vmatmul.bf16.gmra.mxu0 %v2679
      %v3423 = vpop.f32.mrf.mxu0
      %v3424 = vadd.f32 %v3335, %v3423
      %v3425 = vpop.f32.mrf.mxu0
      %v3426 = vadd.f32 %v3337, %v3425
      %3427 = vdwg.mxu0
      %3428 = vmatpush.bf16.msra.mxu0 %v3015
      %3429 = vmatpush.bf16.msra.mxu0 %v3014
      %3430 = vmatpush.bf16.msra.mxu0 %v3013
      %3431 = vmatpush.bf16.msra.mxu0 %v3012
      %3432 = vmatpush.bf16.msra.mxu0 %v3011
      %3433 = vmatpush.bf16.msra.mxu0 %v3010
      %3434 = vmatpush.bf16.msra.mxu0 %v3009
      %3435 = vmatpush.bf16.msra.mxu0 %v3008
      %3436 = vmatmul.bf16.gmra.mxu0 %v1975
      %v3437 = vpop.f32.mrf.mxu0
      %v3438 = vadd.f32 %v3349, %v3437
      %v3439 = vpop.f32.mrf.mxu0
      %v3440 = vadd.f32 %v3351, %v3439
      %3441 = vmatmul.bf16.gmra.mxu0 %v2027
      %v3442 = vpop.f32.mrf.mxu0
      %v3443 = vadd.f32 %v3354, %v3442
      %v3444 = vpop.f32.mrf.mxu0
      %v3445 = vadd.f32 %v3356, %v3444
      %3446 = vmatmul.bf16.gmra.mxu0 %v2075
      %v3447 = vpop.f32.mrf.mxu0
      %v3448 = vadd.f32 %v3359, %v3447
      %v3449 = vpop.f32.mrf.mxu0
      %v3450 = vadd.f32 %v3361, %v3449
      %3451 = vmatmul.bf16.gmra.mxu0 %v2123
      %v3452 = vpop.f32.mrf.mxu0
      %v3453 = vadd.f32 %v3364, %v3452
      %v3454 = vpop.f32.mrf.mxu0
      %v3455 = vadd.f32 %v3366, %v3454
      %3456 = vmatmul.bf16.gmra.mxu0 %v2171
      %v3457 = vpop.f32.mrf.mxu0
      %v3458 = vadd.f32 %v3369, %v3457
      %v3459 = vpop.f32.mrf.mxu0
      %v3460 = vadd.f32 %v3371, %v3459
      %3461 = vmatmul.bf16.gmra.mxu0 %v2219
      %v3462 = vpop.f32.mrf.mxu0
      %v3463 = vadd.f32 %v3374, %v3462
      %v3464 = vpop.f32.mrf.mxu0
      %v3465 = vadd.f32 %v3376, %v3464
      %3466 = vmatmul.bf16.gmra.mxu0 %v2267
      %v3467 = vpop.f32.mrf.mxu0
      %v3468 = vadd.f32 %v3379, %v3467
      %v3469 = vpop.f32.mrf.mxu0
      %v3470 = vadd.f32 %v3381, %v3469
      %3471 = vmatmul.bf16.gmra.mxu0 %v2315
      %v3472 = vpop.f32.mrf.mxu0
      %v3473 = vadd.f32 %v3384, %v3472
      %v3474 = vpop.f32.mrf.mxu0
      %v3475 = vadd.f32 %v3386, %v3474
      %3476 = vmatmul.bf16.gmra.mxu0 %v2363
      %v3477 = vpop.f32.mrf.mxu0
      %v3478 = vadd.f32 %v3389, %v3477
      %v3479 = vpop.f32.mrf.mxu0
      %v3480 = vadd.f32 %v3391, %v3479
      %3481 = vmatmul.bf16.gmra.mxu0 %v2411
      %v3482 = vpop.f32.mrf.mxu0
      %v3483 = vadd.f32 %v3394, %v3482
      %v3484 = vpop.f32.mrf.mxu0
      %v3485 = vadd.f32 %v3396, %v3484
      %3486 = vmatmul.bf16.gmra.mxu0 %v2459
      %v3487 = vpop.f32.mrf.mxu0
      %v3488 = vadd.f32 %v3399, %v3487
      %v3489 = vpop.f32.mrf.mxu0
      %v3490 = vadd.f32 %v3401, %v3489
      %3491 = vmatmul.bf16.gmra.mxu0 %v2507
      %v3492 = vpop.f32.mrf.mxu0
      %v3493 = vadd.f32 %v3404, %v3492
      %v3494 = vpop.f32.mrf.mxu0
      %v3495 = vadd.f32 %v3406, %v3494
      %3496 = vmatmul.bf16.gmra.mxu0 %v2555
      %v3497 = vpop.f32.mrf.mxu0
      %v3498 = vadd.f32 %v3409, %v3497
      %v3499 = vpop.f32.mrf.mxu0
      %v3500 = vadd.f32 %v3411, %v3499
      %3501 = vmatmul.bf16.gmra.mxu0 %v2603
      %v3502 = vpop.f32.mrf.mxu0
      %v3503 = vadd.f32 %v3414, %v3502
      %v3504 = vpop.f32.mrf.mxu0
      %v3505 = vadd.f32 %v3416, %v3504
      %3506 = vmatmul.bf16.gmra.mxu0 %v2651
      %v3507 = vpop.f32.mrf.mxu0
      %v3508 = vadd.f32 %v3419, %v3507
      %v3509 = vpop.f32.mrf.mxu0
      %v3510 = vadd.f32 %v3421, %v3509
      %3511 = vmatmul.bf16.gmra.mxu0 %v2683
      %v3512 = vpop.f32.mrf.mxu0
      %v3513 = vadd.f32 %v3424, %v3512
      %v3514 = vpop.f32.mrf.mxu0
      %v3515 = vadd.f32 %v3426, %v3514
      %3516 = vdwg.mxu0
      %3517 = vmatpush.bf16.msra.mxu0 %v3023
      %3518 = vmatpush.bf16.msra.mxu0 %v3022
      %3519 = vmatpush.bf16.msra.mxu0 %v3021
      %3520 = vmatpush.bf16.msra.mxu0 %v3020
      %3521 = vmatpush.bf16.msra.mxu0 %v3019
      %3522 = vmatpush.bf16.msra.mxu0 %v3018
      %3523 = vmatpush.bf16.msra.mxu0 %v3017
      %3524 = vmatpush.bf16.msra.mxu0 %v3016
      %3525 = vmatmul.bf16.gmra.mxu0 %v1987
      %v3526 = vpop.f32.mrf.mxu0
      %v3527 = vadd.f32 %v3438, %v3526
      %v3528 = vpop.f32.mrf.mxu0
      %v3529 = vadd.f32 %v3440, %v3528
      %3530 = vmatmul.bf16.gmra.mxu0 %v2035
      %v3531 = vpop.f32.mrf.mxu0
      %v3532 = vadd.f32 %v3443, %v3531
      %v3533 = vpop.f32.mrf.mxu0
      %v3534 = vadd.f32 %v3445, %v3533
      %3535 = vmatmul.bf16.gmra.mxu0 %v2083
      %v3536 = vpop.f32.mrf.mxu0
      %v3537 = vadd.f32 %v3448, %v3536
      %v3538 = vpop.f32.mrf.mxu0
      %v3539 = vadd.f32 %v3450, %v3538
      %3540 = vmatmul.bf16.gmra.mxu0 %v2131
      %v3541 = vpop.f32.mrf.mxu0
      %v3542 = vadd.f32 %v3453, %v3541
      %v3543 = vpop.f32.mrf.mxu0
      %v3544 = vadd.f32 %v3455, %v3543
      %3545 = vmatmul.bf16.gmra.mxu0 %v2179
      %v3546 = vpop.f32.mrf.mxu0
      %v3547 = vadd.f32 %v3458, %v3546
      %v3548 = vpop.f32.mrf.mxu0
      %v3549 = vadd.f32 %v3460, %v3548
      %3550 = vmatmul.bf16.gmra.mxu0 %v2227
      %v3551 = vpop.f32.mrf.mxu0
      %v3552 = vadd.f32 %v3463, %v3551
      %v3553 = vpop.f32.mrf.mxu0
      %v3554 = vadd.f32 %v3465, %v3553
      %3555 = vmatmul.bf16.gmra.mxu0 %v2275
      %v3556 = vpop.f32.mrf.mxu0
      %v3557 = vadd.f32 %v3468, %v3556
      %v3558 = vpop.f32.mrf.mxu0
      %v3559 = vadd.f32 %v3470, %v3558
      %3560 = vmatmul.bf16.gmra.mxu0 %v2323
      %v3561 = vpop.f32.mrf.mxu0
      %v3562 = vadd.f32 %v3473, %v3561
      %v3563 = vpop.f32.mrf.mxu0
      %v3564 = vadd.f32 %v3475, %v3563
      %3565 = vmatmul.bf16.gmra.mxu0 %v2371
      %v3566 = vpop.f32.mrf.mxu0
      %v3567 = vadd.f32 %v3478, %v3566
      %v3568 = vpop.f32.mrf.mxu0
      %v3569 = vadd.f32 %v3480, %v3568
      %3570 = vmatmul.bf16.gmra.mxu0 %v2419
      %v3571 = vpop.f32.mrf.mxu0
      %v3572 = vadd.f32 %v3483, %v3571
      %v3573 = vpop.f32.mrf.mxu0
      %v3574 = vadd.f32 %v3485, %v3573
      %3575 = vmatmul.bf16.gmra.mxu0 %v2467
      %v3576 = vpop.f32.mrf.mxu0
      %v3577 = vadd.f32 %v3488, %v3576
      %v3578 = vpop.f32.mrf.mxu0
      %v3579 = vadd.f32 %v3490, %v3578
      %3580 = vmatmul.bf16.gmra.mxu0 %v2515
      %v3581 = vpop.f32.mrf.mxu0
      %v3582 = vadd.f32 %v3493, %v3581
      %v3583 = vpop.f32.mrf.mxu0
      %v3584 = vadd.f32 %v3495, %v3583
      %3585 = vmatmul.bf16.gmra.mxu0 %v2563
      %v3586 = vpop.f32.mrf.mxu0
      %v3587 = vadd.f32 %v3498, %v3586
      %v3588 = vpop.f32.mrf.mxu0
      %v3589 = vadd.f32 %v3500, %v3588
      %3590 = vmatmul.bf16.gmra.mxu0 %v2611
      %v3591 = vpop.f32.mrf.mxu0
      %v3592 = vadd.f32 %v3503, %v3591
      %v3593 = vpop.f32.mrf.mxu0
      %v3594 = vadd.f32 %v3505, %v3593
      %3595 = vmatmul.bf16.gmra.mxu0 %v2659
      %v3596 = vpop.f32.mrf.mxu0
      %v3597 = vadd.f32 %v3508, %v3596
      %v3598 = vpop.f32.mrf.mxu0
      %v3599 = vadd.f32 %v3510, %v3598
      %3600 = vmatmul.bf16.gmra.mxu0 %v2687
      %v3601 = vpop.f32.mrf.mxu0
      %v3602 = vadd.f32 %v3513, %v3601
      %v3603 = vpop.f32.mrf.mxu0
      %v3604 = vadd.f32 %v3515, %v3603
      %3605 = vdwg.mxu0
      %v3606 = vadd.f32 %v1786, %v3527
      %v3607 = vadd.f32 %v1787, %v3529
      %v3608 = vadd.f32 %v1788, %v3532
      %v3609 = vadd.f32 %v1789, %v3534
      %v3610 = vadd.f32 %v1790, %v3537
      %v3611 = vadd.f32 %v1791, %v3539
      %v3612 = vadd.f32 %v1792, %v3542
      %v3613 = vadd.f32 %v1793, %v3544
      %v3614 = vadd.f32 %v1794, %v3547
      %v3615 = vadd.f32 %v1795, %v3549
      %v3616 = vadd.f32 %v1796, %v3552
      %v3617 = vadd.f32 %v1797, %v3554
      %v3618 = vadd.f32 %v1798, %v3557
      %v3619 = vadd.f32 %v1799, %v3559
      %v3620 = vadd.f32 %v1800, %v3562
      %v3621 = vadd.f32 %v1801, %v3564
      %v3622 = vadd.f32 %v1802, %v3567
      %v3623 = vadd.f32 %v1803, %v3569
      %v3624 = vadd.f32 %v1804, %v3572
      %v3625 = vadd.f32 %v1805, %v3574
      %v3626 = vadd.f32 %v1806, %v3577
      %v3627 = vadd.f32 %v1807, %v3579
      %v3628 = vadd.f32 %v1808, %v3582
      %v3629 = vadd.f32 %v1809, %v3584
      %v3630 = vadd.f32 %v1810, %v3587
      %v3631 = vadd.f32 %v1811, %v3589
      %v3632 = vadd.f32 %v1812, %v3592
      %v3633 = vadd.f32 %v1813, %v3594
      %v3634 = vadd.f32 %v1814, %v3597
      %v3635 = vadd.f32 %v1815, %v3599
      %v3636 = vadd.f32 %v1816, %v3602
      %v3637 = vadd.f32 %v1817, %v3604
      %s3638 = scalar_lea.vmem %s1, 768
      %v3639 = vld [vmem:[%s3638] sm:$0xf]
      %v3640 = vld [vmem:[%s3638 + $0x4] sm:$0xf]
      %v3641 = vld [vmem:[%s3638 + $0x8] sm:$0xf]
      %v3642 = vld [vmem:[%s3638 + $0xc] sm:$0xf]
      %v3643 = vld [vmem:[%s3638 + $0x10] sm:$0xf]
      %v3644 = vld [vmem:[%s3638 + $0x14] sm:$0xf]
      %v3645 = vld [vmem:[%s3638 + $0x18] sm:$0xf]
      %v3646 = vld [vmem:[%s3638 + $0x1c] sm:$0xf]
      %v3647 = vld [vmem:[%s3638 + $0x20] sm:$0xf]
      %v3648 = vld [vmem:[%s3638 + $0x24] sm:$0xf]
      %v3649 = vld [vmem:[%s3638 + $0x28] sm:$0xf]
      %v3650 = vld [vmem:[%s3638 + $0x2c] sm:$0xf]
      %v3651 = vld [vmem:[%s3638 + $0x30] sm:$0xf]
      %v3652 = vld [vmem:[%s3638 + $0x34] sm:$0xf]
      %v3653 = vld [vmem:[%s3638 + $0x38] sm:$0xf]
      %v3654 = vld [vmem:[%s3638 + $0x3c] sm:$0xf]
      %v3655 = vld [vmem:[%s3638 + $0x40] sm:$0xf]
      %v3656 = vld [vmem:[%s3638 + $0x44] sm:$0xf]
      %v3657 = vld [vmem:[%s3638 + $0x48] sm:$0xf]
      %v3658 = vld [vmem:[%s3638 + $0x4c] sm:$0xf]
      %v3659 = vld [vmem:[%s3638 + $0x50] sm:$0xf]
      %v3660 = vld [vmem:[%s3638 + $0x54] sm:$0xf]
      %v3661 = vld [vmem:[%s3638 + $0x58] sm:$0xf]
      %v3662 = vld [vmem:[%s3638 + $0x5c] sm:$0xf]
      %v3663 = vld [vmem:[%s3638 + $0x60] sm:$0xf]
      %v3664 = vld [vmem:[%s3638 + $0x64] sm:$0xf]
      %v3665 = vld [vmem:[%s3638 + $0x68] sm:$0xf]
      %v3666 = vld [vmem:[%s3638 + $0x6c] sm:$0xf]
      %v3667 = vld [vmem:[%s3638 + $0x70] sm:$0xf]
      %v3668 = vld [vmem:[%s3638 + $0x74] sm:$0xf]
      %v3669 = vld [vmem:[%s3638 + $0x78] sm:$0xf]
      %v3670 = vld [vmem:[%s3638 + $0x7c] sm:$0xf]
      %v3671 = vld [vmem:[%s3638 + $0x80] sm:$0xf]
      %v3672 = vld [vmem:[%s3638 + $0x84] sm:$0xf]
      %v3673 = vld [vmem:[%s3638 + $0x88] sm:$0xf]
      %v3674 = vld [vmem:[%s3638 + $0x8c] sm:$0xf]
      %v3675 = vld [vmem:[%s3638 + $0x90] sm:$0xf]
      %v3676 = vld [vmem:[%s3638 + $0x94] sm:$0xf]
      %v3677 = vld [vmem:[%s3638 + $0x98] sm:$0xf]
      %v3678 = vld [vmem:[%s3638 + $0x9c] sm:$0xf]
      %v3679 = vld [vmem:[%s3638 + $0xa0] sm:$0xf]
      %v3680 = vld [vmem:[%s3638 + $0xa4] sm:$0xf]
      %v3681 = vld [vmem:[%s3638 + $0xa8] sm:$0xf]
      %v3682 = vld [vmem:[%s3638 + $0xac] sm:$0xf]
      %v3683 = vld [vmem:[%s3638 + $0xb0] sm:$0xf]
      %v3684 = vld [vmem:[%s3638 + $0xb4] sm:$0xf]
      %v3685 = vld [vmem:[%s3638 + $0xb8] sm:$0xf]
      %v3686 = vld [vmem:[%s3638 + $0xbc] sm:$0xf]
      %v3687 = vld [vmem:[%s3638 + $0xc0] sm:$0xf]
      %v3688 = vld [vmem:[%s3638 + $0xc4] sm:$0xf]
      %v3689 = vld [vmem:[%s3638 + $0xc8] sm:$0xf]
      %v3690 = vld [vmem:[%s3638 + $0xcc] sm:$0xf]
      %v3691 = vld [vmem:[%s3638 + $0xd0] sm:$0xf]
      %v3692 = vld [vmem:[%s3638 + $0xd4] sm:$0xf]
      %v3693 = vld [vmem:[%s3638 + $0xd8] sm:$0xf]
      %v3694 = vld [vmem:[%s3638 + $0xdc] sm:$0xf]
      %v3695 = vld [vmem:[%s3638 + $0xe0] sm:$0xf]
      %v3696 = vld [vmem:[%s3638 + $0xe4] sm:$0xf]
      %v3697 = vld [vmem:[%s3638 + $0xe8] sm:$0xf]
      %v3698 = vld [vmem:[%s3638 + $0xec] sm:$0xf]
      %v3699 = vld [vmem:[%s3638 + $0xf0] sm:$0xf]
      %v3700 = vld [vmem:[%s3638 + $0xf4] sm:$0xf]
      %v3701 = vld [vmem:[%s3638 + $0xf8] sm:$0xf]
      %v3702 = vld [vmem:[%s3638 + $0xfc] sm:$0xf]
      %v3703 = vld [vmem:[%s3638 + $0x100] sm:$0xf]
      %v3704 = vld [vmem:[%s3638 + $0x104] sm:$0xf]
      %v3705 = vld [vmem:[%s3638 + $0x108] sm:$0xf]
      %v3706 = vld [vmem:[%s3638 + $0x10c] sm:$0xf]
      %v3707 = vld [vmem:[%s3638 + $0x110] sm:$0xf]
      %v3708 = vld [vmem:[%s3638 + $0x114] sm:$0xf]
      %v3709 = vld [vmem:[%s3638 + $0x118] sm:$0xf]
      %v3710 = vld [vmem:[%s3638 + $0x11c] sm:$0xf]
      %v3711 = vld [vmem:[%s3638 + $0x120] sm:$0xf]
      %v3712 = vld [vmem:[%s3638 + $0x124] sm:$0xf]
      %v3713 = vld [vmem:[%s3638 + $0x128] sm:$0xf]
      %v3714 = vld [vmem:[%s3638 + $0x12c] sm:$0xf]
      %v3715 = vld [vmem:[%s3638 + $0x130] sm:$0xf]
      %v3716 = vld [vmem:[%s3638 + $0x134] sm:$0xf]
      %v3717 = vld [vmem:[%s3638 + $0x138] sm:$0xf]
      %v3718 = vld [vmem:[%s3638 + $0x13c] sm:$0xf]
      %v3719 = vld [vmem:[%s3638 + $0x140] sm:$0xf]
      %v3720 = vld [vmem:[%s3638 + $0x144] sm:$0xf]
      %v3721 = vld [vmem:[%s3638 + $0x148] sm:$0xf]
      %v3722 = vld [vmem:[%s3638 + $0x14c] sm:$0xf]
      %v3723 = vld [vmem:[%s3638 + $0x150] sm:$0xf]
      %v3724 = vld [vmem:[%s3638 + $0x154] sm:$0xf]
      %v3725 = vld [vmem:[%s3638 + $0x158] sm:$0xf]
      %v3726 = vld [vmem:[%s3638 + $0x15c] sm:$0xf]
      %v3727 = vld [vmem:[%s3638 + $0x160] sm:$0xf]
      %v3728 = vld [vmem:[%s3638 + $0x164] sm:$0xf]
      %v3729 = vld [vmem:[%s3638 + $0x168] sm:$0xf]
      %v3730 = vld [vmem:[%s3638 + $0x16c] sm:$0xf]
      %v3731 = vld [vmem:[%s3638 + $0x170] sm:$0xf]
      %v3732 = vld [vmem:[%s3638 + $0x174] sm:$0xf]
      %v3733 = vld [vmem:[%s3638 + $0x178] sm:$0xf]
      %v3734 = vld [vmem:[%s3638 + $0x17c] sm:$0xf]
      %vm3736 = vcmask 1046528
      %v3737 = vrot.slane %v672, 1
      %v3738 = vrot.slane %v678, 1
      %v3739 = vsel %vm3736, %v3737, %v3738
      %v3740 = vrot.slane %v673, 1
      %v3741 = vrot.slane %v679, 1
      %v3742 = vsel %vm3736, %v3740, %v3741
      %v3743 = vrot.slane %v674, 1
      %v3744 = vrot.slane %v680, 1
      %v3745 = vsel %vm3736, %v3743, %v3744
      %v3746 = vrot.slane %v675, 1
      %v3747 = vrot.slane %v681, 1
      %v3748 = vsel %vm3736, %v3746, %v3747
      %v3749 = vrot.slane %v676, 1
      %v3750 = vrot.slane %v682, 1
      %v3751 = vsel %vm3736, %v3749, %v3750
      %v3752 = vrot.slane %v677, 1
      %v3753 = vrot.slane %v683, 1
      %v3754 = vsel %vm3736, %v3752, %v3753
      %v3755 = vrot.slane %v684, 1
      %v3756 = vsel %vm3736, %v3738, %v3755
      %v3757 = vrot.slane %v685, 1
      %v3758 = vsel %vm3736, %v3741, %v3757
      %v3759 = vrot.slane %v686, 1
      %v3760 = vsel %vm3736, %v3744, %v3759
      %v3761 = vrot.slane %v687, 1
      %v3762 = vsel %vm3736, %v3747, %v3761
      %v3763 = vrot.slane %v688, 1
      %v3764 = vsel %vm3736, %v3750, %v3763
      %v3765 = vrot.slane %v689, 1
      %v3766 = vsel %vm3736, %v3753, %v3765
      %v3767 = vrot.slane %v690, 1
      %v3768 = vsel %vm3736, %v3755, %v3767
      %v3769 = vrot.slane %v691, 1
      %v3770 = vsel %vm3736, %v3757, %v3769
      %v3771 = vrot.slane %v692, 1
      %v3772 = vsel %vm3736, %v3759, %v3771
      %v3773 = vrot.slane %v693, 1
      %v3774 = vsel %vm3736, %v3761, %v3773
      %v3775 = vrot.slane %v694, 1
      %v3776 = vsel %vm3736, %v3763, %v3775
      %v3777 = vrot.slane %v695, 1
      %v3778 = vsel %vm3736, %v3765, %v3777
      %v3779 = vrot.slane %v696, 1
      %v3780 = vsel %vm3736, %v3767, %v3779
      %v3781 = vrot.slane %v697, 1
      %v3782 = vsel %vm3736, %v3769, %v3781
      %v3783 = vrot.slane %v698, 1
      %v3784 = vsel %vm3736, %v3771, %v3783
      %v3785 = vrot.slane %v699, 1
      %v3786 = vsel %vm3736, %v3773, %v3785
      %v3787 = vrot.slane %v700, 1
      %v3788 = vsel %vm3736, %v3775, %v3787
      %v3789 = vrot.slane %v701, 1
      %v3790 = vsel %vm3736, %v3777, %v3789
      %v3791 = vrot.slane %v702, 1
      %v3792 = vsel %vm3736, %v3779, %v3791
      %v3793 = vrot.slane %v703, 1
      %v3794 = vsel %vm3736, %v3781, %v3793
      %v3795 = vrot.slane %v704, 1
      %v3796 = vsel %vm3736, %v3783, %v3795
      %v3797 = vrot.slane %v705, 1
      %v3798 = vsel %vm3736, %v3785, %v3797
      %v3799 = vrot.slane %v706, 1
      %v3800 = vsel %vm3736, %v3787, %v3799
      %v3801 = vrot.slane %v707, 1
      %v3802 = vsel %vm3736, %v3789, %v3801
      %v3803 = vrot.slane %v708, 1
      %v3804 = vsel %vm3736, %v3791, %v3803
      %v3805 = vrot.slane %v709, 1
      %v3806 = vsel %vm3736, %v3793, %v3805
      %v3807 = vrot.slane %v710, 1
      %v3808 = vsel %vm3736, %v3795, %v3807
      %v3809 = vrot.slane %v711, 1
      %v3810 = vsel %vm3736, %v3797, %v3809
      %v3811 = vrot.slane %v712, 1
      %v3812 = vsel %vm3736, %v3799, %v3811
      %v3813 = vrot.slane %v713, 1
      %v3814 = vsel %vm3736, %v3801, %v3813
      %v3815 = vrot.slane %v714, 1
      %v3816 = vsel %vm3736, %v3803, %v3815
      %v3817 = vrot.slane %v715, 1
      %v3818 = vsel %vm3736, %v3805, %v3817
      %v3819 = vrot.slane %v716, 1
      %v3820 = vsel %vm3736, %v3807, %v3819
      %v3821 = vrot.slane %v717, 1
      %v3822 = vsel %vm3736, %v3809, %v3821
      %v3823 = vrot.slane %v718, 1
      %v3824 = vsel %vm3736, %v3811, %v3823
      %v3825 = vrot.slane %v719, 1
      %v3826 = vsel %vm3736, %v3813, %v3825
      %v3827 = vrot.slane %v720, 1
      %v3828 = vsel %vm3736, %v3815, %v3827
      %v3829 = vrot.slane %v721, 1
      %v3830 = vsel %vm3736, %v3817, %v3829
      %v3831 = vrot.slane %v722, 1
      %v3832 = vsel %vm3736, %v3819, %v3831
      %v3833 = vrot.slane %v723, 1
      %v3834 = vsel %vm3736, %v3821, %v3833
      %v3835 = vrot.slane %v724, 1
      %v3836 = vsel %vm3736, %v3823, %v3835
      %v3837 = vrot.slane %v725, 1
      %v3838 = vsel %vm3736, %v3825, %v3837
      %v3839 = vrot.slane %v726, 1
      %v3840 = vsel %vm3736, %v3827, %v3839
      %v3841 = vrot.slane %v727, 1
      %v3842 = vsel %vm3736, %v3829, %v3841
      %v3843 = vrot.slane %v728, 1
      %v3844 = vsel %vm3736, %v3831, %v3843
      %v3845 = vrot.slane %v729, 1
      %v3846 = vsel %vm3736, %v3833, %v3845
      %v3847 = vrot.slane %v730, 1
      %v3848 = vsel %vm3736, %v3835, %v3847
      %v3849 = vrot.slane %v731, 1
      %v3850 = vsel %vm3736, %v3837, %v3849
      %v3851 = vrot.slane %v732, 1
      %v3852 = vsel %vm3736, %v3839, %v3851
      %v3853 = vrot.slane %v733, 1
      %v3854 = vsel %vm3736, %v3841, %v3853
      %v3855 = vrot.slane %v734, 1
      %v3856 = vsel %vm3736, %v3843, %v3855
      %v3857 = vrot.slane %v735, 1
      %v3858 = vsel %vm3736, %v3845, %v3857
      %v3859 = vrot.slane %v736, 1
      %v3860 = vsel %vm3736, %v3847, %v3859
      %v3861 = vrot.slane %v737, 1
      %v3862 = vsel %vm3736, %v3849, %v3861
      %v3863 = vrot.slane %v738, 1
      %v3864 = vsel %vm3736, %v3851, %v3863
      %v3865 = vrot.slane %v739, 1
      %v3866 = vsel %vm3736, %v3853, %v3865
      %v3867 = vrot.slane %v740, 1
      %v3868 = vsel %vm3736, %v3855, %v3867
      %v3869 = vrot.slane %v741, 1
      %v3870 = vsel %vm3736, %v3857, %v3869
      %v3871 = vrot.slane %v742, 1
      %v3872 = vsel %vm3736, %v3859, %v3871
      %v3873 = vrot.slane %v743, 1
      %v3874 = vsel %vm3736, %v3861, %v3873
      %v3875 = vrot.slane %v744, 1
      %v3876 = vsel %vm3736, %v3863, %v3875
      %v3877 = vrot.slane %v745, 1
      %v3878 = vsel %vm3736, %v3865, %v3877
      %v3879 = vrot.slane %v746, 1
      %v3880 = vsel %vm3736, %v3867, %v3879
      %v3881 = vrot.slane %v747, 1
      %v3882 = vsel %vm3736, %v3869, %v3881
      %v3883 = vrot.slane %v748, 1
      %v3884 = vsel %vm3736, %v3871, %v3883
      %v3885 = vrot.slane %v749, 1
      %v3886 = vsel %vm3736, %v3873, %v3885
      %v3887 = vrot.slane %v750, 1
      %v3888 = vsel %vm3736, %v3875, %v3887
      %v3889 = vrot.slane %v751, 1
      %v3890 = vsel %vm3736, %v3877, %v3889
      %v3891 = vrot.slane %v752, 1
      %v3892 = vsel %vm3736, %v3879, %v3891
      %v3893 = vrot.slane %v753, 1
      %v3894 = vsel %vm3736, %v3881, %v3893
      %v3895 = vrot.slane %v754, 1
      %v3896 = vsel %vm3736, %v3883, %v3895
      %v3897 = vrot.slane %v755, 1
      %v3898 = vsel %vm3736, %v3885, %v3897
      %v3899 = vrot.slane %v756, 1
      %v3900 = vsel %vm3736, %v3887, %v3899
      %v3901 = vrot.slane %v757, 1
      %v3902 = vsel %vm3736, %v3889, %v3901
      %v3903 = vrot.slane %v758, 1
      %v3904 = vsel %vm3736, %v3891, %v3903
      %v3905 = vrot.slane %v759, 1
      %v3906 = vsel %vm3736, %v3893, %v3905
      %v3907 = vrot.slane %v760, 1
      %v3908 = vsel %vm3736, %v3895, %v3907
      %v3909 = vrot.slane %v761, 1
      %v3910 = vsel %vm3736, %v3897, %v3909
      %v3911 = vrot.slane %v762, 1
      %v3912 = vsel %vm3736, %v3899, %v3911
      %v3913 = vrot.slane %v763, 1
      %v3914 = vsel %vm3736, %v3901, %v3913
      %v3915 = vrot.slane %v764, 1
      %v3916 = vsel %vm3736, %v3903, %v3915
      %v3917 = vrot.slane %v765, 1
      %v3918 = vsel %vm3736, %v3905, %v3917
      %v3919 = vrot.slane %v766, 1
      %v3920 = vsel %vm3736, %v3907, %v3919
      %v3921 = vrot.slane %v767, 1
      %v3922 = vsel %vm3736, %v3909, %v3921
      %v3923 = vrot.slane 0, 1
      %v3924 = vsel %vm3736, %v3911, %v3923
      %v3925 = vsel %vm3736, %v3913, %v3923
      %v3926 = vsel %vm3736, %v3915, %v3923
      %v3927 = vsel %vm3736, %v3917, %v3923
      %v3928 = vsel %vm3736, %v3919, %v3923
      %v3929 = vsel %vm3736, %v3921, %v3923
      %v4122 = vunpack.c.l.b16 %v3639
      %v4123 = vunpack.c.l.b16 %v3640
      %v4124 = vunpack.c.l.b16 %v3641
      %v4125 = vunpack.c.l.b16 %v3642
      %v4126 = vunpack.c.l.b16 %v3643
      %v4127 = vunpack.c.l.b16 %v3644
      %v4128 = vunpack.c.l.b16 %v3645
      %v4129 = vunpack.c.l.b16 %v3646
      %v4130 = vunpack.c.l.b16 %v3647
      %v4131 = vunpack.c.l.b16 %v3648
      %v4132 = vunpack.c.l.b16 %v3649
      %v4133 = vunpack.c.l.b16 %v3650
      %v4134 = vunpack.c.l.b16 %v3651
      %v4135 = vunpack.c.l.b16 %v3652
      %v4136 = vunpack.c.l.b16 %v3653
      %v4137 = vunpack.c.l.b16 %v3654
      %v4138 = vunpack.c.l.b16 %v3655
      %v4139 = vunpack.c.l.b16 %v3656
      %v4140 = vunpack.c.l.b16 %v3657
      %v4141 = vunpack.c.l.b16 %v3658
      %v4142 = vunpack.c.l.b16 %v3659
      %v4143 = vunpack.c.l.b16 %v3660
      %v4144 = vunpack.c.l.b16 %v3661
      %v4145 = vunpack.c.l.b16 %v3662
      %v4146 = vunpack.c.l.b16 %v3663
      %v4147 = vunpack.c.l.b16 %v3664
      %v4148 = vunpack.c.l.b16 %v3665
      %v4149 = vunpack.c.l.b16 %v3666
      %v4150 = vunpack.c.l.b16 %v3667
      %v4151 = vunpack.c.l.b16 %v3668
      %v4152 = vunpack.c.l.b16 %v3669
      %v4153 = vunpack.c.l.b16 %v3670
      %v4154 = vunpack.c.l.b16 %v3671
      %v4155 = vunpack.c.l.b16 %v3672
      %v4156 = vunpack.c.l.b16 %v3673
      %v4157 = vunpack.c.l.b16 %v3674
      %v4158 = vunpack.c.l.b16 %v3675
      %v4159 = vunpack.c.l.b16 %v3676
      %v4160 = vunpack.c.l.b16 %v3677
      %v4161 = vunpack.c.l.b16 %v3678
      %v4162 = vunpack.c.l.b16 %v3679
      %v4163 = vunpack.c.l.b16 %v3680
      %v4164 = vunpack.c.l.b16 %v3681
      %v4165 = vunpack.c.l.b16 %v3682
      %v4166 = vunpack.c.l.b16 %v3683
      %v4167 = vunpack.c.l.b16 %v3684
      %v4168 = vunpack.c.l.b16 %v3685
      %v4169 = vunpack.c.l.b16 %v3686
      %v4170 = vunpack.c.l.b16 %v3687
      %v4171 = vunpack.c.l.b16 %v3688
      %v4172 = vunpack.c.l.b16 %v3689
      %v4173 = vunpack.c.l.b16 %v3690
      %v4174 = vunpack.c.l.b16 %v3691
      %v4175 = vunpack.c.l.b16 %v3692
      %v4176 = vunpack.c.l.b16 %v3693
      %v4177 = vunpack.c.l.b16 %v3694
      %v4178 = vunpack.c.l.b16 %v3695
      %v4179 = vunpack.c.l.b16 %v3696
      %v4180 = vunpack.c.l.b16 %v3697
      %v4181 = vunpack.c.l.b16 %v3698
      %v4182 = vunpack.c.l.b16 %v3699
      %v4183 = vunpack.c.l.b16 %v3700
      %v4184 = vunpack.c.l.b16 %v3701
      %v4185 = vunpack.c.l.b16 %v3702
      %v4186 = vunpack.c.l.b16 %v3703
      %v4187 = vunpack.c.l.b16 %v3704
      %v4188 = vunpack.c.l.b16 %v3705
      %v4189 = vunpack.c.l.b16 %v3706
      %v4190 = vunpack.c.l.b16 %v3707
      %v4191 = vunpack.c.l.b16 %v3708
      %v4192 = vunpack.c.l.b16 %v3709
      %v4193 = vunpack.c.l.b16 %v3710
      %v4194 = vunpack.c.l.b16 %v3711
      %v4195 = vunpack.c.l.b16 %v3712
      %v4196 = vunpack.c.l.b16 %v3713
      %v4197 = vunpack.c.l.b16 %v3714
      %v4198 = vunpack.c.l.b16 %v3715
      %v4199 = vunpack.c.l.b16 %v3716
      %v4200 = vunpack.c.l.b16 %v3717
      %v4201 = vunpack.c.l.b16 %v3718
      %v4202 = vunpack.c.l.b16 %v3719
      %v4203 = vunpack.c.l.b16 %v3720
      %v4204 = vunpack.c.l.b16 %v3721
      %v4205 = vunpack.c.l.b16 %v3722
      %v4206 = vunpack.c.l.b16 %v3723
      %v4207 = vunpack.c.l.b16 %v3724
      %v4208 = vunpack.c.l.b16 %v3725
      %v4209 = vunpack.c.l.b16 %v3726
      %v4210 = vunpack.c.l.b16 %v3727
      %v4211 = vunpack.c.l.b16 %v3728
      %v4212 = vunpack.c.l.b16 %v3729
      %v4213 = vunpack.c.l.b16 %v3730
      %v4214 = vunpack.c.l.b16 %v3731
      %v4215 = vunpack.c.l.b16 %v3732
      %v4216 = vunpack.c.l.b16 %v3733
      %v4217 = vunpack.c.l.b16 %v3734
      %v4218 = vpack.c.b16 %v4123, %v4122
      %v4219 = vpack.c.b16 %v4125, %v4124
      %v4220 = vpack.c.b16 %v4127, %v4126
      %v4221 = vpack.c.b16 %v4129, %v4128
      %v4222 = vpack.c.b16 %v4131, %v4130
      %v4223 = vpack.c.b16 %v4133, %v4132
      %v4224 = vpack.c.b16 %v4135, %v4134
      %v4225 = vpack.c.b16 %v4137, %v4136
      %v4226 = vpack.c.b16 %v4139, %v4138
      %v4227 = vpack.c.b16 %v4141, %v4140
      %v4228 = vpack.c.b16 %v4143, %v4142
      %v4229 = vpack.c.b16 %v4145, %v4144
      %v4230 = vpack.c.b16 %v4147, %v4146
      %v4231 = vpack.c.b16 %v4149, %v4148
      %v4232 = vpack.c.b16 %v4151, %v4150
      %v4233 = vpack.c.b16 %v4153, %v4152
      %v4234 = vpack.c.b16 %v4155, %v4154
      %v4235 = vpack.c.b16 %v4157, %v4156
      %v4236 = vpack.c.b16 %v4159, %v4158
      %v4237 = vpack.c.b16 %v4161, %v4160
      %v4238 = vpack.c.b16 %v4163, %v4162
      %v4239 = vpack.c.b16 %v4165, %v4164
      %v4240 = vpack.c.b16 %v4167, %v4166
      %v4241 = vpack.c.b16 %v4169, %v4168
      %v4242 = vpack.c.b16 %v4171, %v4170
      %v4243 = vpack.c.b16 %v4173, %v4172
      %v4244 = vpack.c.b16 %v4175, %v4174
      %v4245 = vpack.c.b16 %v4177, %v4176
      %v4246 = vpack.c.b16 %v4179, %v4178
      %v4247 = vpack.c.b16 %v4181, %v4180
      %v4248 = vpack.c.b16 %v4183, %v4182
      %v4249 = vpack.c.b16 %v4185, %v4184
      %v4250 = vpack.c.b16 %v4187, %v4186
      %v4251 = vpack.c.b16 %v4189, %v4188
      %v4252 = vpack.c.b16 %v4191, %v4190
      %v4253 = vpack.c.b16 %v4193, %v4192
      %v4254 = vpack.c.b16 %v4195, %v4194
      %v4255 = vpack.c.b16 %v4197, %v4196
      %v4256 = vpack.c.b16 %v4199, %v4198
      %v4257 = vpack.c.b16 %v4201, %v4200
      %v4258 = vpack.c.b16 %v4203, %v4202
      %v4259 = vpack.c.b16 %v4205, %v4204
      %v4260 = vpack.c.b16 %v4207, %v4206
      %v4261 = vpack.c.b16 %v4209, %v4208
      %v4262 = vpack.c.b16 %v4211, %v4210
      %v4263 = vpack.c.b16 %v4213, %v4212
      %v4264 = vpack.c.b16 %v4215, %v4214
      %v4265 = vpack.c.b16 %v4217, %v4216
      %4314 = vmatpush.bf16.msra.mxu0 %v4225
      %4315 = vmatpush.bf16.msra.mxu0 %v4224
      %4316 = vmatpush.bf16.msra.mxu0 %v4223
      %4317 = vmatpush.bf16.msra.mxu0 %v4222
      %4318 = vmatpush.bf16.msra.mxu0 %v4221
      %4319 = vmatpush.bf16.msra.mxu0 %v4220
      %4320 = vmatpush.bf16.msra.mxu0 %v4219
      %4321 = vmatpush.bf16.msra.mxu0 %v4218
      %4322 = vmatmul.bf16.gmra.mxu0 %v3739
      %v4323 = vpop.f32.mrf.mxu0
      %v4324 = vadd.f32 0.0, %v4323
      %v4325 = vpop.f32.mrf.mxu0
      %v4326 = vadd.f32 0.0, %v4325
      %4327 = vmatmul.bf16.gmra.mxu0 %v3756
      %v4328 = vpop.f32.mrf.mxu0
      %v4329 = vadd.f32 0.0, %v4328
      %v4330 = vpop.f32.mrf.mxu0
      %v4331 = vadd.f32 0.0, %v4330
      %4332 = vmatmul.bf16.gmra.mxu0 %v3768
      %v4333 = vpop.f32.mrf.mxu0
      %v4334 = vadd.f32 0.0, %v4333
      %v4335 = vpop.f32.mrf.mxu0
      %v4336 = vadd.f32 0.0, %v4335
      %4337 = vmatmul.bf16.gmra.mxu0 %v3780
      %v4338 = vpop.f32.mrf.mxu0
      %v4339 = vadd.f32 0.0, %v4338
      %v4340 = vpop.f32.mrf.mxu0
      %v4341 = vadd.f32 0.0, %v4340
      %4342 = vmatmul.bf16.gmra.mxu0 %v3792
      %v4343 = vpop.f32.mrf.mxu0
      %v4344 = vadd.f32 0.0, %v4343
      %v4345 = vpop.f32.mrf.mxu0
      %v4346 = vadd.f32 0.0, %v4345
      %4347 = vmatmul.bf16.gmra.mxu0 %v3804
      %v4348 = vpop.f32.mrf.mxu0
      %v4349 = vadd.f32 0.0, %v4348
      %v4350 = vpop.f32.mrf.mxu0
      %v4351 = vadd.f32 0.0, %v4350
      %4352 = vmatmul.bf16.gmra.mxu0 %v3816
      %v4353 = vpop.f32.mrf.mxu0
      %v4354 = vadd.f32 0.0, %v4353
      %v4355 = vpop.f32.mrf.mxu0
      %v4356 = vadd.f32 0.0, %v4355
      %4357 = vmatmul.bf16.gmra.mxu0 %v3828
      %v4358 = vpop.f32.mrf.mxu0
      %v4359 = vadd.f32 0.0, %v4358
      %v4360 = vpop.f32.mrf.mxu0
      %v4361 = vadd.f32 0.0, %v4360
      %4362 = vmatmul.bf16.gmra.mxu0 %v3840
      %v4363 = vpop.f32.mrf.mxu0
      %v4364 = vadd.f32 0.0, %v4363
      %v4365 = vpop.f32.mrf.mxu0
      %v4366 = vadd.f32 0.0, %v4365
      %4367 = vmatmul.bf16.gmra.mxu0 %v3852
      %v4368 = vpop.f32.mrf.mxu0
      %v4369 = vadd.f32 0.0, %v4368
      %v4370 = vpop.f32.mrf.mxu0
      %v4371 = vadd.f32 0.0, %v4370
      %4372 = vmatmul.bf16.gmra.mxu0 %v3864
      %v4373 = vpop.f32.mrf.mxu0
      %v4374 = vadd.f32 0.0, %v4373
      %v4375 = vpop.f32.mrf.mxu0
      %v4376 = vadd.f32 0.0, %v4375
      %4377 = vmatmul.bf16.gmra.mxu0 %v3876
      %v4378 = vpop.f32.mrf.mxu0
      %v4379 = vadd.f32 0.0, %v4378
      %v4380 = vpop.f32.mrf.mxu0
      %v4381 = vadd.f32 0.0, %v4380
      %4382 = vmatmul.bf16.gmra.mxu0 %v3888
      %v4383 = vpop.f32.mrf.mxu0
      %v4384 = vadd.f32 0.0, %v4383
      %v4385 = vpop.f32.mrf.mxu0
      %v4386 = vadd.f32 0.0, %v4385
      %4387 = vmatmul.bf16.gmra.mxu0 %v3900
      %v4388 = vpop.f32.mrf.mxu0
      %v4389 = vadd.f32 0.0, %v4388
      %v4390 = vpop.f32.mrf.mxu0
      %v4391 = vadd.f32 0.0, %v4390
      %4392 = vmatmul.bf16.gmra.mxu0 %v3912
      %v4393 = vpop.f32.mrf.mxu0
      %v4394 = vadd.f32 0.0, %v4393
      %v4395 = vpop.f32.mrf.mxu0
      %v4396 = vadd.f32 0.0, %v4395
      %4397 = vmatmul.bf16.gmra.mxu0 %v3924
      %v4398 = vpop.f32.mrf.mxu0
      %v4399 = vadd.f32 0.0, %v4398
      %v4400 = vpop.f32.mrf.mxu0
      %v4401 = vadd.f32 0.0, %v4400
      %4402 = vdwg.mxu0
      %4403 = vmatpush.bf16.msra.mxu0 %v4233
      %4404 = vmatpush.bf16.msra.mxu0 %v4232
      %4405 = vmatpush.bf16.msra.mxu0 %v4231
      %4406 = vmatpush.bf16.msra.mxu0 %v4230
      %4407 = vmatpush.bf16.msra.mxu0 %v4229
      %4408 = vmatpush.bf16.msra.mxu0 %v4228
      %4409 = vmatpush.bf16.msra.mxu0 %v4227
      %4410 = vmatpush.bf16.msra.mxu0 %v4226
      %4411 = vmatmul.bf16.gmra.mxu0 %v3742
      %v4412 = vpop.f32.mrf.mxu0
      %v4413 = vadd.f32 %v4324, %v4412
      %v4414 = vpop.f32.mrf.mxu0
      %v4415 = vadd.f32 %v4326, %v4414
      %4416 = vmatmul.bf16.gmra.mxu0 %v3758
      %v4417 = vpop.f32.mrf.mxu0
      %v4418 = vadd.f32 %v4329, %v4417
      %v4419 = vpop.f32.mrf.mxu0
      %v4420 = vadd.f32 %v4331, %v4419
      %4421 = vmatmul.bf16.gmra.mxu0 %v3770
      %v4422 = vpop.f32.mrf.mxu0
      %v4423 = vadd.f32 %v4334, %v4422
      %v4424 = vpop.f32.mrf.mxu0
      %v4425 = vadd.f32 %v4336, %v4424
      %4426 = vmatmul.bf16.gmra.mxu0 %v3782
      %v4427 = vpop.f32.mrf.mxu0
      %v4428 = vadd.f32 %v4339, %v4427
      %v4429 = vpop.f32.mrf.mxu0
      %v4430 = vadd.f32 %v4341, %v4429
      %4431 = vmatmul.bf16.gmra.mxu0 %v3794
      %v4432 = vpop.f32.mrf.mxu0
      %v4433 = vadd.f32 %v4344, %v4432
      %v4434 = vpop.f32.mrf.mxu0
      %v4435 = vadd.f32 %v4346, %v4434
      %4436 = vmatmul.bf16.gmra.mxu0 %v3806
      %v4437 = vpop.f32.mrf.mxu0
      %v4438 = vadd.f32 %v4349, %v4437
      %v4439 = vpop.f32.mrf.mxu0
      %v4440 = vadd.f32 %v4351, %v4439
      %4441 = vmatmul.bf16.gmra.mxu0 %v3818
      %v4442 = vpop.f32.mrf.mxu0
      %v4443 = vadd.f32 %v4354, %v4442
      %v4444 = vpop.f32.mrf.mxu0
      %v4445 = vadd.f32 %v4356, %v4444
      %4446 = vmatmul.bf16.gmra.mxu0 %v3830
      %v4447 = vpop.f32.mrf.mxu0
      %v4448 = vadd.f32 %v4359, %v4447
      %v4449 = vpop.f32.mrf.mxu0
      %v4450 = vadd.f32 %v4361, %v4449
      %4451 = vmatmul.bf16.gmra.mxu0 %v3842
      %v4452 = vpop.f32.mrf.mxu0
      %v4453 = vadd.f32 %v4364, %v4452
      %v4454 = vpop.f32.mrf.mxu0
      %v4455 = vadd.f32 %v4366, %v4454
      %4456 = vmatmul.bf16.gmra.mxu0 %v3854
      %v4457 = vpop.f32.mrf.mxu0
      %v4458 = vadd.f32 %v4369, %v4457
      %v4459 = vpop.f32.mrf.mxu0
      %v4460 = vadd.f32 %v4371, %v4459
      %4461 = vmatmul.bf16.gmra.mxu0 %v3866
      %v4462 = vpop.f32.mrf.mxu0
      %v4463 = vadd.f32 %v4374, %v4462
      %v4464 = vpop.f32.mrf.mxu0
      %v4465 = vadd.f32 %v4376, %v4464
      %4466 = vmatmul.bf16.gmra.mxu0 %v3878
      %v4467 = vpop.f32.mrf.mxu0
      %v4468 = vadd.f32 %v4379, %v4467
      %v4469 = vpop.f32.mrf.mxu0
      %v4470 = vadd.f32 %v4381, %v4469
      %4471 = vmatmul.bf16.gmra.mxu0 %v3890
      %v4472 = vpop.f32.mrf.mxu0
      %v4473 = vadd.f32 %v4384, %v4472
      %v4474 = vpop.f32.mrf.mxu0
      %v4475 = vadd.f32 %v4386, %v4474
      %4476 = vmatmul.bf16.gmra.mxu0 %v3902
      %v4477 = vpop.f32.mrf.mxu0
      %v4478 = vadd.f32 %v4389, %v4477
      %v4479 = vpop.f32.mrf.mxu0
      %v4480 = vadd.f32 %v4391, %v4479
      %4481 = vmatmul.bf16.gmra.mxu0 %v3914
      %v4482 = vpop.f32.mrf.mxu0
      %v4483 = vadd.f32 %v4394, %v4482
      %v4484 = vpop.f32.mrf.mxu0
      %v4485 = vadd.f32 %v4396, %v4484
      %4486 = vmatmul.bf16.gmra.mxu0 %v3925
      %v4487 = vpop.f32.mrf.mxu0
      %v4488 = vadd.f32 %v4399, %v4487
      %v4489 = vpop.f32.mrf.mxu0
      %v4490 = vadd.f32 %v4401, %v4489
      %4491 = vdwg.mxu0
      %4492 = vmatpush.bf16.msra.mxu0 %v4241
      %4493 = vmatpush.bf16.msra.mxu0 %v4240
      %4494 = vmatpush.bf16.msra.mxu0 %v4239
      %4495 = vmatpush.bf16.msra.mxu0 %v4238
      %4496 = vmatpush.bf16.msra.mxu0 %v4237
      %4497 = vmatpush.bf16.msra.mxu0 %v4236
      %4498 = vmatpush.bf16.msra.mxu0 %v4235
      %4499 = vmatpush.bf16.msra.mxu0 %v4234
      %4500 = vmatmul.bf16.gmra.mxu0 %v3745
      %v4501 = vpop.f32.mrf.mxu0
      %v4502 = vadd.f32 %v4413, %v4501
      %v4503 = vpop.f32.mrf.mxu0
      %v4504 = vadd.f32 %v4415, %v4503
      %4505 = vmatmul.bf16.gmra.mxu0 %v3760
      %v4506 = vpop.f32.mrf.mxu0
      %v4507 = vadd.f32 %v4418, %v4506
      %v4508 = vpop.f32.mrf.mxu0
      %v4509 = vadd.f32 %v4420, %v4508
      %4510 = vmatmul.bf16.gmra.mxu0 %v3772
      %v4511 = vpop.f32.mrf.mxu0
      %v4512 = vadd.f32 %v4423, %v4511
      %v4513 = vpop.f32.mrf.mxu0
      %v4514 = vadd.f32 %v4425, %v4513
      %4515 = vmatmul.bf16.gmra.mxu0 %v3784
      %v4516 = vpop.f32.mrf.mxu0
      %v4517 = vadd.f32 %v4428, %v4516
      %v4518 = vpop.f32.mrf.mxu0
      %v4519 = vadd.f32 %v4430, %v4518
      %4520 = vmatmul.bf16.gmra.mxu0 %v3796
      %v4521 = vpop.f32.mrf.mxu0
      %v4522 = vadd.f32 %v4433, %v4521
      %v4523 = vpop.f32.mrf.mxu0
      %v4524 = vadd.f32 %v4435, %v4523
      %4525 = vmatmul.bf16.gmra.mxu0 %v3808
      %v4526 = vpop.f32.mrf.mxu0
      %v4527 = vadd.f32 %v4438, %v4526
      %v4528 = vpop.f32.mrf.mxu0
      %v4529 = vadd.f32 %v4440, %v4528
      %4530 = vmatmul.bf16.gmra.mxu0 %v3820
      %v4531 = vpop.f32.mrf.mxu0
      %v4532 = vadd.f32 %v4443, %v4531
      %v4533 = vpop.f32.mrf.mxu0
      %v4534 = vadd.f32 %v4445, %v4533
      %4535 = vmatmul.bf16.gmra.mxu0 %v3832
      %v4536 = vpop.f32.mrf.mxu0
      %v4537 = vadd.f32 %v4448, %v4536
      %v4538 = vpop.f32.mrf.mxu0
      %v4539 = vadd.f32 %v4450, %v4538
      %4540 = vmatmul.bf16.gmra.mxu0 %v3844
      %v4541 = vpop.f32.mrf.mxu0
      %v4542 = vadd.f32 %v4453, %v4541
      %v4543 = vpop.f32.mrf.mxu0
      %v4544 = vadd.f32 %v4455, %v4543
      %4545 = vmatmul.bf16.gmra.mxu0 %v3856
      %v4546 = vpop.f32.mrf.mxu0
      %v4547 = vadd.f32 %v4458, %v4546
      %v4548 = vpop.f32.mrf.mxu0
      %v4549 = vadd.f32 %v4460, %v4548
      %4550 = vmatmul.bf16.gmra.mxu0 %v3868
      %v4551 = vpop.f32.mrf.mxu0
      %v4552 = vadd.f32 %v4463, %v4551
      %v4553 = vpop.f32.mrf.mxu0
      %v4554 = vadd.f32 %v4465, %v4553
      %4555 = vmatmul.bf16.gmra.mxu0 %v3880
      %v4556 = vpop.f32.mrf.mxu0
      %v4557 = vadd.f32 %v4468, %v4556
      %v4558 = vpop.f32.mrf.mxu0
      %v4559 = vadd.f32 %v4470, %v4558
      %4560 = vmatmul.bf16.gmra.mxu0 %v3892
      %v4561 = vpop.f32.mrf.mxu0
      %v4562 = vadd.f32 %v4473, %v4561
      %v4563 = vpop.f32.mrf.mxu0
      %v4564 = vadd.f32 %v4475, %v4563
      %4565 = vmatmul.bf16.gmra.mxu0 %v3904
      %v4566 = vpop.f32.mrf.mxu0
      %v4567 = vadd.f32 %v4478, %v4566
      %v4568 = vpop.f32.mrf.mxu0
      %v4569 = vadd.f32 %v4480, %v4568
      %4570 = vmatmul.bf16.gmra.mxu0 %v3916
      %v4571 = vpop.f32.mrf.mxu0
      %v4572 = vadd.f32 %v4483, %v4571
      %v4573 = vpop.f32.mrf.mxu0
      %v4574 = vadd.f32 %v4485, %v4573
      %4575 = vmatmul.bf16.gmra.mxu0 %v3926
      %v4576 = vpop.f32.mrf.mxu0
      %v4577 = vadd.f32 %v4488, %v4576
      %v4578 = vpop.f32.mrf.mxu0
      %v4579 = vadd.f32 %v4490, %v4578
      %4580 = vdwg.mxu0
      %4581 = vmatpush.bf16.msra.mxu0 %v4249
      %4582 = vmatpush.bf16.msra.mxu0 %v4248
      %4583 = vmatpush.bf16.msra.mxu0 %v4247
      %4584 = vmatpush.bf16.msra.mxu0 %v4246
      %4585 = vmatpush.bf16.msra.mxu0 %v4245
      %4586 = vmatpush.bf16.msra.mxu0 %v4244
      %4587 = vmatpush.bf16.msra.mxu0 %v4243
      %4588 = vmatpush.bf16.msra.mxu0 %v4242
      %4589 = vmatmul.bf16.gmra.mxu0 %v3748
      %v4590 = vpop.f32.mrf.mxu0
      %v4591 = vadd.f32 %v4502, %v4590
      %v4592 = vpop.f32.mrf.mxu0
      %v4593 = vadd.f32 %v4504, %v4592
      %4594 = vmatmul.bf16.gmra.mxu0 %v3762
      %v4595 = vpop.f32.mrf.mxu0
      %v4596 = vadd.f32 %v4507, %v4595
      %v4597 = vpop.f32.mrf.mxu0
      %v4598 = vadd.f32 %v4509, %v4597
      %4599 = vmatmul.bf16.gmra.mxu0 %v3774
      %v4600 = vpop.f32.mrf.mxu0
      %v4601 = vadd.f32 %v4512, %v4600
      %v4602 = vpop.f32.mrf.mxu0
      %v4603 = vadd.f32 %v4514, %v4602
      %4604 = vmatmul.bf16.gmra.mxu0 %v3786
      %v4605 = vpop.f32.mrf.mxu0
      %v4606 = vadd.f32 %v4517, %v4605
      %v4607 = vpop.f32.mrf.mxu0
      %v4608 = vadd.f32 %v4519, %v4607
      %4609 = vmatmul.bf16.gmra.mxu0 %v3798
      %v4610 = vpop.f32.mrf.mxu0
      %v4611 = vadd.f32 %v4522, %v4610
      %v4612 = vpop.f32.mrf.mxu0
      %v4613 = vadd.f32 %v4524, %v4612
      %4614 = vmatmul.bf16.gmra.mxu0 %v3810
      %v4615 = vpop.f32.mrf.mxu0
      %v4616 = vadd.f32 %v4527, %v4615
      %v4617 = vpop.f32.mrf.mxu0
      %v4618 = vadd.f32 %v4529, %v4617
      %4619 = vmatmul.bf16.gmra.mxu0 %v3822
      %v4620 = vpop.f32.mrf.mxu0
      %v4621 = vadd.f32 %v4532, %v4620
      %v4622 = vpop.f32.mrf.mxu0
      %v4623 = vadd.f32 %v4534, %v4622
      %4624 = vmatmul.bf16.gmra.mxu0 %v3834
      %v4625 = vpop.f32.mrf.mxu0
      %v4626 = vadd.f32 %v4537, %v4625
      %v4627 = vpop.f32.mrf.mxu0
      %v4628 = vadd.f32 %v4539, %v4627
      %4629 = vmatmul.bf16.gmra.mxu0 %v3846
      %v4630 = vpop.f32.mrf.mxu0
      %v4631 = vadd.f32 %v4542, %v4630
      %v4632 = vpop.f32.mrf.mxu0
      %v4633 = vadd.f32 %v4544, %v4632
      %4634 = vmatmul.bf16.gmra.mxu0 %v3858
      %v4635 = vpop.f32.mrf.mxu0
      %v4636 = vadd.f32 %v4547, %v4635
      %v4637 = vpop.f32.mrf.mxu0
      %v4638 = vadd.f32 %v4549, %v4637
      %4639 = vmatmul.bf16.gmra.mxu0 %v3870
      %v4640 = vpop.f32.mrf.mxu0
      %v4641 = vadd.f32 %v4552, %v4640
      %v4642 = vpop.f32.mrf.mxu0
      %v4643 = vadd.f32 %v4554, %v4642
      %4644 = vmatmul.bf16.gmra.mxu0 %v3882
      %v4645 = vpop.f32.mrf.mxu0
      %v4646 = vadd.f32 %v4557, %v4645
      %v4647 = vpop.f32.mrf.mxu0
      %v4648 = vadd.f32 %v4559, %v4647
      %4649 = vmatmul.bf16.gmra.mxu0 %v3894
      %v4650 = vpop.f32.mrf.mxu0
      %v4651 = vadd.f32 %v4562, %v4650
      %v4652 = vpop.f32.mrf.mxu0
      %v4653 = vadd.f32 %v4564, %v4652
      %4654 = vmatmul.bf16.gmra.mxu0 %v3906
      %v4655 = vpop.f32.mrf.mxu0
      %v4656 = vadd.f32 %v4567, %v4655
      %v4657 = vpop.f32.mrf.mxu0
      %v4658 = vadd.f32 %v4569, %v4657
      %4659 = vmatmul.bf16.gmra.mxu0 %v3918
      %v4660 = vpop.f32.mrf.mxu0
      %v4661 = vadd.f32 %v4572, %v4660
      %v4662 = vpop.f32.mrf.mxu0
      %v4663 = vadd.f32 %v4574, %v4662
      %4664 = vmatmul.bf16.gmra.mxu0 %v3927
      %v4665 = vpop.f32.mrf.mxu0
      %v4666 = vadd.f32 %v4577, %v4665
      %v4667 = vpop.f32.mrf.mxu0
      %v4668 = vadd.f32 %v4579, %v4667
      %4669 = vdwg.mxu0
      %4670 = vmatpush.bf16.msra.mxu0 %v4257
      %4671 = vmatpush.bf16.msra.mxu0 %v4256
      %4672 = vmatpush.bf16.msra.mxu0 %v4255
      %4673 = vmatpush.bf16.msra.mxu0 %v4254
      %4674 = vmatpush.bf16.msra.mxu0 %v4253
      %4675 = vmatpush.bf16.msra.mxu0 %v4252
      %4676 = vmatpush.bf16.msra.mxu0 %v4251
      %4677 = vmatpush.bf16.msra.mxu0 %v4250
      %4678 = vmatmul.bf16.gmra.mxu0 %v3751
      %v4679 = vpop.f32.mrf.mxu0
      %v4680 = vadd.f32 %v4591, %v4679
      %v4681 = vpop.f32.mrf.mxu0
      %v4682 = vadd.f32 %v4593, %v4681
      %4683 = vmatmul.bf16.gmra.mxu0 %v3764
      %v4684 = vpop.f32.mrf.mxu0
      %v4685 = vadd.f32 %v4596, %v4684
      %v4686 = vpop.f32.mrf.mxu0
      %v4687 = vadd.f32 %v4598, %v4686
      %4688 = vmatmul.bf16.gmra.mxu0 %v3776
      %v4689 = vpop.f32.mrf.mxu0
      %v4690 = vadd.f32 %v4601, %v4689
      %v4691 = vpop.f32.mrf.mxu0
      %v4692 = vadd.f32 %v4603, %v4691
      %4693 = vmatmul.bf16.gmra.mxu0 %v3788
      %v4694 = vpop.f32.mrf.mxu0
      %v4695 = vadd.f32 %v4606, %v4694
      %v4696 = vpop.f32.mrf.mxu0
      %v4697 = vadd.f32 %v4608, %v4696
      %4698 = vmatmul.bf16.gmra.mxu0 %v3800
      %v4699 = vpop.f32.mrf.mxu0
      %v4700 = vadd.f32 %v4611, %v4699
      %v4701 = vpop.f32.mrf.mxu0
      %v4702 = vadd.f32 %v4613, %v4701
      %4703 = vmatmul.bf16.gmra.mxu0 %v3812
      %v4704 = vpop.f32.mrf.mxu0
      %v4705 = vadd.f32 %v4616, %v4704
      %v4706 = vpop.f32.mrf.mxu0
      %v4707 = vadd.f32 %v4618, %v4706
      %4708 = vmatmul.bf16.gmra.mxu0 %v3824
      %v4709 = vpop.f32.mrf.mxu0
      %v4710 = vadd.f32 %v4621, %v4709
      %v4711 = vpop.f32.mrf.mxu0
      %v4712 = vadd.f32 %v4623, %v4711
      %4713 = vmatmul.bf16.gmra.mxu0 %v3836
      %v4714 = vpop.f32.mrf.mxu0
      %v4715 = vadd.f32 %v4626, %v4714
      %v4716 = vpop.f32.mrf.mxu0
      %v4717 = vadd.f32 %v4628, %v4716
      %4718 = vmatmul.bf16.gmra.mxu0 %v3848
      %v4719 = vpop.f32.mrf.mxu0
      %v4720 = vadd.f32 %v4631, %v4719
      %v4721 = vpop.f32.mrf.mxu0
      %v4722 = vadd.f32 %v4633, %v4721
      %4723 = vmatmul.bf16.gmra.mxu0 %v3860
      %v4724 = vpop.f32.mrf.mxu0
      %v4725 = vadd.f32 %v4636, %v4724
      %v4726 = vpop.f32.mrf.mxu0
      %v4727 = vadd.f32 %v4638, %v4726
      %4728 = vmatmul.bf16.gmra.mxu0 %v3872
      %v4729 = vpop.f32.mrf.mxu0
      %v4730 = vadd.f32 %v4641, %v4729
      %v4731 = vpop.f32.mrf.mxu0
      %v4732 = vadd.f32 %v4643, %v4731
      %4733 = vmatmul.bf16.gmra.mxu0 %v3884
      %v4734 = vpop.f32.mrf.mxu0
      %v4735 = vadd.f32 %v4646, %v4734
      %v4736 = vpop.f32.mrf.mxu0
      %v4737 = vadd.f32 %v4648, %v4736
      %4738 = vmatmul.bf16.gmra.mxu0 %v3896
      %v4739 = vpop.f32.mrf.mxu0
      %v4740 = vadd.f32 %v4651, %v4739
      %v4741 = vpop.f32.mrf.mxu0
      %v4742 = vadd.f32 %v4653, %v4741
      %4743 = vmatmul.bf16.gmra.mxu0 %v3908
      %v4744 = vpop.f32.mrf.mxu0
      %v4745 = vadd.f32 %v4656, %v4744
      %v4746 = vpop.f32.mrf.mxu0
      %v4747 = vadd.f32 %v4658, %v4746
      %4748 = vmatmul.bf16.gmra.mxu0 %v3920
      %v4749 = vpop.f32.mrf.mxu0
      %v4750 = vadd.f32 %v4661, %v4749
      %v4751 = vpop.f32.mrf.mxu0
      %v4752 = vadd.f32 %v4663, %v4751
      %4753 = vmatmul.bf16.gmra.mxu0 %v3928
      %v4754 = vpop.f32.mrf.mxu0
      %v4755 = vadd.f32 %v4666, %v4754
      %v4756 = vpop.f32.mrf.mxu0
      %v4757 = vadd.f32 %v4668, %v4756
      %4758 = vdwg.mxu0
      %4759 = vmatpush.bf16.msra.mxu0 %v4265
      %4760 = vmatpush.bf16.msra.mxu0 %v4264
      %4761 = vmatpush.bf16.msra.mxu0 %v4263
      %4762 = vmatpush.bf16.msra.mxu0 %v4262
      %4763 = vmatpush.bf16.msra.mxu0 %v4261
      %4764 = vmatpush.bf16.msra.mxu0 %v4260
      %4765 = vmatpush.bf16.msra.mxu0 %v4259
      %4766 = vmatpush.bf16.msra.mxu0 %v4258
      %4767 = vmatmul.bf16.gmra.mxu0 %v3754
      %v4768 = vpop.f32.mrf.mxu0
      %v4769 = vadd.f32 %v4680, %v4768
      %v4770 = vpop.f32.mrf.mxu0
      %v4771 = vadd.f32 %v4682, %v4770
      %4772 = vmatmul.bf16.gmra.mxu0 %v3766
      %v4773 = vpop.f32.mrf.mxu0
      %v4774 = vadd.f32 %v4685, %v4773
      %v4775 = vpop.f32.mrf.mxu0
      %v4776 = vadd.f32 %v4687, %v4775
      %4777 = vmatmul.bf16.gmra.mxu0 %v3778
      %v4778 = vpop.f32.mrf.mxu0
      %v4779 = vadd.f32 %v4690, %v4778
      %v4780 = vpop.f32.mrf.mxu0
      %v4781 = vadd.f32 %v4692, %v4780
      %4782 = vmatmul.bf16.gmra.mxu0 %v3790
      %v4783 = vpop.f32.mrf.mxu0
      %v4784 = vadd.f32 %v4695, %v4783
      %v4785 = vpop.f32.mrf.mxu0
      %v4786 = vadd.f32 %v4697, %v4785
      %4787 = vmatmul.bf16.gmra.mxu0 %v3802
      %v4788 = vpop.f32.mrf.mxu0
      %v4789 = vadd.f32 %v4700, %v4788
      %v4790 = vpop.f32.mrf.mxu0
      %v4791 = vadd.f32 %v4702, %v4790
      %4792 = vmatmul.bf16.gmra.mxu0 %v3814
      %v4793 = vpop.f32.mrf.mxu0
      %v4794 = vadd.f32 %v4705, %v4793
      %v4795 = vpop.f32.mrf.mxu0
      %v4796 = vadd.f32 %v4707, %v4795
      %4797 = vmatmul.bf16.gmra.mxu0 %v3826
      %v4798 = vpop.f32.mrf.mxu0
      %v4799 = vadd.f32 %v4710, %v4798
      %v4800 = vpop.f32.mrf.mxu0
      %v4801 = vadd.f32 %v4712, %v4800
      %4802 = vmatmul.bf16.gmra.mxu0 %v3838
      %v4803 = vpop.f32.mrf.mxu0
      %v4804 = vadd.f32 %v4715, %v4803
      %v4805 = vpop.f32.mrf.mxu0
      %v4806 = vadd.f32 %v4717, %v4805
      %4807 = vmatmul.bf16.gmra.mxu0 %v3850
      %v4808 = vpop.f32.mrf.mxu0
      %v4809 = vadd.f32 %v4720, %v4808
      %v4810 = vpop.f32.mrf.mxu0
      %v4811 = vadd.f32 %v4722, %v4810
      %4812 = vmatmul.bf16.gmra.mxu0 %v3862
      %v4813 = vpop.f32.mrf.mxu0
      %v4814 = vadd.f32 %v4725, %v4813
      %v4815 = vpop.f32.mrf.mxu0
      %v4816 = vadd.f32 %v4727, %v4815
      %4817 = vmatmul.bf16.gmra.mxu0 %v3874
      %v4818 = vpop.f32.mrf.mxu0
      %v4819 = vadd.f32 %v4730, %v4818
      %v4820 = vpop.f32.mrf.mxu0
      %v4821 = vadd.f32 %v4732, %v4820
      %4822 = vmatmul.bf16.gmra.mxu0 %v3886
      %v4823 = vpop.f32.mrf.mxu0
      %v4824 = vadd.f32 %v4735, %v4823
      %v4825 = vpop.f32.mrf.mxu0
      %v4826 = vadd.f32 %v4737, %v4825
      %4827 = vmatmul.bf16.gmra.mxu0 %v3898
      %v4828 = vpop.f32.mrf.mxu0
      %v4829 = vadd.f32 %v4740, %v4828
      %v4830 = vpop.f32.mrf.mxu0
      %v4831 = vadd.f32 %v4742, %v4830
      %4832 = vmatmul.bf16.gmra.mxu0 %v3910
      %v4833 = vpop.f32.mrf.mxu0
      %v4834 = vadd.f32 %v4745, %v4833
      %v4835 = vpop.f32.mrf.mxu0
      %v4836 = vadd.f32 %v4747, %v4835
      %4837 = vmatmul.bf16.gmra.mxu0 %v3922
      %v4838 = vpop.f32.mrf.mxu0
      %v4839 = vadd.f32 %v4750, %v4838
      %v4840 = vpop.f32.mrf.mxu0
      %v4841 = vadd.f32 %v4752, %v4840
      %4842 = vmatmul.bf16.gmra.mxu0 %v3929
      %v4843 = vpop.f32.mrf.mxu0
      %v4844 = vadd.f32 %v4755, %v4843
      %v4845 = vpop.f32.mrf.mxu0
      %v4846 = vadd.f32 %v4757, %v4845
      %4847 = vdwg.mxu0
      %v4848 = vadd.f32 %v3606, %v4769
      %v4849 = vadd.f32 %v3607, %v4771
      %v4850 = vadd.f32 %v3608, %v4774
      %v4851 = vadd.f32 %v3609, %v4776
      %v4852 = vadd.f32 %v3610, %v4779
      %v4853 = vadd.f32 %v3611, %v4781
      %v4854 = vadd.f32 %v3612, %v4784
      %v4855 = vadd.f32 %v3613, %v4786
      %v4856 = vadd.f32 %v3614, %v4789
      %v4857 = vadd.f32 %v3615, %v4791
      %v4858 = vadd.f32 %v3616, %v4794
      %v4859 = vadd.f32 %v3617, %v4796
      %v4860 = vadd.f32 %v3618, %v4799
      %v4861 = vadd.f32 %v3619, %v4801
      %v4862 = vadd.f32 %v3620, %v4804
      %v4863 = vadd.f32 %v3621, %v4806
      %v4864 = vadd.f32 %v3622, %v4809
      %v4865 = vadd.f32 %v3623, %v4811
      %v4866 = vadd.f32 %v3624, %v4814
      %v4867 = vadd.f32 %v3625, %v4816
      %v4868 = vadd.f32 %v3626, %v4819
      %v4869 = vadd.f32 %v3627, %v4821
      %v4870 = vadd.f32 %v3628, %v4824
      %v4871 = vadd.f32 %v3629, %v4826
      %v4872 = vadd.f32 %v3630, %v4829
      %v4873 = vadd.f32 %v3631, %v4831
      %v4874 = vadd.f32 %v3632, %v4834
      %v4875 = vadd.f32 %v3633, %v4836
      %v4876 = vadd.f32 %v3634, %v4839
      %v4877 = vadd.f32 %v3635, %v4841
      %v4878 = vadd.f32 %v3636, %v4844
      %v4879 = vadd.f32 %v3637, %v4846
      %v4880 = vlaneseq
      %v4881 = vshrl.u32 %v4880, 7
      %v4882 = vadd.s32 %v4881, 8
      %v4883 = vadd.s32 %v4881, 16
      %v4884 = vadd.s32 %v4881, 24
      %v4885 = vadd.s32 %v4881, 32
      %v4886 = vadd.s32 %v4881, 40
      %v4887 = vadd.s32 %v4881, 48
      %v4888 = vadd.s32 %v4881, 56
      %v4889 = vadd.s32 %v4881, 64
      %v4890 = vadd.s32 %v4881, 72
      %v4891 = vadd.s32 %v4881, 80
      %v4892 = vadd.s32 %v4881, 88
      %v4893 = vadd.s32 %v4881, 96
      %v4894 = vadd.s32 %v4881, 104
      %v4895 = vadd.s32 %v4881, 112
      %v4896 = vadd.s32 %v4881, 120
      %v4897 = vadd.s32 %v4881, 128
      %v4898 = vadd.s32 %v4881, 136
      %v4899 = vadd.s32 %v4881, 144
      %v4900 = vadd.s32 %v4881, 152
      %v4901 = vadd.s32 %v4881, 160
      %v4902 = vadd.s32 %v4881, 168
      %v4903 = vadd.s32 %v4881, 176
      %v4904 = vadd.s32 %v4881, 184
      %v4905 = vadd.s32 %v4881, 192
      %v4906 = vadd.s32 %v4881, 200
      %v4907 = vadd.s32 %v4881, 208
      %v4908 = vadd.s32 %v4881, 216
      %v4909 = vadd.s32 %v4881, 224
      %v4910 = vadd.s32 %v4881, 232
      %v4911 = vadd.s32 %v4881, 240
      %v4912 = vadd.s32 %v4881, 248
      %vm4913 = vcmp.lt.s32.totalorder %v4881, 0
      %v4914 = vsub.s32 0, %v4881
      %v4915 = vsel %vm4913, %v4914, %v4881
      %v4916 = vshrl.u32 %v4915, 4
      %v4917 = vand.u32 %v4915, 15
      %v4918 = vsub.s32 0, %v4917
      %v4919 = vsel %vm4913, %v4918, %v4917
      %vm4920 = vcmp.lt.s32.totalorder %v4882, 0
      %v4921 = vsub.s32 0, %v4882
      %v4922 = vsel %vm4920, %v4921, %v4882
      %v4923 = vshrl.u32 %v4922, 4
      %v4924 = vand.u32 %v4922, 15
      %v4925 = vsub.s32 0, %v4924
      %v4926 = vsel %vm4920, %v4925, %v4924
      %vm4927 = vcmp.lt.s32.totalorder %v4883, 0
      %v4928 = vsub.s32 0, %v4883
      %v4929 = vsel %vm4927, %v4928, %v4883
      %v4930 = vshrl.u32 %v4929, 4
      %v4931 = vand.u32 %v4929, 15
      %v4932 = vsub.s32 0, %v4931
      %v4933 = vsel %vm4927, %v4932, %v4931
      %vm4934 = vcmp.lt.s32.totalorder %v4884, 0
      %v4935 = vsub.s32 0, %v4884
      %v4936 = vsel %vm4934, %v4935, %v4884
      %v4937 = vshrl.u32 %v4936, 4
      %v4938 = vand.u32 %v4936, 15
      %v4939 = vsub.s32 0, %v4938
      %v4940 = vsel %vm4934, %v4939, %v4938
      %vm4941 = vcmp.lt.s32.totalorder %v4885, 0
      %v4942 = vsub.s32 0, %v4885
      %v4943 = vsel %vm4941, %v4942, %v4885
      %v4944 = vshrl.u32 %v4943, 4
      %v4945 = vand.u32 %v4943, 15
      %v4946 = vsub.s32 0, %v4945
      %v4947 = vsel %vm4941, %v4946, %v4945
      %vm4948 = vcmp.lt.s32.totalorder %v4886, 0
      %v4949 = vsub.s32 0, %v4886
      %v4950 = vsel %vm4948, %v4949, %v4886
      %v4951 = vshrl.u32 %v4950, 4
      %v4952 = vand.u32 %v4950, 15
      %v4953 = vsub.s32 0, %v4952
      %v4954 = vsel %vm4948, %v4953, %v4952
      %vm4955 = vcmp.lt.s32.totalorder %v4887, 0
      %v4956 = vsub.s32 0, %v4887
      %v4957 = vsel %vm4955, %v4956, %v4887
      %v4958 = vshrl.u32 %v4957, 4
      %v4959 = vand.u32 %v4957, 15
      %v4960 = vsub.s32 0, %v4959
      %v4961 = vsel %vm4955, %v4960, %v4959
      %vm4962 = vcmp.lt.s32.totalorder %v4888, 0
      %v4963 = vsub.s32 0, %v4888
      %v4964 = vsel %vm4962, %v4963, %v4888
      %v4965 = vshrl.u32 %v4964, 4
      %v4966 = vand.u32 %v4964, 15
      %v4967 = vsub.s32 0, %v4966
      %v4968 = vsel %vm4962, %v4967, %v4966
      %vm4969 = vcmp.lt.s32.totalorder %v4889, 0
      %v4970 = vsub.s32 0, %v4889
      %v4971 = vsel %vm4969, %v4970, %v4889
      %v4972 = vshrl.u32 %v4971, 4
      %v4973 = vand.u32 %v4971, 15
      %v4974 = vsub.s32 0, %v4973
      %v4975 = vsel %vm4969, %v4974, %v4973
      %vm4976 = vcmp.lt.s32.totalorder %v4890, 0
      %v4977 = vsub.s32 0, %v4890
      %v4978 = vsel %vm4976, %v4977, %v4890
      %v4979 = vshrl.u32 %v4978, 4
      %v4980 = vand.u32 %v4978, 15
      %v4981 = vsub.s32 0, %v4980
      %v4982 = vsel %vm4976, %v4981, %v4980
      %vm4983 = vcmp.lt.s32.totalorder %v4891, 0
      %v4984 = vsub.s32 0, %v4891
      %v4985 = vsel %vm4983, %v4984, %v4891
      %v4986 = vshrl.u32 %v4985, 4
      %v4987 = vand.u32 %v4985, 15
      %v4988 = vsub.s32 0, %v4987
      %v4989 = vsel %vm4983, %v4988, %v4987
      %vm4990 = vcmp.lt.s32.totalorder %v4892, 0
      %v4991 = vsub.s32 0, %v4892
      %v4992 = vsel %vm4990, %v4991, %v4892
      %v4993 = vshrl.u32 %v4992, 4
      %v4994 = vand.u32 %v4992, 15
      %v4995 = vsub.s32 0, %v4994
      %v4996 = vsel %vm4990, %v4995, %v4994
      %vm4997 = vcmp.lt.s32.totalorder %v4893, 0
      %v4998 = vsub.s32 0, %v4893
      %v4999 = vsel %vm4997, %v4998, %v4893
      %v5000 = vshrl.u32 %v4999, 4
      %v5001 = vand.u32 %v4999, 15
      %v5002 = vsub.s32 0, %v5001
      %v5003 = vsel %vm4997, %v5002, %v5001
      %vm5004 = vcmp.lt.s32.totalorder %v4894, 0
      %v5005 = vsub.s32 0, %v4894
      %v5006 = vsel %vm5004, %v5005, %v4894
      %v5007 = vshrl.u32 %v5006, 4
      %v5008 = vand.u32 %v5006, 15
      %v5009 = vsub.s32 0, %v5008
      %v5010 = vsel %vm5004, %v5009, %v5008
      %vm5011 = vcmp.lt.s32.totalorder %v4895, 0
      %v5012 = vsub.s32 0, %v4895
      %v5013 = vsel %vm5011, %v5012, %v4895
      %v5014 = vshrl.u32 %v5013, 4
      %v5015 = vand.u32 %v5013, 15
      %v5016 = vsub.s32 0, %v5015
      %v5017 = vsel %vm5011, %v5016, %v5015
      %vm5018 = vcmp.lt.s32.totalorder %v4896, 0
      %v5019 = vsub.s32 0, %v4896
      %v5020 = vsel %vm5018, %v5019, %v4896
      %v5021 = vshrl.u32 %v5020, 4
      %v5022 = vand.u32 %v5020, 15
      %v5023 = vsub.s32 0, %v5022
      %v5024 = vsel %vm5018, %v5023, %v5022
      %vm5025 = vcmp.lt.s32.totalorder %v4897, 0
      %v5026 = vsub.s32 0, %v4897
      %v5027 = vsel %vm5025, %v5026, %v4897
      %v5028 = vshrl.u32 %v5027, 4
      %v5029 = vand.u32 %v5027, 15
      %v5030 = vsub.s32 0, %v5029
      %v5031 = vsel %vm5025, %v5030, %v5029
      %vm5032 = vcmp.lt.s32.totalorder %v4898, 0
      %v5033 = vsub.s32 0, %v4898
      %v5034 = vsel %vm5032, %v5033, %v4898
      %v5035 = vshrl.u32 %v5034, 4
      %v5036 = vand.u32 %v5034, 15
      %v5037 = vsub.s32 0, %v5036
      %v5038 = vsel %vm5032, %v5037, %v5036
      %vm5039 = vcmp.lt.s32.totalorder %v4899, 0
      %v5040 = vsub.s32 0, %v4899
      %v5041 = vsel %vm5039, %v5040, %v4899
      %v5042 = vshrl.u32 %v5041, 4
      %v5043 = vand.u32 %v5041, 15
      %v5044 = vsub.s32 0, %v5043
      %v5045 = vsel %vm5039, %v5044, %v5043
      %vm5046 = vcmp.lt.s32.totalorder %v4900, 0
      %v5047 = vsub.s32 0, %v4900
      %v5048 = vsel %vm5046, %v5047, %v4900
      %v5049 = vshrl.u32 %v5048, 4
      %v5050 = vand.u32 %v5048, 15
      %v5051 = vsub.s32 0, %v5050
      %v5052 = vsel %vm5046, %v5051, %v5050
      %vm5053 = vcmp.lt.s32.totalorder %v4901, 0
      %v5054 = vsub.s32 0, %v4901
      %v5055 = vsel %vm5053, %v5054, %v4901
      %v5056 = vshrl.u32 %v5055, 4
      %v5057 = vand.u32 %v5055, 15
      %v5058 = vsub.s32 0, %v5057
      %v5059 = vsel %vm5053, %v5058, %v5057
      %vm5060 = vcmp.lt.s32.totalorder %v4902, 0
      %v5061 = vsub.s32 0, %v4902
      %v5062 = vsel %vm5060, %v5061, %v4902
      %v5063 = vshrl.u32 %v5062, 4
      %v5064 = vand.u32 %v5062, 15
      %v5065 = vsub.s32 0, %v5064
      %v5066 = vsel %vm5060, %v5065, %v5064
      %vm5067 = vcmp.lt.s32.totalorder %v4903, 0
      %v5068 = vsub.s32 0, %v4903
      %v5069 = vsel %vm5067, %v5068, %v4903
      %v5070 = vshrl.u32 %v5069, 4
      %v5071 = vand.u32 %v5069, 15
      %v5072 = vsub.s32 0, %v5071
      %v5073 = vsel %vm5067, %v5072, %v5071
      %vm5074 = vcmp.lt.s32.totalorder %v4904, 0
      %v5075 = vsub.s32 0, %v4904
      %v5076 = vsel %vm5074, %v5075, %v4904
      %v5077 = vshrl.u32 %v5076, 4
      %v5078 = vand.u32 %v5076, 15
      %v5079 = vsub.s32 0, %v5078
      %v5080 = vsel %vm5074, %v5079, %v5078
      %vm5081 = vcmp.lt.s32.totalorder %v4905, 0
      %v5082 = vsub.s32 0, %v4905
      %v5083 = vsel %vm5081, %v5082, %v4905
      %v5084 = vshrl.u32 %v5083, 4
      %v5085 = vand.u32 %v5083, 15
      %v5086 = vsub.s32 0, %v5085
      %v5087 = vsel %vm5081, %v5086, %v5085
      %vm5088 = vcmp.lt.s32.totalorder %v4906, 0
      %v5089 = vsub.s32 0, %v4906
      %v5090 = vsel %vm5088, %v5089, %v4906
      %v5091 = vshrl.u32 %v5090, 4
      %v5092 = vand.u32 %v5090, 15
      %v5093 = vsub.s32 0, %v5092
      %v5094 = vsel %vm5088, %v5093, %v5092
      %vm5095 = vcmp.lt.s32.totalorder %v4907, 0
      %v5096 = vsub.s32 0, %v4907
      %v5097 = vsel %vm5095, %v5096, %v4907
      %v5098 = vshrl.u32 %v5097, 4
      %v5099 = vand.u32 %v5097, 15
      %v5100 = vsub.s32 0, %v5099
      %v5101 = vsel %vm5095, %v5100, %v5099
      %vm5102 = vcmp.lt.s32.totalorder %v4908, 0
      %v5103 = vsub.s32 0, %v4908
      %v5104 = vsel %vm5102, %v5103, %v4908
      %v5105 = vshrl.u32 %v5104, 4
      %v5106 = vand.u32 %v5104, 15
      %v5107 = vsub.s32 0, %v5106
      %v5108 = vsel %vm5102, %v5107, %v5106
      %vm5109 = vcmp.lt.s32.totalorder %v4909, 0
      %v5110 = vsub.s32 0, %v4909
      %v5111 = vsel %vm5109, %v5110, %v4909
      %v5112 = vshrl.u32 %v5111, 4
      %v5113 = vand.u32 %v5111, 15
      %v5114 = vsub.s32 0, %v5113
      %v5115 = vsel %vm5109, %v5114, %v5113
      %vm5116 = vcmp.lt.s32.totalorder %v4910, 0
      %v5117 = vsub.s32 0, %v4910
      %v5118 = vsel %vm5116, %v5117, %v4910
      %v5119 = vshrl.u32 %v5118, 4
      %v5120 = vand.u32 %v5118, 15
      %v5121 = vsub.s32 0, %v5120
      %v5122 = vsel %vm5116, %v5121, %v5120
      %vm5123 = vcmp.lt.s32.totalorder %v4911, 0
      %v5124 = vsub.s32 0, %v4911
      %v5125 = vsel %vm5123, %v5124, %v4911
      %v5126 = vshrl.u32 %v5125, 4
      %v5127 = vand.u32 %v5125, 15
      %v5128 = vsub.s32 0, %v5127
      %v5129 = vsel %vm5123, %v5128, %v5127
      %vm5130 = vcmp.lt.s32.totalorder %v4912, 0
      %v5131 = vsub.s32 0, %v4912
      %v5132 = vsel %vm5130, %v5131, %v4912
      %v5133 = vshrl.u32 %v5132, 4
      %v5134 = vand.u32 %v5132, 15
      %v5135 = vsub.s32 0, %v5134
      %v5136 = vsel %vm5130, %v5135, %v5134
      %vm5137 = vcmp.ne.s32.totalorder %v4919, 0
      %vm5138 = vcmp.ne.s32.totalorder %v4926, 0
      %vm5139 = vcmp.ne.s32.totalorder %v4933, 0
      %vm5140 = vcmp.ne.s32.totalorder %v4940, 0
      %vm5141 = vcmp.ne.s32.totalorder %v4947, 0
      %vm5142 = vcmp.ne.s32.totalorder %v4954, 0
      %vm5143 = vcmp.ne.s32.totalorder %v4961, 0
      %vm5144 = vcmp.ne.s32.totalorder %v4968, 0
      %vm5145 = vcmp.ne.s32.totalorder %v4975, 0
      %vm5146 = vcmp.ne.s32.totalorder %v4982, 0
      %vm5147 = vcmp.ne.s32.totalorder %v4989, 0
      %vm5148 = vcmp.ne.s32.totalorder %v4996, 0
      %vm5149 = vcmp.ne.s32.totalorder %v5003, 0
      %vm5150 = vcmp.ne.s32.totalorder %v5010, 0
      %vm5151 = vcmp.ne.s32.totalorder %v5017, 0
      %vm5152 = vcmp.ne.s32.totalorder %v5024, 0
      %vm5153 = vcmp.ne.s32.totalorder %v5031, 0
      %vm5154 = vcmp.ne.s32.totalorder %v5038, 0
      %vm5155 = vcmp.ne.s32.totalorder %v5045, 0
      %vm5156 = vcmp.ne.s32.totalorder %v5052, 0
      %vm5157 = vcmp.ne.s32.totalorder %v5059, 0
      %vm5158 = vcmp.ne.s32.totalorder %v5066, 0
      %vm5159 = vcmp.ne.s32.totalorder %v5073, 0
      %vm5160 = vcmp.ne.s32.totalorder %v5080, 0
      %vm5161 = vcmp.ne.s32.totalorder %v5087, 0
      %vm5162 = vcmp.ne.s32.totalorder %v5094, 0
      %vm5163 = vcmp.ne.s32.totalorder %v5101, 0
      %vm5164 = vcmp.ne.s32.totalorder %v5108, 0
      %vm5165 = vcmp.ne.s32.totalorder %v5115, 0
      %vm5166 = vcmp.ne.s32.totalorder %v5122, 0
      %vm5167 = vcmp.ne.s32.totalorder %v5129, 0
      %vm5168 = vcmp.ne.s32.totalorder %v5136, 0
      %vm5169 = vcmp.lt.s32.totalorder %v4919, 0
      %vm5170 = vcmp.lt.s32.totalorder %v4926, 0
      %vm5171 = vcmp.lt.s32.totalorder %v4933, 0
      %vm5172 = vcmp.lt.s32.totalorder %v4940, 0
      %vm5173 = vcmp.lt.s32.totalorder %v4947, 0
      %vm5174 = vcmp.lt.s32.totalorder %v4954, 0
      %vm5175 = vcmp.lt.s32.totalorder %v4961, 0
      %vm5176 = vcmp.lt.s32.totalorder %v4968, 0
      %vm5177 = vcmp.lt.s32.totalorder %v4975, 0
      %vm5178 = vcmp.lt.s32.totalorder %v4982, 0
      %vm5179 = vcmp.lt.s32.totalorder %v4989, 0
      %vm5180 = vcmp.lt.s32.totalorder %v4996, 0
      %vm5181 = vcmp.lt.s32.totalorder %v5003, 0
      %vm5182 = vcmp.lt.s32.totalorder %v5010, 0
      %vm5183 = vcmp.lt.s32.totalorder %v5017, 0
      %vm5184 = vcmp.lt.s32.totalorder %v5024, 0
      %vm5185 = vcmp.lt.s32.totalorder %v5031, 0
      %vm5186 = vcmp.lt.s32.totalorder %v5038, 0
      %vm5187 = vcmp.lt.s32.totalorder %v5045, 0
      %vm5188 = vcmp.lt.s32.totalorder %v5052, 0
      %vm5189 = vcmp.lt.s32.totalorder %v5059, 0
      %vm5190 = vcmp.lt.s32.totalorder %v5066, 0
      %vm5191 = vcmp.lt.s32.totalorder %v5073, 0
      %vm5192 = vcmp.lt.s32.totalorder %v5080, 0
      %vm5193 = vcmp.lt.s32.totalorder %v5087, 0
      %vm5194 = vcmp.lt.s32.totalorder %v5094, 0
      %vm5195 = vcmp.lt.s32.totalorder %v5101, 0
      %vm5196 = vcmp.lt.s32.totalorder %v5108, 0
      %vm5197 = vcmp.lt.s32.totalorder %v5115, 0
      %vm5198 = vcmp.lt.s32.totalorder %v5122, 0
      %vm5199 = vcmp.lt.s32.totalorder %v5129, 0
      %vm5200 = vcmp.lt.s32.totalorder %v5136, 0
      %vm5201 = vmand %vm5169, %vm5137
      %vm5202 = vmand %vm5170, %vm5138
      %vm5203 = vmand %vm5171, %vm5139
      %vm5204 = vmand %vm5172, %vm5140
      %vm5205 = vmand %vm5173, %vm5141
      %vm5206 = vmand %vm5174, %vm5142
      %vm5207 = vmand %vm5175, %vm5143
      %vm5208 = vmand %vm5176, %vm5144
      %vm5209 = vmand %vm5177, %vm5145
      %vm5210 = vmand %vm5178, %vm5146
      %vm5211 = vmand %vm5179, %vm5147
      %vm5212 = vmand %vm5180, %vm5148
      %vm5213 = vmand %vm5181, %vm5149
      %vm5214 = vmand %vm5182, %vm5150
      %vm5215 = vmand %vm5183, %vm5151
      %vm5216 = vmand %vm5184, %vm5152
      %vm5217 = vmand %vm5185, %vm5153
      %vm5218 = vmand %vm5186, %vm5154
      %vm5219 = vmand %vm5187, %vm5155
      %vm5220 = vmand %vm5188, %vm5156
      %vm5221 = vmand %vm5189, %vm5157
      %vm5222 = vmand %vm5190, %vm5158
      %vm5223 = vmand %vm5191, %vm5159
      %vm5224 = vmand %vm5192, %vm5160
      %vm5225 = vmand %vm5193, %vm5161
      %vm5226 = vmand %vm5194, %vm5162
      %vm5227 = vmand %vm5195, %vm5163
      %vm5228 = vmand %vm5196, %vm5164
      %vm5229 = vmand %vm5197, %vm5165
      %vm5230 = vmand %vm5198, %vm5166
      %vm5231 = vmand %vm5199, %vm5167
      %vm5232 = vmand %vm5200, %vm5168
      %v5233 = vadd.s32 %v4919, 16
      %v5234 = vadd.s32 %v4926, 16
      %v5235 = vadd.s32 %v4933, 16
      %v5236 = vadd.s32 %v4940, 16
      %v5237 = vadd.s32 %v4947, 16
      %v5238 = vadd.s32 %v4954, 16
      %v5239 = vadd.s32 %v4961, 16
      %v5240 = vadd.s32 %v4968, 16
      %v5241 = vadd.s32 %v4975, 16
      %v5242 = vadd.s32 %v4982, 16
      %v5243 = vadd.s32 %v4989, 16
      %v5244 = vadd.s32 %v4996, 16
      %v5245 = vadd.s32 %v5003, 16
      %v5246 = vadd.s32 %v5010, 16
      %v5247 = vadd.s32 %v5017, 16
      %v5248 = vadd.s32 %v5024, 16
      %v5249 = vadd.s32 %v5031, 16
      %v5250 = vadd.s32 %v5038, 16
      %v5251 = vadd.s32 %v5045, 16
      %v5252 = vadd.s32 %v5052, 16
      %v5253 = vadd.s32 %v5059, 16
      %v5254 = vadd.s32 %v5066, 16
      %v5255 = vadd.s32 %v5073, 16
      %v5256 = vadd.s32 %v5080, 16
      %v5257 = vadd.s32 %v5087, 16
      %v5258 = vadd.s32 %v5094, 16
      %v5259 = vadd.s32 %v5101, 16
      %v5260 = vadd.s32 %v5108, 16
      %v5261 = vadd.s32 %v5115, 16
      %v5262 = vadd.s32 %v5122, 16
      %v5263 = vadd.s32 %v5129, 16
      %v5264 = vadd.s32 %v5136, 16
      %v5265 = vsel %vm5201, %v5233, %v4919
      %v5266 = vsel %vm5202, %v5234, %v4926
      %v5267 = vsel %vm5203, %v5235, %v4933
      %v5268 = vsel %vm5204, %v5236, %v4940
      %v5269 = vsel %vm5205, %v5237, %v4947
      %v5270 = vsel %vm5206, %v5238, %v4954
      %v5271 = vsel %vm5207, %v5239, %v4961
      %v5272 = vsel %vm5208, %v5240, %v4968
      %v5273 = vsel %vm5209, %v5241, %v4975
      %v5274 = vsel %vm5210, %v5242, %v4982
      %v5275 = vsel %vm5211, %v5243, %v4989
      %v5276 = vsel %vm5212, %v5244, %v4996
      %v5277 = vsel %vm5213, %v5245, %v5003
      %v5278 = vsel %vm5214, %v5246, %v5010
      %v5279 = vsel %vm5215, %v5247, %v5017
      %v5280 = vsel %vm5216, %v5248, %v5024
      %v5281 = vsel %vm5217, %v5249, %v5031
      %v5282 = vsel %vm5218, %v5250, %v5038
      %v5283 = vsel %vm5219, %v5251, %v5045
      %v5284 = vsel %vm5220, %v5252, %v5052
      %v5285 = vsel %vm5221, %v5253, %v5059
      %v5286 = vsel %vm5222, %v5254, %v5066
      %v5287 = vsel %vm5223, %v5255, %v5073
      %v5288 = vsel %vm5224, %v5256, %v5080
      %v5289 = vsel %vm5225, %v5257, %v5087
      %v5290 = vsel %vm5226, %v5258, %v5094
      %v5291 = vsel %vm5227, %v5259, %v5101
      %v5292 = vsel %vm5228, %v5260, %v5108
      %v5293 = vsel %vm5229, %v5261, %v5115
      %v5294 = vsel %vm5230, %v5262, %v5122
      %v5295 = vsel %vm5231, %v5263, %v5129
      %v5296 = vsel %vm5232, %v5264, %v5136
      %vm5297 = vcmp.lt.s32.totalorder %v5265, 14
      %vm5298 = vcmp.lt.s32.totalorder %v5266, 14
      %vm5299 = vcmp.lt.s32.totalorder %v5267, 14
      %vm5300 = vcmp.lt.s32.totalorder %v5268, 14
      %vm5301 = vcmp.lt.s32.totalorder %v5269, 14
      %vm5302 = vcmp.lt.s32.totalorder %v5270, 14
      %vm5303 = vcmp.lt.s32.totalorder %v5271, 14
      %vm5304 = vcmp.lt.s32.totalorder %v5272, 14
      %vm5305 = vcmp.lt.s32.totalorder %v5273, 14
      %vm5306 = vcmp.lt.s32.totalorder %v5274, 14
      %vm5307 = vcmp.lt.s32.totalorder %v5275, 14
      %vm5308 = vcmp.lt.s32.totalorder %v5276, 14
      %vm5309 = vcmp.lt.s32.totalorder %v5277, 14
      %vm5310 = vcmp.lt.s32.totalorder %v5278, 14
      %vm5311 = vcmp.lt.s32.totalorder %v5279, 14
      %vm5312 = vcmp.lt.s32.totalorder %v5280, 14
      %vm5313 = vcmp.lt.s32.totalorder %v5281, 14
      %vm5314 = vcmp.lt.s32.totalorder %v5282, 14
      %vm5315 = vcmp.lt.s32.totalorder %v5283, 14
      %vm5316 = vcmp.lt.s32.totalorder %v5284, 14
      %vm5317 = vcmp.lt.s32.totalorder %v5285, 14
      %vm5318 = vcmp.lt.s32.totalorder %v5286, 14
      %vm5319 = vcmp.lt.s32.totalorder %v5287, 14
      %vm5320 = vcmp.lt.s32.totalorder %v5288, 14
      %vm5321 = vcmp.lt.s32.totalorder %v5289, 14
      %vm5322 = vcmp.lt.s32.totalorder %v5290, 14
      %vm5323 = vcmp.lt.s32.totalorder %v5291, 14
      %vm5324 = vcmp.lt.s32.totalorder %v5292, 14
      %vm5325 = vcmp.lt.s32.totalorder %v5293, 14
      %vm5326 = vcmp.lt.s32.totalorder %v5294, 14
      %vm5327 = vcmp.lt.s32.totalorder %v5295, 14
      %vm5328 = vcmp.lt.s32.totalorder %v5296, 14
      %v5329 = vsel %vm5297, 1, 0
      %v5330 = vsel %vm5298, 1, 0
      %v5331 = vsel %vm5299, 1, 0
      %v5332 = vsel %vm5300, 1, 0
      %v5333 = vsel %vm5301, 1, 0
      %v5334 = vsel %vm5302, 1, 0
      %v5335 = vsel %vm5303, 1, 0
      %v5336 = vsel %vm5304, 1, 0
      %v5337 = vsel %vm5305, 1, 0
      %v5338 = vsel %vm5306, 1, 0
      %v5339 = vsel %vm5307, 1, 0
      %v5340 = vsel %vm5308, 1, 0
      %v5341 = vsel %vm5309, 1, 0
      %v5342 = vsel %vm5310, 1, 0
      %v5343 = vsel %vm5311, 1, 0
      %v5344 = vsel %vm5312, 1, 0
      %v5345 = vsel %vm5313, 1, 0
      %v5346 = vsel %vm5314, 1, 0
      %v5347 = vsel %vm5315, 1, 0
      %v5348 = vsel %vm5316, 1, 0
      %v5349 = vsel %vm5317, 1, 0
      %v5350 = vsel %vm5318, 1, 0
      %v5351 = vsel %vm5319, 1, 0
      %v5352 = vsel %vm5320, 1, 0
      %v5353 = vsel %vm5321, 1, 0
      %v5354 = vsel %vm5322, 1, 0
      %v5355 = vsel %vm5323, 1, 0
      %v5356 = vsel %vm5324, 1, 0
      %v5357 = vsel %vm5325, 1, 0
      %v5358 = vsel %vm5326, 1, 0
      %v5359 = vsel %vm5327, 1, 0
      %v5360 = vsel %vm5328, 1, 0
      %v5361 = vcvt.s32.f32 %v5329
      %v5362 = vcvt.s32.f32 %v5330
      %v5363 = vcvt.s32.f32 %v5331
      %v5364 = vcvt.s32.f32 %v5332
      %v5365 = vcvt.s32.f32 %v5333
      %v5366 = vcvt.s32.f32 %v5334
      %v5367 = vcvt.s32.f32 %v5335
      %v5368 = vcvt.s32.f32 %v5336
      %v5369 = vcvt.s32.f32 %v5337
      %v5370 = vcvt.s32.f32 %v5338
      %v5371 = vcvt.s32.f32 %v5339
      %v5372 = vcvt.s32.f32 %v5340
      %v5373 = vcvt.s32.f32 %v5341
      %v5374 = vcvt.s32.f32 %v5342
      %v5375 = vcvt.s32.f32 %v5343
      %v5376 = vcvt.s32.f32 %v5344
      %v5377 = vcvt.s32.f32 %v5345
      %v5378 = vcvt.s32.f32 %v5346
      %v5379 = vcvt.s32.f32 %v5347
      %v5380 = vcvt.s32.f32 %v5348
      %v5381 = vcvt.s32.f32 %v5349
      %v5382 = vcvt.s32.f32 %v5350
      %v5383 = vcvt.s32.f32 %v5351
      %v5384 = vcvt.s32.f32 %v5352
      %v5385 = vcvt.s32.f32 %v5353
      %v5386 = vcvt.s32.f32 %v5354
      %v5387 = vcvt.s32.f32 %v5355
      %v5388 = vcvt.s32.f32 %v5356
      %v5389 = vcvt.s32.f32 %v5357
      %v5390 = vcvt.s32.f32 %v5358
      %v5391 = vcvt.s32.f32 %v5359
      %v5392 = vcvt.s32.f32 %v5360
      %v5393 = vmul.f32 %v4848, %v5361
      %v5394 = vmul.f32 %v4849, %v5362
      %v5395 = vmul.f32 %v4850, %v5363
      %v5396 = vmul.f32 %v4851, %v5364
      %v5397 = vmul.f32 %v4852, %v5365
      %v5398 = vmul.f32 %v4853, %v5366
      %v5399 = vmul.f32 %v4854, %v5367
      %v5400 = vmul.f32 %v4855, %v5368
      %v5401 = vmul.f32 %v4856, %v5369
      %v5402 = vmul.f32 %v4857, %v5370
      %v5403 = vmul.f32 %v4858, %v5371
      %v5404 = vmul.f32 %v4859, %v5372
      %v5405 = vmul.f32 %v4860, %v5373
      %v5406 = vmul.f32 %v4861, %v5374
      %v5407 = vmul.f32 %v4862, %v5375
      %v5408 = vmul.f32 %v4863, %v5376
      %v5409 = vmul.f32 %v4864, %v5377
      %v5410 = vmul.f32 %v4865, %v5378
      %v5411 = vmul.f32 %v4866, %v5379
      %v5412 = vmul.f32 %v4867, %v5380
      %v5413 = vmul.f32 %v4868, %v5381
      %v5414 = vmul.f32 %v4869, %v5382
      %v5415 = vmul.f32 %v4870, %v5383
      %v5416 = vmul.f32 %v4871, %v5384
      %v5417 = vmul.f32 %v4872, %v5385
      %v5418 = vmul.f32 %v4873, %v5386
      %v5419 = vmul.f32 %v4874, %v5387
      %v5420 = vmul.f32 %v4875, %v5388
      %v5421 = vmul.f32 %v4876, %v5389
      %v5422 = vmul.f32 %v4877, %v5390
      %v5423 = vmul.f32 %v4878, %v5391
      %v5424 = vmul.f32 %v4879, %v5392
      %5425 = vst [vmem:[#allocation2 + $0x8] sm:$0xff] %v5393
      %5426 = vst [vmem:[#allocation2 + $0x10] sm:$0xff] %v5394
      %5427 = vst [vmem:[#allocation2 + $0x18] sm:$0xff] %v5395
      %5428 = vst [vmem:[#allocation2 + $0x20] sm:$0xff] %v5396
      %5429 = vst [vmem:[#allocation2 + $0x28] sm:$0xff] %v5397
      %5430 = vst [vmem:[#allocation2 + $0x30] sm:$0xff] %v5398
      %5431 = vst [vmem:[#allocation2 + $0x38] sm:$0xff] %v5399
      %5432 = vst [vmem:[#allocation2 + $0x40] sm:$0xff] %v5400
      %5433 = vst [vmem:[#allocation2 + $0x48] sm:$0xff] %v5401
      %5434 = vst [vmem:[#allocation2 + $0x50] sm:$0xff] %v5402
      %5435 = vst [vmem:[#allocation2 + $0x58] sm:$0xff] %v5403
      %5436 = vst [vmem:[#allocation2 + $0x60] sm:$0xff] %v5404
      %5437 = vst [vmem:[#allocation2 + $0x68] sm:$0xff] %v5405
      %5438 = vst [vmem:[#allocation2 + $0x70] sm:$0xff] %v5406
      %5439 = vst [vmem:[#allocation2 + $0x78] sm:$0xff] %v5407
      %5440 = vst [vmem:[#allocation2 + $0x80] sm:$0xff] %v5408
      %5441 = vst [vmem:[#allocation2 + $0x88] sm:$0xff] %v5409
      %5442 = vst [vmem:[#allocation2 + $0x90] sm:$0xff] %v5410
      %5443 = vst [vmem:[#allocation2 + $0x98] sm:$0xff] %v5411
      %5444 = vst [vmem:[#allocation2 + $0xa0] sm:$0xff] %v5412
      %5445 = vst [vmem:[#allocation2 + $0xa8] sm:$0xff] %v5413
      %5446 = vst [vmem:[#allocation2 + $0xb0] sm:$0xff] %v5414
      %5447 = vst [vmem:[#allocation2 + $0xb8] sm:$0xff] %v5415
      %5448 = vst [vmem:[#allocation2 + $0xc0] sm:$0xff] %v5416
      %5449 = vst [vmem:[#allocation2 + $0xc8] sm:$0xff] %v5417
      %5450 = vst [vmem:[#allocation2 + $0xd0] sm:$0xff] %v5418
      %5451 = vst [vmem:[#allocation2 + $0xd8] sm:$0xff] %v5419
      %5452 = vst [vmem:[#allocation2 + $0xe0] sm:$0xff] %v5420
      %5453 = vst [vmem:[#allocation2 + $0xe8] sm:$0xff] %v5421
      %5454 = vst [vmem:[#allocation2 + $0xf0] sm:$0xff] %v5422
      %5455 = vst [vmem:[#allocation2 + $0xf8] sm:$0xff] %v5423
      %5456 = vst [vmem:[#allocation2 + $0x100] sm:$0xff] %v5424
      %v5457 = vld [vmem:[#allocation2] sm:$0xff]
      %v5458 = vld [vmem:[#allocation2 + $0x8] sm:$0xff]
      %v5459 = vld [vmem:[#allocation2 + $0x10] sm:$0xff]
      %v5460 = vld [vmem:[#allocation2 + $0x18] sm:$0xff]
      %v5461 = vld [vmem:[#allocation2 + $0x20] sm:$0xff]
      %v5462 = vld [vmem:[#allocation2 + $0x28] sm:$0xff]
      %v5463 = vld [vmem:[#allocation2 + $0x30] sm:$0xff]
      %v5464 = vld [vmem:[#allocation2 + $0x38] sm:$0xff]
      %v5465 = vld [vmem:[#allocation2 + $0x40] sm:$0xff]
      %v5466 = vld [vmem:[#allocation2 + $0x48] sm:$0xff]
      %v5467 = vld [vmem:[#allocation2 + $0x50] sm:$0xff]
      %v5468 = vld [vmem:[#allocation2 + $0x58] sm:$0xff]
      %v5469 = vld [vmem:[#allocation2 + $0x60] sm:$0xff]
      %v5470 = vld [vmem:[#allocation2 + $0x68] sm:$0xff]
      %v5471 = vld [vmem:[#allocation2 + $0x70] sm:$0xff]
      %v5472 = vld [vmem:[#allocation2 + $0x78] sm:$0xff]
      %v5473 = vld [vmem:[#allocation2 + $0x80] sm:$0xff]
      %v5474 = vld [vmem:[#allocation2 + $0x88] sm:$0xff]
      %v5475 = vld [vmem:[#allocation2 + $0x90] sm:$0xff]
      %v5476 = vld [vmem:[#allocation2 + $0x98] sm:$0xff]
      %v5477 = vld [vmem:[#allocation2 + $0xa0] sm:$0xff]
      %v5478 = vld [vmem:[#allocation2 + $0xa8] sm:$0xff]
      %v5479 = vld [vmem:[#allocation2 + $0xb0] sm:$0xff]
      %v5480 = vld [vmem:[#allocation2 + $0xb8] sm:$0xff]
      %v5481 = vld [vmem:[#allocation2 + $0xc0] sm:$0xff]
      %v5482 = vld [vmem:[#allocation2 + $0xc8] sm:$0xff]
      %v5483 = vld [vmem:[#allocation2 + $0xd0] sm:$0xff]
      %v5484 = vld [vmem:[#allocation2 + $0xd8] sm:$0xff]
      %v5485 = vld [vmem:[#allocation2 + $0xe0] sm:$0xff]
      %v5486 = vld [vmem:[#allocation2 + $0xe8] sm:$0xff]
      %v5487 = vld [vmem:[#allocation2 + $0xf0] sm:$0xff]
      %v5488 = vld [vmem:[#allocation2 + $0xf8] sm:$0xff]
      %v5489 = vld [vmem:[#allocation2 + $0x100] sm:$0xff]
      %v5490 = vld [vmem:[#allocation2 + $0x108] sm:$0xff]
      %v5491 = vmax.f32 %v5457, 0.0
      %v5492 = vmax.f32 %v5458, 0.0
      %v5493 = vmax.f32 %v5459, 0.0
      %v5494 = vmax.f32 %v5460, 0.0
      %v5495 = vmax.f32 %v5461, 0.0
      %v5496 = vmax.f32 %v5462, 0.0
      %v5497 = vmax.f32 %v5463, 0.0
      %v5498 = vmax.f32 %v5464, 0.0
      %v5499 = vmax.f32 %v5465, 0.0
      %v5500 = vmax.f32 %v5466, 0.0
      %v5501 = vmax.f32 %v5467, 0.0
      %v5502 = vmax.f32 %v5468, 0.0
      %v5503 = vmax.f32 %v5469, 0.0
      %v5504 = vmax.f32 %v5470, 0.0
      %v5505 = vmax.f32 %v5471, 0.0
      %v5506 = vmax.f32 %v5472, 0.0
      %v5507 = vmax.f32 %v5473, 0.0
      %v5508 = vmax.f32 %v5474, 0.0
      %v5509 = vmax.f32 %v5475, 0.0
      %v5510 = vmax.f32 %v5476, 0.0
      %v5511 = vmax.f32 %v5477, 0.0
      %v5512 = vmax.f32 %v5478, 0.0
      %v5513 = vmax.f32 %v5479, 0.0
      %v5514 = vmax.f32 %v5480, 0.0
      %v5515 = vmax.f32 %v5481, 0.0
      %v5516 = vmax.f32 %v5482, 0.0
      %v5517 = vmax.f32 %v5483, 0.0
      %v5518 = vmax.f32 %v5484, 0.0
      %v5519 = vmax.f32 %v5485, 0.0
      %v5520 = vmax.f32 %v5486, 0.0
      %v5521 = vmax.f32 %v5487, 0.0
      %v5522 = vmax.f32 %v5488, 0.0
      %v5523 = vmax.f32 %v5489, 0.0
      %v5524 = vmax.f32 %v5490, 0.0
      %v5525 = vld [vmem:[%s4] sm:$0x1]
      %v5526 = vpack.c.bf16 %v5492, %v5491
      %v5527 = vpack.c.bf16 %v5494, %v5493
      %v5528 = vpack.c.bf16 %v5496, %v5495
      %v5529 = vpack.c.bf16 %v5498, %v5497
      %v5530 = vpack.c.bf16 %v5500, %v5499
      %v5531 = vpack.c.bf16 %v5502, %v5501
      %v5532 = vpack.c.bf16 %v5504, %v5503
      %v5533 = vpack.c.bf16 %v5506, %v5505
      %v5534 = vpack.c.bf16 %v5508, %v5507
      %v5535 = vpack.c.bf16 %v5510, %v5509
      %v5536 = vpack.c.bf16 %v5512, %v5511
      %v5537 = vpack.c.bf16 %v5514, %v5513
      %v5538 = vpack.c.bf16 %v5516, %v5515
      %v5539 = vpack.c.bf16 %v5518, %v5517
      %v5540 = vpack.c.bf16 %v5520, %v5519
      %v5541 = vpack.c.bf16 %v5522, %v5521
      %v5542 = vpack.c.bf16 %v5523, %v5523
      %v5543 = vld [vmem:[%s3] sm:$0xf]
      %v5544 = vld [vmem:[%s3 + $0x4] sm:$0xf]
      %v5545 = vld [vmem:[%s3 + $0x8] sm:$0xf]
      %v5546 = vld [vmem:[%s3 + $0xc] sm:$0xf]
      %v5547 = vld [vmem:[%s3 + $0x10] sm:$0xf]
      %v5548 = vld [vmem:[%s3 + $0x14] sm:$0xf]
      %v5549 = vld [vmem:[%s3 + $0x18] sm:$0xf]
      %v5550 = vld [vmem:[%s3 + $0x1c] sm:$0xf]
      %v5551 = vld [vmem:[%s3 + $0x20] sm:$0xf]
      %v5552 = vld [vmem:[%s3 + $0x24] sm:$0xf]
      %v5553 = vld [vmem:[%s3 + $0x28] sm:$0xf]
      %v5554 = vld [vmem:[%s3 + $0x2c] sm:$0xf]
      %v5555 = vld [vmem:[%s3 + $0x30] sm:$0xf]
      %v5556 = vld [vmem:[%s3 + $0x34] sm:$0xf]
      %v5557 = vld [vmem:[%s3 + $0x38] sm:$0xf]
      %v5558 = vld [vmem:[%s3 + $0x3c] sm:$0xf]
      %vm5559 = vsmask.f32 4352
      %v5561 = vshrl.u32 %v5526, 16
      %v5563 = vrot.slane %v5561, 3
      %v5564 = vshll.u32 %v5526, 16
      %v5566 = vrot.slane %v5564, 4
      %v5567 = vor.u32 %v5563, %v5566
      %v5569 = vshrl.u32 %v5527, 16
      %v5571 = vrot.slane %v5569, 3
      %v5572 = vshll.u32 %v5527, 16
      %v5574 = vrot.slane %v5572, 4
      %v5575 = vor.u32 %v5571, %v5574
      %v5576 = vsel %vm5559, %v5567, %v5575
      %v5578 = vshrl.u32 %v5528, 16
      %v5580 = vrot.slane %v5578, 3
      %v5581 = vshll.u32 %v5528, 16
      %v5583 = vrot.slane %v5581, 4
      %v5584 = vor.u32 %v5580, %v5583
      %v5585 = vsel %vm5559, %v5575, %v5584
      %v5587 = vshrl.u32 %v5529, 16
      %v5589 = vrot.slane %v5587, 3
      %v5590 = vshll.u32 %v5529, 16
      %v5592 = vrot.slane %v5590, 4
      %v5593 = vor.u32 %v5589, %v5592
      %v5594 = vsel %vm5559, %v5584, %v5593
      %v5596 = vshrl.u32 %v5530, 16
      %v5598 = vrot.slane %v5596, 3
      %v5599 = vshll.u32 %v5530, 16
      %v5601 = vrot.slane %v5599, 4
      %v5602 = vor.u32 %v5598, %v5601
      %v5603 = vsel %vm5559, %v5593, %v5602
      %v5605 = vshrl.u32 %v5531, 16
      %v5607 = vrot.slane %v5605, 3
      %v5608 = vshll.u32 %v5531, 16
      %v5610 = vrot.slane %v5608, 4
      %v5611 = vor.u32 %v5607, %v5610
      %v5612 = vsel %vm5559, %v5602, %v5611
      %v5614 = vshrl.u32 %v5532, 16
      %v5616 = vrot.slane %v5614, 3
      %v5617 = vshll.u32 %v5532, 16
      %v5619 = vrot.slane %v5617, 4
      %v5620 = vor.u32 %v5616, %v5619
      %v5621 = vsel %vm5559, %v5611, %v5620
      %v5623 = vshrl.u32 %v5533, 16
      %v5625 = vrot.slane %v5623, 3
      %v5626 = vshll.u32 %v5533, 16
      %v5628 = vrot.slane %v5626, 4
      %v5629 = vor.u32 %v5625, %v5628
      %v5630 = vsel %vm5559, %v5620, %v5629
      %v5632 = vshrl.u32 %v5534, 16
      %v5634 = vrot.slane %v5632, 3
      %v5635 = vshll.u32 %v5534, 16
      %v5637 = vrot.slane %v5635, 4
      %v5638 = vor.u32 %v5634, %v5637
      %v5639 = vsel %vm5559, %v5629, %v5638
      %v5641 = vshrl.u32 %v5535, 16
      %v5643 = vrot.slane %v5641, 3
      %v5644 = vshll.u32 %v5535, 16
      %v5646 = vrot.slane %v5644, 4
      %v5647 = vor.u32 %v5643, %v5646
      %v5648 = vsel %vm5559, %v5638, %v5647
      %v5650 = vshrl.u32 %v5536, 16
      %v5652 = vrot.slane %v5650, 3
      %v5653 = vshll.u32 %v5536, 16
      %v5655 = vrot.slane %v5653, 4
      %v5656 = vor.u32 %v5652, %v5655
      %v5657 = vsel %vm5559, %v5647, %v5656
      %v5659 = vshrl.u32 %v5537, 16
      %v5661 = vrot.slane %v5659, 3
      %v5662 = vshll.u32 %v5537, 16
      %v5664 = vrot.slane %v5662, 4
      %v5665 = vor.u32 %v5661, %v5664
      %v5666 = vsel %vm5559, %v5656, %v5665
      %v5668 = vshrl.u32 %v5538, 16
      %v5670 = vrot.slane %v5668, 3
      %v5671 = vshll.u32 %v5538, 16
      %v5673 = vrot.slane %v5671, 4
      %v5674 = vor.u32 %v5670, %v5673
      %v5675 = vsel %vm5559, %v5665, %v5674
      %v5677 = vshrl.u32 %v5539, 16
      %v5679 = vrot.slane %v5677, 3
      %v5680 = vshll.u32 %v5539, 16
      %v5682 = vrot.slane %v5680, 4
      %v5683 = vor.u32 %v5679, %v5682
      %v5684 = vsel %vm5559, %v5674, %v5683
      %v5686 = vshrl.u32 %v5540, 16
      %v5688 = vrot.slane %v5686, 3
      %v5689 = vshll.u32 %v5540, 16
      %v5691 = vrot.slane %v5689, 4
      %v5692 = vor.u32 %v5688, %v5691
      %v5693 = vsel %vm5559, %v5683, %v5692
      %v5695 = vshrl.u32 %v5541, 16
      %v5697 = vrot.slane %v5695, 3
      %v5698 = vshll.u32 %v5541, 16
      %v5700 = vrot.slane %v5698, 4
      %v5701 = vor.u32 %v5697, %v5700
      %v5702 = vsel %vm5559, %v5692, %v5701
      %v5704 = vshrl.u32 %v5542, 16
      %v5706 = vrot.slane %v5704, 3
      %v5707 = vshll.u32 %v5542, 16
      %v5709 = vrot.slane %v5707, 4
      %v5710 = vor.u32 %v5706, %v5709
      %v5711 = vsel %vm5559, %v5701, %v5710
      %v5744 = vunpack.c.l.b16 %v5543
      %v5745 = vunpack.c.l.b16 %v5544
      %v5746 = vunpack.c.l.b16 %v5545
      %v5747 = vunpack.c.l.b16 %v5546
      %v5748 = vunpack.c.l.b16 %v5547
      %v5749 = vunpack.c.l.b16 %v5548
      %v5750 = vunpack.c.l.b16 %v5549
      %v5751 = vunpack.c.l.b16 %v5550
      %v5752 = vunpack.c.l.b16 %v5551
      %v5753 = vunpack.c.l.b16 %v5552
      %v5754 = vunpack.c.l.b16 %v5553
      %v5755 = vunpack.c.l.b16 %v5554
      %v5756 = vunpack.c.l.b16 %v5555
      %v5757 = vunpack.c.l.b16 %v5556
      %v5758 = vunpack.c.l.b16 %v5557
      %v5759 = vunpack.c.l.b16 %v5558
      %v5760 = vpack.c.b16 %v5745, %v5744
      %v5761 = vpack.c.b16 %v5747, %v5746
      %v5762 = vpack.c.b16 %v5749, %v5748
      %v5763 = vpack.c.b16 %v5751, %v5750
      %v5764 = vpack.c.b16 %v5753, %v5752
      %v5765 = vpack.c.b16 %v5755, %v5754
      %v5766 = vpack.c.b16 %v5757, %v5756
      %v5767 = vpack.c.b16 %v5759, %v5758
      %5776 = vmatpush.bf16.msra.mxu0 %v5767
      %5777 = vmatpush.bf16.msra.mxu0 %v5766
      %5778 = vmatpush.bf16.msra.mxu0 %v5765
      %5779 = vmatpush.bf16.msra.mxu0 %v5764
      %5780 = vmatpush.bf16.msra.mxu0 %v5763
      %5781 = vmatpush.bf16.msra.mxu0 %v5762
      %5782 = vmatpush.bf16.msra.mxu0 %v5761
      %5783 = vmatpush.bf16.msra.mxu0 %v5760
      %5784 = vmatmul.bf16.gmra.mxu0 %v5576
      %v5785 = vpop.f32.mrf.mxu0
      %v5786 = vadd.f32 0.0, %v5785
      %v5787 = vpop.f32.mrf.mxu0
      %v5788 = vadd.f32 0.0, %v5787
      %5789 = vmatmul.bf16.gmra.mxu0 %v5585
      %v5790 = vpop.f32.mrf.mxu0
      %v5791 = vadd.f32 0.0, %v5790
      %v5792 = vpop.f32.mrf.mxu0
      %v5793 = vadd.f32 0.0, %v5792
      %5794 = vmatmul.bf16.gmra.mxu0 %v5594
      %v5795 = vpop.f32.mrf.mxu0
      %v5796 = vadd.f32 0.0, %v5795
      %v5797 = vpop.f32.mrf.mxu0
      %v5798 = vadd.f32 0.0, %v5797
      %5799 = vmatmul.bf16.gmra.mxu0 %v5603
      %v5800 = vpop.f32.mrf.mxu0
      %v5801 = vadd.f32 0.0, %v5800
      %v5802 = vpop.f32.mrf.mxu0
      %v5803 = vadd.f32 0.0, %v5802
      %5804 = vmatmul.bf16.gmra.mxu0 %v5612
      %v5805 = vpop.f32.mrf.mxu0
      %v5806 = vadd.f32 0.0, %v5805
      %v5807 = vpop.f32.mrf.mxu0
      %v5808 = vadd.f32 0.0, %v5807
      %5809 = vmatmul.bf16.gmra.mxu0 %v5621
      %v5810 = vpop.f32.mrf.mxu0
      %v5811 = vadd.f32 0.0, %v5810
      %v5812 = vpop.f32.mrf.mxu0
      %v5813 = vadd.f32 0.0, %v5812
      %5814 = vmatmul.bf16.gmra.mxu0 %v5630
      %v5815 = vpop.f32.mrf.mxu0
      %v5816 = vadd.f32 0.0, %v5815
      %v5817 = vpop.f32.mrf.mxu0
      %v5818 = vadd.f32 0.0, %v5817
      %5819 = vmatmul.bf16.gmra.mxu0 %v5639
      %v5820 = vpop.f32.mrf.mxu0
      %v5821 = vadd.f32 0.0, %v5820
      %v5822 = vpop.f32.mrf.mxu0
      %v5823 = vadd.f32 0.0, %v5822
      %5824 = vmatmul.bf16.gmra.mxu0 %v5648
      %v5825 = vpop.f32.mrf.mxu0
      %v5826 = vadd.f32 0.0, %v5825
      %v5827 = vpop.f32.mrf.mxu0
      %v5828 = vadd.f32 0.0, %v5827
      %5829 = vmatmul.bf16.gmra.mxu0 %v5657
      %v5830 = vpop.f32.mrf.mxu0
      %v5831 = vadd.f32 0.0, %v5830
      %v5832 = vpop.f32.mrf.mxu0
      %v5833 = vadd.f32 0.0, %v5832
      %5834 = vmatmul.bf16.gmra.mxu0 %v5666
      %v5835 = vpop.f32.mrf.mxu0
      %v5836 = vadd.f32 0.0, %v5835
      %v5837 = vpop.f32.mrf.mxu0
      %v5838 = vadd.f32 0.0, %v5837
      %5839 = vmatmul.bf16.gmra.mxu0 %v5675
      %v5840 = vpop.f32.mrf.mxu0
      %v5841 = vadd.f32 0.0, %v5840
      %v5842 = vpop.f32.mrf.mxu0
      %v5843 = vadd.f32 0.0, %v5842
      %5844 = vmatmul.bf16.gmra.mxu0 %v5684
      %v5845 = vpop.f32.mrf.mxu0
      %v5846 = vadd.f32 0.0, %v5845
      %v5847 = vpop.f32.mrf.mxu0
      %v5848 = vadd.f32 0.0, %v5847
      %5849 = vmatmul.bf16.gmra.mxu0 %v5693
      %v5850 = vpop.f32.mrf.mxu0
      %v5851 = vadd.f32 0.0, %v5850
      %v5852 = vpop.f32.mrf.mxu0
      %v5853 = vadd.f32 0.0, %v5852
      %5854 = vmatmul.bf16.gmra.mxu0 %v5702
      %v5855 = vpop.f32.mrf.mxu0
      %v5856 = vadd.f32 0.0, %v5855
      %v5857 = vpop.f32.mrf.mxu0
      %v5858 = vadd.f32 0.0, %v5857
      %5859 = vmatmul.bf16.gmra.mxu0 %v5711
      %v5860 = vpop.f32.mrf.mxu0
      %v5861 = vadd.f32 0.0, %v5860
      %v5862 = vpop.f32.mrf.mxu0
      %v5863 = vadd.f32 0.0, %v5862
      %5864 = vdwg.mxu0
      %v5866 = vperm.slane %v5525, 0
      %v5868 = vadd.f32 %v5866, %v5786
      %v5869 = vadd.f32 %v5866, %v5788
      %v5870 = vadd.f32 %v5866, %v5791
      %v5871 = vadd.f32 %v5866, %v5793
      %v5872 = vadd.f32 %v5866, %v5796
      %v5873 = vadd.f32 %v5866, %v5798
      %v5874 = vadd.f32 %v5866, %v5801
      %v5875 = vadd.f32 %v5866, %v5803
      %v5876 = vadd.f32 %v5866, %v5806
      %v5877 = vadd.f32 %v5866, %v5808
      %v5878 = vadd.f32 %v5866, %v5811
      %v5879 = vadd.f32 %v5866, %v5813
      %v5880 = vadd.f32 %v5866, %v5816
      %v5881 = vadd.f32 %v5866, %v5818
      %v5882 = vadd.f32 %v5866, %v5821
      %v5883 = vadd.f32 %v5866, %v5823
      %v5884 = vadd.f32 %v5866, %v5826
      %v5885 = vadd.f32 %v5866, %v5828
      %v5886 = vadd.f32 %v5866, %v5831
      %v5887 = vadd.f32 %v5866, %v5833
      %v5888 = vadd.f32 %v5866, %v5836
      %v5889 = vadd.f32 %v5866, %v5838
      %v5890 = vadd.f32 %v5866, %v5841
      %v5891 = vadd.f32 %v5866, %v5843
      %v5892 = vadd.f32 %v5866, %v5846
      %v5893 = vadd.f32 %v5866, %v5848
      %v5894 = vadd.f32 %v5866, %v5851
      %v5895 = vadd.f32 %v5866, %v5853
      %v5896 = vadd.f32 %v5866, %v5856
      %v5897 = vadd.f32 %v5866, %v5858
      %v5898 = vadd.f32 %v5866, %v5861
      %v5899 = vadd.f32 %v5866, %v5863
      %v5900 = vpack.c.bf16 %v5493, %v5492
      %v5901 = vpack.c.bf16 %v5495, %v5494
      %v5902 = vpack.c.bf16 %v5497, %v5496
      %v5903 = vpack.c.bf16 %v5499, %v5498
      %v5904 = vpack.c.bf16 %v5501, %v5500
      %v5905 = vpack.c.bf16 %v5503, %v5502
      %v5906 = vpack.c.bf16 %v5505, %v5504
      %v5907 = vpack.c.bf16 %v5507, %v5506
      %v5908 = vpack.c.bf16 %v5509, %v5508
      %v5909 = vpack.c.bf16 %v5511, %v5510
      %v5910 = vpack.c.bf16 %v5513, %v5512
      %v5911 = vpack.c.bf16 %v5515, %v5514
      %v5912 = vpack.c.bf16 %v5517, %v5516
      %v5913 = vpack.c.bf16 %v5519, %v5518
      %v5914 = vpack.c.bf16 %v5521, %v5520
      %v5915 = vpack.c.bf16 %v5523, %v5522
      %s5916 = scalar_lea.vmem %s3, 64
      %v5917 = vld [vmem:[%s5916] sm:$0xf]
      %v5918 = vld [vmem:[%s5916 + $0x4] sm:$0xf]
      %v5919 = vld [vmem:[%s5916 + $0x8] sm:$0xf]
      %v5920 = vld [vmem:[%s5916 + $0xc] sm:$0xf]
      %v5921 = vld [vmem:[%s5916 + $0x10] sm:$0xf]
      %v5922 = vld [vmem:[%s5916 + $0x14] sm:$0xf]
      %v5923 = vld [vmem:[%s5916 + $0x18] sm:$0xf]
      %v5924 = vld [vmem:[%s5916 + $0x1c] sm:$0xf]
      %v5925 = vld [vmem:[%s5916 + $0x20] sm:$0xf]
      %v5926 = vld [vmem:[%s5916 + $0x24] sm:$0xf]
      %v5927 = vld [vmem:[%s5916 + $0x28] sm:$0xf]
      %v5928 = vld [vmem:[%s5916 + $0x2c] sm:$0xf]
      %v5929 = vld [vmem:[%s5916 + $0x30] sm:$0xf]
      %v5930 = vld [vmem:[%s5916 + $0x34] sm:$0xf]
      %v5931 = vld [vmem:[%s5916 + $0x38] sm:$0xf]
      %v5932 = vld [vmem:[%s5916 + $0x3c] sm:$0xf]
      %v5949 = vunpack.c.l.b16 %v5917
      %v5950 = vunpack.c.l.b16 %v5918
      %v5951 = vunpack.c.l.b16 %v5919
      %v5952 = vunpack.c.l.b16 %v5920
      %v5953 = vunpack.c.l.b16 %v5921
      %v5954 = vunpack.c.l.b16 %v5922
      %v5955 = vunpack.c.l.b16 %v5923
      %v5956 = vunpack.c.l.b16 %v5924
      %v5957 = vunpack.c.l.b16 %v5925
      %v5958 = vunpack.c.l.b16 %v5926
      %v5959 = vunpack.c.l.b16 %v5927
      %v5960 = vunpack.c.l.b16 %v5928
      %v5961 = vunpack.c.l.b16 %v5929
      %v5962 = vunpack.c.l.b16 %v5930
      %v5963 = vunpack.c.l.b16 %v5931
      %v5964 = vunpack.c.l.b16 %v5932
      %v5965 = vpack.c.b16 %v5950, %v5949
      %v5966 = vpack.c.b16 %v5952, %v5951
      %v5967 = vpack.c.b16 %v5954, %v5953
      %v5968 = vpack.c.b16 %v5956, %v5955
      %v5969 = vpack.c.b16 %v5958, %v5957
      %v5970 = vpack.c.b16 %v5960, %v5959
      %v5971 = vpack.c.b16 %v5962, %v5961
      %v5972 = vpack.c.b16 %v5964, %v5963
      %5981 = vmatpush.bf16.msra.mxu0 %v5972
      %5982 = vmatpush.bf16.msra.mxu0 %v5971
      %5983 = vmatpush.bf16.msra.mxu0 %v5970
      %5984 = vmatpush.bf16.msra.mxu0 %v5969
      %5985 = vmatpush.bf16.msra.mxu0 %v5968
      %5986 = vmatpush.bf16.msra.mxu0 %v5967
      %5987 = vmatpush.bf16.msra.mxu0 %v5966
      %5988 = vmatpush.bf16.msra.mxu0 %v5965
      %5989 = vmatmul.bf16.gmra.mxu0 %v5900
      %v5990 = vpop.f32.mrf.mxu0
      %v5991 = vadd.f32 0.0, %v5990
      %v5992 = vpop.f32.mrf.mxu0
      %v5993 = vadd.f32 0.0, %v5992
      %5994 = vmatmul.bf16.gmra.mxu0 %v5901
      %v5995 = vpop.f32.mrf.mxu0
      %v5996 = vadd.f32 0.0, %v5995
      %v5997 = vpop.f32.mrf.mxu0
      %v5998 = vadd.f32 0.0, %v5997
      %5999 = vmatmul.bf16.gmra.mxu0 %v5902
      %v6000 = vpop.f32.mrf.mxu0
      %v6001 = vadd.f32 0.0, %v6000
      %v6002 = vpop.f32.mrf.mxu0
      %v6003 = vadd.f32 0.0, %v6002
      %6004 = vmatmul.bf16.gmra.mxu0 %v5903
      %v6005 = vpop.f32.mrf.mxu0
      %v6006 = vadd.f32 0.0, %v6005
      %v6007 = vpop.f32.mrf.mxu0
      %v6008 = vadd.f32 0.0, %v6007
      %6009 = vmatmul.bf16.gmra.mxu0 %v5904
      %v6010 = vpop.f32.mrf.mxu0
      %v6011 = vadd.f32 0.0, %v6010
      %v6012 = vpop.f32.mrf.mxu0
      %v6013 = vadd.f32 0.0, %v6012
      %6014 = vmatmul.bf16.gmra.mxu0 %v5905
      %v6015 = vpop.f32.mrf.mxu0
      %v6016 = vadd.f32 0.0, %v6015
      %v6017 = vpop.f32.mrf.mxu0
      %v6018 = vadd.f32 0.0, %v6017
      %6019 = vmatmul.bf16.gmra.mxu0 %v5906
      %v6020 = vpop.f32.mrf.mxu0
      %v6021 = vadd.f32 0.0, %v6020
      %v6022 = vpop.f32.mrf.mxu0
      %v6023 = vadd.f32 0.0, %v6022
      %6024 = vmatmul.bf16.gmra.mxu0 %v5907
      %v6025 = vpop.f32.mrf.mxu0
      %v6026 = vadd.f32 0.0, %v6025
      %v6027 = vpop.f32.mrf.mxu0
      %v6028 = vadd.f32 0.0, %v6027
      %6029 = vmatmul.bf16.gmra.mxu0 %v5908
      %v6030 = vpop.f32.mrf.mxu0
      %v6031 = vadd.f32 0.0, %v6030
      %v6032 = vpop.f32.mrf.mxu0
      %v6033 = vadd.f32 0.0, %v6032
      %6034 = vmatmul.bf16.gmra.mxu0 %v5909
      %v6035 = vpop.f32.mrf.mxu0
      %v6036 = vadd.f32 0.0, %v6035
      %v6037 = vpop.f32.mrf.mxu0
      %v6038 = vadd.f32 0.0, %v6037
      %6039 = vmatmul.bf16.gmra.mxu0 %v5910
      %v6040 = vpop.f32.mrf.mxu0
      %v6041 = vadd.f32 0.0, %v6040
      %v6042 = vpop.f32.mrf.mxu0
      %v6043 = vadd.f32 0.0, %v6042
      %6044 = vmatmul.bf16.gmra.mxu0 %v5911
      %v6045 = vpop.f32.mrf.mxu0
      %v6046 = vadd.f32 0.0, %v6045
      %v6047 = vpop.f32.mrf.mxu0
      %v6048 = vadd.f32 0.0, %v6047
      %6049 = vmatmul.bf16.gmra.mxu0 %v5912
      %v6050 = vpop.f32.mrf.mxu0
      %v6051 = vadd.f32 0.0, %v6050
      %v6052 = vpop.f32.mrf.mxu0
      %v6053 = vadd.f32 0.0, %v6052
      %6054 = vmatmul.bf16.gmra.mxu0 %v5913
      %v6055 = vpop.f32.mrf.mxu0
      %v6056 = vadd.f32 0.0, %v6055
      %v6057 = vpop.f32.mrf.mxu0
      %v6058 = vadd.f32 0.0, %v6057
      %6059 = vmatmul.bf16.gmra.mxu0 %v5914
      %v6060 = vpop.f32.mrf.mxu0
      %v6061 = vadd.f32 0.0, %v6060
      %v6062 = vpop.f32.mrf.mxu0
      %v6063 = vadd.f32 0.0, %v6062
      %6064 = vmatmul.bf16.gmra.mxu0 %v5915
      %v6065 = vpop.f32.mrf.mxu0
      %v6066 = vadd.f32 0.0, %v6065
      %v6067 = vpop.f32.mrf.mxu0
      %v6068 = vadd.f32 0.0, %v6067
      %6069 = vdwg.mxu0
      %v6070 = vadd.f32 %v5868, %v5991
      %v6071 = vadd.f32 %v5869, %v5993
      %v6072 = vadd.f32 %v5870, %v5996
      %v6073 = vadd.f32 %v5871, %v5998
      %v6074 = vadd.f32 %v5872, %v6001
      %v6075 = vadd.f32 %v5873, %v6003
      %v6076 = vadd.f32 %v5874, %v6006
      %v6077 = vadd.f32 %v5875, %v6008
      %v6078 = vadd.f32 %v5876, %v6011
      %v6079 = vadd.f32 %v5877, %v6013
      %v6080 = vadd.f32 %v5878, %v6016
      %v6081 = vadd.f32 %v5879, %v6018
      %v6082 = vadd.f32 %v5880, %v6021
      %v6083 = vadd.f32 %v5881, %v6023
      %v6084 = vadd.f32 %v5882, %v6026
      %v6085 = vadd.f32 %v5883, %v6028
      %v6086 = vadd.f32 %v5884, %v6031
      %v6087 = vadd.f32 %v5885, %v6033
      %v6088 = vadd.f32 %v5886, %v6036
      %v6089 = vadd.f32 %v5887, %v6038
      %v6090 = vadd.f32 %v5888, %v6041
      %v6091 = vadd.f32 %v5889, %v6043
      %v6092 = vadd.f32 %v5890, %v6046
      %v6093 = vadd.f32 %v5891, %v6048
      %v6094 = vadd.f32 %v5892, %v6051
      %v6095 = vadd.f32 %v5893, %v6053
      %v6096 = vadd.f32 %v5894, %v6056
      %v6097 = vadd.f32 %v5895, %v6058
      %v6098 = vadd.f32 %v5896, %v6061
      %v6099 = vadd.f32 %v5897, %v6063
      %v6100 = vadd.f32 %v5898, %v6066
      %v6101 = vadd.f32 %v5899, %v6068
      %v6102 = vpack.c.bf16 %v5524, %v5524
      %s6103 = scalar_lea.vmem %s3, 128
      %v6104 = vld [vmem:[%s6103] sm:$0xf]
      %v6105 = vld [vmem:[%s6103 + $0x4] sm:$0xf]
      %v6106 = vld [vmem:[%s6103 + $0x8] sm:$0xf]
      %v6107 = vld [vmem:[%s6103 + $0xc] sm:$0xf]
      %v6108 = vld [vmem:[%s6103 + $0x10] sm:$0xf]
      %v6109 = vld [vmem:[%s6103 + $0x14] sm:$0xf]
      %v6110 = vld [vmem:[%s6103 + $0x18] sm:$0xf]
      %v6111 = vld [vmem:[%s6103 + $0x1c] sm:$0xf]
      %v6112 = vld [vmem:[%s6103 + $0x20] sm:$0xf]
      %v6113 = vld [vmem:[%s6103 + $0x24] sm:$0xf]
      %v6114 = vld [vmem:[%s6103 + $0x28] sm:$0xf]
      %v6115 = vld [vmem:[%s6103 + $0x2c] sm:$0xf]
      %v6116 = vld [vmem:[%s6103 + $0x30] sm:$0xf]
      %v6117 = vld [vmem:[%s6103 + $0x34] sm:$0xf]
      %v6118 = vld [vmem:[%s6103 + $0x38] sm:$0xf]
      %v6119 = vld [vmem:[%s6103 + $0x3c] sm:$0xf]
      %v6121 = vshrl.u32 %v5900, 16
      %v6123 = vshll.u32 %v5900, 16
      %v6125 = vrot.slane %v6123, 1
      %v6126 = vor.u32 %v6121, %v6125
      %v6128 = vshll.u32 %v5901, 16
      %v6130 = vrot.slane %v6128, 1
      %v6131 = vsel %vm1915, %v6126, %v6130
      %v6132 = vshrl.u32 %v5901, 16
      %v6134 = vor.u32 %v6132, %v6130
      %v6136 = vshll.u32 %v5902, 16
      %v6138 = vrot.slane %v6136, 1
      %v6139 = vsel %vm1915, %v6134, %v6138
      %v6140 = vshrl.u32 %v5902, 16
      %v6142 = vor.u32 %v6140, %v6138
      %v6144 = vshll.u32 %v5903, 16
      %v6146 = vrot.slane %v6144, 1
      %v6147 = vsel %vm1915, %v6142, %v6146
      %v6148 = vshrl.u32 %v5903, 16
      %v6150 = vor.u32 %v6148, %v6146
      %v6152 = vshll.u32 %v5904, 16
      %v6154 = vrot.slane %v6152, 1
      %v6155 = vsel %vm1915, %v6150, %v6154
      %v6156 = vshrl.u32 %v5904, 16
      %v6158 = vor.u32 %v6156, %v6154
      %v6160 = vshll.u32 %v5905, 16
      %v6162 = vrot.slane %v6160, 1
      %v6163 = vsel %vm1915, %v6158, %v6162
      %v6164 = vshrl.u32 %v5905, 16
      %v6166 = vor.u32 %v6164, %v6162
      %v6168 = vshll.u32 %v5906, 16
      %v6170 = vrot.slane %v6168, 1
      %v6171 = vsel %vm1915, %v6166, %v6170
      %v6172 = vshrl.u32 %v5906, 16
      %v6174 = vor.u32 %v6172, %v6170
      %v6176 = vshll.u32 %v5907, 16
      %v6178 = vrot.slane %v6176, 1
      %v6179 = vsel %vm1915, %v6174, %v6178
      %v6180 = vshrl.u32 %v5907, 16
      %v6182 = vor.u32 %v6180, %v6178
      %v6184 = vshll.u32 %v5908, 16
      %v6186 = vrot.slane %v6184, 1
      %v6187 = vsel %vm1915, %v6182, %v6186
      %v6188 = vshrl.u32 %v5908, 16
      %v6190 = vor.u32 %v6188, %v6186
      %v6192 = vshll.u32 %v5909, 16
      %v6194 = vrot.slane %v6192, 1
      %v6195 = vsel %vm1915, %v6190, %v6194
      %v6196 = vshrl.u32 %v5909, 16
      %v6198 = vor.u32 %v6196, %v6194
      %v6200 = vshll.u32 %v5910, 16
      %v6202 = vrot.slane %v6200, 1
      %v6203 = vsel %vm1915, %v6198, %v6202
      %v6204 = vshrl.u32 %v5910, 16
      %v6206 = vor.u32 %v6204, %v6202
      %v6208 = vshll.u32 %v5911, 16
      %v6210 = vrot.slane %v6208, 1
      %v6211 = vsel %vm1915, %v6206, %v6210
      %v6212 = vshrl.u32 %v5911, 16
      %v6214 = vor.u32 %v6212, %v6210
      %v6216 = vshll.u32 %v5912, 16
      %v6218 = vrot.slane %v6216, 1
      %v6219 = vsel %vm1915, %v6214, %v6218
      %v6220 = vshrl.u32 %v5912, 16
      %v6222 = vor.u32 %v6220, %v6218
      %v6224 = vshll.u32 %v5913, 16
      %v6226 = vrot.slane %v6224, 1
      %v6227 = vsel %vm1915, %v6222, %v6226
      %v6228 = vshrl.u32 %v5913, 16
      %v6230 = vor.u32 %v6228, %v6226
      %v6232 = vshll.u32 %v5914, 16
      %v6234 = vrot.slane %v6232, 1
      %v6235 = vsel %vm1915, %v6230, %v6234
      %v6236 = vshrl.u32 %v5914, 16
      %v6238 = vor.u32 %v6236, %v6234
      %v6240 = vshll.u32 %v5915, 16
      %v6242 = vrot.slane %v6240, 1
      %v6243 = vsel %vm1915, %v6238, %v6242
      %v6244 = vshrl.u32 %v5915, 16
      %v6246 = vor.u32 %v6244, %v6242
      %v6248 = vshll.u32 %v6102, 16
      %v6250 = vrot.slane %v6248, 1
      %v6251 = vsel %vm1915, %v6246, %v6250
      %v6284 = vunpack.c.l.b16 %v6104
      %v6285 = vunpack.c.l.b16 %v6105
      %v6286 = vunpack.c.l.b16 %v6106
      %v6287 = vunpack.c.l.b16 %v6107
      %v6288 = vunpack.c.l.b16 %v6108
      %v6289 = vunpack.c.l.b16 %v6109
      %v6290 = vunpack.c.l.b16 %v6110
      %v6291 = vunpack.c.l.b16 %v6111
      %v6292 = vunpack.c.l.b16 %v6112
      %v6293 = vunpack.c.l.b16 %v6113
      %v6294 = vunpack.c.l.b16 %v6114
      %v6295 = vunpack.c.l.b16 %v6115
      %v6296 = vunpack.c.l.b16 %v6116
      %v6297 = vunpack.c.l.b16 %v6117
      %v6298 = vunpack.c.l.b16 %v6118
      %v6299 = vunpack.c.l.b16 %v6119
      %v6300 = vpack.c.b16 %v6285, %v6284
      %v6301 = vpack.c.b16 %v6287, %v6286
      %v6302 = vpack.c.b16 %v6289, %v6288
      %v6303 = vpack.c.b16 %v6291, %v6290
      %v6304 = vpack.c.b16 %v6293, %v6292
      %v6305 = vpack.c.b16 %v6295, %v6294
      %v6306 = vpack.c.b16 %v6297, %v6296
      %v6307 = vpack.c.b16 %v6299, %v6298
      %6316 = vmatpush.bf16.msra.mxu0 %v6307
      %6317 = vmatpush.bf16.msra.mxu0 %v6306
      %6318 = vmatpush.bf16.msra.mxu0 %v6305
      %6319 = vmatpush.bf16.msra.mxu0 %v6304
      %6320 = vmatpush.bf16.msra.mxu0 %v6303
      %6321 = vmatpush.bf16.msra.mxu0 %v6302
      %6322 = vmatpush.bf16.msra.mxu0 %v6301
      %6323 = vmatpush.bf16.msra.mxu0 %v6300
      %6324 = vmatmul.bf16.gmra.mxu0 %v6131
      %v6325 = vpop.f32.mrf.mxu0
      %v6326 = vadd.f32 0.0, %v6325
      %v6327 = vpop.f32.mrf.mxu0
      %v6328 = vadd.f32 0.0, %v6327
      %6329 = vmatmul.bf16.gmra.mxu0 %v6139
      %v6330 = vpop.f32.mrf.mxu0
      %v6331 = vadd.f32 0.0, %v6330
      %v6332 = vpop.f32.mrf.mxu0
      %v6333 = vadd.f32 0.0, %v6332
      %6334 = vmatmul.bf16.gmra.mxu0 %v6147
      %v6335 = vpop.f32.mrf.mxu0
      %v6336 = vadd.f32 0.0, %v6335
      %v6337 = vpop.f32.mrf.mxu0
      %v6338 = vadd.f32 0.0, %v6337
      %6339 = vmatmul.bf16.gmra.mxu0 %v6155
      %v6340 = vpop.f32.mrf.mxu0
      %v6341 = vadd.f32 0.0, %v6340
      %v6342 = vpop.f32.mrf.mxu0
      %v6343 = vadd.f32 0.0, %v6342
      %6344 = vmatmul.bf16.gmra.mxu0 %v6163
      %v6345 = vpop.f32.mrf.mxu0
      %v6346 = vadd.f32 0.0, %v6345
      %v6347 = vpop.f32.mrf.mxu0
      %v6348 = vadd.f32 0.0, %v6347
      %6349 = vmatmul.bf16.gmra.mxu0 %v6171
      %v6350 = vpop.f32.mrf.mxu0
      %v6351 = vadd.f32 0.0, %v6350
      %v6352 = vpop.f32.mrf.mxu0
      %v6353 = vadd.f32 0.0, %v6352
      %6354 = vmatmul.bf16.gmra.mxu0 %v6179
      %v6355 = vpop.f32.mrf.mxu0
      %v6356 = vadd.f32 0.0, %v6355
      %v6357 = vpop.f32.mrf.mxu0
      %v6358 = vadd.f32 0.0, %v6357
      %6359 = vmatmul.bf16.gmra.mxu0 %v6187
      %v6360 = vpop.f32.mrf.mxu0
      %v6361 = vadd.f32 0.0, %v6360
      %v6362 = vpop.f32.mrf.mxu0
      %v6363 = vadd.f32 0.0, %v6362
      %6364 = vmatmul.bf16.gmra.mxu0 %v6195
      %v6365 = vpop.f32.mrf.mxu0
      %v6366 = vadd.f32 0.0, %v6365
      %v6367 = vpop.f32.mrf.mxu0
      %v6368 = vadd.f32 0.0, %v6367
      %6369 = vmatmul.bf16.gmra.mxu0 %v6203
      %v6370 = vpop.f32.mrf.mxu0
      %v6371 = vadd.f32 0.0, %v6370
      %v6372 = vpop.f32.mrf.mxu0
      %v6373 = vadd.f32 0.0, %v6372
      %6374 = vmatmul.bf16.gmra.mxu0 %v6211
      %v6375 = vpop.f32.mrf.mxu0
      %v6376 = vadd.f32 0.0, %v6375
      %v6377 = vpop.f32.mrf.mxu0
      %v6378 = vadd.f32 0.0, %v6377
      %6379 = vmatmul.bf16.gmra.mxu0 %v6219
      %v6380 = vpop.f32.mrf.mxu0
      %v6381 = vadd.f32 0.0, %v6380
      %v6382 = vpop.f32.mrf.mxu0
      %v6383 = vadd.f32 0.0, %v6382
      %6384 = vmatmul.bf16.gmra.mxu0 %v6227
      %v6385 = vpop.f32.mrf.mxu0
      %v6386 = vadd.f32 0.0, %v6385
      %v6387 = vpop.f32.mrf.mxu0
      %v6388 = vadd.f32 0.0, %v6387
      %6389 = vmatmul.bf16.gmra.mxu0 %v6235
      %v6390 = vpop.f32.mrf.mxu0
      %v6391 = vadd.f32 0.0, %v6390
      %v6392 = vpop.f32.mrf.mxu0
      %v6393 = vadd.f32 0.0, %v6392
      %6394 = vmatmul.bf16.gmra.mxu0 %v6243
      %v6395 = vpop.f32.mrf.mxu0
      %v6396 = vadd.f32 0.0, %v6395
      %v6397 = vpop.f32.mrf.mxu0
      %v6398 = vadd.f32 0.0, %v6397
      %6399 = vmatmul.bf16.gmra.mxu0 %v6251
      %v6400 = vpop.f32.mrf.mxu0
      %v6401 = vadd.f32 0.0, %v6400
      %v6402 = vpop.f32.mrf.mxu0
      %v6403 = vadd.f32 0.0, %v6402
      %6404 = vdwg.mxu0
      %v6405 = vadd.f32 %v6070, %v6326
      %v6406 = vadd.f32 %v6071, %v6328
      %v6407 = vadd.f32 %v6072, %v6331
      %v6408 = vadd.f32 %v6073, %v6333
      %v6409 = vadd.f32 %v6074, %v6336
      %v6410 = vadd.f32 %v6075, %v6338
      %v6411 = vadd.f32 %v6076, %v6341
      %v6412 = vadd.f32 %v6077, %v6343
      %v6413 = vadd.f32 %v6078, %v6346
      %v6414 = vadd.f32 %v6079, %v6348
      %v6415 = vadd.f32 %v6080, %v6351
      %v6416 = vadd.f32 %v6081, %v6353
      %v6417 = vadd.f32 %v6082, %v6356
      %v6418 = vadd.f32 %v6083, %v6358
      %v6419 = vadd.f32 %v6084, %v6361
      %v6420 = vadd.f32 %v6085, %v6363
      %v6421 = vadd.f32 %v6086, %v6366
      %v6422 = vadd.f32 %v6087, %v6368
      %v6423 = vadd.f32 %v6088, %v6371
      %v6424 = vadd.f32 %v6089, %v6373
      %v6425 = vadd.f32 %v6090, %v6376
      %v6426 = vadd.f32 %v6091, %v6378
      %v6427 = vadd.f32 %v6092, %v6381
      %v6428 = vadd.f32 %v6093, %v6383
      %v6429 = vadd.f32 %v6094, %v6386
      %v6430 = vadd.f32 %v6095, %v6388
      %v6431 = vadd.f32 %v6096, %v6391
      %v6432 = vadd.f32 %v6097, %v6393
      %v6433 = vadd.f32 %v6098, %v6396
      %v6434 = vadd.f32 %v6099, %v6398
      %v6435 = vadd.f32 %v6100, %v6401
      %v6436 = vadd.f32 %v6101, %v6403
      %v6437 = vmul.f32 %v6405, %v5361
      %v6438 = vmul.f32 %v6406, %v5362
      %v6439 = vmul.f32 %v6407, %v5363
      %v6440 = vmul.f32 %v6408, %v5364
      %v6441 = vmul.f32 %v6409, %v5365
      %v6442 = vmul.f32 %v6410, %v5366
      %v6443 = vmul.f32 %v6411, %v5367
      %v6444 = vmul.f32 %v6412, %v5368
      %v6445 = vmul.f32 %v6413, %v5369
      %v6446 = vmul.f32 %v6414, %v5370
      %v6447 = vmul.f32 %v6415, %v5371
      %v6448 = vmul.f32 %v6416, %v5372
      %v6449 = vmul.f32 %v6417, %v5373
      %v6450 = vmul.f32 %v6418, %v5374
      %v6451 = vmul.f32 %v6419, %v5375
      %v6452 = vmul.f32 %v6420, %v5376
      %v6453 = vmul.f32 %v6421, %v5377
      %v6454 = vmul.f32 %v6422, %v5378
      %v6455 = vmul.f32 %v6423, %v5379
      %v6456 = vmul.f32 %v6424, %v5380
      %v6457 = vmul.f32 %v6425, %v5381
      %v6458 = vmul.f32 %v6426, %v5382
      %v6459 = vmul.f32 %v6427, %v5383
      %v6460 = vmul.f32 %v6428, %v5384
      %v6461 = vmul.f32 %v6429, %v5385
      %v6462 = vmul.f32 %v6430, %v5386
      %v6463 = vmul.f32 %v6431, %v5387
      %v6464 = vmul.f32 %v6432, %v5388
      %v6465 = vmul.f32 %v6433, %v5389
      %v6466 = vmul.f32 %v6434, %v5390
      %v6467 = vmul.f32 %v6435, %v5391
      %v6468 = vmul.f32 %v6436, %v5392
      %6469 = vst [vmem:[#allocation2 + $0x8] sm:$0xff] %v6437
      %6470 = vst [vmem:[#allocation2 + $0x10] sm:$0xff] %v6438
      %6471 = vst [vmem:[#allocation2 + $0x18] sm:$0xff] %v6439
      %6472 = vst [vmem:[#allocation2 + $0x20] sm:$0xff] %v6440
      %6473 = vst [vmem:[#allocation2 + $0x28] sm:$0xff] %v6441
      %6474 = vst [vmem:[#allocation2 + $0x30] sm:$0xff] %v6442
      %6475 = vst [vmem:[#allocation2 + $0x38] sm:$0xff] %v6443
      %6476 = vst [vmem:[#allocation2 + $0x40] sm:$0xff] %v6444
      %6477 = vst [vmem:[#allocation2 + $0x48] sm:$0xff] %v6445
      %6478 = vst [vmem:[#allocation2 + $0x50] sm:$0xff] %v6446
      %6479 = vst [vmem:[#allocation2 + $0x58] sm:$0xff] %v6447
      %6480 = vst [vmem:[#allocation2 + $0x60] sm:$0xff] %v6448
      %6481 = vst [vmem:[#allocation2 + $0x68] sm:$0xff] %v6449
      %6482 = vst [vmem:[#allocation2 + $0x70] sm:$0xff] %v6450
      %6483 = vst [vmem:[#allocation2 + $0x78] sm:$0xff] %v6451
      %6484 = vst [vmem:[#allocation2 + $0x80] sm:$0xff] %v6452
      %6485 = vst [vmem:[#allocation2 + $0x88] sm:$0xff] %v6453
      %6486 = vst [vmem:[#allocation2 + $0x90] sm:$0xff] %v6454
      %6487 = vst [vmem:[#allocation2 + $0x98] sm:$0xff] %v6455
      %6488 = vst [vmem:[#allocation2 + $0xa0] sm:$0xff] %v6456
      %6489 = vst [vmem:[#allocation2 + $0xa8] sm:$0xff] %v6457
      %6490 = vst [vmem:[#allocation2 + $0xb0] sm:$0xff] %v6458
      %6491 = vst [vmem:[#allocation2 + $0xb8] sm:$0xff] %v6459
      %6492 = vst [vmem:[#allocation2 + $0xc0] sm:$0xff] %v6460
      %6493 = vst [vmem:[#allocation2 + $0xc8] sm:$0xff] %v6461
      %6494 = vst [vmem:[#allocation2 + $0xd0] sm:$0xff] %v6462
      %6495 = vst [vmem:[#allocation2 + $0xd8] sm:$0xff] %v6463
      %6496 = vst [vmem:[#allocation2 + $0xe0] sm:$0xff] %v6464
      %6497 = vst [vmem:[#allocation2 + $0xe8] sm:$0xff] %v6465
      %6498 = vst [vmem:[#allocation2 + $0xf0] sm:$0xff] %v6466
      %6499 = vst [vmem:[#allocation2 + $0xf8] sm:$0xff] %v6467
      %6500 = vst [vmem:[#allocation2 + $0x100] sm:$0xff] %v6468
      %v6501 = vld [vmem:[#allocation2] sm:$0xff]
      %v6502 = vld [vmem:[#allocation2 + $0x8] sm:$0xff]
      %v6503 = vld [vmem:[#allocation2 + $0x10] sm:$0xff]
      %v6504 = vld [vmem:[#allocation2 + $0x18] sm:$0xff]
      %v6505 = vld [vmem:[#allocation2 + $0x20] sm:$0xff]
      %v6506 = vld [vmem:[#allocation2 + $0x28] sm:$0xff]
      %v6507 = vld [vmem:[#allocation2 + $0x30] sm:$0xff]
      %v6508 = vld [vmem:[#allocation2 + $0x38] sm:$0xff]
      %v6509 = vld [vmem:[#allocation2 + $0x40] sm:$0xff]
      %v6510 = vld [vmem:[#allocation2 + $0x48] sm:$0xff]
      %v6511 = vld [vmem:[#allocation2 + $0x50] sm:$0xff]
      %v6512 = vld [vmem:[#allocation2 + $0x58] sm:$0xff]
      %v6513 = vld [vmem:[#allocation2 + $0x60] sm:$0xff]
      %v6514 = vld [vmem:[#allocation2 + $0x68] sm:$0xff]
      %v6515 = vld [vmem:[#allocation2 + $0x70] sm:$0xff]
      %v6516 = vld [vmem:[#allocation2 + $0x78] sm:$0xff]
      %v6517 = vld [vmem:[#allocation2 + $0x80] sm:$0xff]
      %v6518 = vld [vmem:[#allocation2 + $0x88] sm:$0xff]
      %v6519 = vld [vmem:[#allocation2 + $0x90] sm:$0xff]
      %v6520 = vld [vmem:[#allocation2 + $0x98] sm:$0xff]
      %v6521 = vld [vmem:[#allocation2 + $0xa0] sm:$0xff]
      %v6522 = vld [vmem:[#allocation2 + $0xa8] sm:$0xff]
      %v6523 = vld [vmem:[#allocation2 + $0xb0] sm:$0xff]
      %v6524 = vld [vmem:[#allocation2 + $0xb8] sm:$0xff]
      %v6525 = vld [vmem:[#allocation2 + $0xc0] sm:$0xff]
      %v6526 = vld [vmem:[#allocation2 + $0xc8] sm:$0xff]
      %v6527 = vld [vmem:[#allocation2 + $0xd0] sm:$0xff]
      %v6528 = vld [vmem:[#allocation2 + $0xd8] sm:$0xff]
      %v6529 = vld [vmem:[#allocation2 + $0xe0] sm:$0xff]
      %v6530 = vld [vmem:[#allocation2 + $0xe8] sm:$0xff]
      %v6531 = vld [vmem:[#allocation2 + $0xf0] sm:$0xff]
      %v6532 = vld [vmem:[#allocation2 + $0xf8] sm:$0xff]
      %v6533 = vld [vmem:[#allocation2 + $0x100] sm:$0xff]
      %v6534 = vld [vmem:[#allocation2 + $0x108] sm:$0xff]
      %v6535 = vmax.f32 %v6501, 0.0
      %v6536 = vmax.f32 %v6502, 0.0
      %v6537 = vmax.f32 %v6503, 0.0
      %v6538 = vmax.f32 %v6504, 0.0
      %v6539 = vmax.f32 %v6505, 0.0
      %v6540 = vmax.f32 %v6506, 0.0
      %v6541 = vmax.f32 %v6507, 0.0
      %v6542 = vmax.f32 %v6508, 0.0
      %v6543 = vmax.f32 %v6509, 0.0
      %v6544 = vmax.f32 %v6510, 0.0
      %v6545 = vmax.f32 %v6511, 0.0
      %v6546 = vmax.f32 %v6512, 0.0
      %v6547 = vmax.f32 %v6513, 0.0
      %v6548 = vmax.f32 %v6514, 0.0
      %v6549 = vmax.f32 %v6515, 0.0
      %v6550 = vmax.f32 %v6516, 0.0
      %v6551 = vmax.f32 %v6517, 0.0
      %v6552 = vmax.f32 %v6518, 0.0
      %v6553 = vmax.f32 %v6519, 0.0
      %v6554 = vmax.f32 %v6520, 0.0
      %v6555 = vmax.f32 %v6521, 0.0
      %v6556 = vmax.f32 %v6522, 0.0
      %v6557 = vmax.f32 %v6523, 0.0
      %v6558 = vmax.f32 %v6524, 0.0
      %v6559 = vmax.f32 %v6525, 0.0
      %v6560 = vmax.f32 %v6526, 0.0
      %v6561 = vmax.f32 %v6527, 0.0
      %v6562 = vmax.f32 %v6528, 0.0
      %v6563 = vmax.f32 %v6529, 0.0
      %v6564 = vmax.f32 %v6530, 0.0
      %v6565 = vmax.f32 %v6531, 0.0
      %v6566 = vmax.f32 %v6532, 0.0
      %v6567 = vmax.f32 %v6533, 0.0
      %v6568 = vmax.f32 %v6534, 0.0
      %v6569 = vld [vmem:[%s4] sm:$0x1]
      %v6570 = vpack.c.bf16 %v6536, %v6535
      %v6571 = vpack.c.bf16 %v6538, %v6537
      %v6572 = vpack.c.bf16 %v6540, %v6539
      %v6573 = vpack.c.bf16 %v6542, %v6541
      %v6574 = vpack.c.bf16 %v6544, %v6543
      %v6575 = vpack.c.bf16 %v6546, %v6545
      %v6576 = vpack.c.bf16 %v6548, %v6547
      %v6577 = vpack.c.bf16 %v6550, %v6549
      %v6578 = vpack.c.bf16 %v6552, %v6551
      %v6579 = vpack.c.bf16 %v6554, %v6553
      %v6580 = vpack.c.bf16 %v6556, %v6555
      %v6581 = vpack.c.bf16 %v6558, %v6557
      %v6582 = vpack.c.bf16 %v6560, %v6559
      %v6583 = vpack.c.bf16 %v6562, %v6561
      %v6584 = vpack.c.bf16 %v6564, %v6563
      %v6585 = vpack.c.bf16 %v6566, %v6565
      %v6586 = vpack.c.bf16 %v6567, %v6567
      %v6587 = vld [vmem:[%s3] sm:$0xf]
      %v6588 = vld [vmem:[%s3 + $0x4] sm:$0xf]
      %v6589 = vld [vmem:[%s3 + $0x8] sm:$0xf]
      %v6590 = vld [vmem:[%s3 + $0xc] sm:$0xf]
      %v6591 = vld [vmem:[%s3 + $0x10] sm:$0xf]
      %v6592 = vld [vmem:[%s3 + $0x14] sm:$0xf]
      %v6593 = vld [vmem:[%s3 + $0x18] sm:$0xf]
      %v6594 = vld [vmem:[%s3 + $0x1c] sm:$0xf]
      %v6595 = vld [vmem:[%s3 + $0x20] sm:$0xf]
      %v6596 = vld [vmem:[%s3 + $0x24] sm:$0xf]
      %v6597 = vld [vmem:[%s3 + $0x28] sm:$0xf]
      %v6598 = vld [vmem:[%s3 + $0x2c] sm:$0xf]
      %v6599 = vld [vmem:[%s3 + $0x30] sm:$0xf]
      %v6600 = vld [vmem:[%s3 + $0x34] sm:$0xf]
      %v6601 = vld [vmem:[%s3 + $0x38] sm:$0xf]
      %v6602 = vld [vmem:[%s3 + $0x3c] sm:$0xf]
      %v6604 = vshrl.u32 %v6570, 16
      %v6606 = vrot.slane %v6604, 3
      %v6607 = vshll.u32 %v6570, 16
      %v6609 = vrot.slane %v6607, 4
      %v6610 = vor.u32 %v6606, %v6609
      %v6612 = vshrl.u32 %v6571, 16
      %v6614 = vrot.slane %v6612, 3
      %v6615 = vshll.u32 %v6571, 16
      %v6617 = vrot.slane %v6615, 4
      %v6618 = vor.u32 %v6614, %v6617
      %v6619 = vsel %vm5559, %v6610, %v6618
      %v6621 = vshrl.u32 %v6572, 16
      %v6623 = vrot.slane %v6621, 3
      %v6624 = vshll.u32 %v6572, 16
      %v6626 = vrot.slane %v6624, 4
      %v6627 = vor.u32 %v6623, %v6626
      %v6628 = vsel %vm5559, %v6618, %v6627
      %v6630 = vshrl.u32 %v6573, 16
      %v6632 = vrot.slane %v6630, 3
      %v6633 = vshll.u32 %v6573, 16
      %v6635 = vrot.slane %v6633, 4
      %v6636 = vor.u32 %v6632, %v6635
      %v6637 = vsel %vm5559, %v6627, %v6636
      %v6639 = vshrl.u32 %v6574, 16
      %v6641 = vrot.slane %v6639, 3
      %v6642 = vshll.u32 %v6574, 16
      %v6644 = vrot.slane %v6642, 4
      %v6645 = vor.u32 %v6641, %v6644
      %v6646 = vsel %vm5559, %v6636, %v6645
      %v6648 = vshrl.u32 %v6575, 16
      %v6650 = vrot.slane %v6648, 3
      %v6651 = vshll.u32 %v6575, 16
      %v6653 = vrot.slane %v6651, 4
      %v6654 = vor.u32 %v6650, %v6653
      %v6655 = vsel %vm5559, %v6645, %v6654
      %v6657 = vshrl.u32 %v6576, 16
      %v6659 = vrot.slane %v6657, 3
      %v6660 = vshll.u32 %v6576, 16
      %v6662 = vrot.slane %v6660, 4
      %v6663 = vor.u32 %v6659, %v6662
      %v6664 = vsel %vm5559, %v6654, %v6663
      %v6666 = vshrl.u32 %v6577, 16
      %v6668 = vrot.slane %v6666, 3
      %v6669 = vshll.u32 %v6577, 16
      %v6671 = vrot.slane %v6669, 4
      %v6672 = vor.u32 %v6668, %v6671
      %v6673 = vsel %vm5559, %v6663, %v6672
      %v6675 = vshrl.u32 %v6578, 16
      %v6677 = vrot.slane %v6675, 3
      %v6678 = vshll.u32 %v6578, 16
      %v6680 = vrot.slane %v6678, 4
      %v6681 = vor.u32 %v6677, %v6680
      %v6682 = vsel %vm5559, %v6672, %v6681
      %v6684 = vshrl.u32 %v6579, 16
      %v6686 = vrot.slane %v6684, 3
      %v6687 = vshll.u32 %v6579, 16
      %v6689 = vrot.slane %v6687, 4
      %v6690 = vor.u32 %v6686, %v6689
      %v6691 = vsel %vm5559, %v6681, %v6690
      %v6693 = vshrl.u32 %v6580, 16
      %v6695 = vrot.slane %v6693, 3
      %v6696 = vshll.u32 %v6580, 16
      %v6698 = vrot.slane %v6696, 4
      %v6699 = vor.u32 %v6695, %v6698
      %v6700 = vsel %vm5559, %v6690, %v6699
      %v6702 = vshrl.u32 %v6581, 16
      %v6704 = vrot.slane %v6702, 3
      %v6705 = vshll.u32 %v6581, 16
      %v6707 = vrot.slane %v6705, 4
      %v6708 = vor.u32 %v6704, %v6707
      %v6709 = vsel %vm5559, %v6699, %v6708
      %v6711 = vshrl.u32 %v6582, 16
      %v6713 = vrot.slane %v6711, 3
      %v6714 = vshll.u32 %v6582, 16
      %v6716 = vrot.slane %v6714, 4
      %v6717 = vor.u32 %v6713, %v6716
      %v6718 = vsel %vm5559, %v6708, %v6717
      %v6720 = vshrl.u32 %v6583, 16
      %v6722 = vrot.slane %v6720, 3
      %v6723 = vshll.u32 %v6583, 16
      %v6725 = vrot.slane %v6723, 4
      %v6726 = vor.u32 %v6722, %v6725
      %v6727 = vsel %vm5559, %v6717, %v6726
      %v6729 = vshrl.u32 %v6584, 16
      %v6731 = vrot.slane %v6729, 3
      %v6732 = vshll.u32 %v6584, 16
      %v6734 = vrot.slane %v6732, 4
      %v6735 = vor.u32 %v6731, %v6734
      %v6736 = vsel %vm5559, %v6726, %v6735
      %v6738 = vshrl.u32 %v6585, 16
      %v6740 = vrot.slane %v6738, 3
      %v6741 = vshll.u32 %v6585, 16
      %v6743 = vrot.slane %v6741, 4
      %v6744 = vor.u32 %v6740, %v6743
      %v6745 = vsel %vm5559, %v6735, %v6744
      %v6747 = vshrl.u32 %v6586, 16
      %v6749 = vrot.slane %v6747, 3
      %v6750 = vshll.u32 %v6586, 16
      %v6752 = vrot.slane %v6750, 4
      %v6753 = vor.u32 %v6749, %v6752
      %v6754 = vsel %vm5559, %v6744, %v6753
      %v6787 = vunpack.c.l.b16 %v6587
      %v6788 = vunpack.c.l.b16 %v6588
      %v6789 = vunpack.c.l.b16 %v6589
      %v6790 = vunpack.c.l.b16 %v6590
      %v6791 = vunpack.c.l.b16 %v6591
      %v6792 = vunpack.c.l.b16 %v6592
      %v6793 = vunpack.c.l.b16 %v6593
      %v6794 = vunpack.c.l.b16 %v6594
      %v6795 = vunpack.c.l.b16 %v6595
      %v6796 = vunpack.c.l.b16 %v6596
      %v6797 = vunpack.c.l.b16 %v6597
      %v6798 = vunpack.c.l.b16 %v6598
      %v6799 = vunpack.c.l.b16 %v6599
      %v6800 = vunpack.c.l.b16 %v6600
      %v6801 = vunpack.c.l.b16 %v6601
      %v6802 = vunpack.c.l.b16 %v6602
      %v6803 = vpack.c.b16 %v6788, %v6787
      %v6804 = vpack.c.b16 %v6790, %v6789
      %v6805 = vpack.c.b16 %v6792, %v6791
      %v6806 = vpack.c.b16 %v6794, %v6793
      %v6807 = vpack.c.b16 %v6796, %v6795
      %v6808 = vpack.c.b16 %v6798, %v6797
      %v6809 = vpack.c.b16 %v6800, %v6799
      %v6810 = vpack.c.b16 %v6802, %v6801
      %6819 = vmatpush.bf16.msra.mxu0 %v6810
      %6820 = vmatpush.bf16.msra.mxu0 %v6809
      %6821 = vmatpush.bf16.msra.mxu0 %v6808
      %6822 = vmatpush.bf16.msra.mxu0 %v6807
      %6823 = vmatpush.bf16.msra.mxu0 %v6806
      %6824 = vmatpush.bf16.msra.mxu0 %v6805
      %6825 = vmatpush.bf16.msra.mxu0 %v6804
      %6826 = vmatpush.bf16.msra.mxu0 %v6803
      %6827 = vmatmul.bf16.gmra.mxu0 %v6619
      %v6828 = vpop.f32.mrf.mxu0
      %v6829 = vadd.f32 0.0, %v6828
      %v6830 = vpop.f32.mrf.mxu0
      %v6831 = vadd.f32 0.0, %v6830
      %6832 = vmatmul.bf16.gmra.mxu0 %v6628
      %v6833 = vpop.f32.mrf.mxu0
      %v6834 = vadd.f32 0.0, %v6833
      %v6835 = vpop.f32.mrf.mxu0
      %v6836 = vadd.f32 0.0, %v6835
      %6837 = vmatmul.bf16.gmra.mxu0 %v6637
      %v6838 = vpop.f32.mrf.mxu0
      %v6839 = vadd.f32 0.0, %v6838
      %v6840 = vpop.f32.mrf.mxu0
      %v6841 = vadd.f32 0.0, %v6840
      %6842 = vmatmul.bf16.gmra.mxu0 %v6646
      %v6843 = vpop.f32.mrf.mxu0
      %v6844 = vadd.f32 0.0, %v6843
      %v6845 = vpop.f32.mrf.mxu0
      %v6846 = vadd.f32 0.0, %v6845
      %6847 = vmatmul.bf16.gmra.mxu0 %v6655
      %v6848 = vpop.f32.mrf.mxu0
      %v6849 = vadd.f32 0.0, %v6848
      %v6850 = vpop.f32.mrf.mxu0
      %v6851 = vadd.f32 0.0, %v6850
      %6852 = vmatmul.bf16.gmra.mxu0 %v6664
      %v6853 = vpop.f32.mrf.mxu0
      %v6854 = vadd.f32 0.0, %v6853
      %v6855 = vpop.f32.mrf.mxu0
      %v6856 = vadd.f32 0.0, %v6855
      %6857 = vmatmul.bf16.gmra.mxu0 %v6673
      %v6858 = vpop.f32.mrf.mxu0
      %v6859 = vadd.f32 0.0, %v6858
      %v6860 = vpop.f32.mrf.mxu0
      %v6861 = vadd.f32 0.0, %v6860
      %6862 = vmatmul.bf16.gmra.mxu0 %v6682
      %v6863 = vpop.f32.mrf.mxu0
      %v6864 = vadd.f32 0.0, %v6863
      %v6865 = vpop.f32.mrf.mxu0
      %v6866 = vadd.f32 0.0, %v6865
      %6867 = vmatmul.bf16.gmra.mxu0 %v6691
      %v6868 = vpop.f32.mrf.mxu0
      %v6869 = vadd.f32 0.0, %v6868
      %v6870 = vpop.f32.mrf.mxu0
      %v6871 = vadd.f32 0.0, %v6870
      %6872 = vmatmul.bf16.gmra.mxu0 %v6700
      %v6873 = vpop.f32.mrf.mxu0
      %v6874 = vadd.f32 0.0, %v6873
      %v6875 = vpop.f32.mrf.mxu0
      %v6876 = vadd.f32 0.0, %v6875
      %6877 = vmatmul.bf16.gmra.mxu0 %v6709
      %v6878 = vpop.f32.mrf.mxu0
      %v6879 = vadd.f32 0.0, %v6878
      %v6880 = vpop.f32.mrf.mxu0
      %v6881 = vadd.f32 0.0, %v6880
      %6882 = vmatmul.bf16.gmra.mxu0 %v6718
      %v6883 = vpop.f32.mrf.mxu0
      %v6884 = vadd.f32 0.0, %v6883
      %v6885 = vpop.f32.mrf.mxu0
      %v6886 = vadd.f32 0.0, %v6885
      %6887 = vmatmul.bf16.gmra.mxu0 %v6727
      %v6888 = vpop.f32.mrf.mxu0
      %v6889 = vadd.f32 0.0, %v6888
      %v6890 = vpop.f32.mrf.mxu0
      %v6891 = vadd.f32 0.0, %v6890
      %6892 = vmatmul.bf16.gmra.mxu0 %v6736
      %v6893 = vpop.f32.mrf.mxu0
      %v6894 = vadd.f32 0.0, %v6893
      %v6895 = vpop.f32.mrf.mxu0
      %v6896 = vadd.f32 0.0, %v6895
      %6897 = vmatmul.bf16.gmra.mxu0 %v6745
      %v6898 = vpop.f32.mrf.mxu0
      %v6899 = vadd.f32 0.0, %v6898
      %v6900 = vpop.f32.mrf.mxu0
      %v6901 = vadd.f32 0.0, %v6900
      %6902 = vmatmul.bf16.gmra.mxu0 %v6754
      %v6903 = vpop.f32.mrf.mxu0
      %v6904 = vadd.f32 0.0, %v6903
      %v6905 = vpop.f32.mrf.mxu0
      %v6906 = vadd.f32 0.0, %v6905
      %6907 = vdwg.mxu0
      %v6909 = vperm.slane %v6569, 0
      %v6911 = vadd.f32 %v6909, %v6829
      %v6912 = vadd.f32 %v6909, %v6831
      %v6913 = vadd.f32 %v6909, %v6834
      %v6914 = vadd.f32 %v6909, %v6836
      %v6915 = vadd.f32 %v6909, %v6839
      %v6916 = vadd.f32 %v6909, %v6841
      %v6917 = vadd.f32 %v6909, %v6844
      %v6918 = vadd.f32 %v6909, %v6846
      %v6919 = vadd.f32 %v6909, %v6849
      %v6920 = vadd.f32 %v6909, %v6851
      %v6921 = vadd.f32 %v6909, %v6854
      %v6922 = vadd.f32 %v6909, %v6856
      %v6923 = vadd.f32 %v6909, %v6859
      %v6924 = vadd.f32 %v6909, %v6861
      %v6925 = vadd.f32 %v6909, %v6864
      %v6926 = vadd.f32 %v6909, %v6866
      %v6927 = vadd.f32 %v6909, %v6869
      %v6928 = vadd.f32 %v6909, %v6871
      %v6929 = vadd.f32 %v6909, %v6874
      %v6930 = vadd.f32 %v6909, %v6876
      %v6931 = vadd.f32 %v6909, %v6879
      %v6932 = vadd.f32 %v6909, %v6881
      %v6933 = vadd.f32 %v6909, %v6884
      %v6934 = vadd.f32 %v6909, %v6886
      %v6935 = vadd.f32 %v6909, %v6889
      %v6936 = vadd.f32 %v6909, %v6891
      %v6937 = vadd.f32 %v6909, %v6894
      %v6938 = vadd.f32 %v6909, %v6896
      %v6939 = vadd.f32 %v6909, %v6899
      %v6940 = vadd.f32 %v6909, %v6901
      %v6941 = vadd.f32 %v6909, %v6904
      %v6942 = vadd.f32 %v6909, %v6906
      %v6943 = vpack.c.bf16 %v6537, %v6536
      %v6944 = vpack.c.bf16 %v6539, %v6538
      %v6945 = vpack.c.bf16 %v6541, %v6540
      %v6946 = vpack.c.bf16 %v6543, %v6542
      %v6947 = vpack.c.bf16 %v6545, %v6544
      %v6948 = vpack.c.bf16 %v6547, %v6546
      %v6949 = vpack.c.bf16 %v6549, %v6548
      %v6950 = vpack.c.bf16 %v6551, %v6550
      %v6951 = vpack.c.bf16 %v6553, %v6552
      %v6952 = vpack.c.bf16 %v6555, %v6554
      %v6953 = vpack.c.bf16 %v6557, %v6556
      %v6954 = vpack.c.bf16 %v6559, %v6558
      %v6955 = vpack.c.bf16 %v6561, %v6560
      %v6956 = vpack.c.bf16 %v6563, %v6562
      %v6957 = vpack.c.bf16 %v6565, %v6564
      %v6958 = vpack.c.bf16 %v6567, %v6566
      %v6959 = vld [vmem:[%s5916] sm:$0xf]
      %v6960 = vld [vmem:[%s5916 + $0x4] sm:$0xf]
      %v6961 = vld [vmem:[%s5916 + $0x8] sm:$0xf]
      %v6962 = vld [vmem:[%s5916 + $0xc] sm:$0xf]
      %v6963 = vld [vmem:[%s5916 + $0x10] sm:$0xf]
      %v6964 = vld [vmem:[%s5916 + $0x14] sm:$0xf]
      %v6965 = vld [vmem:[%s5916 + $0x18] sm:$0xf]
      %v6966 = vld [vmem:[%s5916 + $0x1c] sm:$0xf]
      %v6967 = vld [vmem:[%s5916 + $0x20] sm:$0xf]
      %v6968 = vld [vmem:[%s5916 + $0x24] sm:$0xf]
      %v6969 = vld [vmem:[%s5916 + $0x28] sm:$0xf]
      %v6970 = vld [vmem:[%s5916 + $0x2c] sm:$0xf]
      %v6971 = vld [vmem:[%s5916 + $0x30] sm:$0xf]
      %v6972 = vld [vmem:[%s5916 + $0x34] sm:$0xf]
      %v6973 = vld [vmem:[%s5916 + $0x38] sm:$0xf]
      %v6974 = vld [vmem:[%s5916 + $0x3c] sm:$0xf]
      %v6991 = vunpack.c.l.b16 %v6959
      %v6992 = vunpack.c.l.b16 %v6960
      %v6993 = vunpack.c.l.b16 %v6961
      %v6994 = vunpack.c.l.b16 %v6962
      %v6995 = vunpack.c.l.b16 %v6963
      %v6996 = vunpack.c.l.b16 %v6964
      %v6997 = vunpack.c.l.b16 %v6965
      %v6998 = vunpack.c.l.b16 %v6966
      %v6999 = vunpack.c.l.b16 %v6967
      %v7000 = vunpack.c.l.b16 %v6968
      %v7001 = vunpack.c.l.b16 %v6969
      %v7002 = vunpack.c.l.b16 %v6970
      %v7003 = vunpack.c.l.b16 %v6971
      %v7004 = vunpack.c.l.b16 %v6972
      %v7005 = vunpack.c.l.b16 %v6973
      %v7006 = vunpack.c.l.b16 %v6974
      %v7007 = vpack.c.b16 %v6992, %v6991
      %v7008 = vpack.c.b16 %v6994, %v6993
      %v7009 = vpack.c.b16 %v6996, %v6995
      %v7010 = vpack.c.b16 %v6998, %v6997
      %v7011 = vpack.c.b16 %v7000, %v6999
      %v7012 = vpack.c.b16 %v7002, %v7001
      %v7013 = vpack.c.b16 %v7004, %v7003
      %v7014 = vpack.c.b16 %v7006, %v7005
      %7023 = vmatpush.bf16.msra.mxu0 %v7014
      %7024 = vmatpush.bf16.msra.mxu0 %v7013
      %7025 = vmatpush.bf16.msra.mxu0 %v7012
      %7026 = vmatpush.bf16.msra.mxu0 %v7011
      %7027 = vmatpush.bf16.msra.mxu0 %v7010
      %7028 = vmatpush.bf16.msra.mxu0 %v7009
      %7029 = vmatpush.bf16.msra.mxu0 %v7008
      %7030 = vmatpush.bf16.msra.mxu0 %v7007
      %7031 = vmatmul.bf16.gmra.mxu0 %v6943
      %v7032 = vpop.f32.mrf.mxu0
      %v7033 = vadd.f32 0.0, %v7032
      %v7034 = vpop.f32.mrf.mxu0
      %v7035 = vadd.f32 0.0, %v7034
      %7036 = vmatmul.bf16.gmra.mxu0 %v6944
      %v7037 = vpop.f32.mrf.mxu0
      %v7038 = vadd.f32 0.0, %v7037
      %v7039 = vpop.f32.mrf.mxu0
      %v7040 = vadd.f32 0.0, %v7039
      %7041 = vmatmul.bf16.gmra.mxu0 %v6945
      %v7042 = vpop.f32.mrf.mxu0
      %v7043 = vadd.f32 0.0, %v7042
      %v7044 = vpop.f32.mrf.mxu0
      %v7045 = vadd.f32 0.0, %v7044
      %7046 = vmatmul.bf16.gmra.mxu0 %v6946
      %v7047 = vpop.f32.mrf.mxu0
      %v7048 = vadd.f32 0.0, %v7047
      %v7049 = vpop.f32.mrf.mxu0
      %v7050 = vadd.f32 0.0, %v7049
      %7051 = vmatmul.bf16.gmra.mxu0 %v6947
      %v7052 = vpop.f32.mrf.mxu0
      %v7053 = vadd.f32 0.0, %v7052
      %v7054 = vpop.f32.mrf.mxu0
      %v7055 = vadd.f32 0.0, %v7054
      %7056 = vmatmul.bf16.gmra.mxu0 %v6948
      %v7057 = vpop.f32.mrf.mxu0
      %v7058 = vadd.f32 0.0, %v7057
      %v7059 = vpop.f32.mrf.mxu0
      %v7060 = vadd.f32 0.0, %v7059
      %7061 = vmatmul.bf16.gmra.mxu0 %v6949
      %v7062 = vpop.f32.mrf.mxu0
      %v7063 = vadd.f32 0.0, %v7062
      %v7064 = vpop.f32.mrf.mxu0
      %v7065 = vadd.f32 0.0, %v7064
      %7066 = vmatmul.bf16.gmra.mxu0 %v6950
      %v7067 = vpop.f32.mrf.mxu0
      %v7068 = vadd.f32 0.0, %v7067
      %v7069 = vpop.f32.mrf.mxu0
      %v7070 = vadd.f32 0.0, %v7069
      %7071 = vmatmul.bf16.gmra.mxu0 %v6951
      %v7072 = vpop.f32.mrf.mxu0
      %v7073 = vadd.f32 0.0, %v7072
      %v7074 = vpop.f32.mrf.mxu0
      %v7075 = vadd.f32 0.0, %v7074
      %7076 = vmatmul.bf16.gmra.mxu0 %v6952
      %v7077 = vpop.f32.mrf.mxu0
      %v7078 = vadd.f32 0.0, %v7077
      %v7079 = vpop.f32.mrf.mxu0
      %v7080 = vadd.f32 0.0, %v7079
      %7081 = vmatmul.bf16.gmra.mxu0 %v6953
      %v7082 = vpop.f32.mrf.mxu0
      %v7083 = vadd.f32 0.0, %v7082
      %v7084 = vpop.f32.mrf.mxu0
      %v7085 = vadd.f32 0.0, %v7084
      %7086 = vmatmul.bf16.gmra.mxu0 %v6954
      %v7087 = vpop.f32.mrf.mxu0
      %v7088 = vadd.f32 0.0, %v7087
      %v7089 = vpop.f32.mrf.mxu0
      %v7090 = vadd.f32 0.0, %v7089
      %7091 = vmatmul.bf16.gmra.mxu0 %v6955
      %v7092 = vpop.f32.mrf.mxu0
      %v7093 = vadd.f32 0.0, %v7092
      %v7094 = vpop.f32.mrf.mxu0
      %v7095 = vadd.f32 0.0, %v7094
      %7096 = vmatmul.bf16.gmra.mxu0 %v6956
      %v7097 = vpop.f32.mrf.mxu0
      %v7098 = vadd.f32 0.0, %v7097
      %v7099 = vpop.f32.mrf.mxu0
      %v7100 = vadd.f32 0.0, %v7099
      %7101 = vmatmul.bf16.gmra.mxu0 %v6957
      %v7102 = vpop.f32.mrf.mxu0
      %v7103 = vadd.f32 0.0, %v7102
      %v7104 = vpop.f32.mrf.mxu0
      %v7105 = vadd.f32 0.0, %v7104
      %7106 = vmatmul.bf16.gmra.mxu0 %v6958
      %v7107 = vpop.f32.mrf.mxu0
      %v7108 = vadd.f32 0.0, %v7107
      %v7109 = vpop.f32.mrf.mxu0
      %v7110 = vadd.f32 0.0, %v7109
      %7111 = vdwg.mxu0
      %v7112 = vadd.f32 %v6911, %v7033
      %v7113 = vadd.f32 %v6912, %v7035
      %v7114 = vadd.f32 %v6913, %v7038
      %v7115 = vadd.f32 %v6914, %v7040
      %v7116 = vadd.f32 %v6915, %v7043
      %v7117 = vadd.f32 %v6916, %v7045
      %v7118 = vadd.f32 %v6917, %v7048
      %v7119 = vadd.f32 %v6918, %v7050
      %v7120 = vadd.f32 %v6919, %v7053
      %v7121 = vadd.f32 %v6920, %v7055
      %v7122 = vadd.f32 %v6921, %v7058
      %v7123 = vadd.f32 %v6922, %v7060
      %v7124 = vadd.f32 %v6923, %v7063
      %v7125 = vadd.f32 %v6924, %v7065
      %v7126 = vadd.f32 %v6925, %v7068
      %v7127 = vadd.f32 %v6926, %v7070
      %v7128 = vadd.f32 %v6927, %v7073
      %v7129 = vadd.f32 %v6928, %v7075
      %v7130 = vadd.f32 %v6929, %v7078
      %v7131 = vadd.f32 %v6930, %v7080
      %v7132 = vadd.f32 %v6931, %v7083
      %v7133 = vadd.f32 %v6932, %v7085
      %v7134 = vadd.f32 %v6933, %v7088
      %v7135 = vadd.f32 %v6934, %v7090
      %v7136 = vadd.f32 %v6935, %v7093
      %v7137 = vadd.f32 %v6936, %v7095
      %v7138 = vadd.f32 %v6937, %v7098
      %v7139 = vadd.f32 %v6938, %v7100
      %v7140 = vadd.f32 %v6939, %v7103
      %v7141 = vadd.f32 %v6940, %v7105
      %v7142 = vadd.f32 %v6941, %v7108
      %v7143 = vadd.f32 %v6942, %v7110
      %v7144 = vpack.c.bf16 %v6568, %v6568
      %v7145 = vld [vmem:[%s6103] sm:$0xf]
      %v7146 = vld [vmem:[%s6103 + $0x4] sm:$0xf]
      %v7147 = vld [vmem:[%s6103 + $0x8] sm:$0xf]
      %v7148 = vld [vmem:[%s6103 + $0xc] sm:$0xf]
      %v7149 = vld [vmem:[%s6103 + $0x10] sm:$0xf]
      %v7150 = vld [vmem:[%s6103 + $0x14] sm:$0xf]
      %v7151 = vld [vmem:[%s6103 + $0x18] sm:$0xf]
      %v7152 = vld [vmem:[%s6103 + $0x1c] sm:$0xf]
      %v7153 = vld [vmem:[%s6103 + $0x20] sm:$0xf]
      %v7154 = vld [vmem:[%s6103 + $0x24] sm:$0xf]
      %v7155 = vld [vmem:[%s6103 + $0x28] sm:$0xf]
      %v7156 = vld [vmem:[%s6103 + $0x2c] sm:$0xf]
      %v7157 = vld [vmem:[%s6103 + $0x30] sm:$0xf]
      %v7158 = vld [vmem:[%s6103 + $0x34] sm:$0xf]
      %v7159 = vld [vmem:[%s6103 + $0x38] sm:$0xf]
      %v7160 = vld [vmem:[%s6103 + $0x3c] sm:$0xf]
      %v7162 = vshrl.u32 %v6943, 16
      %v7164 = vshll.u32 %v6943, 16
      %v7166 = vrot.slane %v7164, 1
      %v7167 = vor.u32 %v7162, %v7166
      %v7169 = vshll.u32 %v6944, 16
      %v7171 = vrot.slane %v7169, 1
      %v7172 = vsel %vm1915, %v7167, %v7171
      %v7173 = vshrl.u32 %v6944, 16
      %v7175 = vor.u32 %v7173, %v7171
      %v7177 = vshll.u32 %v6945, 16
      %v7179 = vrot.slane %v7177, 1
      %v7180 = vsel %vm1915, %v7175, %v7179
      %v7181 = vshrl.u32 %v6945, 16
      %v7183 = vor.u32 %v7181, %v7179
      %v7185 = vshll.u32 %v6946, 16
      %v7187 = vrot.slane %v7185, 1
      %v7188 = vsel %vm1915, %v7183, %v7187
      %v7189 = vshrl.u32 %v6946, 16
      %v7191 = vor.u32 %v7189, %v7187
      %v7193 = vshll.u32 %v6947, 16
      %v7195 = vrot.slane %v7193, 1
      %v7196 = vsel %vm1915, %v7191, %v7195
      %v7197 = vshrl.u32 %v6947, 16
      %v7199 = vor.u32 %v7197, %v7195
      %v7201 = vshll.u32 %v6948, 16
      %v7203 = vrot.slane %v7201, 1
      %v7204 = vsel %vm1915, %v7199, %v7203
      %v7205 = vshrl.u32 %v6948, 16
      %v7207 = vor.u32 %v7205, %v7203
      %v7209 = vshll.u32 %v6949, 16
      %v7211 = vrot.slane %v7209, 1
      %v7212 = vsel %vm1915, %v7207, %v7211
      %v7213 = vshrl.u32 %v6949, 16
      %v7215 = vor.u32 %v7213, %v7211
      %v7217 = vshll.u32 %v6950, 16
      %v7219 = vrot.slane %v7217, 1
      %v7220 = vsel %vm1915, %v7215, %v7219
      %v7221 = vshrl.u32 %v6950, 16
      %v7223 = vor.u32 %v7221, %v7219
      %v7225 = vshll.u32 %v6951, 16
      %v7227 = vrot.slane %v7225, 1
      %v7228 = vsel %vm1915, %v7223, %v7227
      %v7229 = vshrl.u32 %v6951, 16
      %v7231 = vor.u32 %v7229, %v7227
      %v7233 = vshll.u32 %v6952, 16
      %v7235 = vrot.slane %v7233, 1
      %v7236 = vsel %vm1915, %v7231, %v7235
      %v7237 = vshrl.u32 %v6952, 16
      %v7239 = vor.u32 %v7237, %v7235
      %v7241 = vshll.u32 %v6953, 16
      %v7243 = vrot.slane %v7241, 1
      %v7244 = vsel %vm1915, %v7239, %v7243
      %v7245 = vshrl.u32 %v6953, 16
      %v7247 = vor.u32 %v7245, %v7243
      %v7249 = vshll.u32 %v6954, 16
      %v7251 = vrot.slane %v7249, 1
      %v7252 = vsel %vm1915, %v7247, %v7251
      %v7253 = vshrl.u32 %v6954, 16
      %v7255 = vor.u32 %v7253, %v7251
      %v7257 = vshll.u32 %v6955, 16
      %v7259 = vrot.slane %v7257, 1
      %v7260 = vsel %vm1915, %v7255, %v7259
      %v7261 = vshrl.u32 %v6955, 16
      %v7263 = vor.u32 %v7261, %v7259
      %v7265 = vshll.u32 %v6956, 16
      %v7267 = vrot.slane %v7265, 1
      %v7268 = vsel %vm1915, %v7263, %v7267
      %v7269 = vshrl.u32 %v6956, 16
      %v7271 = vor.u32 %v7269, %v7267
      %v7273 = vshll.u32 %v6957, 16
      %v7275 = vrot.slane %v7273, 1
      %v7276 = vsel %vm1915, %v7271, %v7275
      %v7277 = vshrl.u32 %v6957, 16
      %v7279 = vor.u32 %v7277, %v7275
      %v7281 = vshll.u32 %v6958, 16
      %v7283 = vrot.slane %v7281, 1
      %v7284 = vsel %vm1915, %v7279, %v7283
      %v7285 = vshrl.u32 %v6958, 16
      %v7287 = vor.u32 %v7285, %v7283
      %v7289 = vshll.u32 %v7144, 16
      %v7291 = vrot.slane %v7289, 1
      %v7292 = vsel %vm1915, %v7287, %v7291
      %v7325 = vunpack.c.l.b16 %v7145
      %v7326 = vunpack.c.l.b16 %v7146
      %v7327 = vunpack.c.l.b16 %v7147
      %v7328 = vunpack.c.l.b16 %v7148
      %v7329 = vunpack.c.l.b16 %v7149
      %v7330 = vunpack.c.l.b16 %v7150
      %v7331 = vunpack.c.l.b16 %v7151
      %v7332 = vunpack.c.l.b16 %v7152
      %v7333 = vunpack.c.l.b16 %v7153
      %v7334 = vunpack.c.l.b16 %v7154
      %v7335 = vunpack.c.l.b16 %v7155
      %v7336 = vunpack.c.l.b16 %v7156
      %v7337 = vunpack.c.l.b16 %v7157
      %v7338 = vunpack.c.l.b16 %v7158
      %v7339 = vunpack.c.l.b16 %v7159
      %v7340 = vunpack.c.l.b16 %v7160
      %v7341 = vpack.c.b16 %v7326, %v7325
      %v7342 = vpack.c.b16 %v7328, %v7327
      %v7343 = vpack.c.b16 %v7330, %v7329
      %v7344 = vpack.c.b16 %v7332, %v7331
      %v7345 = vpack.c.b16 %v7334, %v7333
      %v7346 = vpack.c.b16 %v7336, %v7335
      %v7347 = vpack.c.b16 %v7338, %v7337
      %v7348 = vpack.c.b16 %v7340, %v7339
      %7357 = vmatpush.bf16.msra.mxu0 %v7348
      %7358 = vmatpush.bf16.msra.mxu0 %v7347
      %7359 = vmatpush.bf16.msra.mxu0 %v7346
      %7360 = vmatpush.bf16.msra.mxu0 %v7345
      %7361 = vmatpush.bf16.msra.mxu0 %v7344
      %7362 = vmatpush.bf16.msra.mxu0 %v7343
      %7363 = vmatpush.bf16.msra.mxu0 %v7342
      %7364 = vmatpush.bf16.msra.mxu0 %v7341
      %7365 = vmatmul.bf16.gmra.mxu0 %v7172
      %v7366 = vpop.f32.mrf.mxu0
      %v7367 = vadd.f32 0.0, %v7366
      %v7368 = vpop.f32.mrf.mxu0
      %v7369 = vadd.f32 0.0, %v7368
      %7370 = vmatmul.bf16.gmra.mxu0 %v7180
      %v7371 = vpop.f32.mrf.mxu0
      %v7372 = vadd.f32 0.0, %v7371
      %v7373 = vpop.f32.mrf.mxu0
      %v7374 = vadd.f32 0.0, %v7373
      %7375 = vmatmul.bf16.gmra.mxu0 %v7188
      %v7376 = vpop.f32.mrf.mxu0
      %v7377 = vadd.f32 0.0, %v7376
      %v7378 = vpop.f32.mrf.mxu0
      %v7379 = vadd.f32 0.0, %v7378
      %7380 = vmatmul.bf16.gmra.mxu0 %v7196
      %v7381 = vpop.f32.mrf.mxu0
      %v7382 = vadd.f32 0.0, %v7381
      %v7383 = vpop.f32.mrf.mxu0
      %v7384 = vadd.f32 0.0, %v7383
      %7385 = vmatmul.bf16.gmra.mxu0 %v7204
      %v7386 = vpop.f32.mrf.mxu0
      %v7387 = vadd.f32 0.0, %v7386
      %v7388 = vpop.f32.mrf.mxu0
      %v7389 = vadd.f32 0.0, %v7388
      %7390 = vmatmul.bf16.gmra.mxu0 %v7212
      %v7391 = vpop.f32.mrf.mxu0
      %v7392 = vadd.f32 0.0, %v7391
      %v7393 = vpop.f32.mrf.mxu0
      %v7394 = vadd.f32 0.0, %v7393
      %7395 = vmatmul.bf16.gmra.mxu0 %v7220
      %v7396 = vpop.f32.mrf.mxu0
      %v7397 = vadd.f32 0.0, %v7396
      %v7398 = vpop.f32.mrf.mxu0
      %v7399 = vadd.f32 0.0, %v7398
      %7400 = vmatmul.bf16.gmra.mxu0 %v7228
      %v7401 = vpop.f32.mrf.mxu0
      %v7402 = vadd.f32 0.0, %v7401
      %v7403 = vpop.f32.mrf.mxu0
      %v7404 = vadd.f32 0.0, %v7403
      %7405 = vmatmul.bf16.gmra.mxu0 %v7236
      %v7406 = vpop.f32.mrf.mxu0
      %v7407 = vadd.f32 0.0, %v7406
      %v7408 = vpop.f32.mrf.mxu0
      %v7409 = vadd.f32 0.0, %v7408
      %7410 = vmatmul.bf16.gmra.mxu0 %v7244
      %v7411 = vpop.f32.mrf.mxu0
      %v7412 = vadd.f32 0.0, %v7411
      %v7413 = vpop.f32.mrf.mxu0
      %v7414 = vadd.f32 0.0, %v7413
      %7415 = vmatmul.bf16.gmra.mxu0 %v7252
      %v7416 = vpop.f32.mrf.mxu0
      %v7417 = vadd.f32 0.0, %v7416
      %v7418 = vpop.f32.mrf.mxu0
      %v7419 = vadd.f32 0.0, %v7418
      %7420 = vmatmul.bf16.gmra.mxu0 %v7260
      %v7421 = vpop.f32.mrf.mxu0
      %v7422 = vadd.f32 0.0, %v7421
      %v7423 = vpop.f32.mrf.mxu0
      %v7424 = vadd.f32 0.0, %v7423
      %7425 = vmatmul.bf16.gmra.mxu0 %v7268
      %v7426 = vpop.f32.mrf.mxu0
      %v7427 = vadd.f32 0.0, %v7426
      %v7428 = vpop.f32.mrf.mxu0
      %v7429 = vadd.f32 0.0, %v7428
      %7430 = vmatmul.bf16.gmra.mxu0 %v7276
      %v7431 = vpop.f32.mrf.mxu0
      %v7432 = vadd.f32 0.0, %v7431
      %v7433 = vpop.f32.mrf.mxu0
      %v7434 = vadd.f32 0.0, %v7433
      %7435 = vmatmul.bf16.gmra.mxu0 %v7284
      %v7436 = vpop.f32.mrf.mxu0
      %v7437 = vadd.f32 0.0, %v7436
      %v7438 = vpop.f32.mrf.mxu0
      %v7439 = vadd.f32 0.0, %v7438
      %7440 = vmatmul.bf16.gmra.mxu0 %v7292
      %v7441 = vpop.f32.mrf.mxu0
      %v7442 = vadd.f32 0.0, %v7441
      %v7443 = vpop.f32.mrf.mxu0
      %v7444 = vadd.f32 0.0, %v7443
      %7445 = vdwg.mxu0
      %v7446 = vadd.f32 %v7112, %v7367
      %v7447 = vadd.f32 %v7113, %v7369
      %v7448 = vadd.f32 %v7114, %v7372
      %v7449 = vadd.f32 %v7115, %v7374
      %v7450 = vadd.f32 %v7116, %v7377
      %v7451 = vadd.f32 %v7117, %v7379
      %v7452 = vadd.f32 %v7118, %v7382
      %v7453 = vadd.f32 %v7119, %v7384
      %v7454 = vadd.f32 %v7120, %v7387
      %v7455 = vadd.f32 %v7121, %v7389
      %v7456 = vadd.f32 %v7122, %v7392
      %v7457 = vadd.f32 %v7123, %v7394
      %v7458 = vadd.f32 %v7124, %v7397
      %v7459 = vadd.f32 %v7125, %v7399
      %v7460 = vadd.f32 %v7126, %v7402
      %v7461 = vadd.f32 %v7127, %v7404
      %v7462 = vadd.f32 %v7128, %v7407
      %v7463 = vadd.f32 %v7129, %v7409
      %v7464 = vadd.f32 %v7130, %v7412
      %v7465 = vadd.f32 %v7131, %v7414
      %v7466 = vadd.f32 %v7132, %v7417
      %v7467 = vadd.f32 %v7133, %v7419
      %v7468 = vadd.f32 %v7134, %v7422
      %v7469 = vadd.f32 %v7135, %v7424
      %v7470 = vadd.f32 %v7136, %v7427
      %v7471 = vadd.f32 %v7137, %v7429
      %v7472 = vadd.f32 %v7138, %v7432
      %v7473 = vadd.f32 %v7139, %v7434
      %v7474 = vadd.f32 %v7140, %v7437
      %v7475 = vadd.f32 %v7141, %v7439
      %v7476 = vadd.f32 %v7142, %v7442
      %v7477 = vadd.f32 %v7143, %v7444
      %v7478 = vmul.f32 %v7446, %v5361
      %v7479 = vmul.f32 %v7447, %v5362
      %v7480 = vmul.f32 %v7448, %v5363
      %v7481 = vmul.f32 %v7449, %v5364
      %v7482 = vmul.f32 %v7450, %v5365
      %v7483 = vmul.f32 %v7451, %v5366
      %v7484 = vmul.f32 %v7452, %v5367
      %v7485 = vmul.f32 %v7453, %v5368
      %v7486 = vmul.f32 %v7454, %v5369
      %v7487 = vmul.f32 %v7455, %v5370
      %v7488 = vmul.f32 %v7456, %v5371
      %v7489 = vmul.f32 %v7457, %v5372
      %v7490 = vmul.f32 %v7458, %v5373
      %v7491 = vmul.f32 %v7459, %v5374
      %v7492 = vmul.f32 %v7460, %v5375
      %v7493 = vmul.f32 %v7461, %v5376
      %v7494 = vmul.f32 %v7462, %v5377
      %v7495 = vmul.f32 %v7463, %v5378
      %v7496 = vmul.f32 %v7464, %v5379
      %v7497 = vmul.f32 %v7465, %v5380
      %v7498 = vmul.f32 %v7466, %v5381
      %v7499 = vmul.f32 %v7467, %v5382
      %v7500 = vmul.f32 %v7468, %v5383
      %v7501 = vmul.f32 %v7469, %v5384
      %v7502 = vmul.f32 %v7470, %v5385
      %v7503 = vmul.f32 %v7471, %v5386
      %v7504 = vmul.f32 %v7472, %v5387
      %v7505 = vmul.f32 %v7473, %v5388
      %v7506 = vmul.f32 %v7474, %v5389
      %v7507 = vmul.f32 %v7475, %v5390
      %v7508 = vmul.f32 %v7476, %v5391
      %v7509 = vmul.f32 %v7477, %v5392
      %7510 = vst [vmem:[#allocation2 + $0x8] sm:$0xff] %v7478
      %7511 = vst [vmem:[#allocation2 + $0x10] sm:$0xff] %v7479
      %7512 = vst [vmem:[#allocation2 + $0x18] sm:$0xff] %v7480
      %7513 = vst [vmem:[#allocation2 + $0x20] sm:$0xff] %v7481
      %7514 = vst [vmem:[#allocation2 + $0x28] sm:$0xff] %v7482
      %7515 = vst [vmem:[#allocation2 + $0x30] sm:$0xff] %v7483
      %7516 = vst [vmem:[#allocation2 + $0x38] sm:$0xff] %v7484
      %7517 = vst [vmem:[#allocation2 + $0x40] sm:$0xff] %v7485
      %7518 = vst [vmem:[#allocation2 + $0x48] sm:$0xff] %v7486
      %7519 = vst [vmem:[#allocation2 + $0x50] sm:$0xff] %v7487
      %7520 = vst [vmem:[#allocation2 + $0x58] sm:$0xff] %v7488
      %7521 = vst [vmem:[#allocation2 + $0x60] sm:$0xff] %v7489
      %7522 = vst [vmem:[#allocation2 + $0x68] sm:$0xff] %v7490
      %7523 = vst [vmem:[#allocation2 + $0x70] sm:$0xff] %v7491
      %7524 = vst [vmem:[#allocation2 + $0x78] sm:$0xff] %v7492
      %7525 = vst [vmem:[#allocation2 + $0x80] sm:$0xff] %v7493
      %7526 = vst [vmem:[#allocation2 + $0x88] sm:$0xff] %v7494
      %7527 = vst [vmem:[#allocation2 + $0x90] sm:$0xff] %v7495
      %7528 = vst [vmem:[#allocation2 + $0x98] sm:$0xff] %v7496
      %7529 = vst [vmem:[#allocation2 + $0xa0] sm:$0xff] %v7497
      %7530 = vst [vmem:[#allocation2 + $0xa8] sm:$0xff] %v7498
      %7531 = vst [vmem:[#allocation2 + $0xb0] sm:$0xff] %v7499
      %7532 = vst [vmem:[#allocation2 + $0xb8] sm:$0xff] %v7500
      %7533 = vst [vmem:[#allocation2 + $0xc0] sm:$0xff] %v7501
      %7534 = vst [vmem:[#allocation2 + $0xc8] sm:$0xff] %v7502
      %7535 = vst [vmem:[#allocation2 + $0xd0] sm:$0xff] %v7503
      %7536 = vst [vmem:[#allocation2 + $0xd8] sm:$0xff] %v7504
      %7537 = vst [vmem:[#allocation2 + $0xe0] sm:$0xff] %v7505
      %7538 = vst [vmem:[#allocation2 + $0xe8] sm:$0xff] %v7506
      %7539 = vst [vmem:[#allocation2 + $0xf0] sm:$0xff] %v7507
      %7540 = vst [vmem:[#allocation2 + $0xf8] sm:$0xff] %v7508
      %7541 = vst [vmem:[#allocation2 + $0x100] sm:$0xff] %v7509
      %vm7542 = vcmp.lt.s32.totalorder %v4881, 0
      %v7543 = vsub.s32 0, %v4881
      %v7544 = vsel %vm7542, %v7543, %v4881
      %v7545 = vshrl.u32 %v7544, 3
      %v7546 = vand.u32 %v7544, 7
      %v7547 = vsub.s32 0, %v7546
      %v7548 = vsel %vm7542, %v7547, %v7546
      %vm7549 = vcmp.lt.s32.totalorder %v4882, 0
      %v7550 = vsub.s32 0, %v4882
      %v7551 = vsel %vm7549, %v7550, %v4882
      %v7552 = vshrl.u32 %v7551, 3
      %v7553 = vand.u32 %v7551, 7
      %v7554 = vsub.s32 0, %v7553
      %v7555 = vsel %vm7549, %v7554, %v7553
      %vm7556 = vcmp.lt.s32.totalorder %v4883, 0
      %v7557 = vsub.s32 0, %v4883
      %v7558 = vsel %vm7556, %v7557, %v4883
      %v7559 = vshrl.u32 %v7558, 3
      %v7560 = vand.u32 %v7558, 7
      %v7561 = vsub.s32 0, %v7560
      %v7562 = vsel %vm7556, %v7561, %v7560
      %vm7563 = vcmp.lt.s32.totalorder %v4884, 0
      %v7564 = vsub.s32 0, %v4884
      %v7565 = vsel %vm7563, %v7564, %v4884
      %v7566 = vshrl.u32 %v7565, 3
      %v7567 = vand.u32 %v7565, 7
      %v7568 = vsub.s32 0, %v7567
      %v7569 = vsel %vm7563, %v7568, %v7567
      %vm7570 = vcmp.lt.s32.totalorder %v4885, 0
      %v7571 = vsub.s32 0, %v4885
      %v7572 = vsel %vm7570, %v7571, %v4885
      %v7573 = vshrl.u32 %v7572, 3
      %v7574 = vand.u32 %v7572, 7
      %v7575 = vsub.s32 0, %v7574
      %v7576 = vsel %vm7570, %v7575, %v7574
      %vm7577 = vcmp.lt.s32.totalorder %v4886, 0
      %v7578 = vsub.s32 0, %v4886
      %v7579 = vsel %vm7577, %v7578, %v4886
      %v7580 = vshrl.u32 %v7579, 3
      %v7581 = vand.u32 %v7579, 7
      %v7582 = vsub.s32 0, %v7581
      %v7583 = vsel %vm7577, %v7582, %v7581
      %vm7584 = vcmp.lt.s32.totalorder %v4887, 0
      %v7585 = vsub.s32 0, %v4887
      %v7586 = vsel %vm7584, %v7585, %v4887
      %v7587 = vshrl.u32 %v7586, 3
      %v7588 = vand.u32 %v7586, 7
      %v7589 = vsub.s32 0, %v7588
      %v7590 = vsel %vm7584, %v7589, %v7588
      %vm7591 = vcmp.lt.s32.totalorder %v4888, 0
      %v7592 = vsub.s32 0, %v4888
      %v7593 = vsel %vm7591, %v7592, %v4888
      %v7594 = vshrl.u32 %v7593, 3
      %v7595 = vand.u32 %v7593, 7
      %v7596 = vsub.s32 0, %v7595
      %v7597 = vsel %vm7591, %v7596, %v7595
      %vm7598 = vcmp.lt.s32.totalorder %v4889, 0
      %v7599 = vsub.s32 0, %v4889
      %v7600 = vsel %vm7598, %v7599, %v4889
      %v7601 = vshrl.u32 %v7600, 3
      %v7602 = vand.u32 %v7600, 7
      %v7603 = vsub.s32 0, %v7602
      %v7604 = vsel %vm7598, %v7603, %v7602
      %vm7605 = vcmp.lt.s32.totalorder %v4890, 0
      %v7606 = vsub.s32 0, %v4890
      %v7607 = vsel %vm7605, %v7606, %v4890
      %v7608 = vshrl.u32 %v7607, 3
      %v7609 = vand.u32 %v7607, 7
      %v7610 = vsub.s32 0, %v7609
      %v7611 = vsel %vm7605, %v7610, %v7609
      %vm7612 = vcmp.lt.s32.totalorder %v4891, 0
      %v7613 = vsub.s32 0, %v4891
      %v7614 = vsel %vm7612, %v7613, %v4891
      %v7615 = vshrl.u32 %v7614, 3
      %v7616 = vand.u32 %v7614, 7
      %v7617 = vsub.s32 0, %v7616
      %v7618 = vsel %vm7612, %v7617, %v7616
      %vm7619 = vcmp.lt.s32.totalorder %v4892, 0
      %v7620 = vsub.s32 0, %v4892
      %v7621 = vsel %vm7619, %v7620, %v4892
      %v7622 = vshrl.u32 %v7621, 3
      %v7623 = vand.u32 %v7621, 7
      %v7624 = vsub.s32 0, %v7623
      %v7625 = vsel %vm7619, %v7624, %v7623
      %vm7626 = vcmp.lt.s32.totalorder %v4893, 0
      %v7627 = vsub.s32 0, %v4893
      %v7628 = vsel %vm7626, %v7627, %v4893
      %v7629 = vshrl.u32 %v7628, 3
      %v7630 = vand.u32 %v7628, 7
      %v7631 = vsub.s32 0, %v7630
      %v7632 = vsel %vm7626, %v7631, %v7630
      %vm7633 = vcmp.lt.s32.totalorder %v4894, 0
      %v7634 = vsub.s32 0, %v4894
      %v7635 = vsel %vm7633, %v7634, %v4894
      %v7636 = vshrl.u32 %v7635, 3
      %v7637 = vand.u32 %v7635, 7
      %v7638 = vsub.s32 0, %v7637
      %v7639 = vsel %vm7633, %v7638, %v7637
      %vm7640 = vcmp.lt.s32.totalorder %v4895, 0
      %v7641 = vsub.s32 0, %v4895
      %v7642 = vsel %vm7640, %v7641, %v4895
      %v7643 = vshrl.u32 %v7642, 3
      %v7644 = vand.u32 %v7642, 7
      %v7645 = vsub.s32 0, %v7644
      %v7646 = vsel %vm7640, %v7645, %v7644
      %vm7647 = vcmp.lt.s32.totalorder %v4896, 0
      %v7648 = vsub.s32 0, %v4896
      %v7649 = vsel %vm7647, %v7648, %v4896
      %v7650 = vshrl.u32 %v7649, 3
      %v7651 = vand.u32 %v7649, 7
      %v7652 = vsub.s32 0, %v7651
      %v7653 = vsel %vm7647, %v7652, %v7651
      %vm7654 = vcmp.ne.s32.totalorder %v7548, 0
      %vm7655 = vcmp.ne.s32.totalorder %v7555, 0
      %vm7656 = vcmp.ne.s32.totalorder %v7562, 0
      %vm7657 = vcmp.ne.s32.totalorder %v7569, 0
      %vm7658 = vcmp.ne.s32.totalorder %v7576, 0
      %vm7659 = vcmp.ne.s32.totalorder %v7583, 0
      %vm7660 = vcmp.ne.s32.totalorder %v7590, 0
      %vm7661 = vcmp.ne.s32.totalorder %v7597, 0
      %vm7662 = vcmp.ne.s32.totalorder %v7604, 0
      %vm7663 = vcmp.ne.s32.totalorder %v7611, 0
      %vm7664 = vcmp.ne.s32.totalorder %v7618, 0
      %vm7665 = vcmp.ne.s32.totalorder %v7625, 0
      %vm7666 = vcmp.ne.s32.totalorder %v7632, 0
      %vm7667 = vcmp.ne.s32.totalorder %v7639, 0
      %vm7668 = vcmp.ne.s32.totalorder %v7646, 0
      %vm7669 = vcmp.ne.s32.totalorder %v7653, 0
      %vm7670 = vcmp.lt.s32.totalorder %v7548, 0
      %vm7671 = vcmp.lt.s32.totalorder %v7555, 0
      %vm7672 = vcmp.lt.s32.totalorder %v7562, 0
      %vm7673 = vcmp.lt.s32.totalorder %v7569, 0
      %vm7674 = vcmp.lt.s32.totalorder %v7576, 0
      %vm7675 = vcmp.lt.s32.totalorder %v7583, 0
      %vm7676 = vcmp.lt.s32.totalorder %v7590, 0
      %vm7677 = vcmp.lt.s32.totalorder %v7597, 0
      %vm7678 = vcmp.lt.s32.totalorder %v7604, 0
      %vm7679 = vcmp.lt.s32.totalorder %v7611, 0
      %vm7680 = vcmp.lt.s32.totalorder %v7618, 0
      %vm7681 = vcmp.lt.s32.totalorder %v7625, 0
      %vm7682 = vcmp.lt.s32.totalorder %v7632, 0
      %vm7683 = vcmp.lt.s32.totalorder %v7639, 0
      %vm7684 = vcmp.lt.s32.totalorder %v7646, 0
      %vm7685 = vcmp.lt.s32.totalorder %v7653, 0
      %vm7686 = vmand %vm7670, %vm7654
      %vm7687 = vmand %vm7671, %vm7655
      %vm7688 = vmand %vm7672, %vm7656
      %vm7689 = vmand %vm7673, %vm7657
      %vm7690 = vmand %vm7674, %vm7658
      %vm7691 = vmand %vm7675, %vm7659
      %vm7692 = vmand %vm7676, %vm7660
      %vm7693 = vmand %vm7677, %vm7661
      %vm7694 = vmand %vm7678, %vm7662
      %vm7695 = vmand %vm7679, %vm7663
      %vm7696 = vmand %vm7680, %vm7664
      %vm7697 = vmand %vm7681, %vm7665
      %vm7698 = vmand %vm7682, %vm7666
      %vm7699 = vmand %vm7683, %vm7667
      %vm7700 = vmand %vm7684, %vm7668
      %vm7701 = vmand %vm7685, %vm7669
      %v7702 = vadd.s32 %v7548, 8
      %v7703 = vadd.s32 %v7555, 8
      %v7704 = vadd.s32 %v7562, 8
      %v7705 = vadd.s32 %v7569, 8
      %v7706 = vadd.s32 %v7576, 8
      %v7707 = vadd.s32 %v7583, 8
      %v7708 = vadd.s32 %v7590, 8
      %v7709 = vadd.s32 %v7597, 8
      %v7710 = vadd.s32 %v7604, 8
      %v7711 = vadd.s32 %v7611, 8
      %v7712 = vadd.s32 %v7618, 8
      %v7713 = vadd.s32 %v7625, 8
      %v7714 = vadd.s32 %v7632, 8
      %v7715 = vadd.s32 %v7639, 8
      %v7716 = vadd.s32 %v7646, 8
      %v7717 = vadd.s32 %v7653, 8
      %v7718 = vsel %vm7686, %v7702, %v7548
      %v7719 = vsel %vm7687, %v7703, %v7555
      %v7720 = vsel %vm7688, %v7704, %v7562
      %v7721 = vsel %vm7689, %v7705, %v7569
      %v7722 = vsel %vm7690, %v7706, %v7576
      %v7723 = vsel %vm7691, %v7707, %v7583
      %v7724 = vsel %vm7692, %v7708, %v7590
      %v7725 = vsel %vm7693, %v7709, %v7597
      %v7726 = vsel %vm7694, %v7710, %v7604
      %v7727 = vsel %vm7695, %v7711, %v7611
      %v7728 = vsel %vm7696, %v7712, %v7618
      %v7729 = vsel %vm7697, %v7713, %v7625
      %v7730 = vsel %vm7698, %v7714, %v7632
      %v7731 = vsel %vm7699, %v7715, %v7639
      %v7732 = vsel %vm7700, %v7716, %v7646
      %v7733 = vsel %vm7701, %v7717, %v7653
      %vm7734 = vcmp.lt.s32.totalorder %v7718, 7
      %vm7735 = vcmp.lt.s32.totalorder %v7719, 7
      %vm7736 = vcmp.lt.s32.totalorder %v7720, 7
      %vm7737 = vcmp.lt.s32.totalorder %v7721, 7
      %vm7738 = vcmp.lt.s32.totalorder %v7722, 7
      %vm7739 = vcmp.lt.s32.totalorder %v7723, 7
      %vm7740 = vcmp.lt.s32.totalorder %v7724, 7
      %vm7741 = vcmp.lt.s32.totalorder %v7725, 7
      %vm7742 = vcmp.lt.s32.totalorder %v7726, 7
      %vm7743 = vcmp.lt.s32.totalorder %v7727, 7
      %vm7744 = vcmp.lt.s32.totalorder %v7728, 7
      %vm7745 = vcmp.lt.s32.totalorder %v7729, 7
      %vm7746 = vcmp.lt.s32.totalorder %v7730, 7
      %vm7747 = vcmp.lt.s32.totalorder %v7731, 7
      %vm7748 = vcmp.lt.s32.totalorder %v7732, 7
      %vm7749 = vcmp.lt.s32.totalorder %v7733, 7
      %v7750 = vsel %vm7734, 1, 0
      %v7751 = vsel %vm7735, 1, 0
      %v7752 = vsel %vm7736, 1, 0
      %v7753 = vsel %vm7737, 1, 0
      %v7754 = vsel %vm7738, 1, 0
      %v7755 = vsel %vm7739, 1, 0
      %v7756 = vsel %vm7740, 1, 0
      %v7757 = vsel %vm7741, 1, 0
      %v7758 = vsel %vm7742, 1, 0
      %v7759 = vsel %vm7743, 1, 0
      %v7760 = vsel %vm7744, 1, 0
      %v7761 = vsel %vm7745, 1, 0
      %v7762 = vsel %vm7746, 1, 0
      %v7763 = vsel %vm7747, 1, 0
      %v7764 = vsel %vm7748, 1, 0
      %v7765 = vsel %vm7749, 1, 0
      %v7766 = vcvt.s32.f32 %v7750
      %v7767 = vcvt.s32.f32 %v7751
      %v7768 = vcvt.s32.f32 %v7752
      %v7769 = vcvt.s32.f32 %v7753
      %v7770 = vcvt.s32.f32 %v7754
      %v7771 = vcvt.s32.f32 %v7755
      %v7772 = vcvt.s32.f32 %v7756
      %v7773 = vcvt.s32.f32 %v7757
      %v7774 = vcvt.s32.f32 %v7758
      %v7775 = vcvt.s32.f32 %v7759
      %v7776 = vcvt.s32.f32 %v7760
      %v7777 = vcvt.s32.f32 %v7761
      %v7778 = vcvt.s32.f32 %v7762
      %v7779 = vcvt.s32.f32 %v7763
      %v7780 = vcvt.s32.f32 %v7764
      %v7781 = vcvt.s32.f32 %v7765
      %s7782 = scalar_lea.vmem [#allocation2], 8
      %v7783 = vld [vmem:[%s7782] ss:$2 sm:$0xff]
      %s7784 = scalar_lea.vmem [#allocation2], 24
      %v7785 = vld [vmem:[%s7784] ss:$2 sm:$0xff]
      %s7786 = scalar_lea.vmem [#allocation2], 40
      %v7787 = vld [vmem:[%s7786] ss:$2 sm:$0xff]
      %s7788 = scalar_lea.vmem [#allocation2], 56
      %v7789 = vld [vmem:[%s7788] ss:$2 sm:$0xff]
      %s7790 = scalar_lea.vmem [#allocation2], 72
      %v7791 = vld [vmem:[%s7790] ss:$2 sm:$0xff]
      %s7792 = scalar_lea.vmem [#allocation2], 88
      %v7793 = vld [vmem:[%s7792] ss:$2 sm:$0xff]
      %s7794 = scalar_lea.vmem [#allocation2], 104
      %v7795 = vld [vmem:[%s7794] ss:$2 sm:$0xff]
      %s7796 = scalar_lea.vmem [#allocation2], 120
      %v7797 = vld [vmem:[%s7796] ss:$2 sm:$0xff]
      %s7798 = scalar_lea.vmem [#allocation2], 136
      %v7799 = vld [vmem:[%s7798] ss:$2 sm:$0xff]
      %s7800 = scalar_lea.vmem [#allocation2], 152
      %v7801 = vld [vmem:[%s7800] ss:$2 sm:$0xff]
      %s7802 = scalar_lea.vmem [#allocation2], 168
      %v7803 = vld [vmem:[%s7802] ss:$2 sm:$0xff]
      %s7804 = scalar_lea.vmem [#allocation2], 184
      %v7805 = vld [vmem:[%s7804] ss:$2 sm:$0xff]
      %s7806 = scalar_lea.vmem [#allocation2], 200
      %v7807 = vld [vmem:[%s7806] ss:$2 sm:$0xff]
      %s7808 = scalar_lea.vmem [#allocation2], 216
      %v7809 = vld [vmem:[%s7808] ss:$2 sm:$0xff]
      %s7810 = scalar_lea.vmem [#allocation2], 232
      %v7811 = vld [vmem:[%s7810] ss:$2 sm:$0xff]
      %s7812 = scalar_lea.vmem [#allocation2], 248
      %v7813 = vld [vmem:[%s7812] ss:$2 sm:$0xff]
      %s7814 = scalar_lea.vmem [#allocation2], 9
      %v7815 = vld [vmem:[%s7814] ss:$2 sm:$0xff]
      %s7816 = scalar_lea.vmem [#allocation2], 25
      %v7817 = vld [vmem:[%s7816] ss:$2 sm:$0xff]
      %s7818 = scalar_lea.vmem [#allocation2], 41
      %v7819 = vld [vmem:[%s7818] ss:$2 sm:$0xff]
      %s7820 = scalar_lea.vmem [#allocation2], 57
      %v7821 = vld [vmem:[%s7820] ss:$2 sm:$0xff]
      %s7822 = scalar_lea.vmem [#allocation2], 73
      %v7823 = vld [vmem:[%s7822] ss:$2 sm:$0xff]
      %s7824 = scalar_lea.vmem [#allocation2], 89
      %v7825 = vld [vmem:[%s7824] ss:$2 sm:$0xff]
      %s7826 = scalar_lea.vmem [#allocation2], 105
      %v7827 = vld [vmem:[%s7826] ss:$2 sm:$0xff]
      %s7828 = scalar_lea.vmem [#allocation2], 121
      %v7829 = vld [vmem:[%s7828] ss:$2 sm:$0xff]
      %s7830 = scalar_lea.vmem [#allocation2], 137
      %v7831 = vld [vmem:[%s7830] ss:$2 sm:$0xff]
      %s7832 = scalar_lea.vmem [#allocation2], 153
      %v7833 = vld [vmem:[%s7832] ss:$2 sm:$0xff]
      %s7834 = scalar_lea.vmem [#allocation2], 169
      %v7835 = vld [vmem:[%s7834] ss:$2 sm:$0xff]
      %s7836 = scalar_lea.vmem [#allocation2], 185
      %v7837 = vld [vmem:[%s7836] ss:$2 sm:$0xff]
      %s7838 = scalar_lea.vmem [#allocation2], 201
      %v7839 = vld [vmem:[%s7838] ss:$2 sm:$0xff]
      %s7840 = scalar_lea.vmem [#allocation2], 217
      %v7841 = vld [vmem:[%s7840] ss:$2 sm:$0xff]
      %s7842 = scalar_lea.vmem [#allocation2], 233
      %v7843 = vld [vmem:[%s7842] ss:$2 sm:$0xff]
      %s7844 = scalar_lea.vmem [#allocation2], 249
      %v7845 = vld [vmem:[%s7844] ss:$2 sm:$0xff]
      %s7846 = scalar_lea.vmem [#allocation2], 10
      %v7847 = vld [vmem:[%s7846] ss:$2 sm:$0xff]
      %s7848 = scalar_lea.vmem [#allocation2], 26
      %v7849 = vld [vmem:[%s7848] ss:$2 sm:$0xff]
      %s7850 = scalar_lea.vmem [#allocation2], 42
      %v7851 = vld [vmem:[%s7850] ss:$2 sm:$0xff]
      %s7852 = scalar_lea.vmem [#allocation2], 58
      %v7853 = vld [vmem:[%s7852] ss:$2 sm:$0xff]
      %s7854 = scalar_lea.vmem [#allocation2], 74
      %v7855 = vld [vmem:[%s7854] ss:$2 sm:$0xff]
      %s7856 = scalar_lea.vmem [#allocation2], 90
      %v7857 = vld [vmem:[%s7856] ss:$2 sm:$0xff]
      %s7858 = scalar_lea.vmem [#allocation2], 106
      %v7859 = vld [vmem:[%s7858] ss:$2 sm:$0xff]
      %s7860 = scalar_lea.vmem [#allocation2], 122
      %v7861 = vld [vmem:[%s7860] ss:$2 sm:$0xff]
      %s7862 = scalar_lea.vmem [#allocation2], 138
      %v7863 = vld [vmem:[%s7862] ss:$2 sm:$0xff]
      %s7864 = scalar_lea.vmem [#allocation2], 154
      %v7865 = vld [vmem:[%s7864] ss:$2 sm:$0xff]
      %s7866 = scalar_lea.vmem [#allocation2], 170
      %v7867 = vld [vmem:[%s7866] ss:$2 sm:$0xff]
      %s7868 = scalar_lea.vmem [#allocation2], 186
      %v7869 = vld [vmem:[%s7868] ss:$2 sm:$0xff]
      %s7870 = scalar_lea.vmem [#allocation2], 202
      %v7871 = vld [vmem:[%s7870] ss:$2 sm:$0xff]
      %s7872 = scalar_lea.vmem [#allocation2], 218
      %v7873 = vld [vmem:[%s7872] ss:$2 sm:$0xff]
      %s7874 = scalar_lea.vmem [#allocation2], 234
      %v7875 = vld [vmem:[%s7874] ss:$2 sm:$0xff]
      %s7876 = scalar_lea.vmem [#allocation2], 250
      %v7877 = vld [vmem:[%s7876] ss:$2 sm:$0xff]
      %v7878 = vmax.f32 %v7783, %v7815
      %v7879 = vmax.f32 %v7785, %v7817
      %v7880 = vmax.f32 %v7787, %v7819
      %v7881 = vmax.f32 %v7789, %v7821
      %v7882 = vmax.f32 %v7791, %v7823
      %v7883 = vmax.f32 %v7793, %v7825
      %v7884 = vmax.f32 %v7795, %v7827
      %v7885 = vmax.f32 %v7797, %v7829
      %v7886 = vmax.f32 %v7799, %v7831
      %v7887 = vmax.f32 %v7801, %v7833
      %v7888 = vmax.f32 %v7803, %v7835
      %v7889 = vmax.f32 %v7805, %v7837
      %v7890 = vmax.f32 %v7807, %v7839
      %v7891 = vmax.f32 %v7809, %v7841
      %v7892 = vmax.f32 %v7811, %v7843
      %v7893 = vmax.f32 %v7813, %v7845
      %v7894 = vmax.f32 %v7878, %v7847
      %v7895 = vmax.f32 %v7879, %v7849
      %v7896 = vmax.f32 %v7880, %v7851
      %v7897 = vmax.f32 %v7881, %v7853
      %v7898 = vmax.f32 %v7882, %v7855
      %v7899 = vmax.f32 %v7883, %v7857
      %v7900 = vmax.f32 %v7884, %v7859
      %v7901 = vmax.f32 %v7885, %v7861
      %v7902 = vmax.f32 %v7886, %v7863
      %v7903 = vmax.f32 %v7887, %v7865
      %v7904 = vmax.f32 %v7888, %v7867
      %v7905 = vmax.f32 %v7889, %v7869
      %v7906 = vmax.f32 %v7890, %v7871
      %v7907 = vmax.f32 %v7891, %v7873
      %v7908 = vmax.f32 %v7892, %v7875
      %v7909 = vmax.f32 %v7893, %v7877
      %v7910 = vmul.f32 %v7894, %v7766
      %v7911 = vmul.f32 %v7895, %v7767
      %v7912 = vmul.f32 %v7896, %v7768
      %v7913 = vmul.f32 %v7897, %v7769
      %v7914 = vmul.f32 %v7898, %v7770
      %v7915 = vmul.f32 %v7899, %v7771
      %v7916 = vmul.f32 %v7900, %v7772
      %v7917 = vmul.f32 %v7901, %v7773
      %v7918 = vmul.f32 %v7902, %v7774
      %v7919 = vmul.f32 %v7903, %v7775
      %v7920 = vmul.f32 %v7904, %v7776
      %v7921 = vmul.f32 %v7905, %v7777
      %v7922 = vmul.f32 %v7906, %v7778
      %v7923 = vmul.f32 %v7907, %v7779
      %v7924 = vmul.f32 %v7908, %v7780
      %v7925 = vmul.f32 %v7909, %v7781
      %7926 = vst [vmem:[#allocation2 + $0x8] sm:$0xff] %v7910
      %7927 = vst [vmem:[#allocation2 + $0x10] sm:$0xff] %v7911
      %7928 = vst [vmem:[#allocation2 + $0x18] sm:$0xff] %v7912
      %7929 = vst [vmem:[#allocation2 + $0x20] sm:$0xff] %v7913
      %7930 = vst [vmem:[#allocation2 + $0x28] sm:$0xff] %v7914
      %7931 = vst [vmem:[#allocation2 + $0x30] sm:$0xff] %v7915
      %7932 = vst [vmem:[#allocation2 + $0x38] sm:$0xff] %v7916
      %7933 = vst [vmem:[#allocation2 + $0x40] sm:$0xff] %v7917
      %7934 = vst [vmem:[#allocation2 + $0x48] sm:$0xff] %v7918
      %7935 = vst [vmem:[#allocation2 + $0x50] sm:$0xff] %v7919
      %7936 = vst [vmem:[#allocation2 + $0x58] sm:$0xff] %v7920
      %7937 = vst [vmem:[#allocation2 + $0x60] sm:$0xff] %v7921
      %7938 = vst [vmem:[#allocation2 + $0x68] sm:$0xff] %v7922
      %7939 = vst [vmem:[#allocation2 + $0x70] sm:$0xff] %v7923
      %7940 = vst [vmem:[#allocation2 + $0x78] sm:$0xff] %v7924
      %7941 = vst [vmem:[#allocation2 + $0x80] sm:$0xff] %v7925
      %v7942 = vld [vmem:[#allocation2] sm:$0xff]
      %v7943 = vld [vmem:[#allocation2 + $0x8] sm:$0xff]
      %v7944 = vld [vmem:[#allocation2 + $0x10] sm:$0xff]
      %v7945 = vld [vmem:[#allocation2 + $0x18] sm:$0xff]
      %v7946 = vld [vmem:[#allocation2 + $0x20] sm:$0xff]
      %v7947 = vld [vmem:[#allocation2 + $0x28] sm:$0xff]
      %v7948 = vld [vmem:[#allocation2 + $0x30] sm:$0xff]
      %v7949 = vld [vmem:[#allocation2 + $0x38] sm:$0xff]
      %v7950 = vld [vmem:[#allocation2 + $0x40] sm:$0xff]
      %v7951 = vld [vmem:[#allocation2 + $0x48] sm:$0xff]
      %v7952 = vld [vmem:[#allocation2 + $0x50] sm:$0xff]
      %v7953 = vld [vmem:[#allocation2 + $0x58] sm:$0xff]
      %v7954 = vld [vmem:[#allocation2 + $0x60] sm:$0xff]
      %v7955 = vld [vmem:[#allocation2 + $0x68] sm:$0xff]
      %v7956 = vld [vmem:[#allocation2 + $0x70] sm:$0xff]
      %v7957 = vld [vmem:[#allocation2 + $0x78] sm:$0xff]
      %v7958 = vld [vmem:[#allocation2 + $0x80] sm:$0xff]
      %v7959 = vld [vmem:[#allocation2 + $0x88] sm:$0xff]
      %v7960 = vmax.f32 %v7942, 0.0
      %v7961 = vmax.f32 %v7943, 0.0
      %v7962 = vmax.f32 %v7944, 0.0
      %v7963 = vmax.f32 %v7945, 0.0
      %v7964 = vmax.f32 %v7946, 0.0
      %v7965 = vmax.f32 %v7947, 0.0
      %v7966 = vmax.f32 %v7948, 0.0
      %v7967 = vmax.f32 %v7949, 0.0
      %v7968 = vmax.f32 %v7950, 0.0
      %v7969 = vmax.f32 %v7951, 0.0
      %v7970 = vmax.f32 %v7952, 0.0
      %v7971 = vmax.f32 %v7953, 0.0
      %v7972 = vmax.f32 %v7954, 0.0
      %v7973 = vmax.f32 %v7955, 0.0
      %v7974 = vmax.f32 %v7956, 0.0
      %v7975 = vmax.f32 %v7957, 0.0
      %v7976 = vmax.f32 %v7958, 0.0
      %v7977 = vmax.f32 %v7959, 0.0
      %v7978 = vld [vmem:[%s4] sm:$0x1]
      %v7979 = vpack.c.bf16 %v7961, %v7960
      %v7980 = vpack.c.bf16 %v7963, %v7962
      %v7981 = vpack.c.bf16 %v7965, %v7964
      %v7982 = vpack.c.bf16 %v7967, %v7966
      %v7983 = vpack.c.bf16 %v7969, %v7968
      %v7984 = vpack.c.bf16 %v7971, %v7970
      %v7985 = vpack.c.bf16 %v7973, %v7972
      %v7986 = vpack.c.bf16 %v7975, %v7974
      %v7987 = vpack.c.bf16 %v7976, %v7976
      %v7988 = vld [vmem:[%s3] sm:$0xf]
      %v7989 = vld [vmem:[%s3 + $0x4] sm:$0xf]
      %v7990 = vld [vmem:[%s3 + $0x8] sm:$0xf]
      %v7991 = vld [vmem:[%s3 + $0xc] sm:$0xf]
      %v7992 = vld [vmem:[%s3 + $0x10] sm:$0xf]
      %v7993 = vld [vmem:[%s3 + $0x14] sm:$0xf]
      %v7994 = vld [vmem:[%s3 + $0x18] sm:$0xf]
      %v7995 = vld [vmem:[%s3 + $0x1c] sm:$0xf]
      %v7996 = vld [vmem:[%s3 + $0x20] sm:$0xf]
      %v7997 = vld [vmem:[%s3 + $0x24] sm:$0xf]
      %v7998 = vld [vmem:[%s3 + $0x28] sm:$0xf]
      %v7999 = vld [vmem:[%s3 + $0x2c] sm:$0xf]
      %v8000 = vld [vmem:[%s3 + $0x30] sm:$0xf]
      %v8001 = vld [vmem:[%s3 + $0x34] sm:$0xf]
      %v8002 = vld [vmem:[%s3 + $0x38] sm:$0xf]
      %v8003 = vld [vmem:[%s3 + $0x3c] sm:$0xf]
      %v8005 = vshrl.u32 %v7979, 16
      %v8007 = vrot.slane %v8005, 3
      %v8008 = vshll.u32 %v7979, 16
      %v8010 = vrot.slane %v8008, 4
      %v8011 = vor.u32 %v8007, %v8010
      %v8013 = vshrl.u32 %v7980, 16
      %v8015 = vrot.slane %v8013, 3
      %v8016 = vshll.u32 %v7980, 16
      %v8018 = vrot.slane %v8016, 4
      %v8019 = vor.u32 %v8015, %v8018
      %v8020 = vsel %vm5559, %v8011, %v8019
      %v8022 = vshrl.u32 %v7981, 16
      %v8024 = vrot.slane %v8022, 3
      %v8025 = vshll.u32 %v7981, 16
      %v8027 = vrot.slane %v8025, 4
      %v8028 = vor.u32 %v8024, %v8027
      %v8029 = vsel %vm5559, %v8019, %v8028
      %v8031 = vshrl.u32 %v7982, 16
      %v8033 = vrot.slane %v8031, 3
      %v8034 = vshll.u32 %v7982, 16
      %v8036 = vrot.slane %v8034, 4
      %v8037 = vor.u32 %v8033, %v8036
      %v8038 = vsel %vm5559, %v8028, %v8037
      %v8040 = vshrl.u32 %v7983, 16
      %v8042 = vrot.slane %v8040, 3
      %v8043 = vshll.u32 %v7983, 16
      %v8045 = vrot.slane %v8043, 4
      %v8046 = vor.u32 %v8042, %v8045
      %v8047 = vsel %vm5559, %v8037, %v8046
      %v8049 = vshrl.u32 %v7984, 16
      %v8051 = vrot.slane %v8049, 3
      %v8052 = vshll.u32 %v7984, 16
      %v8054 = vrot.slane %v8052, 4
      %v8055 = vor.u32 %v8051, %v8054
      %v8056 = vsel %vm5559, %v8046, %v8055
      %v8058 = vshrl.u32 %v7985, 16
      %v8060 = vrot.slane %v8058, 3
      %v8061 = vshll.u32 %v7985, 16
      %v8063 = vrot.slane %v8061, 4
      %v8064 = vor.u32 %v8060, %v8063
      %v8065 = vsel %vm5559, %v8055, %v8064
      %v8067 = vshrl.u32 %v7986, 16
      %v8069 = vrot.slane %v8067, 3
      %v8070 = vshll.u32 %v7986, 16
      %v8072 = vrot.slane %v8070, 4
      %v8073 = vor.u32 %v8069, %v8072
      %v8074 = vsel %vm5559, %v8064, %v8073
      %v8076 = vshrl.u32 %v7987, 16
      %v8078 = vrot.slane %v8076, 3
      %v8079 = vshll.u32 %v7987, 16
      %v8081 = vrot.slane %v8079, 4
      %v8082 = vor.u32 %v8078, %v8081
      %v8083 = vsel %vm5559, %v8073, %v8082
      %v8108 = vunpack.c.l.b16 %v7988
      %v8109 = vunpack.c.l.b16 %v7989
      %v8110 = vunpack.c.l.b16 %v7990
      %v8111 = vunpack.c.l.b16 %v7991
      %v8112 = vunpack.c.l.b16 %v7992
      %v8113 = vunpack.c.l.b16 %v7993
      %v8114 = vunpack.c.l.b16 %v7994
      %v8115 = vunpack.c.l.b16 %v7995
      %v8116 = vunpack.c.l.b16 %v7996
      %v8117 = vunpack.c.l.b16 %v7997
      %v8118 = vunpack.c.l.b16 %v7998
      %v8119 = vunpack.c.l.b16 %v7999
      %v8120 = vunpack.c.l.b16 %v8000
      %v8121 = vunpack.c.l.b16 %v8001
      %v8122 = vunpack.c.l.b16 %v8002
      %v8123 = vunpack.c.l.b16 %v8003
      %v8124 = vpack.c.b16 %v8109, %v8108
      %v8125 = vpack.c.b16 %v8111, %v8110
      %v8126 = vpack.c.b16 %v8113, %v8112
      %v8127 = vpack.c.b16 %v8115, %v8114
      %v8128 = vpack.c.b16 %v8117, %v8116
      %v8129 = vpack.c.b16 %v8119, %v8118
      %v8130 = vpack.c.b16 %v8121, %v8120
      %v8131 = vpack.c.b16 %v8123, %v8122
      %8140 = vmatpush.bf16.msra.mxu0 %v8131
      %8141 = vmatpush.bf16.msra.mxu0 %v8130
      %8142 = vmatpush.bf16.msra.mxu0 %v8129
      %8143 = vmatpush.bf16.msra.mxu0 %v8128
      %8144 = vmatpush.bf16.msra.mxu0 %v8127
      %8145 = vmatpush.bf16.msra.mxu0 %v8126
      %8146 = vmatpush.bf16.msra.mxu0 %v8125
      %8147 = vmatpush.bf16.msra.mxu0 %v8124
      %8148 = vmatmul.bf16.gmra.mxu0 %v8020
      %v8149 = vpop.f32.mrf.mxu0
      %v8150 = vadd.f32 0.0, %v8149
      %v8151 = vpop.f32.mrf.mxu0
      %v8152 = vadd.f32 0.0, %v8151
      %8153 = vmatmul.bf16.gmra.mxu0 %v8029
      %v8154 = vpop.f32.mrf.mxu0
      %v8155 = vadd.f32 0.0, %v8154
      %v8156 = vpop.f32.mrf.mxu0
      %v8157 = vadd.f32 0.0, %v8156
      %8158 = vmatmul.bf16.gmra.mxu0 %v8038
      %v8159 = vpop.f32.mrf.mxu0
      %v8160 = vadd.f32 0.0, %v8159
      %v8161 = vpop.f32.mrf.mxu0
      %v8162 = vadd.f32 0.0, %v8161
      %8163 = vmatmul.bf16.gmra.mxu0 %v8047
      %v8164 = vpop.f32.mrf.mxu0
      %v8165 = vadd.f32 0.0, %v8164
      %v8166 = vpop.f32.mrf.mxu0
      %v8167 = vadd.f32 0.0, %v8166
      %8168 = vmatmul.bf16.gmra.mxu0 %v8056
      %v8169 = vpop.f32.mrf.mxu0
      %v8170 = vadd.f32 0.0, %v8169
      %v8171 = vpop.f32.mrf.mxu0
      %v8172 = vadd.f32 0.0, %v8171
      %8173 = vmatmul.bf16.gmra.mxu0 %v8065
      %v8174 = vpop.f32.mrf.mxu0
      %v8175 = vadd.f32 0.0, %v8174
      %v8176 = vpop.f32.mrf.mxu0
      %v8177 = vadd.f32 0.0, %v8176
      %8178 = vmatmul.bf16.gmra.mxu0 %v8074
      %v8179 = vpop.f32.mrf.mxu0
      %v8180 = vadd.f32 0.0, %v8179
      %v8181 = vpop.f32.mrf.mxu0
      %v8182 = vadd.f32 0.0, %v8181
      %8183 = vmatmul.bf16.gmra.mxu0 %v8083
      %v8184 = vpop.f32.mrf.mxu0
      %v8185 = vadd.f32 0.0, %v8184
      %v8186 = vpop.f32.mrf.mxu0
      %v8187 = vadd.f32 0.0, %v8186
      %8188 = vdwg.mxu0
      %v8190 = vperm.slane %v7978, 0
      %v8192 = vadd.f32 %v8190, %v8150
      %v8193 = vadd.f32 %v8190, %v8152
      %v8194 = vadd.f32 %v8190, %v8155
      %v8195 = vadd.f32 %v8190, %v8157
      %v8196 = vadd.f32 %v8190, %v8160
      %v8197 = vadd.f32 %v8190, %v8162
      %v8198 = vadd.f32 %v8190, %v8165
      %v8199 = vadd.f32 %v8190, %v8167
      %v8200 = vadd.f32 %v8190, %v8170
      %v8201 = vadd.f32 %v8190, %v8172
      %v8202 = vadd.f32 %v8190, %v8175
      %v8203 = vadd.f32 %v8190, %v8177
      %v8204 = vadd.f32 %v8190, %v8180
      %v8205 = vadd.f32 %v8190, %v8182
      %v8206 = vadd.f32 %v8190, %v8185
      %v8207 = vadd.f32 %v8190, %v8187
      %v8208 = vpack.c.bf16 %v7962, %v7961
      %v8209 = vpack.c.bf16 %v7964, %v7963
      %v8210 = vpack.c.bf16 %v7966, %v7965
      %v8211 = vpack.c.bf16 %v7968, %v7967
      %v8212 = vpack.c.bf16 %v7970, %v7969
      %v8213 = vpack.c.bf16 %v7972, %v7971
      %v8214 = vpack.c.bf16 %v7974, %v7973
      %v8215 = vpack.c.bf16 %v7976, %v7975
      %v8216 = vld [vmem:[%s5916] sm:$0xf]
      %v8217 = vld [vmem:[%s5916 + $0x4] sm:$0xf]
      %v8218 = vld [vmem:[%s5916 + $0x8] sm:$0xf]
      %v8219 = vld [vmem:[%s5916 + $0xc] sm:$0xf]
      %v8220 = vld [vmem:[%s5916 + $0x10] sm:$0xf]
      %v8221 = vld [vmem:[%s5916 + $0x14] sm:$0xf]
      %v8222 = vld [vmem:[%s5916 + $0x18] sm:$0xf]
      %v8223 = vld [vmem:[%s5916 + $0x1c] sm:$0xf]
      %v8224 = vld [vmem:[%s5916 + $0x20] sm:$0xf]
      %v8225 = vld [vmem:[%s5916 + $0x24] sm:$0xf]
      %v8226 = vld [vmem:[%s5916 + $0x28] sm:$0xf]
      %v8227 = vld [vmem:[%s5916 + $0x2c] sm:$0xf]
      %v8228 = vld [vmem:[%s5916 + $0x30] sm:$0xf]
      %v8229 = vld [vmem:[%s5916 + $0x34] sm:$0xf]
      %v8230 = vld [vmem:[%s5916 + $0x38] sm:$0xf]
      %v8231 = vld [vmem:[%s5916 + $0x3c] sm:$0xf]
      %v8248 = vunpack.c.l.b16 %v8216
      %v8249 = vunpack.c.l.b16 %v8217
      %v8250 = vunpack.c.l.b16 %v8218
      %v8251 = vunpack.c.l.b16 %v8219
      %v8252 = vunpack.c.l.b16 %v8220
      %v8253 = vunpack.c.l.b16 %v8221
      %v8254 = vunpack.c.l.b16 %v8222
      %v8255 = vunpack.c.l.b16 %v8223
      %v8256 = vunpack.c.l.b16 %v8224
      %v8257 = vunpack.c.l.b16 %v8225
      %v8258 = vunpack.c.l.b16 %v8226
      %v8259 = vunpack.c.l.b16 %v8227
      %v8260 = vunpack.c.l.b16 %v8228
      %v8261 = vunpack.c.l.b16 %v8229
      %v8262 = vunpack.c.l.b16 %v8230
      %v8263 = vunpack.c.l.b16 %v8231
      %v8264 = vpack.c.b16 %v8249, %v8248
      %v8265 = vpack.c.b16 %v8251, %v8250
      %v8266 = vpack.c.b16 %v8253, %v8252
      %v8267 = vpack.c.b16 %v8255, %v8254
      %v8268 = vpack.c.b16 %v8257, %v8256
      %v8269 = vpack.c.b16 %v8259, %v8258
      %v8270 = vpack.c.b16 %v8261, %v8260
      %v8271 = vpack.c.b16 %v8263, %v8262
      %8280 = vmatpush.bf16.msra.mxu0 %v8271
      %8281 = vmatpush.bf16.msra.mxu0 %v8270
      %8282 = vmatpush.bf16.msra.mxu0 %v8269
      %8283 = vmatpush.bf16.msra.mxu0 %v8268
      %8284 = vmatpush.bf16.msra.mxu0 %v8267
      %8285 = vmatpush.bf16.msra.mxu0 %v8266
      %8286 = vmatpush.bf16.msra.mxu0 %v8265
      %8287 = vmatpush.bf16.msra.mxu0 %v8264
      %8288 = vmatmul.bf16.gmra.mxu0 %v8208
      %v8289 = vpop.f32.mrf.mxu0
      %v8290 = vadd.f32 0.0, %v8289
      %v8291 = vpop.f32.mrf.mxu0
      %v8292 = vadd.f32 0.0, %v8291
      %8293 = vmatmul.bf16.gmra.mxu0 %v8209
      %v8294 = vpop.f32.mrf.mxu0
      %v8295 = vadd.f32 0.0, %v8294
      %v8296 = vpop.f32.mrf.mxu0
      %v8297 = vadd.f32 0.0, %v8296
      %8298 = vmatmul.bf16.gmra.mxu0 %v8210
      %v8299 = vpop.f32.mrf.mxu0
      %v8300 = vadd.f32 0.0, %v8299
      %v8301 = vpop.f32.mrf.mxu0
      %v8302 = vadd.f32 0.0, %v8301
      %8303 = vmatmul.bf16.gmra.mxu0 %v8211
      %v8304 = vpop.f32.mrf.mxu0
      %v8305 = vadd.f32 0.0, %v8304
      %v8306 = vpop.f32.mrf.mxu0
      %v8307 = vadd.f32 0.0, %v8306
      %8308 = vmatmul.bf16.gmra.mxu0 %v8212
      %v8309 = vpop.f32.mrf.mxu0
      %v8310 = vadd.f32 0.0, %v8309
      %v8311 = vpop.f32.mrf.mxu0
      %v8312 = vadd.f32 0.0, %v8311
      %8313 = vmatmul.bf16.gmra.mxu0 %v8213
      %v8314 = vpop.f32.mrf.mxu0
      %v8315 = vadd.f32 0.0, %v8314
      %v8316 = vpop.f32.mrf.mxu0
      %v8317 = vadd.f32 0.0, %v8316
      %8318 = vmatmul.bf16.gmra.mxu0 %v8214
      %v8319 = vpop.f32.mrf.mxu0
      %v8320 = vadd.f32 0.0, %v8319
      %v8321 = vpop.f32.mrf.mxu0
      %v8322 = vadd.f32 0.0, %v8321
      %8323 = vmatmul.bf16.gmra.mxu0 %v8215
      %v8324 = vpop.f32.mrf.mxu0
      %v8325 = vadd.f32 0.0, %v8324
      %v8326 = vpop.f32.mrf.mxu0
      %v8327 = vadd.f32 0.0, %v8326
      %8328 = vdwg.mxu0
      %v8329 = vadd.f32 %v8192, %v8290
      %v8330 = vadd.f32 %v8193, %v8292
      %v8331 = vadd.f32 %v8194, %v8295
      %v8332 = vadd.f32 %v8195, %v8297
      %v8333 = vadd.f32 %v8196, %v8300
      %v8334 = vadd.f32 %v8197, %v8302
      %v8335 = vadd.f32 %v8198, %v8305
      %v8336 = vadd.f32 %v8199, %v8307
      %v8337 = vadd.f32 %v8200, %v8310
      %v8338 = vadd.f32 %v8201, %v8312
      %v8339 = vadd.f32 %v8202, %v8315
      %v8340 = vadd.f32 %v8203, %v8317
      %v8341 = vadd.f32 %v8204, %v8320
      %v8342 = vadd.f32 %v8205, %v8322
      %v8343 = vadd.f32 %v8206, %v8325
      %v8344 = vadd.f32 %v8207, %v8327
      %v8345 = vpack.c.bf16 %v7977, %v7977
      %v8346 = vld [vmem:[%s6103] sm:$0xf]
      %v8347 = vld [vmem:[%s6103 + $0x4] sm:$0xf]
      %v8348 = vld [vmem:[%s6103 + $0x8] sm:$0xf]
      %v8349 = vld [vmem:[%s6103 + $0xc] sm:$0xf]
      %v8350 = vld [vmem:[%s6103 + $0x10] sm:$0xf]
      %v8351 = vld [vmem:[%s6103 + $0x14] sm:$0xf]
      %v8352 = vld [vmem:[%s6103 + $0x18] sm:$0xf]
      %v8353 = vld [vmem:[%s6103 + $0x1c] sm:$0xf]
      %v8354 = vld [vmem:[%s6103 + $0x20] sm:$0xf]
      %v8355 = vld [vmem:[%s6103 + $0x24] sm:$0xf]
      %v8356 = vld [vmem:[%s6103 + $0x28] sm:$0xf]
      %v8357 = vld [vmem:[%s6103 + $0x2c] sm:$0xf]
      %v8358 = vld [vmem:[%s6103 + $0x30] sm:$0xf]
      %v8359 = vld [vmem:[%s6103 + $0x34] sm:$0xf]
      %v8360 = vld [vmem:[%s6103 + $0x38] sm:$0xf]
      %v8361 = vld [vmem:[%s6103 + $0x3c] sm:$0xf]
      %v8363 = vshrl.u32 %v8208, 16
      %v8365 = vshll.u32 %v8208, 16
      %v8367 = vrot.slane %v8365, 1
      %v8368 = vor.u32 %v8363, %v8367
      %v8370 = vshll.u32 %v8209, 16
      %v8372 = vrot.slane %v8370, 1
      %v8373 = vsel %vm1915, %v8368, %v8372
      %v8374 = vshrl.u32 %v8209, 16
      %v8376 = vor.u32 %v8374, %v8372
      %v8378 = vshll.u32 %v8210, 16
      %v8380 = vrot.slane %v8378, 1
      %v8381 = vsel %vm1915, %v8376, %v8380
      %v8382 = vshrl.u32 %v8210, 16
      %v8384 = vor.u32 %v8382, %v8380
      %v8386 = vshll.u32 %v8211, 16
      %v8388 = vrot.slane %v8386, 1
      %v8389 = vsel %vm1915, %v8384, %v8388
      %v8390 = vshrl.u32 %v8211, 16
      %v8392 = vor.u32 %v8390, %v8388
      %v8394 = vshll.u32 %v8212, 16
      %v8396 = vrot.slane %v8394, 1
      %v8397 = vsel %vm1915, %v8392, %v8396
      %v8398 = vshrl.u32 %v8212, 16
      %v8400 = vor.u32 %v8398, %v8396
      %v8402 = vshll.u32 %v8213, 16
      %v8404 = vrot.slane %v8402, 1
      %v8405 = vsel %vm1915, %v8400, %v8404
      %v8406 = vshrl.u32 %v8213, 16
      %v8408 = vor.u32 %v8406, %v8404
      %v8410 = vshll.u32 %v8214, 16
      %v8412 = vrot.slane %v8410, 1
      %v8413 = vsel %vm1915, %v8408, %v8412
      %v8414 = vshrl.u32 %v8214, 16
      %v8416 = vor.u32 %v8414, %v8412
      %v8418 = vshll.u32 %v8215, 16
      %v8420 = vrot.slane %v8418, 1
      %v8421 = vsel %vm1915, %v8416, %v8420
      %v8422 = vshrl.u32 %v8215, 16
      %v8424 = vor.u32 %v8422, %v8420
      %v8426 = vshll.u32 %v8345, 16
      %v8428 = vrot.slane %v8426, 1
      %v8429 = vsel %vm1915, %v8424, %v8428
      %v8454 = vunpack.c.l.b16 %v8346
      %v8455 = vunpack.c.l.b16 %v8347
      %v8456 = vunpack.c.l.b16 %v8348
      %v8457 = vunpack.c.l.b16 %v8349
      %v8458 = vunpack.c.l.b16 %v8350
      %v8459 = vunpack.c.l.b16 %v8351
      %v8460 = vunpack.c.l.b16 %v8352
      %v8461 = vunpack.c.l.b16 %v8353
      %v8462 = vunpack.c.l.b16 %v8354
      %v8463 = vunpack.c.l.b16 %v8355
      %v8464 = vunpack.c.l.b16 %v8356
      %v8465 = vunpack.c.l.b16 %v8357
      %v8466 = vunpack.c.l.b16 %v8358
      %v8467 = vunpack.c.l.b16 %v8359
      %v8468 = vunpack.c.l.b16 %v8360
      %v8469 = vunpack.c.l.b16 %v8361
      %v8470 = vpack.c.b16 %v8455, %v8454
      %v8471 = vpack.c.b16 %v8457, %v8456
      %v8472 = vpack.c.b16 %v8459, %v8458
      %v8473 = vpack.c.b16 %v8461, %v8460
      %v8474 = vpack.c.b16 %v8463, %v8462
      %v8475 = vpack.c.b16 %v8465, %v8464
      %v8476 = vpack.c.b16 %v8467, %v8466
      %v8477 = vpack.c.b16 %v8469, %v8468
      %8486 = vmatpush.bf16.msra.mxu0 %v8477
      %8487 = vmatpush.bf16.msra.mxu0 %v8476
      %8488 = vmatpush.bf16.msra.mxu0 %v8475
      %8489 = vmatpush.bf16.msra.mxu0 %v8474
      %8490 = vmatpush.bf16.msra.mxu0 %v8473
      %8491 = vmatpush.bf16.msra.mxu0 %v8472
      %8492 = vmatpush.bf16.msra.mxu0 %v8471
      %8493 = vmatpush.bf16.msra.mxu0 %v8470
      %8494 = vmatmul.bf16.gmra.mxu0 %v8373
      %v8495 = vpop.f32.mrf.mxu0
      %v8496 = vadd.f32 0.0, %v8495
      %v8497 = vpop.f32.mrf.mxu0
      %v8498 = vadd.f32 0.0, %v8497
      %8499 = vmatmul.bf16.gmra.mxu0 %v8381
      %v8500 = vpop.f32.mrf.mxu0
      %v8501 = vadd.f32 0.0, %v8500
      %v8502 = vpop.f32.mrf.mxu0
      %v8503 = vadd.f32 0.0, %v8502
      %8504 = vmatmul.bf16.gmra.mxu0 %v8389
      %v8505 = vpop.f32.mrf.mxu0
      %v8506 = vadd.f32 0.0, %v8505
      %v8507 = vpop.f32.mrf.mxu0
      %v8508 = vadd.f32 0.0, %v8507
      %8509 = vmatmul.bf16.gmra.mxu0 %v8397
      %v8510 = vpop.f32.mrf.mxu0
      %v8511 = vadd.f32 0.0, %v8510
      %v8512 = vpop.f32.mrf.mxu0
      %v8513 = vadd.f32 0.0, %v8512
      %8514 = vmatmul.bf16.gmra.mxu0 %v8405
      %v8515 = vpop.f32.mrf.mxu0
      %v8516 = vadd.f32 0.0, %v8515
      %v8517 = vpop.f32.mrf.mxu0
      %v8518 = vadd.f32 0.0, %v8517
      %8519 = vmatmul.bf16.gmra.mxu0 %v8413
      %v8520 = vpop.f32.mrf.mxu0
      %v8521 = vadd.f32 0.0, %v8520
      %v8522 = vpop.f32.mrf.mxu0
      %v8523 = vadd.f32 0.0, %v8522
      %8524 = vmatmul.bf16.gmra.mxu0 %v8421
      %v8525 = vpop.f32.mrf.mxu0
      %v8526 = vadd.f32 0.0, %v8525
      %v8527 = vpop.f32.mrf.mxu0
      %v8528 = vadd.f32 0.0, %v8527
      %8529 = vmatmul.bf16.gmra.mxu0 %v8429
      %v8530 = vpop.f32.mrf.mxu0
      %v8531 = vadd.f32 0.0, %v8530
      %v8532 = vpop.f32.mrf.mxu0
      %v8533 = vadd.f32 0.0, %v8532
      %8534 = vdwg.mxu0
      %v8535 = vadd.f32 %v8329, %v8496
      %v8536 = vadd.f32 %v8330, %v8498
      %v8537 = vadd.f32 %v8331, %v8501
      %v8538 = vadd.f32 %v8332, %v8503
      %v8539 = vadd.f32 %v8333, %v8506
      %v8540 = vadd.f32 %v8334, %v8508
      %v8541 = vadd.f32 %v8335, %v8511
      %v8542 = vadd.f32 %v8336, %v8513
      %v8543 = vadd.f32 %v8337, %v8516
      %v8544 = vadd.f32 %v8338, %v8518
      %v8545 = vadd.f32 %v8339, %v8521
      %v8546 = vadd.f32 %v8340, %v8523
      %v8547 = vadd.f32 %v8341, %v8526
      %v8548 = vadd.f32 %v8342, %v8528
      %v8549 = vadd.f32 %v8343, %v8531
      %v8550 = vadd.f32 %v8344, %v8533
      %v8551 = vmul.f32 %v8535, %v7766
      %v8552 = vmul.f32 %v8536, %v7767
      %v8553 = vmul.f32 %v8537, %v7768
      %v8554 = vmul.f32 %v8538, %v7769
      %v8555 = vmul.f32 %v8539, %v7770
      %v8556 = vmul.f32 %v8540, %v7771
      %v8557 = vmul.f32 %v8541, %v7772
      %v8558 = vmul.f32 %v8542, %v7773
      %v8559 = vmul.f32 %v8543, %v7774
      %v8560 = vmul.f32 %v8544, %v7775
      %v8561 = vmul.f32 %v8545, %v7776
      %v8562 = vmul.f32 %v8546, %v7777
      %v8563 = vmul.f32 %v8547, %v7778
      %v8564 = vmul.f32 %v8548, %v7779
      %v8565 = vmul.f32 %v8549, %v7780
      %v8566 = vmul.f32 %v8550, %v7781
      %8567 = vst [vmem:[#allocation2 + $0x8] sm:$0xff] %v8551
      %8568 = vst [vmem:[#allocation2 + $0x10] sm:$0xff] %v8552
      %8569 = vst [vmem:[#allocation2 + $0x18] sm:$0xff] %v8553
      %8570 = vst [vmem:[#allocation2 + $0x20] sm:$0xff] %v8554
      %8571 = vst [vmem:[#allocation2 + $0x28] sm:$0xff] %v8555
      %8572 = vst [vmem:[#allocation2 + $0x30] sm:$0xff] %v8556
      %8573 = vst [vmem:[#allocation2 + $0x38] sm:$0xff] %v8557
      %8574 = vst [vmem:[#allocation2 + $0x40] sm:$0xff] %v8558
      %8575 = vst [vmem:[#allocation2 + $0x48] sm:$0xff] %v8559
      %8576 = vst [vmem:[#allocation2 + $0x50] sm:$0xff] %v8560
      %8577 = vst [vmem:[#allocation2 + $0x58] sm:$0xff] %v8561
      %8578 = vst [vmem:[#allocation2 + $0x60] sm:$0xff] %v8562
      %8579 = vst [vmem:[#allocation2 + $0x68] sm:$0xff] %v8563
      %8580 = vst [vmem:[#allocation2 + $0x70] sm:$0xff] %v8564
      %8581 = vst [vmem:[#allocation2 + $0x78] sm:$0xff] %v8565
      %8582 = vst [vmem:[#allocation2 + $0x80] sm:$0xff] %v8566
      %v8583 = vld [vmem:[#allocation2] sm:$0xff]
      %v8584 = vld [vmem:[#allocation2 + $0x8] sm:$0xff]
      %v8585 = vld [vmem:[#allocation2 + $0x10] sm:$0xff]
      %v8586 = vld [vmem:[#allocation2 + $0x18] sm:$0xff]
      %v8587 = vld [vmem:[#allocation2 + $0x20] sm:$0xff]
      %v8588 = vld [vmem:[#allocation2 + $0x28] sm:$0xff]
      %v8589 = vld [vmem:[#allocation2 + $0x30] sm:$0xff]
      %v8590 = vld [vmem:[#allocation2 + $0x38] sm:$0xff]
      %v8591 = vld [vmem:[#allocation2 + $0x40] sm:$0xff]
      %v8592 = vld [vmem:[#allocation2 + $0x48] sm:$0xff]
      %v8593 = vld [vmem:[#allocation2 + $0x50] sm:$0xff]
      %v8594 = vld [vmem:[#allocation2 + $0x58] sm:$0xff]
      %v8595 = vld [vmem:[#allocation2 + $0x60] sm:$0xff]
      %v8596 = vld [vmem:[#allocation2 + $0x68] sm:$0xff]
      %v8597 = vld [vmem:[#allocation2 + $0x70] sm:$0xff]
      %v8598 = vld [vmem:[#allocation2 + $0x78] sm:$0xff]
      %v8599 = vld [vmem:[#allocation2 + $0x80] sm:$0xff]
      %v8600 = vld [vmem:[#allocation2 + $0x88] sm:$0xff]
      %v8601 = vmax.f32 %v8583, 0.0
      %v8602 = vmax.f32 %v8584, 0.0
      %v8603 = vmax.f32 %v8585, 0.0
      %v8604 = vmax.f32 %v8586, 0.0
      %v8605 = vmax.f32 %v8587, 0.0
      %v8606 = vmax.f32 %v8588, 0.0
      %v8607 = vmax.f32 %v8589, 0.0
      %v8608 = vmax.f32 %v8590, 0.0
      %v8609 = vmax.f32 %v8591, 0.0
      %v8610 = vmax.f32 %v8592, 0.0
      %v8611 = vmax.f32 %v8593, 0.0
      %v8612 = vmax.f32 %v8594, 0.0
      %v8613 = vmax.f32 %v8595, 0.0
      %v8614 = vmax.f32 %v8596, 0.0
      %v8615 = vmax.f32 %v8597, 0.0
      %v8616 = vmax.f32 %v8598, 0.0
      %v8617 = vmax.f32 %v8599, 0.0
      %v8618 = vmax.f32 %v8600, 0.0
      %v8619 = vld [vmem:[%s4] sm:$0x1]
      %v8620 = vpack.c.bf16 %v8602, %v8601
      %v8621 = vpack.c.bf16 %v8604, %v8603
      %v8622 = vpack.c.bf16 %v8606, %v8605
      %v8623 = vpack.c.bf16 %v8608, %v8607
      %v8624 = vpack.c.bf16 %v8610, %v8609
      %v8625 = vpack.c.bf16 %v8612, %v8611
      %v8626 = vpack.c.bf16 %v8614, %v8613
      %v8627 = vpack.c.bf16 %v8616, %v8615
      %v8628 = vpack.c.bf16 %v8617, %v8617
      %v8629 = vld [vmem:[%s3] sm:$0xf]
      %v8630 = vld [vmem:[%s3 + $0x4] sm:$0xf]
      %v8631 = vld [vmem:[%s3 + $0x8] sm:$0xf]
      %v8632 = vld [vmem:[%s3 + $0xc] sm:$0xf]
      %v8633 = vld [vmem:[%s3 + $0x10] sm:$0xf]
      %v8634 = vld [vmem:[%s3 + $0x14] sm:$0xf]
      %v8635 = vld [vmem:[%s3 + $0x18] sm:$0xf]
      %v8636 = vld [vmem:[%s3 + $0x1c] sm:$0xf]
      %v8637 = vld [vmem:[%s3 + $0x20] sm:$0xf]
      %v8638 = vld [vmem:[%s3 + $0x24] sm:$0xf]
      %v8639 = vld [vmem:[%s3 + $0x28] sm:$0xf]
      %v8640 = vld [vmem:[%s3 + $0x2c] sm:$0xf]
      %v8641 = vld [vmem:[%s3 + $0x30] sm:$0xf]
      %v8642 = vld [vmem:[%s3 + $0x34] sm:$0xf]
      %v8643 = vld [vmem:[%s3 + $0x38] sm:$0xf]
      %v8644 = vld [vmem:[%s3 + $0x3c] sm:$0xf]
      %v8646 = vshrl.u32 %v8620, 16
      %v8648 = vrot.slane %v8646, 3
      %v8649 = vshll.u32 %v8620, 16
      %v8651 = vrot.slane %v8649, 4
      %v8652 = vor.u32 %v8648, %v8651
      %v8654 = vshrl.u32 %v8621, 16
      %v8656 = vrot.slane %v8654, 3
      %v8657 = vshll.u32 %v8621, 16
      %v8659 = vrot.slane %v8657, 4
      %v8660 = vor.u32 %v8656, %v8659
      %v8661 = vsel %vm5559, %v8652, %v8660
      %v8663 = vshrl.u32 %v8622, 16
      %v8665 = vrot.slane %v8663, 3
      %v8666 = vshll.u32 %v8622, 16
      %v8668 = vrot.slane %v8666, 4
      %v8669 = vor.u32 %v8665, %v8668
      %v8670 = vsel %vm5559, %v8660, %v8669
      %v8672 = vshrl.u32 %v8623, 16
      %v8674 = vrot.slane %v8672, 3
      %v8675 = vshll.u32 %v8623, 16
      %v8677 = vrot.slane %v8675, 4
      %v8678 = vor.u32 %v8674, %v8677
      %v8679 = vsel %vm5559, %v8669, %v8678
      %v8681 = vshrl.u32 %v8624, 16
      %v8683 = vrot.slane %v8681, 3
      %v8684 = vshll.u32 %v8624, 16
      %v8686 = vrot.slane %v8684, 4
      %v8687 = vor.u32 %v8683, %v8686
      %v8688 = vsel %vm5559, %v8678, %v8687
      %v8690 = vshrl.u32 %v8625, 16
      %v8692 = vrot.slane %v8690, 3
      %v8693 = vshll.u32 %v8625, 16
      %v8695 = vrot.slane %v8693, 4
      %v8696 = vor.u32 %v8692, %v8695
      %v8697 = vsel %vm5559, %v8687, %v8696
      %v8699 = vshrl.u32 %v8626, 16
      %v8701 = vrot.slane %v8699, 3
      %v8702 = vshll.u32 %v8626, 16
      %v8704 = vrot.slane %v8702, 4
      %v8705 = vor.u32 %v8701, %v8704
      %v8706 = vsel %vm5559, %v8696, %v8705
      %v8708 = vshrl.u32 %v8627, 16
      %v8710 = vrot.slane %v8708, 3
      %v8711 = vshll.u32 %v8627, 16
      %v8713 = vrot.slane %v8711, 4
      %v8714 = vor.u32 %v8710, %v8713
      %v8715 = vsel %vm5559, %v8705, %v8714
      %v8717 = vshrl.u32 %v8628, 16
      %v8719 = vrot.slane %v8717, 3
      %v8720 = vshll.u32 %v8628, 16
      %v8722 = vrot.slane %v8720, 4
      %v8723 = vor.u32 %v8719, %v8722
      %v8724 = vsel %vm5559, %v8714, %v8723
      %v8749 = vunpack.c.l.b16 %v8629
      %v8750 = vunpack.c.l.b16 %v8630
      %v8751 = vunpack.c.l.b16 %v8631
      %v8752 = vunpack.c.l.b16 %v8632
      %v8753 = vunpack.c.l.b16 %v8633
      %v8754 = vunpack.c.l.b16 %v8634
      %v8755 = vunpack.c.l.b16 %v8635
      %v8756 = vunpack.c.l.b16 %v8636
      %v8757 = vunpack.c.l.b16 %v8637
      %v8758 = vunpack.c.l.b16 %v8638
      %v8759 = vunpack.c.l.b16 %v8639
      %v8760 = vunpack.c.l.b16 %v8640
      %v8761 = vunpack.c.l.b16 %v8641
      %v8762 = vunpack.c.l.b16 %v8642
      %v8763 = vunpack.c.l.b16 %v8643
      %v8764 = vunpack.c.l.b16 %v8644
      %v8765 = vpack.c.b16 %v8750, %v8749
      %v8766 = vpack.c.b16 %v8752, %v8751
      %v8767 = vpack.c.b16 %v8754, %v8753
      %v8768 = vpack.c.b16 %v8756, %v8755
      %v8769 = vpack.c.b16 %v8758, %v8757
      %v8770 = vpack.c.b16 %v8760, %v8759
      %v8771 = vpack.c.b16 %v8762, %v8761
      %v8772 = vpack.c.b16 %v8764, %v8763
      %8781 = vmatpush.bf16.msra.mxu0 %v8772
      %8782 = vmatpush.bf16.msra.mxu0 %v8771
      %8783 = vmatpush.bf16.msra.mxu0 %v8770
      %8784 = vmatpush.bf16.msra.mxu0 %v8769
      %8785 = vmatpush.bf16.msra.mxu0 %v8768
      %8786 = vmatpush.bf16.msra.mxu0 %v8767
      %8787 = vmatpush.bf16.msra.mxu0 %v8766
      %8788 = vmatpush.bf16.msra.mxu0 %v8765
      %8789 = vmatmul.bf16.gmra.mxu0 %v8661
      %v8790 = vpop.f32.mrf.mxu0
      %v8791 = vadd.f32 0.0, %v8790
      %v8792 = vpop.f32.mrf.mxu0
      %v8793 = vadd.f32 0.0, %v8792
      %8794 = vmatmul.bf16.gmra.mxu0 %v8670
      %v8795 = vpop.f32.mrf.mxu0
      %v8796 = vadd.f32 0.0, %v8795
      %v8797 = vpop.f32.mrf.mxu0
      %v8798 = vadd.f32 0.0, %v8797
      %8799 = vmatmul.bf16.gmra.mxu0 %v8679
      %v8800 = vpop.f32.mrf.mxu0
      %v8801 = vadd.f32 0.0, %v8800
      %v8802 = vpop.f32.mrf.mxu0
      %v8803 = vadd.f32 0.0, %v8802
      %8804 = vmatmul.bf16.gmra.mxu0 %v8688
      %v8805 = vpop.f32.mrf.mxu0
      %v8806 = vadd.f32 0.0, %v8805
      %v8807 = vpop.f32.mrf.mxu0
      %v8808 = vadd.f32 0.0, %v8807
      %8809 = vmatmul.bf16.gmra.mxu0 %v8697
      %v8810 = vpop.f32.mrf.mxu0
      %v8811 = vadd.f32 0.0, %v8810
      %v8812 = vpop.f32.mrf.mxu0
      %v8813 = vadd.f32 0.0, %v8812
      %8814 = vmatmul.bf16.gmra.mxu0 %v8706
      %v8815 = vpop.f32.mrf.mxu0
      %v8816 = vadd.f32 0.0, %v8815
      %v8817 = vpop.f32.mrf.mxu0
      %v8818 = vadd.f32 0.0, %v8817
      %8819 = vmatmul.bf16.gmra.mxu0 %v8715
      %v8820 = vpop.f32.mrf.mxu0
      %v8821 = vadd.f32 0.0, %v8820
      %v8822 = vpop.f32.mrf.mxu0
      %v8823 = vadd.f32 0.0, %v8822
      %8824 = vmatmul.bf16.gmra.mxu0 %v8724
      %v8825 = vpop.f32.mrf.mxu0
      %v8826 = vadd.f32 0.0, %v8825
      %v8827 = vpop.f32.mrf.mxu0
      %v8828 = vadd.f32 0.0, %v8827
      %8829 = vdwg.mxu0
      %v8831 = vperm.slane %v8619, 0
      %v8833 = vadd.f32 %v8831, %v8791
      %v8834 = vadd.f32 %v8831, %v8793
      %v8835 = vadd.f32 %v8831, %v8796
      %v8836 = vadd.f32 %v8831, %v8798
      %v8837 = vadd.f32 %v8831, %v8801
      %v8838 = vadd.f32 %v8831, %v8803
      %v8839 = vadd.f32 %v8831, %v8806
      %v8840 = vadd.f32 %v8831, %v8808
      %v8841 = vadd.f32 %v8831, %v8811
      %v8842 = vadd.f32 %v8831, %v8813
      %v8843 = vadd.f32 %v8831, %v8816
      %v8844 = vadd.f32 %v8831, %v8818
      %v8845 = vadd.f32 %v8831, %v8821
      %v8846 = vadd.f32 %v8831, %v8823
      %v8847 = vadd.f32 %v8831, %v8826
      %v8848 = vadd.f32 %v8831, %v8828
      %v8849 = vpack.c.bf16 %v8603, %v8602
      %v8850 = vpack.c.bf16 %v8605, %v8604
      %v8851 = vpack.c.bf16 %v8607, %v8606
      %v8852 = vpack.c.bf16 %v8609, %v8608
      %v8853 = vpack.c.bf16 %v8611, %v8610
      %v8854 = vpack.c.bf16 %v8613, %v8612
      %v8855 = vpack.c.bf16 %v8615, %v8614
      %v8856 = vpack.c.bf16 %v8617, %v8616
      %v8857 = vld [vmem:[%s5916] sm:$0xf]
      %v8858 = vld [vmem:[%s5916 + $0x4] sm:$0xf]
      %v8859 = vld [vmem:[%s5916 + $0x8] sm:$0xf]
      %v8860 = vld [vmem:[%s5916 + $0xc] sm:$0xf]
      %v8861 = vld [vmem:[%s5916 + $0x10] sm:$0xf]
      %v8862 = vld [vmem:[%s5916 + $0x14] sm:$0xf]
      %v8863 = vld [vmem:[%s5916 + $0x18] sm:$0xf]
      %v8864 = vld [vmem:[%s5916 + $0x1c] sm:$0xf]
      %v8865 = vld [vmem:[%s5916 + $0x20] sm:$0xf]
      %v8866 = vld [vmem:[%s5916 + $0x24] sm:$0xf]
      %v8867 = vld [vmem:[%s5916 + $0x28] sm:$0xf]
      %v8868 = vld [vmem:[%s5916 + $0x2c] sm:$0xf]
      %v8869 = vld [vmem:[%s5916 + $0x30] sm:$0xf]
      %v8870 = vld [vmem:[%s5916 + $0x34] sm:$0xf]
      %v8871 = vld [vmem:[%s5916 + $0x38] sm:$0xf]
      %v8872 = vld [vmem:[%s5916 + $0x3c] sm:$0xf]
      %v8889 = vunpack.c.l.b16 %v8857
      %v8890 = vunpack.c.l.b16 %v8858
      %v8891 = vunpack.c.l.b16 %v8859
      %v8892 = vunpack.c.l.b16 %v8860
      %v8893 = vunpack.c.l.b16 %v8861
      %v8894 = vunpack.c.l.b16 %v8862
      %v8895 = vunpack.c.l.b16 %v8863
      %v8896 = vunpack.c.l.b16 %v8864
      %v8897 = vunpack.c.l.b16 %v8865
      %v8898 = vunpack.c.l.b16 %v8866
      %v8899 = vunpack.c.l.b16 %v8867
      %v8900 = vunpack.c.l.b16 %v8868
      %v8901 = vunpack.c.l.b16 %v8869
      %v8902 = vunpack.c.l.b16 %v8870
      %v8903 = vunpack.c.l.b16 %v8871
      %v8904 = vunpack.c.l.b16 %v8872
      %v8905 = vpack.c.b16 %v8890, %v8889
      %v8906 = vpack.c.b16 %v8892, %v8891
      %v8907 = vpack.c.b16 %v8894, %v8893
      %v8908 = vpack.c.b16 %v8896, %v8895
      %v8909 = vpack.c.b16 %v8898, %v8897
      %v8910 = vpack.c.b16 %v8900, %v8899
      %v8911 = vpack.c.b16 %v8902, %v8901
      %v8912 = vpack.c.b16 %v8904, %v8903
      %8921 = vmatpush.bf16.msra.mxu0 %v8912
      %8922 = vmatpush.bf16.msra.mxu0 %v8911
      %8923 = vmatpush.bf16.msra.mxu0 %v8910
      %8924 = vmatpush.bf16.msra.mxu0 %v8909
      %8925 = vmatpush.bf16.msra.mxu0 %v8908
      %8926 = vmatpush.bf16.msra.mxu0 %v8907
      %8927 = vmatpush.bf16.msra.mxu0 %v8906
      %8928 = vmatpush.bf16.msra.mxu0 %v8905
      %8929 = vmatmul.bf16.gmra.mxu0 %v8849
      %v8930 = vpop.f32.mrf.mxu0
      %v8931 = vadd.f32 0.0, %v8930
      %v8932 = vpop.f32.mrf.mxu0
      %v8933 = vadd.f32 0.0, %v8932
      %8934 = vmatmul.bf16.gmra.mxu0 %v8850
      %v8935 = vpop.f32.mrf.mxu0
      %v8936 = vadd.f32 0.0, %v8935
      %v8937 = vpop.f32.mrf.mxu0
      %v8938 = vadd.f32 0.0, %v8937
      %8939 = vmatmul.bf16.gmra.mxu0 %v8851
      %v8940 = vpop.f32.mrf.mxu0
      %v8941 = vadd.f32 0.0, %v8940
      %v8942 = vpop.f32.mrf.mxu0
      %v8943 = vadd.f32 0.0, %v8942
      %8944 = vmatmul.bf16.gmra.mxu0 %v8852
      %v8945 = vpop.f32.mrf.mxu0
      %v8946 = vadd.f32 0.0, %v8945
      %v8947 = vpop.f32.mrf.mxu0
      %v8948 = vadd.f32 0.0, %v8947
      %8949 = vmatmul.bf16.gmra.mxu0 %v8853
      %v8950 = vpop.f32.mrf.mxu0
      %v8951 = vadd.f32 0.0, %v8950
      %v8952 = vpop.f32.mrf.mxu0
      %v8953 = vadd.f32 0.0, %v8952
      %8954 = vmatmul.bf16.gmra.mxu0 %v8854
      %v8955 = vpop.f32.mrf.mxu0
      %v8956 = vadd.f32 0.0, %v8955
      %v8957 = vpop.f32.mrf.mxu0
      %v8958 = vadd.f32 0.0, %v8957
      %8959 = vmatmul.bf16.gmra.mxu0 %v8855
      %v8960 = vpop.f32.mrf.mxu0
      %v8961 = vadd.f32 0.0, %v8960
      %v8962 = vpop.f32.mrf.mxu0
      %v8963 = vadd.f32 0.0, %v8962
      %8964 = vmatmul.bf16.gmra.mxu0 %v8856
      %v8965 = vpop.f32.mrf.mxu0
      %v8966 = vadd.f32 0.0, %v8965
      %v8967 = vpop.f32.mrf.mxu0
      %v8968 = vadd.f32 0.0, %v8967
      %8969 = vdwg.mxu0
      %v8970 = vadd.f32 %v8833, %v8931
      %v8971 = vadd.f32 %v8834, %v8933
      %v8972 = vadd.f32 %v8835, %v8936
      %v8973 = vadd.f32 %v8836, %v8938
      %v8974 = vadd.f32 %v8837, %v8941
      %v8975 = vadd.f32 %v8838, %v8943
      %v8976 = vadd.f32 %v8839, %v8946
      %v8977 = vadd.f32 %v8840, %v8948
      %v8978 = vadd.f32 %v8841, %v8951
      %v8979 = vadd.f32 %v8842, %v8953
      %v8980 = vadd.f32 %v8843, %v8956
      %v8981 = vadd.f32 %v8844, %v8958
      %v8982 = vadd.f32 %v8845, %v8961
      %v8983 = vadd.f32 %v8846, %v8963
      %v8984 = vadd.f32 %v8847, %v8966
      %v8985 = vadd.f32 %v8848, %v8968
      %v8986 = vpack.c.bf16 %v8618, %v8618
      %v8987 = vld [vmem:[%s6103] sm:$0xf]
      %v8988 = vld [vmem:[%s6103 + $0x4] sm:$0xf]
      %v8989 = vld [vmem:[%s6103 + $0x8] sm:$0xf]
      %v8990 = vld [vmem:[%s6103 + $0xc] sm:$0xf]
      %v8991 = vld [vmem:[%s6103 + $0x10] sm:$0xf]
      %v8992 = vld [vmem:[%s6103 + $0x14] sm:$0xf]
      %v8993 = vld [vmem:[%s6103 + $0x18] sm:$0xf]
      %v8994 = vld [vmem:[%s6103 + $0x1c] sm:$0xf]
      %v8995 = vld [vmem:[%s6103 + $0x20] sm:$0xf]
      %v8996 = vld [vmem:[%s6103 + $0x24] sm:$0xf]
      %v8997 = vld [vmem:[%s6103 + $0x28] sm:$0xf]
      %v8998 = vld [vmem:[%s6103 + $0x2c] sm:$0xf]
      %v8999 = vld [vmem:[%s6103 + $0x30] sm:$0xf]
      %v9000 = vld [vmem:[%s6103 + $0x34] sm:$0xf]
      %v9001 = vld [vmem:[%s6103 + $0x38] sm:$0xf]
      %v9002 = vld [vmem:[%s6103 + $0x3c] sm:$0xf]
      %v9004 = vshrl.u32 %v8849, 16
      %v9006 = vshll.u32 %v8849, 16
      %v9008 = vrot.slane %v9006, 1
      %v9009 = vor.u32 %v9004, %v9008
      %v9011 = vshll.u32 %v8850, 16
      %v9013 = vrot.slane %v9011, 1
      %v9014 = vsel %vm1915, %v9009, %v9013
      %v9015 = vshrl.u32 %v8850, 16
      %v9017 = vor.u32 %v9015, %v9013
      %v9019 = vshll.u32 %v8851, 16
      %v9021 = vrot.slane %v9019, 1
      %v9022 = vsel %vm1915, %v9017, %v9021
      %v9023 = vshrl.u32 %v8851, 16
      %v9025 = vor.u32 %v9023, %v9021
      %v9027 = vshll.u32 %v8852, 16
      %v9029 = vrot.slane %v9027, 1
      %v9030 = vsel %vm1915, %v9025, %v9029
      %v9031 = vshrl.u32 %v8852, 16
      %v9033 = vor.u32 %v9031, %v9029
      %v9035 = vshll.u32 %v8853, 16
      %v9037 = vrot.slane %v9035, 1
      %v9038 = vsel %vm1915, %v9033, %v9037
      %v9039 = vshrl.u32 %v8853, 16
      %v9041 = vor.u32 %v9039, %v9037
      %v9043 = vshll.u32 %v8854, 16
      %v9045 = vrot.slane %v9043, 1
      %v9046 = vsel %vm1915, %v9041, %v9045
      %v9047 = vshrl.u32 %v8854, 16
      %v9049 = vor.u32 %v9047, %v9045
      %v9051 = vshll.u32 %v8855, 16
      %v9053 = vrot.slane %v9051, 1
      %v9054 = vsel %vm1915, %v9049, %v9053
      %v9055 = vshrl.u32 %v8855, 16
      %v9057 = vor.u32 %v9055, %v9053
      %v9059 = vshll.u32 %v8856, 16
      %v9061 = vrot.slane %v9059, 1
      %v9062 = vsel %vm1915, %v9057, %v9061
      %v9063 = vshrl.u32 %v8856, 16
      %v9065 = vor.u32 %v9063, %v9061
      %v9067 = vshll.u32 %v8986, 16
      %v9069 = vrot.slane %v9067, 1
      %v9070 = vsel %vm1915, %v9065, %v9069
      %v9095 = vunpack.c.l.b16 %v8987
      %v9096 = vunpack.c.l.b16 %v8988
      %v9097 = vunpack.c.l.b16 %v8989
      %v9098 = vunpack.c.l.b16 %v8990
      %v9099 = vunpack.c.l.b16 %v8991
      %v9100 = vunpack.c.l.b16 %v8992
      %v9101 = vunpack.c.l.b16 %v8993
      %v9102 = vunpack.c.l.b16 %v8994
      %v9103 = vunpack.c.l.b16 %v8995
      %v9104 = vunpack.c.l.b16 %v8996
      %v9105 = vunpack.c.l.b16 %v8997
      %v9106 = vunpack.c.l.b16 %v8998
      %v9107 = vunpack.c.l.b16 %v8999
      %v9108 = vunpack.c.l.b16 %v9000
      %v9109 = vunpack.c.l.b16 %v9001
      %v9110 = vunpack.c.l.b16 %v9002
      %v9111 = vpack.c.b16 %v9096, %v9095
      %v9112 = vpack.c.b16 %v9098, %v9097
      %v9113 = vpack.c.b16 %v9100, %v9099
      %v9114 = vpack.c.b16 %v9102, %v9101
      %v9115 = vpack.c.b16 %v9104, %v9103
      %v9116 = vpack.c.b16 %v9106, %v9105
      %v9117 = vpack.c.b16 %v9108, %v9107
      %v9118 = vpack.c.b16 %v9110, %v9109
      %9127 = vmatpush.bf16.msra.mxu0 %v9118
      %9128 = vmatpush.bf16.msra.mxu0 %v9117
      %9129 = vmatpush.bf16.msra.mxu0 %v9116
      %9130 = vmatpush.bf16.msra.mxu0 %v9115
      %9131 = vmatpush.bf16.msra.mxu0 %v9114
      %9132 = vmatpush.bf16.msra.mxu0 %v9113
      %9133 = vmatpush.bf16.msra.mxu0 %v9112
      %9134 = vmatpush.bf16.msra.mxu0 %v9111
      %9135 = vmatmul.bf16.gmra.mxu0 %v9014
      %v9136 = vpop.f32.mrf.mxu0
      %v9137 = vadd.f32 0.0, %v9136
      %v9138 = vpop.f32.mrf.mxu0
      %v9139 = vadd.f32 0.0, %v9138
      %9140 = vmatmul.bf16.gmra.mxu0 %v9022
      %v9141 = vpop.f32.mrf.mxu0
      %v9142 = vadd.f32 0.0, %v9141
      %v9143 = vpop.f32.mrf.mxu0
      %v9144 = vadd.f32 0.0, %v9143
      %9145 = vmatmul.bf16.gmra.mxu0 %v9030
      %v9146 = vpop.f32.mrf.mxu0
      %v9147 = vadd.f32 0.0, %v9146
      %v9148 = vpop.f32.mrf.mxu0
      %v9149 = vadd.f32 0.0, %v9148
      %9150 = vmatmul.bf16.gmra.mxu0 %v9038
      %v9151 = vpop.f32.mrf.mxu0
      %v9152 = vadd.f32 0.0, %v9151
      %v9153 = vpop.f32.mrf.mxu0
      %v9154 = vadd.f32 0.0, %v9153
      %9155 = vmatmul.bf16.gmra.mxu0 %v9046
      %v9156 = vpop.f32.mrf.mxu0
      %v9157 = vadd.f32 0.0, %v9156
      %v9158 = vpop.f32.mrf.mxu0
      %v9159 = vadd.f32 0.0, %v9158
      %9160 = vmatmul.bf16.gmra.mxu0 %v9054
      %v9161 = vpop.f32.mrf.mxu0
      %v9162 = vadd.f32 0.0, %v9161
      %v9163 = vpop.f32.mrf.mxu0
      %v9164 = vadd.f32 0.0, %v9163
      %9165 = vmatmul.bf16.gmra.mxu0 %v9062
      %v9166 = vpop.f32.mrf.mxu0
      %v9167 = vadd.f32 0.0, %v9166
      %v9168 = vpop.f32.mrf.mxu0
      %v9169 = vadd.f32 0.0, %v9168
      %9170 = vmatmul.bf16.gmra.mxu0 %v9070
      %v9171 = vpop.f32.mrf.mxu0
      %v9172 = vadd.f32 0.0, %v9171
      %v9173 = vpop.f32.mrf.mxu0
      %v9174 = vadd.f32 0.0, %v9173
      %9175 = vdwg.mxu0
      %v9176 = vadd.f32 %v8970, %v9137
      %v9177 = vadd.f32 %v8971, %v9139
      %v9178 = vadd.f32 %v8972, %v9142
      %v9179 = vadd.f32 %v8973, %v9144
      %v9180 = vadd.f32 %v8974, %v9147
      %v9181 = vadd.f32 %v8975, %v9149
      %v9182 = vadd.f32 %v8976, %v9152
      %v9183 = vadd.f32 %v8977, %v9154
      %v9184 = vadd.f32 %v8978, %v9157
      %v9185 = vadd.f32 %v8979, %v9159
      %v9186 = vadd.f32 %v8980, %v9162
      %v9187 = vadd.f32 %v8981, %v9164
      %v9188 = vadd.f32 %v8982, %v9167
      %v9189 = vadd.f32 %v8983, %v9169
      %v9190 = vadd.f32 %v8984, %v9172
      %v9191 = vadd.f32 %v8985, %v9174
      %v9192 = vmul.f32 %v9176, %v7766
      %v9193 = vmul.f32 %v9177, %v7767
      %v9194 = vmul.f32 %v9178, %v7768
      %v9195 = vmul.f32 %v9179, %v7769
      %v9196 = vmul.f32 %v9180, %v7770
      %v9197 = vmul.f32 %v9181, %v7771
      %v9198 = vmul.f32 %v9182, %v7772
      %v9199 = vmul.f32 %v9183, %v7773
      %v9200 = vmul.f32 %v9184, %v7774
      %v9201 = vmul.f32 %v9185, %v7775
      %v9202 = vmul.f32 %v9186, %v7776
      %v9203 = vmul.f32 %v9187, %v7777
      %v9204 = vmul.f32 %v9188, %v7778
      %v9205 = vmul.f32 %v9189, %v7779
      %v9206 = vmul.f32 %v9190, %v7780
      %v9207 = vmul.f32 %v9191, %v7781
      %v9208 = vadd.f32 %v9192, %v7910
      %v9209 = vadd.f32 %v9193, %v7911
      %v9210 = vadd.f32 %v9194, %v7912
      %v9211 = vadd.f32 %v9195, %v7913
      %v9212 = vadd.f32 %v9196, %v7914
      %v9213 = vadd.f32 %v9197, %v7915
      %v9214 = vadd.f32 %v9198, %v7916
      %v9215 = vadd.f32 %v9199, %v7917
      %v9216 = vadd.f32 %v9200, %v7918
      %v9217 = vadd.f32 %v9201, %v7919
      %v9218 = vadd.f32 %v9202, %v7920
      %v9219 = vadd.f32 %v9203, %v7921
      %v9220 = vadd.f32 %v9204, %v7922
      %v9221 = vadd.f32 %v9205, %v7923
      %v9222 = vadd.f32 %v9206, %v7924
      %v9223 = vadd.f32 %v9207, %v7925
      %9224 = vst [vmem:[#allocation2 + $0x8] sm:$0xff] %v9208
      %9225 = vst [vmem:[#allocation2 + $0x10] sm:$0xff] %v9209
      %9226 = vst [vmem:[#allocation2 + $0x18] sm:$0xff] %v9210
      %9227 = vst [vmem:[#allocation2 + $0x20] sm:$0xff] %v9211
      %9228 = vst [vmem:[#allocation2 + $0x28] sm:$0xff] %v9212
      %9229 = vst [vmem:[#allocation2 + $0x30] sm:$0xff] %v9213
      %9230 = vst [vmem:[#allocation2 + $0x38] sm:$0xff] %v9214
      %9231 = vst [vmem:[#allocation2 + $0x40] sm:$0xff] %v9215
      %9232 = vst [vmem:[#allocation2 + $0x48] sm:$0xff] %v9216
      %9233 = vst [vmem:[#allocation2 + $0x50] sm:$0xff] %v9217
      %9234 = vst [vmem:[#allocation2 + $0x58] sm:$0xff] %v9218
      %9235 = vst [vmem:[#allocation2 + $0x60] sm:$0xff] %v9219
      %9236 = vst [vmem:[#allocation2 + $0x68] sm:$0xff] %v9220
      %9237 = vst [vmem:[#allocation2 + $0x70] sm:$0xff] %v9221
      %9238 = vst [vmem:[#allocation2 + $0x78] sm:$0xff] %v9222
      %9239 = vst [vmem:[#allocation2 + $0x80] sm:$0xff] %v9223
      %vm9240 = vcmp.lt.s32.totalorder %v4881, 0
      %v9241 = vsub.s32 0, %v4881
      %v9242 = vsel %vm9240, %v9241, %v4881
      %v9243 = vshrl.u32 %v9242, 2
      %v9244 = vand.u32 %v9242, 3
      %v9245 = vsub.s32 0, %v9244
      %v9246 = vsel %vm9240, %v9245, %v9244
      %vm9247 = vcmp.lt.s32.totalorder %v4882, 0
      %v9248 = vsub.s32 0, %v4882
      %v9249 = vsel %vm9247, %v9248, %v4882
      %v9250 = vshrl.u32 %v9249, 2
      %v9251 = vand.u32 %v9249, 3
      %v9252 = vsub.s32 0, %v9251
      %v9253 = vsel %vm9247, %v9252, %v9251
      %vm9254 = vcmp.lt.s32.totalorder %v4883, 0
      %v9255 = vsub.s32 0, %v4883
      %v9256 = vsel %vm9254, %v9255, %v4883
      %v9257 = vshrl.u32 %v9256, 2
      %v9258 = vand.u32 %v9256, 3
      %v9259 = vsub.s32 0, %v9258
      %v9260 = vsel %vm9254, %v9259, %v9258
      %vm9261 = vcmp.lt.s32.totalorder %v4884, 0
      %v9262 = vsub.s32 0, %v4884
      %v9263 = vsel %vm9261, %v9262, %v4884
      %v9264 = vshrl.u32 %v9263, 2
      %v9265 = vand.u32 %v9263, 3
      %v9266 = vsub.s32 0, %v9265
      %v9267 = vsel %vm9261, %v9266, %v9265
      %vm9268 = vcmp.lt.s32.totalorder %v4885, 0
      %v9269 = vsub.s32 0, %v4885
      %v9270 = vsel %vm9268, %v9269, %v4885
      %v9271 = vshrl.u32 %v9270, 2
      %v9272 = vand.u32 %v9270, 3
      %v9273 = vsub.s32 0, %v9272
      %v9274 = vsel %vm9268, %v9273, %v9272
      %vm9275 = vcmp.lt.s32.totalorder %v4886, 0
      %v9276 = vsub.s32 0, %v4886
      %v9277 = vsel %vm9275, %v9276, %v4886
      %v9278 = vshrl.u32 %v9277, 2
      %v9279 = vand.u32 %v9277, 3
      %v9280 = vsub.s32 0, %v9279
      %v9281 = vsel %vm9275, %v9280, %v9279
      %vm9282 = vcmp.lt.s32.totalorder %v4887, 0
      %v9283 = vsub.s32 0, %v4887
      %v9284 = vsel %vm9282, %v9283, %v4887
      %v9285 = vshrl.u32 %v9284, 2
      %v9286 = vand.u32 %v9284, 3
      %v9287 = vsub.s32 0, %v9286
      %v9288 = vsel %vm9282, %v9287, %v9286
      %vm9289 = vcmp.lt.s32.totalorder %v4888, 0
      %v9290 = vsub.s32 0, %v4888
      %v9291 = vsel %vm9289, %v9290, %v4888
      %v9292 = vshrl.u32 %v9291, 2
      %v9293 = vand.u32 %v9291, 3
      %v9294 = vsub.s32 0, %v9293
      %v9295 = vsel %vm9289, %v9294, %v9293
      %vm9296 = vcmp.ne.s32.totalorder %v9246, 0
      %vm9297 = vcmp.ne.s32.totalorder %v9253, 0
      %vm9298 = vcmp.ne.s32.totalorder %v9260, 0
      %vm9299 = vcmp.ne.s32.totalorder %v9267, 0
      %vm9300 = vcmp.ne.s32.totalorder %v9274, 0
      %vm9301 = vcmp.ne.s32.totalorder %v9281, 0
      %vm9302 = vcmp.ne.s32.totalorder %v9288, 0
      %vm9303 = vcmp.ne.s32.totalorder %v9295, 0
      %vm9304 = vcmp.lt.s32.totalorder %v9246, 0
      %vm9305 = vcmp.lt.s32.totalorder %v9253, 0
      %vm9306 = vcmp.lt.s32.totalorder %v9260, 0
      %vm9307 = vcmp.lt.s32.totalorder %v9267, 0
      %vm9308 = vcmp.lt.s32.totalorder %v9274, 0
      %vm9309 = vcmp.lt.s32.totalorder %v9281, 0
      %vm9310 = vcmp.lt.s32.totalorder %v9288, 0
      %vm9311 = vcmp.lt.s32.totalorder %v9295, 0
      %vm9312 = vmand %vm9304, %vm9296
      %vm9313 = vmand %vm9305, %vm9297
      %vm9314 = vmand %vm9306, %vm9298
      %vm9315 = vmand %vm9307, %vm9299
      %vm9316 = vmand %vm9308, %vm9300
      %vm9317 = vmand %vm9309, %vm9301
      %vm9318 = vmand %vm9310, %vm9302
      %vm9319 = vmand %vm9311, %vm9303
      %v9320 = vadd.s32 %v9246, 4
      %v9321 = vadd.s32 %v9253, 4
      %v9322 = vadd.s32 %v9260, 4
      %v9323 = vadd.s32 %v9267, 4
      %v9324 = vadd.s32 %v9274, 4
      %v9325 = vadd.s32 %v9281, 4
      %v9326 = vadd.s32 %v9288, 4
      %v9327 = vadd.s32 %v9295, 4
      %v9328 = vsel %vm9312, %v9320, %v9246
      %v9329 = vsel %vm9313, %v9321, %v9253
      %v9330 = vsel %vm9314, %v9322, %v9260
      %v9331 = vsel %vm9315, %v9323, %v9267
      %v9332 = vsel %vm9316, %v9324, %v9274
      %v9333 = vsel %vm9317, %v9325, %v9281
      %v9334 = vsel %vm9318, %v9326, %v9288
      %v9335 = vsel %vm9319, %v9327, %v9295
      %vm9336 = vcmp.lt.s32.totalorder %v9328, 3
      %vm9337 = vcmp.lt.s32.totalorder %v9329, 3
      %vm9338 = vcmp.lt.s32.totalorder %v9330, 3
      %vm9339 = vcmp.lt.s32.totalorder %v9331, 3
      %vm9340 = vcmp.lt.s32.totalorder %v9332, 3
      %vm9341 = vcmp.lt.s32.totalorder %v9333, 3
      %vm9342 = vcmp.lt.s32.totalorder %v9334, 3
      %vm9343 = vcmp.lt.s32.totalorder %v9335, 3
      %v9344 = vsel %vm9336, 1, 0
      %v9345 = vsel %vm9337, 1, 0
      %v9346 = vsel %vm9338, 1, 0
      %v9347 = vsel %vm9339, 1, 0
      %v9348 = vsel %vm9340, 1, 0
      %v9349 = vsel %vm9341, 1, 0
      %v9350 = vsel %vm9342, 1, 0
      %v9351 = vsel %vm9343, 1, 0
      %v9352 = vcvt.s32.f32 %v9344
      %v9353 = vcvt.s32.f32 %v9345
      %v9354 = vcvt.s32.f32 %v9346
      %v9355 = vcvt.s32.f32 %v9347
      %v9356 = vcvt.s32.f32 %v9348
      %v9357 = vcvt.s32.f32 %v9349
      %v9358 = vcvt.s32.f32 %v9350
      %v9359 = vcvt.s32.f32 %v9351
      %v9360 = vld [vmem:[%s7782] ss:$2 sm:$0xff]
      %v9361 = vld [vmem:[%s7784] ss:$2 sm:$0xff]
      %v9362 = vld [vmem:[%s7786] ss:$2 sm:$0xff]
      %v9363 = vld [vmem:[%s7788] ss:$2 sm:$0xff]
      %v9364 = vld [vmem:[%s7790] ss:$2 sm:$0xff]
      %v9365 = vld [vmem:[%s7792] ss:$2 sm:$0xff]
      %v9366 = vld [vmem:[%s7794] ss:$2 sm:$0xff]
      %v9367 = vld [vmem:[%s7796] ss:$2 sm:$0xff]
      %v9368 = vld [vmem:[%s7814] ss:$2 sm:$0xff]
      %v9369 = vld [vmem:[%s7816] ss:$2 sm:$0xff]
      %v9370 = vld [vmem:[%s7818] ss:$2 sm:$0xff]
      %v9371 = vld [vmem:[%s7820] ss:$2 sm:$0xff]
      %v9372 = vld [vmem:[%s7822] ss:$2 sm:$0xff]
      %v9373 = vld [vmem:[%s7824] ss:$2 sm:$0xff]
      %v9374 = vld [vmem:[%s7826] ss:$2 sm:$0xff]
      %v9375 = vld [vmem:[%s7828] ss:$2 sm:$0xff]
      %v9376 = vld [vmem:[%s7846] ss:$2 sm:$0xff]
      %v9377 = vld [vmem:[%s7848] ss:$2 sm:$0xff]
      %v9378 = vld [vmem:[%s7850] ss:$2 sm:$0xff]
      %v9379 = vld [vmem:[%s7852] ss:$2 sm:$0xff]
      %v9380 = vld [vmem:[%s7854] ss:$2 sm:$0xff]
      %v9381 = vld [vmem:[%s7856] ss:$2 sm:$0xff]
      %v9382 = vld [vmem:[%s7858] ss:$2 sm:$0xff]
      %v9383 = vld [vmem:[%s7860] ss:$2 sm:$0xff]
      %v9384 = vmax.f32 %v9360, %v9368
      %v9385 = vmax.f32 %v9361, %v9369
      %v9386 = vmax.f32 %v9362, %v9370
      %v9387 = vmax.f32 %v9363, %v9371
      %v9388 = vmax.f32 %v9364, %v9372
      %v9389 = vmax.f32 %v9365, %v9373
      %v9390 = vmax.f32 %v9366, %v9374
      %v9391 = vmax.f32 %v9367, %v9375
      %v9392 = vmax.f32 %v9384, %v9376
      %v9393 = vmax.f32 %v9385, %v9377
      %v9394 = vmax.f32 %v9386, %v9378
      %v9395 = vmax.f32 %v9387, %v9379
      %v9396 = vmax.f32 %v9388, %v9380
      %v9397 = vmax.f32 %v9389, %v9381
      %v9398 = vmax.f32 %v9390, %v9382
      %v9399 = vmax.f32 %v9391, %v9383
      %v9400 = vmul.f32 %v9392, %v9352
      %v9401 = vmul.f32 %v9393, %v9353
      %v9402 = vmul.f32 %v9394, %v9354
      %v9403 = vmul.f32 %v9395, %v9355
      %v9404 = vmul.f32 %v9396, %v9356
      %v9405 = vmul.f32 %v9397, %v9357
      %v9406 = vmul.f32 %v9398, %v9358
      %v9407 = vmul.f32 %v9399, %v9359
      %9408 = vst [vmem:[#allocation2 + $0x8] sm:$0xff] %v9400
      %9409 = vst [vmem:[#allocation2 + $0x10] sm:$0xff] %v9401
      %9410 = vst [vmem:[#allocation2 + $0x18] sm:$0xff] %v9402
      %9411 = vst [vmem:[#allocation2 + $0x20] sm:$0xff] %v9403
      %9412 = vst [vmem:[#allocation2 + $0x28] sm:$0xff] %v9404
      %9413 = vst [vmem:[#allocation2 + $0x30] sm:$0xff] %v9405
      %9414 = vst [vmem:[#allocation2 + $0x38] sm:$0xff] %v9406
      %9415 = vst [vmem:[#allocation2 + $0x40] sm:$0xff] %v9407
      %v9416 = vld [vmem:[#allocation2] sm:$0xff]
      %v9417 = vld [vmem:[#allocation2 + $0x8] sm:$0xff]
      %v9418 = vld [vmem:[#allocation2 + $0x10] sm:$0xff]
      %v9419 = vld [vmem:[#allocation2 + $0x18] sm:$0xff]
      %v9420 = vld [vmem:[#allocation2 + $0x20] sm:$0xff]
      %v9421 = vld [vmem:[#allocation2 + $0x28] sm:$0xff]
      %v9422 = vld [vmem:[#allocation2 + $0x30] sm:$0xff]
      %v9423 = vld [vmem:[#allocation2 + $0x38] sm:$0xff]
      %v9424 = vld [vmem:[#allocation2 + $0x40] sm:$0xff]
      %v9425 = vld [vmem:[#allocation2 + $0x48] sm:$0xff]
      %v9426 = vmax.f32 %v9416, 0.0
      %v9427 = vmax.f32 %v9417, 0.0
      %v9428 = vmax.f32 %v9418, 0.0
      %v9429 = vmax.f32 %v9419, 0.0
      %v9430 = vmax.f32 %v9420, 0.0
      %v9431 = vmax.f32 %v9421, 0.0
      %v9432 = vmax.f32 %v9422, 0.0
      %v9433 = vmax.f32 %v9423, 0.0
      %v9434 = vmax.f32 %v9424, 0.0
      %v9435 = vmax.f32 %v9425, 0.0
      %v9436 = vld [vmem:[%s4] sm:$0x1]
      %v9437 = vpack.c.bf16 %v9427, %v9426
      %v9438 = vpack.c.bf16 %v9429, %v9428
      %v9439 = vpack.c.bf16 %v9431, %v9430
      %v9440 = vpack.c.bf16 %v9433, %v9432
      %v9441 = vpack.c.bf16 %v9434, %v9434
      %v9442 = vld [vmem:[%s3] sm:$0xf]
      %v9443 = vld [vmem:[%s3 + $0x4] sm:$0xf]
      %v9444 = vld [vmem:[%s3 + $0x8] sm:$0xf]
      %v9445 = vld [vmem:[%s3 + $0xc] sm:$0xf]
      %v9446 = vld [vmem:[%s3 + $0x10] sm:$0xf]
      %v9447 = vld [vmem:[%s3 + $0x14] sm:$0xf]
      %v9448 = vld [vmem:[%s3 + $0x18] sm:$0xf]
      %v9449 = vld [vmem:[%s3 + $0x1c] sm:$0xf]
      %v9450 = vld [vmem:[%s3 + $0x20] sm:$0xf]
      %v9451 = vld [vmem:[%s3 + $0x24] sm:$0xf]
      %v9452 = vld [vmem:[%s3 + $0x28] sm:$0xf]
      %v9453 = vld [vmem:[%s3 + $0x2c] sm:$0xf]
      %v9454 = vld [vmem:[%s3 + $0x30] sm:$0xf]
      %v9455 = vld [vmem:[%s3 + $0x34] sm:$0xf]
      %v9456 = vld [vmem:[%s3 + $0x38] sm:$0xf]
      %v9457 = vld [vmem:[%s3 + $0x3c] sm:$0xf]
      %v9459 = vshrl.u32 %v9437, 16
      %v9461 = vrot.slane %v9459, 3
      %v9462 = vshll.u32 %v9437, 16
      %v9464 = vrot.slane %v9462, 4
      %v9465 = vor.u32 %v9461, %v9464
      %v9467 = vshrl.u32 %v9438, 16
      %v9469 = vrot.slane %v9467, 3
      %v9470 = vshll.u32 %v9438, 16
      %v9472 = vrot.slane %v9470, 4
      %v9473 = vor.u32 %v9469, %v9472
      %v9474 = vsel %vm5559, %v9465, %v9473
      %v9476 = vshrl.u32 %v9439, 16
      %v9478 = vrot.slane %v9476, 3
      %v9479 = vshll.u32 %v9439, 16
      %v9481 = vrot.slane %v9479, 4
      %v9482 = vor.u32 %v9478, %v9481
      %v9483 = vsel %vm5559, %v9473, %v9482
      %v9485 = vshrl.u32 %v9440, 16
      %v9487 = vrot.slane %v9485, 3
      %v9488 = vshll.u32 %v9440, 16
      %v9490 = vrot.slane %v9488, 4
      %v9491 = vor.u32 %v9487, %v9490
      %v9492 = vsel %vm5559, %v9482, %v9491
      %v9494 = vshrl.u32 %v9441, 16
      %v9496 = vrot.slane %v9494, 3
      %v9497 = vshll.u32 %v9441, 16
      %v9499 = vrot.slane %v9497, 4
      %v9500 = vor.u32 %v9496, %v9499
      %v9501 = vsel %vm5559, %v9491, %v9500
      %v9522 = vunpack.c.l.b16 %v9442
      %v9523 = vunpack.c.l.b16 %v9443
      %v9524 = vunpack.c.l.b16 %v9444
      %v9525 = vunpack.c.l.b16 %v9445
      %v9526 = vunpack.c.l.b16 %v9446
      %v9527 = vunpack.c.l.b16 %v9447
      %v9528 = vunpack.c.l.b16 %v9448
      %v9529 = vunpack.c.l.b16 %v9449
      %v9530 = vunpack.c.l.b16 %v9450
      %v9531 = vunpack.c.l.b16 %v9451
      %v9532 = vunpack.c.l.b16 %v9452
      %v9533 = vunpack.c.l.b16 %v9453
      %v9534 = vunpack.c.l.b16 %v9454
      %v9535 = vunpack.c.l.b16 %v9455
      %v9536 = vunpack.c.l.b16 %v9456
      %v9537 = vunpack.c.l.b16 %v9457
      %v9538 = vpack.c.b16 %v9523, %v9522
      %v9539 = vpack.c.b16 %v9525, %v9524
      %v9540 = vpack.c.b16 %v9527, %v9526
      %v9541 = vpack.c.b16 %v9529, %v9528
      %v9542 = vpack.c.b16 %v9531, %v9530
      %v9543 = vpack.c.b16 %v9533, %v9532
      %v9544 = vpack.c.b16 %v9535, %v9534
      %v9545 = vpack.c.b16 %v9537, %v9536
      %9554 = vmatpush.bf16.msra.mxu0 %v9545
      %9555 = vmatpush.bf16.msra.mxu0 %v9544
      %9556 = vmatpush.bf16.msra.mxu0 %v9543
      %9557 = vmatpush.bf16.msra.mxu0 %v9542
      %9558 = vmatpush.bf16.msra.mxu0 %v9541
      %9559 = vmatpush.bf16.msra.mxu0 %v9540
      %9560 = vmatpush.bf16.msra.mxu0 %v9539
      %9561 = vmatpush.bf16.msra.mxu0 %v9538
      %9562 = vmatmul.bf16.gmra.mxu0 %v9474
      %v9563 = vpop.f32.mrf.mxu0
      %v9564 = vadd.f32 0.0, %v9563
      %v9565 = vpop.f32.mrf.mxu0
      %v9566 = vadd.f32 0.0, %v9565
      %9567 = vmatmul.bf16.gmra.mxu0 %v9483
      %v9568 = vpop.f32.mrf.mxu0
      %v9569 = vadd.f32 0.0, %v9568
      %v9570 = vpop.f32.mrf.mxu0
      %v9571 = vadd.f32 0.0, %v9570
      %9572 = vmatmul.bf16.gmra.mxu0 %v9492
      %v9573 = vpop.f32.mrf.mxu0
      %v9574 = vadd.f32 0.0, %v9573
      %v9575 = vpop.f32.mrf.mxu0
      %v9576 = vadd.f32 0.0, %v9575
      %9577 = vmatmul.bf16.gmra.mxu0 %v9501
      %v9578 = vpop.f32.mrf.mxu0
      %v9579 = vadd.f32 0.0, %v9578
      %v9580 = vpop.f32.mrf.mxu0
      %v9581 = vadd.f32 0.0, %v9580
      %9582 = vdwg.mxu0
      %v9584 = vperm.slane %v9436, 0
      %v9586 = vadd.f32 %v9584, %v9564
      %v9587 = vadd.f32 %v9584, %v9566
      %v9588 = vadd.f32 %v9584, %v9569
      %v9589 = vadd.f32 %v9584, %v9571
      %v9590 = vadd.f32 %v9584, %v9574
      %v9591 = vadd.f32 %v9584, %v9576
      %v9592 = vadd.f32 %v9584, %v9579
      %v9593 = vadd.f32 %v9584, %v9581
      %v9594 = vpack.c.bf16 %v9428, %v9427
      %v9595 = vpack.c.bf16 %v9430, %v9429
      %v9596 = vpack.c.bf16 %v9432, %v9431
      %v9597 = vpack.c.bf16 %v9434, %v9433
      %v9598 = vld [vmem:[%s5916] sm:$0xf]
      %v9599 = vld [vmem:[%s5916 + $0x4] sm:$0xf]
      %v9600 = vld [vmem:[%s5916 + $0x8] sm:$0xf]
      %v9601 = vld [vmem:[%s5916 + $0xc] sm:$0xf]
      %v9602 = vld [vmem:[%s5916 + $0x10] sm:$0xf]
      %v9603 = vld [vmem:[%s5916 + $0x14] sm:$0xf]
      %v9604 = vld [vmem:[%s5916 + $0x18] sm:$0xf]
      %v9605 = vld [vmem:[%s5916 + $0x1c] sm:$0xf]
      %v9606 = vld [vmem:[%s5916 + $0x20] sm:$0xf]
      %v9607 = vld [vmem:[%s5916 + $0x24] sm:$0xf]
      %v9608 = vld [vmem:[%s5916 + $0x28] sm:$0xf]
      %v9609 = vld [vmem:[%s5916 + $0x2c] sm:$0xf]
      %v9610 = vld [vmem:[%s5916 + $0x30] sm:$0xf]
      %v9611 = vld [vmem:[%s5916 + $0x34] sm:$0xf]
      %v9612 = vld [vmem:[%s5916 + $0x38] sm:$0xf]
      %v9613 = vld [vmem:[%s5916 + $0x3c] sm:$0xf]
      %v9630 = vunpack.c.l.b16 %v9598
      %v9631 = vunpack.c.l.b16 %v9599
      %v9632 = vunpack.c.l.b16 %v9600
      %v9633 = vunpack.c.l.b16 %v9601
      %v9634 = vunpack.c.l.b16 %v9602
      %v9635 = vunpack.c.l.b16 %v9603
      %v9636 = vunpack.c.l.b16 %v9604
      %v9637 = vunpack.c.l.b16 %v9605
      %v9638 = vunpack.c.l.b16 %v9606
      %v9639 = vunpack.c.l.b16 %v9607
      %v9640 = vunpack.c.l.b16 %v9608
      %v9641 = vunpack.c.l.b16 %v9609
      %v9642 = vunpack.c.l.b16 %v9610
      %v9643 = vunpack.c.l.b16 %v9611
      %v9644 = vunpack.c.l.b16 %v9612
      %v9645 = vunpack.c.l.b16 %v9613
      %v9646 = vpack.c.b16 %v9631, %v9630
      %v9647 = vpack.c.b16 %v9633, %v9632
      %v9648 = vpack.c.b16 %v9635, %v9634
      %v9649 = vpack.c.b16 %v9637, %v9636
      %v9650 = vpack.c.b16 %v9639, %v9638
      %v9651 = vpack.c.b16 %v9641, %v9640
      %v9652 = vpack.c.b16 %v9643, %v9642
      %v9653 = vpack.c.b16 %v9645, %v9644
      %9662 = vmatpush.bf16.msra.mxu0 %v9653
      %9663 = vmatpush.bf16.msra.mxu0 %v9652
      %9664 = vmatpush.bf16.msra.mxu0 %v9651
      %9665 = vmatpush.bf16.msra.mxu0 %v9650
      %9666 = vmatpush.bf16.msra.mxu0 %v9649
      %9667 = vmatpush.bf16.msra.mxu0 %v9648
      %9668 = vmatpush.bf16.msra.mxu0 %v9647
      %9669 = vmatpush.bf16.msra.mxu0 %v9646
      %9670 = vmatmul.bf16.gmra.mxu0 %v9594
      %v9671 = vpop.f32.mrf.mxu0
      %v9672 = vadd.f32 0.0, %v9671
      %v9673 = vpop.f32.mrf.mxu0
      %v9674 = vadd.f32 0.0, %v9673
      %9675 = vmatmul.bf16.gmra.mxu0 %v9595
      %v9676 = vpop.f32.mrf.mxu0
      %v9677 = vadd.f32 0.0, %v9676
      %v9678 = vpop.f32.mrf.mxu0
      %v9679 = vadd.f32 0.0, %v9678
      %9680 = vmatmul.bf16.gmra.mxu0 %v9596
      %v9681 = vpop.f32.mrf.mxu0
      %v9682 = vadd.f32 0.0, %v9681
      %v9683 = vpop.f32.mrf.mxu0
      %v9684 = vadd.f32 0.0, %v9683
      %9685 = vmatmul.bf16.gmra.mxu0 %v9597
      %v9686 = vpop.f32.mrf.mxu0
      %v9687 = vadd.f32 0.0, %v9686
      %v9688 = vpop.f32.mrf.mxu0
      %v9689 = vadd.f32 0.0, %v9688
      %9690 = vdwg.mxu0
      %v9691 = vadd.f32 %v9586, %v9672
      %v9692 = vadd.f32 %v9587, %v9674
      %v9693 = vadd.f32 %v9588, %v9677
      %v9694 = vadd.f32 %v9589, %v9679
      %v9695 = vadd.f32 %v9590, %v9682
      %v9696 = vadd.f32 %v9591, %v9684
      %v9697 = vadd.f32 %v9592, %v9687
      %v9698 = vadd.f32 %v9593, %v9689
      %v9699 = vpack.c.bf16 %v9435, %v9435
      %v9700 = vld [vmem:[%s6103] sm:$0xf]
      %v9701 = vld [vmem:[%s6103 + $0x4] sm:$0xf]
      %v9702 = vld [vmem:[%s6103 + $0x8] sm:$0xf]
      %v9703 = vld [vmem:[%s6103 + $0xc] sm:$0xf]
      %v9704 = vld [vmem:[%s6103 + $0x10] sm:$0xf]
      %v9705 = vld [vmem:[%s6103 + $0x14] sm:$0xf]
      %v9706 = vld [vmem:[%s6103 + $0x18] sm:$0xf]
      %v9707 = vld [vmem:[%s6103 + $0x1c] sm:$0xf]
      %v9708 = vld [vmem:[%s6103 + $0x20] sm:$0xf]
      %v9709 = vld [vmem:[%s6103 + $0x24] sm:$0xf]
      %v9710 = vld [vmem:[%s6103 + $0x28] sm:$0xf]
      %v9711 = vld [vmem:[%s6103 + $0x2c] sm:$0xf]
      %v9712 = vld [vmem:[%s6103 + $0x30] sm:$0xf]
      %v9713 = vld [vmem:[%s6103 + $0x34] sm:$0xf]
      %v9714 = vld [vmem:[%s6103 + $0x38] sm:$0xf]
      %v9715 = vld [vmem:[%s6103 + $0x3c] sm:$0xf]
      %v9717 = vshrl.u32 %v9594, 16
      %v9719 = vshll.u32 %v9594, 16
      %v9721 = vrot.slane %v9719, 1
      %v9722 = vor.u32 %v9717, %v9721
      %v9724 = vshll.u32 %v9595, 16
      %v9726 = vrot.slane %v9724, 1
      %v9727 = vsel %vm1915, %v9722, %v9726
      %v9728 = vshrl.u32 %v9595, 16
      %v9730 = vor.u32 %v9728, %v9726
      %v9732 = vshll.u32 %v9596, 16
      %v9734 = vrot.slane %v9732, 1
      %v9735 = vsel %vm1915, %v9730, %v9734
      %v9736 = vshrl.u32 %v9596, 16
      %v9738 = vor.u32 %v9736, %v9734
      %v9740 = vshll.u32 %v9597, 16
      %v9742 = vrot.slane %v9740, 1
      %v9743 = vsel %vm1915, %v9738, %v9742
      %v9744 = vshrl.u32 %v9597, 16
      %v9746 = vor.u32 %v9744, %v9742
      %v9748 = vshll.u32 %v9699, 16
      %v9750 = vrot.slane %v9748, 1
      %v9751 = vsel %vm1915, %v9746, %v9750
      %v9772 = vunpack.c.l.b16 %v9700
      %v9773 = vunpack.c.l.b16 %v9701
      %v9774 = vunpack.c.l.b16 %v9702
      %v9775 = vunpack.c.l.b16 %v9703
      %v9776 = vunpack.c.l.b16 %v9704
      %v9777 = vunpack.c.l.b16 %v9705
      %v9778 = vunpack.c.l.b16 %v9706
      %v9779 = vunpack.c.l.b16 %v9707
      %v9780 = vunpack.c.l.b16 %v9708
      %v9781 = vunpack.c.l.b16 %v9709
      %v9782 = vunpack.c.l.b16 %v9710
      %v9783 = vunpack.c.l.b16 %v9711
      %v9784 = vunpack.c.l.b16 %v9712
      %v9785 = vunpack.c.l.b16 %v9713
      %v9786 = vunpack.c.l.b16 %v9714
      %v9787 = vunpack.c.l.b16 %v9715
      %v9788 = vpack.c.b16 %v9773, %v9772
      %v9789 = vpack.c.b16 %v9775, %v9774
      %v9790 = vpack.c.b16 %v9777, %v9776
      %v9791 = vpack.c.b16 %v9779, %v9778
      %v9792 = vpack.c.b16 %v9781, %v9780
      %v9793 = vpack.c.b16 %v9783, %v9782
      %v9794 = vpack.c.b16 %v9785, %v9784
      %v9795 = vpack.c.b16 %v9787, %v9786
      %9804 = vmatpush.bf16.msra.mxu0 %v9795
      %9805 = vmatpush.bf16.msra.mxu0 %v9794
      %9806 = vmatpush.bf16.msra.mxu0 %v9793
      %9807 = vmatpush.bf16.msra.mxu0 %v9792
      %9808 = vmatpush.bf16.msra.mxu0 %v9791
      %9809 = vmatpush.bf16.msra.mxu0 %v9790
      %9810 = vmatpush.bf16.msra.mxu0 %v9789
      %9811 = vmatpush.bf16.msra.mxu0 %v9788
      %9812 = vmatmul.bf16.gmra.mxu0 %v9727
      %v9813 = vpop.f32.mrf.mxu0
      %v9814 = vadd.f32 0.0, %v9813
      %v9815 = vpop.f32.mrf.mxu0
      %v9816 = vadd.f32 0.0, %v9815
      %9817 = vmatmul.bf16.gmra.mxu0 %v9735
      %v9818 = vpop.f32.mrf.mxu0
      %v9819 = vadd.f32 0.0, %v9818
      %v9820 = vpop.f32.mrf.mxu0
      %v9821 = vadd.f32 0.0, %v9820
      %9822 = vmatmul.bf16.gmra.mxu0 %v9743
      %v9823 = vpop.f32.mrf.mxu0
      %v9824 = vadd.f32 0.0, %v9823
      %v9825 = vpop.f32.mrf.mxu0
      %v9826 = vadd.f32 0.0, %v9825
      %9827 = vmatmul.bf16.gmra.mxu0 %v9751
      %v9828 = vpop.f32.mrf.mxu0
      %v9829 = vadd.f32 0.0, %v9828
      %v9830 = vpop.f32.mrf.mxu0
      %v9831 = vadd.f32 0.0, %v9830
      %9832 = vdwg.mxu0
      %v9833 = vadd.f32 %v9691, %v9814
      %v9834 = vadd.f32 %v9692, %v9816
      %v9835 = vadd.f32 %v9693, %v9819
      %v9836 = vadd.f32 %v9694, %v9821
      %v9837 = vadd.f32 %v9695, %v9824
      %v9838 = vadd.f32 %v9696, %v9826
      %v9839 = vadd.f32 %v9697, %v9829
      %v9840 = vadd.f32 %v9698, %v9831
      %v9841 = vmul.f32 %v9833, %v9352
      %v9842 = vmul.f32 %v9834, %v9353
      %v9843 = vmul.f32 %v9835, %v9354
      %v9844 = vmul.f32 %v9836, %v9355
      %v9845 = vmul.f32 %v9837, %v9356
      %v9846 = vmul.f32 %v9838, %v9357
      %v9847 = vmul.f32 %v9839, %v9358
      %v9848 = vmul.f32 %v9840, %v9359
      %9849 = vst [vmem:[#allocation2 + $0x8] sm:$0xff] %v9841
      %9850 = vst [vmem:[#allocation2 + $0x10] sm:$0xff] %v9842
      %9851 = vst [vmem:[#allocation2 + $0x18] sm:$0xff] %v9843
      %9852 = vst [vmem:[#allocation2 + $0x20] sm:$0xff] %v9844
      %9853 = vst [vmem:[#allocation2 + $0x28] sm:$0xff] %v9845
      %9854 = vst [vmem:[#allocation2 + $0x30] sm:$0xff] %v9846
      %9855 = vst [vmem:[#allocation2 + $0x38] sm:$0xff] %v9847
      %9856 = vst [vmem:[#allocation2 + $0x40] sm:$0xff] %v9848
      %v9857 = vld [vmem:[#allocation2] sm:$0xff]
      %v9858 = vld [vmem:[#allocation2 + $0x8] sm:$0xff]
      %v9859 = vld [vmem:[#allocation2 + $0x10] sm:$0xff]
      %v9860 = vld [vmem:[#allocation2 + $0x18] sm:$0xff]
      %v9861 = vld [vmem:[#allocation2 + $0x20] sm:$0xff]
      %v9862 = vld [vmem:[#allocation2 + $0x28] sm:$0xff]
      %v9863 = vld [vmem:[#allocation2 + $0x30] sm:$0xff]
      %v9864 = vld [vmem:[#allocation2 + $0x38] sm:$0xff]
      %v9865 = vld [vmem:[#allocation2 + $0x40] sm:$0xff]
      %v9866 = vld [vmem:[#allocation2 + $0x48] sm:$0xff]
      %v9867 = vmax.f32 %v9857, 0.0
      %v9868 = vmax.f32 %v9858, 0.0
      %v9869 = vmax.f32 %v9859, 0.0
      %v9870 = vmax.f32 %v9860, 0.0
      %v9871 = vmax.f32 %v9861, 0.0
      %v9872 = vmax.f32 %v9862, 0.0
      %v9873 = vmax.f32 %v9863, 0.0
      %v9874 = vmax.f32 %v9864, 0.0
      %v9875 = vmax.f32 %v9865, 0.0
      %v9876 = vmax.f32 %v9866, 0.0
      %v9877 = vld [vmem:[%s4] sm:$0x1]
      %v9878 = vpack.c.bf16 %v9868, %v9867
      %v9879 = vpack.c.bf16 %v9870, %v9869
      %v9880 = vpack.c.bf16 %v9872, %v9871
      %v9881 = vpack.c.bf16 %v9874, %v9873
      %v9882 = vpack.c.bf16 %v9875, %v9875
      %v9883 = vld [vmem:[%s3] sm:$0xf]
      %v9884 = vld [vmem:[%s3 + $0x4] sm:$0xf]
      %v9885 = vld [vmem:[%s3 + $0x8] sm:$0xf]
      %v9886 = vld [vmem:[%s3 + $0xc] sm:$0xf]
      %v9887 = vld [vmem:[%s3 + $0x10] sm:$0xf]
      %v9888 = vld [vmem:[%s3 + $0x14] sm:$0xf]
      %v9889 = vld [vmem:[%s3 + $0x18] sm:$0xf]
      %v9890 = vld [vmem:[%s3 + $0x1c] sm:$0xf]
      %v9891 = vld [vmem:[%s3 + $0x20] sm:$0xf]
      %v9892 = vld [vmem:[%s3 + $0x24] sm:$0xf]
      %v9893 = vld [vmem:[%s3 + $0x28] sm:$0xf]
      %v9894 = vld [vmem:[%s3 + $0x2c] sm:$0xf]
      %v9895 = vld [vmem:[%s3 + $0x30] sm:$0xf]
      %v9896 = vld [vmem:[%s3 + $0x34] sm:$0xf]
      %v9897 = vld [vmem:[%s3 + $0x38] sm:$0xf]
      %v9898 = vld [vmem:[%s3 + $0x3c] sm:$0xf]
      %v9900 = vshrl.u32 %v9878, 16
      %v9902 = vrot.slane %v9900, 3
      %v9903 = vshll.u32 %v9878, 16
      %v9905 = vrot.slane %v9903, 4
      %v9906 = vor.u32 %v9902, %v9905
      %v9908 = vshrl.u32 %v9879, 16
      %v9910 = vrot.slane %v9908, 3
      %v9911 = vshll.u32 %v9879, 16
      %v9913 = vrot.slane %v9911, 4
      %v9914 = vor.u32 %v9910, %v9913
      %v9915 = vsel %vm5559, %v9906, %v9914
      %v9917 = vshrl.u32 %v9880, 16
      %v9919 = vrot.slane %v9917, 3
      %v9920 = vshll.u32 %v9880, 16
      %v9922 = vrot.slane %v9920, 4
      %v9923 = vor.u32 %v9919, %v9922
      %v9924 = vsel %vm5559, %v9914, %v9923
      %v9926 = vshrl.u32 %v9881, 16
      %v9928 = vrot.slane %v9926, 3
      %v9929 = vshll.u32 %v9881, 16
      %v9931 = vrot.slane %v9929, 4
      %v9932 = vor.u32 %v9928, %v9931
      %v9933 = vsel %vm5559, %v9923, %v9932
      %v9935 = vshrl.u32 %v9882, 16
      %v9937 = vrot.slane %v9935, 3
      %v9938 = vshll.u32 %v9882, 16
      %v9940 = vrot.slane %v9938, 4
      %v9941 = vor.u32 %v9937, %v9940
      %v9942 = vsel %vm5559, %v9932, %v9941
      %v9963 = vunpack.c.l.b16 %v9883
      %v9964 = vunpack.c.l.b16 %v9884
      %v9965 = vunpack.c.l.b16 %v9885
      %v9966 = vunpack.c.l.b16 %v9886
      %v9967 = vunpack.c.l.b16 %v9887
      %v9968 = vunpack.c.l.b16 %v9888
      %v9969 = vunpack.c.l.b16 %v9889
      %v9970 = vunpack.c.l.b16 %v9890
      %v9971 = vunpack.c.l.b16 %v9891
      %v9972 = vunpack.c.l.b16 %v9892
      %v9973 = vunpack.c.l.b16 %v9893
      %v9974 = vunpack.c.l.b16 %v9894
      %v9975 = vunpack.c.l.b16 %v9895
      %v9976 = vunpack.c.l.b16 %v9896
      %v9977 = vunpack.c.l.b16 %v9897
      %v9978 = vunpack.c.l.b16 %v9898
      %v9979 = vpack.c.b16 %v9964, %v9963
      %v9980 = vpack.c.b16 %v9966, %v9965
      %v9981 = vpack.c.b16 %v9968, %v9967
      %v9982 = vpack.c.b16 %v9970, %v9969
      %v9983 = vpack.c.b16 %v9972, %v9971
      %v9984 = vpack.c.b16 %v9974, %v9973
      %v9985 = vpack.c.b16 %v9976, %v9975
      %v9986 = vpack.c.b16 %v9978, %v9977
      %9995 = vmatpush.bf16.msra.mxu0 %v9986
      %9996 = vmatpush.bf16.msra.mxu0 %v9985
      %9997 = vmatpush.bf16.msra.mxu0 %v9984
      %9998 = vmatpush.bf16.msra.mxu0 %v9983
      %9999 = vmatpush.bf16.msra.mxu0 %v9982
      %10000 = vmatpush.bf16.msra.mxu0 %v9981
      %10001 = vmatpush.bf16.msra.mxu0 %v9980
      %10002 = vmatpush.bf16.msra.mxu0 %v9979
      %10003 = vmatmul.bf16.gmra.mxu0 %v9915
      %v10004 = vpop.f32.mrf.mxu0
      %v10005 = vadd.f32 0.0, %v10004
      %v10006 = vpop.f32.mrf.mxu0
      %v10007 = vadd.f32 0.0, %v10006
      %10008 = vmatmul.bf16.gmra.mxu0 %v9924
      %v10009 = vpop.f32.mrf.mxu0
      %v10010 = vadd.f32 0.0, %v10009
      %v10011 = vpop.f32.mrf.mxu0
      %v10012 = vadd.f32 0.0, %v10011
      %10013 = vmatmul.bf16.gmra.mxu0 %v9933
      %v10014 = vpop.f32.mrf.mxu0
      %v10015 = vadd.f32 0.0, %v10014
      %v10016 = vpop.f32.mrf.mxu0
      %v10017 = vadd.f32 0.0, %v10016
      %10018 = vmatmul.bf16.gmra.mxu0 %v9942
      %v10019 = vpop.f32.mrf.mxu0
      %v10020 = vadd.f32 0.0, %v10019
      %v10021 = vpop.f32.mrf.mxu0
      %v10022 = vadd.f32 0.0, %v10021
      %10023 = vdwg.mxu0
      %v10025 = vperm.slane %v9877, 0
      %v10027 = vadd.f32 %v10025, %v10005
      %v10028 = vadd.f32 %v10025, %v10007
      %v10029 = vadd.f32 %v10025, %v10010
      %v10030 = vadd.f32 %v10025, %v10012
      %v10031 = vadd.f32 %v10025, %v10015
      %v10032 = vadd.f32 %v10025, %v10017
      %v10033 = vadd.f32 %v10025, %v10020
      %v10034 = vadd.f32 %v10025, %v10022
      %v10035 = vpack.c.bf16 %v9869, %v9868
      %v10036 = vpack.c.bf16 %v9871, %v9870
      %v10037 = vpack.c.bf16 %v9873, %v9872
      %v10038 = vpack.c.bf16 %v9875, %v9874
      %v10039 = vld [vmem:[%s5916] sm:$0xf]
      %v10040 = vld [vmem:[%s5916 + $0x4] sm:$0xf]
      %v10041 = vld [vmem:[%s5916 + $0x8] sm:$0xf]
      %v10042 = vld [vmem:[%s5916 + $0xc] sm:$0xf]
      %v10043 = vld [vmem:[%s5916 + $0x10] sm:$0xf]
      %v10044 = vld [vmem:[%s5916 + $0x14] sm:$0xf]
      %v10045 = vld [vmem:[%s5916 + $0x18] sm:$0xf]
      %v10046 = vld [vmem:[%s5916 + $0x1c] sm:$0xf]
      %v10047 = vld [vmem:[%s5916 + $0x20] sm:$0xf]
      %v10048 = vld [vmem:[%s5916 + $0x24] sm:$0xf]
      %v10049 = vld [vmem:[%s5916 + $0x28] sm:$0xf]
      %v10050 = vld [vmem:[%s5916 + $0x2c] sm:$0xf]
      %v10051 = vld [vmem:[%s5916 + $0x30] sm:$0xf]
      %v10052 = vld [vmem:[%s5916 + $0x34] sm:$0xf]
      %v10053 = vld [vmem:[%s5916 + $0x38] sm:$0xf]
      %v10054 = vld [vmem:[%s5916 + $0x3c] sm:$0xf]
      %v10071 = vunpack.c.l.b16 %v10039
      %v10072 = vunpack.c.l.b16 %v10040
      %v10073 = vunpack.c.l.b16 %v10041
      %v10074 = vunpack.c.l.b16 %v10042
      %v10075 = vunpack.c.l.b16 %v10043
      %v10076 = vunpack.c.l.b16 %v10044
      %v10077 = vunpack.c.l.b16 %v10045
      %v10078 = vunpack.c.l.b16 %v10046
      %v10079 = vunpack.c.l.b16 %v10047
      %v10080 = vunpack.c.l.b16 %v10048
      %v10081 = vunpack.c.l.b16 %v10049
      %v10082 = vunpack.c.l.b16 %v10050
      %v10083 = vunpack.c.l.b16 %v10051
      %v10084 = vunpack.c.l.b16 %v10052
      %v10085 = vunpack.c.l.b16 %v10053
      %v10086 = vunpack.c.l.b16 %v10054
      %v10087 = vpack.c.b16 %v10072, %v10071
      %v10088 = vpack.c.b16 %v10074, %v10073
      %v10089 = vpack.c.b16 %v10076, %v10075
      %v10090 = vpack.c.b16 %v10078, %v10077
      %v10091 = vpack.c.b16 %v10080, %v10079
      %v10092 = vpack.c.b16 %v10082, %v10081
      %v10093 = vpack.c.b16 %v10084, %v10083
      %v10094 = vpack.c.b16 %v10086, %v10085
      %10103 = vmatpush.bf16.msra.mxu0 %v10094
      %10104 = vmatpush.bf16.msra.mxu0 %v10093
      %10105 = vmatpush.bf16.msra.mxu0 %v10092
      %10106 = vmatpush.bf16.msra.mxu0 %v10091
      %10107 = vmatpush.bf16.msra.mxu0 %v10090
      %10108 = vmatpush.bf16.msra.mxu0 %v10089
      %10109 = vmatpush.bf16.msra.mxu0 %v10088
      %10110 = vmatpush.bf16.msra.mxu0 %v10087
      %10111 = vmatmul.bf16.gmra.mxu0 %v10035
      %v10112 = vpop.f32.mrf.mxu0
      %v10113 = vadd.f32 0.0, %v10112
      %v10114 = vpop.f32.mrf.mxu0
      %v10115 = vadd.f32 0.0, %v10114
      %10116 = vmatmul.bf16.gmra.mxu0 %v10036
      %v10117 = vpop.f32.mrf.mxu0
      %v10118 = vadd.f32 0.0, %v10117
      %v10119 = vpop.f32.mrf.mxu0
      %v10120 = vadd.f32 0.0, %v10119
      %10121 = vmatmul.bf16.gmra.mxu0 %v10037
      %v10122 = vpop.f32.mrf.mxu0
      %v10123 = vadd.f32 0.0, %v10122
      %v10124 = vpop.f32.mrf.mxu0
      %v10125 = vadd.f32 0.0, %v10124
      %10126 = vmatmul.bf16.gmra.mxu0 %v10038
      %v10127 = vpop.f32.mrf.mxu0
      %v10128 = vadd.f32 0.0, %v10127
      %v10129 = vpop.f32.mrf.mxu0
      %v10130 = vadd.f32 0.0, %v10129
      %10131 = vdwg.mxu0
      %v10132 = vadd.f32 %v10027, %v10113
      %v10133 = vadd.f32 %v10028, %v10115
      %v10134 = vadd.f32 %v10029, %v10118
      %v10135 = vadd.f32 %v10030, %v10120
      %v10136 = vadd.f32 %v10031, %v10123
      %v10137 = vadd.f32 %v10032, %v10125
      %v10138 = vadd.f32 %v10033, %v10128
      %v10139 = vadd.f32 %v10034, %v10130
      %v10140 = vpack.c.bf16 %v9876, %v9876
      %v10141 = vld [vmem:[%s6103] sm:$0xf]
      %v10142 = vld [vmem:[%s6103 + $0x4] sm:$0xf]
      %v10143 = vld [vmem:[%s6103 + $0x8] sm:$0xf]
      %v10144 = vld [vmem:[%s6103 + $0xc] sm:$0xf]
      %v10145 = vld [vmem:[%s6103 + $0x10] sm:$0xf]
      %v10146 = vld [vmem:[%s6103 + $0x14] sm:$0xf]
      %v10147 = vld [vmem:[%s6103 + $0x18] sm:$0xf]
      %v10148 = vld [vmem:[%s6103 + $0x1c] sm:$0xf]
      %v10149 = vld [vmem:[%s6103 + $0x20] sm:$0xf]
      %v10150 = vld [vmem:[%s6103 + $0x24] sm:$0xf]
      %v10151 = vld [vmem:[%s6103 + $0x28] sm:$0xf]
      %v10152 = vld [vmem:[%s6103 + $0x2c] sm:$0xf]
      %v10153 = vld [vmem:[%s6103 + $0x30] sm:$0xf]
      %v10154 = vld [vmem:[%s6103 + $0x34] sm:$0xf]
      %v10155 = vld [vmem:[%s6103 + $0x38] sm:$0xf]
      %v10156 = vld [vmem:[%s6103 + $0x3c] sm:$0xf]
      %v10158 = vshrl.u32 %v10035, 16
      %v10160 = vshll.u32 %v10035, 16
      %v10162 = vrot.slane %v10160, 1
      %v10163 = vor.u32 %v10158, %v10162
      %v10165 = vshll.u32 %v10036, 16
      %v10167 = vrot.slane %v10165, 1
      %v10168 = vsel %vm1915, %v10163, %v10167
      %v10169 = vshrl.u32 %v10036, 16
      %v10171 = vor.u32 %v10169, %v10167
      %v10173 = vshll.u32 %v10037, 16
      %v10175 = vrot.slane %v10173, 1
      %v10176 = vsel %vm1915, %v10171, %v10175
      %v10177 = vshrl.u32 %v10037, 16
      %v10179 = vor.u32 %v10177, %v10175
      %v10181 = vshll.u32 %v10038, 16
      %v10183 = vrot.slane %v10181, 1
      %v10184 = vsel %vm1915, %v10179, %v10183
      %v10185 = vshrl.u32 %v10038, 16
      %v10187 = vor.u32 %v10185, %v10183
      %v10189 = vshll.u32 %v10140, 16
      %v10191 = vrot.slane %v10189, 1
      %v10192 = vsel %vm1915, %v10187, %v10191
      %v10213 = vunpack.c.l.b16 %v10141
      %v10214 = vunpack.c.l.b16 %v10142
      %v10215 = vunpack.c.l.b16 %v10143
      %v10216 = vunpack.c.l.b16 %v10144
      %v10217 = vunpack.c.l.b16 %v10145
      %v10218 = vunpack.c.l.b16 %v10146
      %v10219 = vunpack.c.l.b16 %v10147
      %v10220 = vunpack.c.l.b16 %v10148
      %v10221 = vunpack.c.l.b16 %v10149
      %v10222 = vunpack.c.l.b16 %v10150
      %v10223 = vunpack.c.l.b16 %v10151
      %v10224 = vunpack.c.l.b16 %v10152
      %v10225 = vunpack.c.l.b16 %v10153
      %v10226 = vunpack.c.l.b16 %v10154
      %v10227 = vunpack.c.l.b16 %v10155
      %v10228 = vunpack.c.l.b16 %v10156
      %v10229 = vpack.c.b16 %v10214, %v10213
      %v10230 = vpack.c.b16 %v10216, %v10215
      %v10231 = vpack.c.b16 %v10218, %v10217
      %v10232 = vpack.c.b16 %v10220, %v10219
      %v10233 = vpack.c.b16 %v10222, %v10221
      %v10234 = vpack.c.b16 %v10224, %v10223
      %v10235 = vpack.c.b16 %v10226, %v10225
      %v10236 = vpack.c.b16 %v10228, %v10227
      %10245 = vmatpush.bf16.msra.mxu0 %v10236
      %10246 = vmatpush.bf16.msra.mxu0 %v10235
      %10247 = vmatpush.bf16.msra.mxu0 %v10234
      %10248 = vmatpush.bf16.msra.mxu0 %v10233
      %10249 = vmatpush.bf16.msra.mxu0 %v10232
      %10250 = vmatpush.bf16.msra.mxu0 %v10231
      %10251 = vmatpush.bf16.msra.mxu0 %v10230
      %10252 = vmatpush.bf16.msra.mxu0 %v10229
      %10253 = vmatmul.bf16.gmra.mxu0 %v10168
      %v10254 = vpop.f32.mrf.mxu0
      %v10255 = vadd.f32 0.0, %v10254
      %v10256 = vpop.f32.mrf.mxu0
      %v10257 = vadd.f32 0.0, %v10256
      %10258 = vmatmul.bf16.gmra.mxu0 %v10176
      %v10259 = vpop.f32.mrf.mxu0
      %v10260 = vadd.f32 0.0, %v10259
      %v10261 = vpop.f32.mrf.mxu0
      %v10262 = vadd.f32 0.0, %v10261
      %10263 = vmatmul.bf16.gmra.mxu0 %v10184
      %v10264 = vpop.f32.mrf.mxu0
      %v10265 = vadd.f32 0.0, %v10264
      %v10266 = vpop.f32.mrf.mxu0
      %v10267 = vadd.f32 0.0, %v10266
      %10268 = vmatmul.bf16.gmra.mxu0 %v10192
      %v10269 = vpop.f32.mrf.mxu0
      %v10270 = vadd.f32 0.0, %v10269
      %v10271 = vpop.f32.mrf.mxu0
      %v10272 = vadd.f32 0.0, %v10271
      %10273 = vdwg.mxu0
      %v10274 = vadd.f32 %v10132, %v10255
      %v10275 = vadd.f32 %v10133, %v10257
      %v10276 = vadd.f32 %v10134, %v10260
      %v10277 = vadd.f32 %v10135, %v10262
      %v10278 = vadd.f32 %v10136, %v10265
      %v10279 = vadd.f32 %v10137, %v10267
      %v10280 = vadd.f32 %v10138, %v10270
      %v10281 = vadd.f32 %v10139, %v10272
      %v10282 = vmul.f32 %v10274, %v9352
      %v10283 = vmul.f32 %v10275, %v9353
      %v10284 = vmul.f32 %v10276, %v9354
      %v10285 = vmul.f32 %v10277, %v9355
      %v10286 = vmul.f32 %v10278, %v9356
      %v10287 = vmul.f32 %v10279, %v9357
      %v10288 = vmul.f32 %v10280, %v9358
      %v10289 = vmul.f32 %v10281, %v9359
      %v10290 = vadd.f32 %v10282, %v9400
      %v10291 = vadd.f32 %v10283, %v9401
      %v10292 = vadd.f32 %v10284, %v9402
      %v10293 = vadd.f32 %v10285, %v9403
      %v10294 = vadd.f32 %v10286, %v9404
      %v10295 = vadd.f32 %v10287, %v9405
      %v10296 = vadd.f32 %v10288, %v9406
      %v10297 = vadd.f32 %v10289, %v9407
      %10298 = vst [vmem:[#allocation2 + $0x8] sm:$0xff] %v10290
      %10299 = vst [vmem:[#allocation2 + $0x10] sm:$0xff] %v10291
      %10300 = vst [vmem:[#allocation2 + $0x18] sm:$0xff] %v10292
      %10301 = vst [vmem:[#allocation2 + $0x20] sm:$0xff] %v10293
      %10302 = vst [vmem:[#allocation2 + $0x28] sm:$0xff] %v10294
      %10303 = vst [vmem:[#allocation2 + $0x30] sm:$0xff] %v10295
      %10304 = vst [vmem:[#allocation2 + $0x38] sm:$0xff] %v10296
      %10305 = vst [vmem:[#allocation2 + $0x40] sm:$0xff] %v10297
      %vm10306 = vcmp.lt.s32.totalorder %v4881, 0
      %v10307 = vsub.s32 0, %v4881
      %v10308 = vsel %vm10306, %v10307, %v4881
      %v10309 = vshrl.u32 %v10308, 1
      %v10310 = vand.u32 %v10308, 1
      %v10311 = vsub.s32 0, %v10310
      %v10312 = vsel %vm10306, %v10311, %v10310
      %vm10313 = vcmp.lt.s32.totalorder %v4882, 0
      %v10314 = vsub.s32 0, %v4882
      %v10315 = vsel %vm10313, %v10314, %v4882
      %v10316 = vshrl.u32 %v10315, 1
      %v10317 = vand.u32 %v10315, 1
      %v10318 = vsub.s32 0, %v10317
      %v10319 = vsel %vm10313, %v10318, %v10317
      %vm10320 = vcmp.lt.s32.totalorder %v4883, 0
      %v10321 = vsub.s32 0, %v4883
      %v10322 = vsel %vm10320, %v10321, %v4883
      %v10323 = vshrl.u32 %v10322, 1
      %v10324 = vand.u32 %v10322, 1
      %v10325 = vsub.s32 0, %v10324
      %v10326 = vsel %vm10320, %v10325, %v10324
      %vm10327 = vcmp.lt.s32.totalorder %v4884, 0
      %v10328 = vsub.s32 0, %v4884
      %v10329 = vsel %vm10327, %v10328, %v4884
      %v10330 = vshrl.u32 %v10329, 1
      %v10331 = vand.u32 %v10329, 1
      %v10332 = vsub.s32 0, %v10331
      %v10333 = vsel %vm10327, %v10332, %v10331
      %vm10334 = vcmp.ne.s32.totalorder %v10312, 0
      %vm10335 = vcmp.ne.s32.totalorder %v10319, 0
      %vm10336 = vcmp.ne.s32.totalorder %v10326, 0
      %vm10337 = vcmp.ne.s32.totalorder %v10333, 0
      %vm10338 = vcmp.lt.s32.totalorder %v10312, 0
      %vm10339 = vcmp.lt.s32.totalorder %v10319, 0
      %vm10340 = vcmp.lt.s32.totalorder %v10326, 0
      %vm10341 = vcmp.lt.s32.totalorder %v10333, 0
      %vm10342 = vmand %vm10338, %vm10334
      %vm10343 = vmand %vm10339, %vm10335
      %vm10344 = vmand %vm10340, %vm10336
      %vm10345 = vmand %vm10341, %vm10337
      %v10346 = vadd.s32 %v10312, 2
      %v10347 = vadd.s32 %v10319, 2
      %v10348 = vadd.s32 %v10326, 2
      %v10349 = vadd.s32 %v10333, 2
      %v10350 = vsel %vm10342, %v10346, %v10312
      %v10351 = vsel %vm10343, %v10347, %v10319
      %v10352 = vsel %vm10344, %v10348, %v10326
      %v10353 = vsel %vm10345, %v10349, %v10333
      %vm10354 = vcmp.lt.s32.totalorder %v10350, 1
      %vm10355 = vcmp.lt.s32.totalorder %v10351, 1
      %vm10356 = vcmp.lt.s32.totalorder %v10352, 1
      %vm10357 = vcmp.lt.s32.totalorder %v10353, 1
      %v10358 = vsel %vm10354, 1, 0
      %v10359 = vsel %vm10355, 1, 0
      %v10360 = vsel %vm10356, 1, 0
      %v10361 = vsel %vm10357, 1, 0
      %v10362 = vcvt.s32.f32 %v10358
      %v10363 = vcvt.s32.f32 %v10359
      %v10364 = vcvt.s32.f32 %v10360
      %v10365 = vcvt.s32.f32 %v10361
      %v10366 = vld [vmem:[%s7782] ss:$2 sm:$0xff]
      %v10367 = vld [vmem:[%s7784] ss:$2 sm:$0xff]
      %v10368 = vld [vmem:[%s7786] ss:$2 sm:$0xff]
      %v10369 = vld [vmem:[%s7788] ss:$2 sm:$0xff]
      %v10370 = vld [vmem:[%s7814] ss:$2 sm:$0xff]
      %v10371 = vld [vmem:[%s7816] ss:$2 sm:$0xff]
      %v10372 = vld [vmem:[%s7818] ss:$2 sm:$0xff]
      %v10373 = vld [vmem:[%s7820] ss:$2 sm:$0xff]
      %v10374 = vld [vmem:[%s7846] ss:$2 sm:$0xff]
      %v10375 = vld [vmem:[%s7848] ss:$2 sm:$0xff]
      %v10376 = vld [vmem:[%s7850] ss:$2 sm:$0xff]
      %v10377 = vld [vmem:[%s7852] ss:$2 sm:$0xff]
      %v10378 = vmax.f32 %v10366, %v10370
      %v10379 = vmax.f32 %v10367, %v10371
      %v10380 = vmax.f32 %v10368, %v10372
      %v10381 = vmax.f32 %v10369, %v10373
      %v10382 = vmax.f32 %v10378, %v10374
      %v10383 = vmax.f32 %v10379, %v10375
      %v10384 = vmax.f32 %v10380, %v10376
      %v10385 = vmax.f32 %v10381, %v10377
      %v10386 = vmul.f32 %v10382, %v10362
      %v10387 = vmul.f32 %v10383, %v10363
      %v10388 = vmul.f32 %v10384, %v10364
      %v10389 = vmul.f32 %v10385, %v10365
      %10390 = vst [vmem:[#allocation2 + $0x8] sm:$0xff] %v10386
      %10391 = vst [vmem:[#allocation2 + $0x10] sm:$0xff] %v10387
      %10392 = vst [vmem:[#allocation2 + $0x18] sm:$0xff] %v10388
      %10393 = vst [vmem:[#allocation2 + $0x20] sm:$0xff] %v10389
      %v10394 = vld [vmem:[#allocation2] sm:$0xff]
      %v10395 = vld [vmem:[#allocation2 + $0x8] sm:$0xff]
      %v10396 = vld [vmem:[#allocation2 + $0x10] sm:$0xff]
      %v10397 = vld [vmem:[#allocation2 + $0x18] sm:$0xff]
      %v10398 = vld [vmem:[#allocation2 + $0x20] sm:$0xff]
      %v10399 = vld [vmem:[#allocation2 + $0x28] sm:$0xff]
      %v10400 = vmax.f32 %v10394, 0.0
      %v10401 = vmax.f32 %v10395, 0.0
      %v10402 = vmax.f32 %v10396, 0.0
      %v10403 = vmax.f32 %v10397, 0.0
      %v10404 = vmax.f32 %v10398, 0.0
      %v10405 = vmax.f32 %v10399, 0.0
      %v10406 = vld [vmem:[%s4] sm:$0x1]
      %v10407 = vpack.c.bf16 %v10401, %v10400
      %v10408 = vpack.c.bf16 %v10403, %v10402
      %v10409 = vpack.c.bf16 %v10404, %v10404
      %v10410 = vld [vmem:[%s3] sm:$0xf]
      %v10411 = vld [vmem:[%s3 + $0x4] sm:$0xf]
      %v10412 = vld [vmem:[%s3 + $0x8] sm:$0xf]
      %v10413 = vld [vmem:[%s3 + $0xc] sm:$0xf]
      %v10414 = vld [vmem:[%s3 + $0x10] sm:$0xf]
      %v10415 = vld [vmem:[%s3 + $0x14] sm:$0xf]
      %v10416 = vld [vmem:[%s3 + $0x18] sm:$0xf]
      %v10417 = vld [vmem:[%s3 + $0x1c] sm:$0xf]
      %v10418 = vld [vmem:[%s3 + $0x20] sm:$0xf]
      %v10419 = vld [vmem:[%s3 + $0x24] sm:$0xf]
      %v10420 = vld [vmem:[%s3 + $0x28] sm:$0xf]
      %v10421 = vld [vmem:[%s3 + $0x2c] sm:$0xf]
      %v10422 = vld [vmem:[%s3 + $0x30] sm:$0xf]
      %v10423 = vld [vmem:[%s3 + $0x34] sm:$0xf]
      %v10424 = vld [vmem:[%s3 + $0x38] sm:$0xf]
      %v10425 = vld [vmem:[%s3 + $0x3c] sm:$0xf]
      %v10427 = vshrl.u32 %v10407, 16
      %v10429 = vrot.slane %v10427, 3
      %v10430 = vshll.u32 %v10407, 16
      %v10432 = vrot.slane %v10430, 4
      %v10433 = vor.u32 %v10429, %v10432
      %v10435 = vshrl.u32 %v10408, 16
      %v10437 = vrot.slane %v10435, 3
      %v10438 = vshll.u32 %v10408, 16
      %v10440 = vrot.slane %v10438, 4
      %v10441 = vor.u32 %v10437, %v10440
      %v10442 = vsel %vm5559, %v10433, %v10441
      %v10444 = vshrl.u32 %v10409, 16
      %v10446 = vrot.slane %v10444, 3
      %v10447 = vshll.u32 %v10409, 16
      %v10449 = vrot.slane %v10447, 4
      %v10450 = vor.u32 %v10446, %v10449
      %v10451 = vsel %vm5559, %v10441, %v10450
      %v10470 = vunpack.c.l.b16 %v10410
      %v10471 = vunpack.c.l.b16 %v10411
      %v10472 = vunpack.c.l.b16 %v10412
      %v10473 = vunpack.c.l.b16 %v10413
      %v10474 = vunpack.c.l.b16 %v10414
      %v10475 = vunpack.c.l.b16 %v10415
      %v10476 = vunpack.c.l.b16 %v10416
      %v10477 = vunpack.c.l.b16 %v10417
      %v10478 = vunpack.c.l.b16 %v10418
      %v10479 = vunpack.c.l.b16 %v10419
      %v10480 = vunpack.c.l.b16 %v10420
      %v10481 = vunpack.c.l.b16 %v10421
      %v10482 = vunpack.c.l.b16 %v10422
      %v10483 = vunpack.c.l.b16 %v10423
      %v10484 = vunpack.c.l.b16 %v10424
      %v10485 = vunpack.c.l.b16 %v10425
      %v10486 = vpack.c.b16 %v10471, %v10470
      %v10487 = vpack.c.b16 %v10473, %v10472
      %v10488 = vpack.c.b16 %v10475, %v10474
      %v10489 = vpack.c.b16 %v10477, %v10476
      %v10490 = vpack.c.b16 %v10479, %v10478
      %v10491 = vpack.c.b16 %v10481, %v10480
      %v10492 = vpack.c.b16 %v10483, %v10482
      %v10493 = vpack.c.b16 %v10485, %v10484
      %10502 = vmatpush.bf16.msra.mxu0 %v10493
      %10503 = vmatpush.bf16.msra.mxu0 %v10492
      %10504 = vmatpush.bf16.msra.mxu0 %v10491
      %10505 = vmatpush.bf16.msra.mxu0 %v10490
      %10506 = vmatpush.bf16.msra.mxu0 %v10489
      %10507 = vmatpush.bf16.msra.mxu0 %v10488
      %10508 = vmatpush.bf16.msra.mxu0 %v10487
      %10509 = vmatpush.bf16.msra.mxu0 %v10486
      %10510 = vmatmul.bf16.gmra.mxu0 %v10442
      %v10511 = vpop.f32.mrf.mxu0
      %v10512 = vadd.f32 0.0, %v10511
      %v10513 = vpop.f32.mrf.mxu0
      %v10514 = vadd.f32 0.0, %v10513
      %10515 = vmatmul.bf16.gmra.mxu0 %v10451
      %v10516 = vpop.f32.mrf.mxu0
      %v10517 = vadd.f32 0.0, %v10516
      %v10518 = vpop.f32.mrf.mxu0
      %v10519 = vadd.f32 0.0, %v10518
      %10520 = vdwg.mxu0
      %v10522 = vperm.slane %v10406, 0
      %v10524 = vadd.f32 %v10522, %v10512
      %v10525 = vadd.f32 %v10522, %v10514
      %v10526 = vadd.f32 %v10522, %v10517
      %v10527 = vadd.f32 %v10522, %v10519
      %v10528 = vpack.c.bf16 %v10402, %v10401
      %v10529 = vpack.c.bf16 %v10404, %v10403
      %v10530 = vld [vmem:[%s5916] sm:$0xf]
      %v10531 = vld [vmem:[%s5916 + $0x4] sm:$0xf]
      %v10532 = vld [vmem:[%s5916 + $0x8] sm:$0xf]
      %v10533 = vld [vmem:[%s5916 + $0xc] sm:$0xf]
      %v10534 = vld [vmem:[%s5916 + $0x10] sm:$0xf]
      %v10535 = vld [vmem:[%s5916 + $0x14] sm:$0xf]
      %v10536 = vld [vmem:[%s5916 + $0x18] sm:$0xf]
      %v10537 = vld [vmem:[%s5916 + $0x1c] sm:$0xf]
      %v10538 = vld [vmem:[%s5916 + $0x20] sm:$0xf]
      %v10539 = vld [vmem:[%s5916 + $0x24] sm:$0xf]
      %v10540 = vld [vmem:[%s5916 + $0x28] sm:$0xf]
      %v10541 = vld [vmem:[%s5916 + $0x2c] sm:$0xf]
      %v10542 = vld [vmem:[%s5916 + $0x30] sm:$0xf]
      %v10543 = vld [vmem:[%s5916 + $0x34] sm:$0xf]
      %v10544 = vld [vmem:[%s5916 + $0x38] sm:$0xf]
      %v10545 = vld [vmem:[%s5916 + $0x3c] sm:$0xf]
      %v10562 = vunpack.c.l.b16 %v10530
      %v10563 = vunpack.c.l.b16 %v10531
      %v10564 = vunpack.c.l.b16 %v10532
      %v10565 = vunpack.c.l.b16 %v10533
      %v10566 = vunpack.c.l.b16 %v10534
      %v10567 = vunpack.c.l.b16 %v10535
      %v10568 = vunpack.c.l.b16 %v10536
      %v10569 = vunpack.c.l.b16 %v10537
      %v10570 = vunpack.c.l.b16 %v10538
      %v10571 = vunpack.c.l.b16 %v10539
      %v10572 = vunpack.c.l.b16 %v10540
      %v10573 = vunpack.c.l.b16 %v10541
      %v10574 = vunpack.c.l.b16 %v10542
      %v10575 = vunpack.c.l.b16 %v10543
      %v10576 = vunpack.c.l.b16 %v10544
      %v10577 = vunpack.c.l.b16 %v10545
      %v10578 = vpack.c.b16 %v10563, %v10562
      %v10579 = vpack.c.b16 %v10565, %v10564
      %v10580 = vpack.c.b16 %v10567, %v10566
      %v10581 = vpack.c.b16 %v10569, %v10568
      %v10582 = vpack.c.b16 %v10571, %v10570
      %v10583 = vpack.c.b16 %v10573, %v10572
      %v10584 = vpack.c.b16 %v10575, %v10574
      %v10585 = vpack.c.b16 %v10577, %v10576
      %10594 = vmatpush.bf16.msra.mxu0 %v10585
      %10595 = vmatpush.bf16.msra.mxu0 %v10584
      %10596 = vmatpush.bf16.msra.mxu0 %v10583
      %10597 = vmatpush.bf16.msra.mxu0 %v10582
      %10598 = vmatpush.bf16.msra.mxu0 %v10581
      %10599 = vmatpush.bf16.msra.mxu0 %v10580
      %10600 = vmatpush.bf16.msra.mxu0 %v10579
      %10601 = vmatpush.bf16.msra.mxu0 %v10578
      %10602 = vmatmul.bf16.gmra.mxu0 %v10528
      %v10603 = vpop.f32.mrf.mxu0
      %v10604 = vadd.f32 0.0, %v10603
      %v10605 = vpop.f32.mrf.mxu0
      %v10606 = vadd.f32 0.0, %v10605
      %10607 = vmatmul.bf16.gmra.mxu0 %v10529
      %v10608 = vpop.f32.mrf.mxu0
      %v10609 = vadd.f32 0.0, %v10608
      %v10610 = vpop.f32.mrf.mxu0
      %v10611 = vadd.f32 0.0, %v10610
      %10612 = vdwg.mxu0
      %v10613 = vadd.f32 %v10524, %v10604
      %v10614 = vadd.f32 %v10525, %v10606
      %v10615 = vadd.f32 %v10526, %v10609
      %v10616 = vadd.f32 %v10527, %v10611
      %v10617 = vpack.c.bf16 %v10405, %v10405
      %v10618 = vld [vmem:[%s6103] sm:$0xf]
      %v10619 = vld [vmem:[%s6103 + $0x4] sm:$0xf]
      %v10620 = vld [vmem:[%s6103 + $0x8] sm:$0xf]
      %v10621 = vld [vmem:[%s6103 + $0xc] sm:$0xf]
      %v10622 = vld [vmem:[%s6103 + $0x10] sm:$0xf]
      %v10623 = vld [vmem:[%s6103 + $0x14] sm:$0xf]
      %v10624 = vld [vmem:[%s6103 + $0x18] sm:$0xf]
      %v10625 = vld [vmem:[%s6103 + $0x1c] sm:$0xf]
      %v10626 = vld [vmem:[%s6103 + $0x20] sm:$0xf]
      %v10627 = vld [vmem:[%s6103 + $0x24] sm:$0xf]
      %v10628 = vld [vmem:[%s6103 + $0x28] sm:$0xf]
      %v10629 = vld [vmem:[%s6103 + $0x2c] sm:$0xf]
      %v10630 = vld [vmem:[%s6103 + $0x30] sm:$0xf]
      %v10631 = vld [vmem:[%s6103 + $0x34] sm:$0xf]
      %v10632 = vld [vmem:[%s6103 + $0x38] sm:$0xf]
      %v10633 = vld [vmem:[%s6103 + $0x3c] sm:$0xf]
      %v10635 = vshrl.u32 %v10528, 16
      %v10637 = vshll.u32 %v10528, 16
      %v10639 = vrot.slane %v10637, 1
      %v10640 = vor.u32 %v10635, %v10639
      %v10642 = vshll.u32 %v10529, 16
      %v10644 = vrot.slane %v10642, 1
      %v10645 = vsel %vm1915, %v10640, %v10644
      %v10646 = vshrl.u32 %v10529, 16
      %v10648 = vor.u32 %v10646, %v10644
      %v10650 = vshll.u32 %v10617, 16
      %v10652 = vrot.slane %v10650, 1
      %v10653 = vsel %vm1915, %v10648, %v10652
      %v10672 = vunpack.c.l.b16 %v10618
      %v10673 = vunpack.c.l.b16 %v10619
      %v10674 = vunpack.c.l.b16 %v10620
      %v10675 = vunpack.c.l.b16 %v10621
      %v10676 = vunpack.c.l.b16 %v10622
      %v10677 = vunpack.c.l.b16 %v10623
      %v10678 = vunpack.c.l.b16 %v10624
      %v10679 = vunpack.c.l.b16 %v10625
      %v10680 = vunpack.c.l.b16 %v10626
      %v10681 = vunpack.c.l.b16 %v10627
      %v10682 = vunpack.c.l.b16 %v10628
      %v10683 = vunpack.c.l.b16 %v10629
      %v10684 = vunpack.c.l.b16 %v10630
      %v10685 = vunpack.c.l.b16 %v10631
      %v10686 = vunpack.c.l.b16 %v10632
      %v10687 = vunpack.c.l.b16 %v10633
      %v10688 = vpack.c.b16 %v10673, %v10672
      %v10689 = vpack.c.b16 %v10675, %v10674
      %v10690 = vpack.c.b16 %v10677, %v10676
      %v10691 = vpack.c.b16 %v10679, %v10678
      %v10692 = vpack.c.b16 %v10681, %v10680
      %v10693 = vpack.c.b16 %v10683, %v10682
      %v10694 = vpack.c.b16 %v10685, %v10684
      %v10695 = vpack.c.b16 %v10687, %v10686
      %10704 = vmatpush.bf16.msra.mxu0 %v10695
      %10705 = vmatpush.bf16.msra.mxu0 %v10694
      %10706 = vmatpush.bf16.msra.mxu0 %v10693
      %10707 = vmatpush.bf16.msra.mxu0 %v10692
      %10708 = vmatpush.bf16.msra.mxu0 %v10691
      %10709 = vmatpush.bf16.msra.mxu0 %v10690
      %10710 = vmatpush.bf16.msra.mxu0 %v10689
      %10711 = vmatpush.bf16.msra.mxu0 %v10688
      %10712 = vmatmul.bf16.gmra.mxu0 %v10645
      %v10713 = vpop.f32.mrf.mxu0
      %v10714 = vadd.f32 0.0, %v10713
      %v10715 = vpop.f32.mrf.mxu0
      %v10716 = vadd.f32 0.0, %v10715
      %10717 = vmatmul.bf16.gmra.mxu0 %v10653
      %v10718 = vpop.f32.mrf.mxu0
      %v10719 = vadd.f32 0.0, %v10718
      %v10720 = vpop.f32.mrf.mxu0
      %v10721 = vadd.f32 0.0, %v10720
      %10722 = vdwg.mxu0
      %v10723 = vadd.f32 %v10613, %v10714
      %v10724 = vadd.f32 %v10614, %v10716
      %v10725 = vadd.f32 %v10615, %v10719
      %v10726 = vadd.f32 %v10616, %v10721
      %v10727 = vmul.f32 %v10723, %v10362
      %v10728 = vmul.f32 %v10724, %v10363
      %v10729 = vmul.f32 %v10725, %v10364
      %v10730 = vmul.f32 %v10726, %v10365
      %10731 = vst [vmem:[#allocation2 + $0x8] sm:$0xff] %v10727
      %10732 = vst [vmem:[#allocation2 + $0x10] sm:$0xff] %v10728
      %10733 = vst [vmem:[#allocation2 + $0x18] sm:$0xff] %v10729
      %10734 = vst [vmem:[#allocation2 + $0x20] sm:$0xff] %v10730
      %v10735 = vld [vmem:[#allocation2] sm:$0xff]
      %v10736 = vld [vmem:[#allocation2 + $0x8] sm:$0xff]
      %v10737 = vld [vmem:[#allocation2 + $0x10] sm:$0xff]
      %v10738 = vld [vmem:[#allocation2 + $0x18] sm:$0xff]
      %v10739 = vld [vmem:[#allocation2 + $0x20] sm:$0xff]
      %v10740 = vld [vmem:[#allocation2 + $0x28] sm:$0xff]
      %v10741 = vmax.f32 %v10735, 0.0
      %v10742 = vmax.f32 %v10736, 0.0
      %v10743 = vmax.f32 %v10737, 0.0
      %v10744 = vmax.f32 %v10738, 0.0
      %v10745 = vmax.f32 %v10739, 0.0
      %v10746 = vmax.f32 %v10740, 0.0
      %v10747 = vld [vmem:[%s4] sm:$0x1]
      %v10748 = vpack.c.bf16 %v10742, %v10741
      %v10749 = vpack.c.bf16 %v10744, %v10743
      %v10750 = vpack.c.bf16 %v10745, %v10745
      %v10751 = vld [vmem:[%s3] sm:$0xf]
      %v10752 = vld [vmem:[%s3 + $0x4] sm:$0xf]
      %v10753 = vld [vmem:[%s3 + $0x8] sm:$0xf]
      %v10754 = vld [vmem:[%s3 + $0xc] sm:$0xf]
      %v10755 = vld [vmem:[%s3 + $0x10] sm:$0xf]
      %v10756 = vld [vmem:[%s3 + $0x14] sm:$0xf]
      %v10757 = vld [vmem:[%s3 + $0x18] sm:$0xf]
      %v10758 = vld [vmem:[%s3 + $0x1c] sm:$0xf]
      %v10759 = vld [vmem:[%s3 + $0x20] sm:$0xf]
      %v10760 = vld [vmem:[%s3 + $0x24] sm:$0xf]
      %v10761 = vld [vmem:[%s3 + $0x28] sm:$0xf]
      %v10762 = vld [vmem:[%s3 + $0x2c] sm:$0xf]
      %v10763 = vld [vmem:[%s3 + $0x30] sm:$0xf]
      %v10764 = vld [vmem:[%s3 + $0x34] sm:$0xf]
      %v10765 = vld [vmem:[%s3 + $0x38] sm:$0xf]
      %v10766 = vld [vmem:[%s3 + $0x3c] sm:$0xf]
      %v10768 = vshrl.u32 %v10748, 16
      %v10770 = vrot.slane %v10768, 3
      %v10771 = vshll.u32 %v10748, 16
      %v10773 = vrot.slane %v10771, 4
      %v10774 = vor.u32 %v10770, %v10773
      %v10776 = vshrl.u32 %v10749, 16
      %v10778 = vrot.slane %v10776, 3
      %v10779 = vshll.u32 %v10749, 16
      %v10781 = vrot.slane %v10779, 4
      %v10782 = vor.u32 %v10778, %v10781
      %v10783 = vsel %vm5559, %v10774, %v10782
      %v10785 = vshrl.u32 %v10750, 16
      %v10787 = vrot.slane %v10785, 3
      %v10788 = vshll.u32 %v10750, 16
      %v10790 = vrot.slane %v10788, 4
      %v10791 = vor.u32 %v10787, %v10790
      %v10792 = vsel %vm5559, %v10782, %v10791
      %v10811 = vunpack.c.l.b16 %v10751
      %v10812 = vunpack.c.l.b16 %v10752
      %v10813 = vunpack.c.l.b16 %v10753
      %v10814 = vunpack.c.l.b16 %v10754
      %v10815 = vunpack.c.l.b16 %v10755
      %v10816 = vunpack.c.l.b16 %v10756
      %v10817 = vunpack.c.l.b16 %v10757
      %v10818 = vunpack.c.l.b16 %v10758
      %v10819 = vunpack.c.l.b16 %v10759
      %v10820 = vunpack.c.l.b16 %v10760
      %v10821 = vunpack.c.l.b16 %v10761
      %v10822 = vunpack.c.l.b16 %v10762
      %v10823 = vunpack.c.l.b16 %v10763
      %v10824 = vunpack.c.l.b16 %v10764
      %v10825 = vunpack.c.l.b16 %v10765
      %v10826 = vunpack.c.l.b16 %v10766
      %v10827 = vpack.c.b16 %v10812, %v10811
      %v10828 = vpack.c.b16 %v10814, %v10813
      %v10829 = vpack.c.b16 %v10816, %v10815
      %v10830 = vpack.c.b16 %v10818, %v10817
      %v10831 = vpack.c.b16 %v10820, %v10819
      %v10832 = vpack.c.b16 %v10822, %v10821
      %v10833 = vpack.c.b16 %v10824, %v10823
      %v10834 = vpack.c.b16 %v10826, %v10825
      %10843 = vmatpush.bf16.msra.mxu0 %v10834
      %10844 = vmatpush.bf16.msra.mxu0 %v10833
      %10845 = vmatpush.bf16.msra.mxu0 %v10832
      %10846 = vmatpush.bf16.msra.mxu0 %v10831
      %10847 = vmatpush.bf16.msra.mxu0 %v10830
      %10848 = vmatpush.bf16.msra.mxu0 %v10829
      %10849 = vmatpush.bf16.msra.mxu0 %v10828
      %10850 = vmatpush.bf16.msra.mxu0 %v10827
      %10851 = vmatmul.bf16.gmra.mxu0 %v10783
      %v10852 = vpop.f32.mrf.mxu0
      %v10853 = vadd.f32 0.0, %v10852
      %v10854 = vpop.f32.mrf.mxu0
      %v10855 = vadd.f32 0.0, %v10854
      %10856 = vmatmul.bf16.gmra.mxu0 %v10792
      %v10857 = vpop.f32.mrf.mxu0
      %v10858 = vadd.f32 0.0, %v10857
      %v10859 = vpop.f32.mrf.mxu0
      %v10860 = vadd.f32 0.0, %v10859
      %10861 = vdwg.mxu0
      %v10863 = vperm.slane %v10747, 0
      %v10865 = vadd.f32 %v10863, %v10853
      %v10866 = vadd.f32 %v10863, %v10855
      %v10867 = vadd.f32 %v10863, %v10858
      %v10868 = vadd.f32 %v10863, %v10860
      %v10869 = vpack.c.bf16 %v10743, %v10742
      %v10870 = vpack.c.bf16 %v10745, %v10744
      %v10871 = vld [vmem:[%s5916] sm:$0xf]
      %v10872 = vld [vmem:[%s5916 + $0x4] sm:$0xf]
      %v10873 = vld [vmem:[%s5916 + $0x8] sm:$0xf]
      %v10874 = vld [vmem:[%s5916 + $0xc] sm:$0xf]
      %v10875 = vld [vmem:[%s5916 + $0x10] sm:$0xf]
      %v10876 = vld [vmem:[%s5916 + $0x14] sm:$0xf]
      %v10877 = vld [vmem:[%s5916 + $0x18] sm:$0xf]
      %v10878 = vld [vmem:[%s5916 + $0x1c] sm:$0xf]
      %v10879 = vld [vmem:[%s5916 + $0x20] sm:$0xf]
      %v10880 = vld [vmem:[%s5916 + $0x24] sm:$0xf]
      %v10881 = vld [vmem:[%s5916 + $0x28] sm:$0xf]
      %v10882 = vld [vmem:[%s5916 + $0x2c] sm:$0xf]
      %v10883 = vld [vmem:[%s5916 + $0x30] sm:$0xf]
      %v10884 = vld [vmem:[%s5916 + $0x34] sm:$0xf]
      %v10885 = vld [vmem:[%s5916 + $0x38] sm:$0xf]
      %v10886 = vld [vmem:[%s5916 + $0x3c] sm:$0xf]
      %v10903 = vunpack.c.l.b16 %v10871
      %v10904 = vunpack.c.l.b16 %v10872
      %v10905 = vunpack.c.l.b16 %v10873
      %v10906 = vunpack.c.l.b16 %v10874
      %v10907 = vunpack.c.l.b16 %v10875
      %v10908 = vunpack.c.l.b16 %v10876
      %v10909 = vunpack.c.l.b16 %v10877
      %v10910 = vunpack.c.l.b16 %v10878
      %v10911 = vunpack.c.l.b16 %v10879
      %v10912 = vunpack.c.l.b16 %v10880
      %v10913 = vunpack.c.l.b16 %v10881
      %v10914 = vunpack.c.l.b16 %v10882
      %v10915 = vunpack.c.l.b16 %v10883
      %v10916 = vunpack.c.l.b16 %v10884
      %v10917 = vunpack.c.l.b16 %v10885
      %v10918 = vunpack.c.l.b16 %v10886
      %v10919 = vpack.c.b16 %v10904, %v10903
      %v10920 = vpack.c.b16 %v10906, %v10905
      %v10921 = vpack.c.b16 %v10908, %v10907
      %v10922 = vpack.c.b16 %v10910, %v10909
      %v10923 = vpack.c.b16 %v10912, %v10911
      %v10924 = vpack.c.b16 %v10914, %v10913
      %v10925 = vpack.c.b16 %v10916, %v10915
      %v10926 = vpack.c.b16 %v10918, %v10917
      %10935 = vmatpush.bf16.msra.mxu0 %v10926
      %10936 = vmatpush.bf16.msra.mxu0 %v10925
      %10937 = vmatpush.bf16.msra.mxu0 %v10924
      %10938 = vmatpush.bf16.msra.mxu0 %v10923
      %10939 = vmatpush.bf16.msra.mxu0 %v10922
      %10940 = vmatpush.bf16.msra.mxu0 %v10921
      %10941 = vmatpush.bf16.msra.mxu0 %v10920
      %10942 = vmatpush.bf16.msra.mxu0 %v10919
      %10943 = vmatmul.bf16.gmra.mxu0 %v10869
      %v10944 = vpop.f32.mrf.mxu0
      %v10945 = vadd.f32 0.0, %v10944
      %v10946 = vpop.f32.mrf.mxu0
      %v10947 = vadd.f32 0.0, %v10946
      %10948 = vmatmul.bf16.gmra.mxu0 %v10870
      %v10949 = vpop.f32.mrf.mxu0
      %v10950 = vadd.f32 0.0, %v10949
      %v10951 = vpop.f32.mrf.mxu0
      %v10952 = vadd.f32 0.0, %v10951
      %10953 = vdwg.mxu0
      %v10954 = vadd.f32 %v10865, %v10945
      %v10955 = vadd.f32 %v10866, %v10947
      %v10956 = vadd.f32 %v10867, %v10950
      %v10957 = vadd.f32 %v10868, %v10952
      %v10958 = vpack.c.bf16 %v10746, %v10746
      %v10959 = vld [vmem:[%s6103] sm:$0xf]
      %v10960 = vld [vmem:[%s6103 + $0x4] sm:$0xf]
      %v10961 = vld [vmem:[%s6103 + $0x8] sm:$0xf]
      %v10962 = vld [vmem:[%s6103 + $0xc] sm:$0xf]
      %v10963 = vld [vmem:[%s6103 + $0x10] sm:$0xf]
      %v10964 = vld [vmem:[%s6103 + $0x14] sm:$0xf]
      %v10965 = vld [vmem:[%s6103 + $0x18] sm:$0xf]
      %v10966 = vld [vmem:[%s6103 + $0x1c] sm:$0xf]
      %v10967 = vld [vmem:[%s6103 + $0x20] sm:$0xf]
      %v10968 = vld [vmem:[%s6103 + $0x24] sm:$0xf]
      %v10969 = vld [vmem:[%s6103 + $0x28] sm:$0xf]
      %v10970 = vld [vmem:[%s6103 + $0x2c] sm:$0xf]
      %v10971 = vld [vmem:[%s6103 + $0x30] sm:$0xf]
      %v10972 = vld [vmem:[%s6103 + $0x34] sm:$0xf]
      %v10973 = vld [vmem:[%s6103 + $0x38] sm:$0xf]
      %v10974 = vld [vmem:[%s6103 + $0x3c] sm:$0xf]
      %v10976 = vshrl.u32 %v10869, 16
      %v10978 = vshll.u32 %v10869, 16
      %v10980 = vrot.slane %v10978, 1
      %v10981 = vor.u32 %v10976, %v10980
      %v10983 = vshll.u32 %v10870, 16
      %v10985 = vrot.slane %v10983, 1
      %v10986 = vsel %vm1915, %v10981, %v10985
      %v10987 = vshrl.u32 %v10870, 16
      %v10989 = vor.u32 %v10987, %v10985
      %v10991 = vshll.u32 %v10958, 16
      %v10993 = vrot.slane %v10991, 1
      %v10994 = vsel %vm1915, %v10989, %v10993
      %v11013 = vunpack.c.l.b16 %v10959
      %v11014 = vunpack.c.l.b16 %v10960
      %v11015 = vunpack.c.l.b16 %v10961
      %v11016 = vunpack.c.l.b16 %v10962
      %v11017 = vunpack.c.l.b16 %v10963
      %v11018 = vunpack.c.l.b16 %v10964
      %v11019 = vunpack.c.l.b16 %v10965
      %v11020 = vunpack.c.l.b16 %v10966
      %v11021 = vunpack.c.l.b16 %v10967
      %v11022 = vunpack.c.l.b16 %v10968
      %v11023 = vunpack.c.l.b16 %v10969
      %v11024 = vunpack.c.l.b16 %v10970
      %v11025 = vunpack.c.l.b16 %v10971
      %v11026 = vunpack.c.l.b16 %v10972
      %v11027 = vunpack.c.l.b16 %v10973
      %v11028 = vunpack.c.l.b16 %v10974
      %v11029 = vpack.c.b16 %v11014, %v11013
      %v11030 = vpack.c.b16 %v11016, %v11015
      %v11031 = vpack.c.b16 %v11018, %v11017
      %v11032 = vpack.c.b16 %v11020, %v11019
      %v11033 = vpack.c.b16 %v11022, %v11021
      %v11034 = vpack.c.b16 %v11024, %v11023
      %v11035 = vpack.c.b16 %v11026, %v11025
      %v11036 = vpack.c.b16 %v11028, %v11027
      %11045 = vmatpush.bf16.msra.mxu0 %v11036
      %11046 = vmatpush.bf16.msra.mxu0 %v11035
      %11047 = vmatpush.bf16.msra.mxu0 %v11034
      %11048 = vmatpush.bf16.msra.mxu0 %v11033
      %11049 = vmatpush.bf16.msra.mxu0 %v11032
      %11050 = vmatpush.bf16.msra.mxu0 %v11031
      %11051 = vmatpush.bf16.msra.mxu0 %v11030
      %11052 = vmatpush.bf16.msra.mxu0 %v11029
      %11053 = vmatmul.bf16.gmra.mxu0 %v10986
      %v11054 = vpop.f32.mrf.mxu0
      %v11055 = vadd.f32 0.0, %v11054
      %v11056 = vpop.f32.mrf.mxu0
      %v11057 = vadd.f32 0.0, %v11056
      %11058 = vmatmul.bf16.gmra.mxu0 %v10994
      %v11059 = vpop.f32.mrf.mxu0
      %v11060 = vadd.f32 0.0, %v11059
      %v11061 = vpop.f32.mrf.mxu0
      %v11062 = vadd.f32 0.0, %v11061
      %11063 = vdwg.mxu0
      %v11064 = vadd.f32 %v10954, %v11055
      %v11065 = vadd.f32 %v10955, %v11057
      %v11066 = vadd.f32 %v10956, %v11060
      %v11067 = vadd.f32 %v10957, %v11062
      %v11068 = vmul.f32 %v11064, %v10362
      %v11069 = vmul.f32 %v11065, %v10363
      %v11070 = vmul.f32 %v11066, %v10364
      %v11071 = vmul.f32 %v11067, %v10365
      %v11072 = vadd.f32 %v11068, %v10386
      %v11073 = vadd.f32 %v11069, %v10387
      %v11074 = vadd.f32 %v11070, %v10388
      %v11075 = vadd.f32 %v11071, %v10389
      %11076 = vst [vmem:[#allocation2 + $0x8] sm:$0xff] %v11072
      %11077 = vst [vmem:[#allocation2 + $0x10] sm:$0xff] %v11073
      %11078 = vst [vmem:[#allocation2 + $0x18] sm:$0xff] %v11074
      %11079 = vst [vmem:[#allocation2 + $0x20] sm:$0xff] %v11075
      %v11080 = vld [vmem:[%s7782] ss:$2 sm:$0xff]
      %v11081 = vld [vmem:[%s7784] ss:$2 sm:$0xff]
      %v11082 = vld [vmem:[%s5] sm:$0xff]
      %v11083 = vld [vmem:[%s5 + $0x8] sm:$0xff]
      %v11084 = vld [vmem:[%s5 + $0x10] sm:$0xff]
      %v11085 = vld [vmem:[%s5 + $0x18] sm:$0xff]
      %v11086 = vld [vmem:[%s5 + $0x20] sm:$0xff]
      %v11087 = vld [vmem:[%s5 + $0x28] sm:$0xff]
      %v11088 = vld [vmem:[%s5 + $0x30] sm:$0xff]
      %v11089 = vld [vmem:[%s5 + $0x38] sm:$0xff]
      %v11090 = vld [vmem:[%s5 + $0x40] sm:$0xff]
      %v11091 = vld [vmem:[%s5 + $0x48] sm:$0xff]
      %v11092 = vld [vmem:[%s5 + $0x50] sm:$0xff]
      %v11093 = vld [vmem:[%s5 + $0x58] sm:$0xff]
      %v11094 = vld [vmem:[%s5 + $0x60] sm:$0xff]
      %v11095 = vld [vmem:[%s5 + $0x68] sm:$0xff]
      %v11096 = vld [vmem:[%s5 + $0x70] sm:$0xff]
      %v11097 = vld [vmem:[%s5 + $0x78] sm:$0xff]
      %v11098 = vld [vmem:[%s6] sm:$0x1]
      %v11100 = vperm.slane %v11098, 0
      %11102 = vmatpush.msra.mxu0 %v11097
      %11103 = vmatpush.msra.mxu0 %v11096
      %11104 = vmatpush.msra.mxu0 %v11095
      %11105 = vmatpush.msra.mxu0 %v11094
      %11106 = vmatpush.msra.mxu0 %v11093
      %11107 = vmatpush.msra.mxu0 %v11092
      %11108 = vmatpush.msra.mxu0 %v11091
      %11109 = vmatpush.msra.mxu0 %v11090
      %11110 = vmatpush.msra.mxu0 %v11089
      %11111 = vmatpush.msra.mxu0 %v11088
      %11112 = vmatpush.msra.mxu0 %v11087
      %11113 = vmatpush.msra.mxu0 %v11086
      %11114 = vmatpush.msra.mxu0 %v11085
      %11115 = vmatpush.msra.mxu0 %v11084
      %11116 = vmatpush.msra.mxu0 %v11083
      %11117 = vmatpush.msra.mxu0 %v11082
      %11118 = vmatmul.f32.gmra.mxu0 %v11080
      %v11119 = vpop.f32.mrf.mxu0
      %v11120 = vadd.f32 %v11100, %v11119
      %11121 = vmatmul.f32.gmra.mxu0 %v11081
      %v11122 = vpop.f32.mrf.mxu0
      %v11123 = vadd.f32 %v11100, %v11122
      %11124 = vdwg.mxu0
      %11125 = vst [vmem:[%s283] sm:$0xff] %v11120
      %11126 = vst [vmem:[%s283 + $0x8] sm:$0xff] %v11123
      %s11127 = smul.u32 2, %s18
      %p11128 = scmp.lt.s32.totalorder %s11127, 7
      %s11129 = scalar_select %p11128, %s11127, 7
      %s11130 = smul.addr %s11129, 8
      %s11131 = scalar_lea.vmem %s7, %s11130
      // Predicated region
      $region49: #{jeffbert_forward.1} parent=47 // pred_check
        %p11132 = pneg %p188
      $region50: #{jeffbert_forward.1} parent=47 // pred_check_branch
        %11134 = sbr.rel (%p11132) target = $region52
      $region51: #{jeffbert_forward.1} parent=47 // pred_region
        %s11135 = smul.u32 2, %s18
      $region52: #{jeffbert_forward.1} parent=47 // pred_fallthru
        _
    $region48: #{jeffbert_forward.1} parent=5 // pred_fallthru
      _
    %p11136 = scmp.le.s32.totalorder 2, %s13
    // Predicated region
    $region53: #{jeffbert_forward.1} parent=5 // pred_check
      %p11137 = pneg %p11136
    $region54: #{jeffbert_forward.1} parent=5 // pred_check_branch
      %11139 = sbr.rel (%p11137) target = $region56
    $region55: #{jeffbert_forward.1} parent=5 // pred_region
      %s11140 = ssub.s32 %s13, 2
      // Predicated region
      $region57: #{jeffbert_forward.1} parent=55 // pred_check
        %p11141 = pneg %p194
      $region58: #{jeffbert_forward.1} parent=55 // pred_check_branch
        %11143 = sbr.rel (%p11141) target = $region60
      $region59: #{jeffbert_forward.1} parent=55 // pred_region
        %s11144 = smul.u32 2, %s19
        %p11145 = scmp.lt.s32.totalorder %s11144, 7
        %s11146 = scalar_select %p11145, %s11144, 7
        %s11147 = smul.addr %s11146, 8
        %s11148 = scalar_lea.vmem %s7, %s11147
      $region60: #{jeffbert_forward.1} parent=55 // pred_fallthru
        _
    $region56: #{jeffbert_forward.1} parent=5 // pred_fallthru
      _
  $region6: #{jeffbert_forward.1} parent=0 // loop_footer
    %s17 = sadd.s32 1, %s13
  $region7: #{jeffbert_forward.1} parent=0 // loop_footer_branch
    %12 = sbr.rel target = $region3
  $region8: #{jeffbert_forward.1} parent=0 // loop_exit
    _

</llo_original>
